<compile_context>
chip_gen: v6e
topology: v6e:2x2x1
jax: 0.10.0
libtpu: 0.0.40
codegen_flags: <defaults>
</compile_context>

<pallas_src>
import functools
import math

import jax
import jax.numpy as jnp
from jax import lax
from jax.experimental import pallas as pl
from jax.experimental.pallas import tpu as pltpu


def _ressno_kernel(z_ref, wiT_ref, biT_ref, whT_ref, bhT_ref, woT_ref,
                   boT_ref, woHC_ref, wio_ref, zout_ref, obj_ref, *,
                   n_layers, depth, n_exact_terms, var):
    c_dim, tile_n = z_ref.shape

    def layer_body(l, carry):
        zT, ldj = carry                                   # (C, T) f32, f32[]

        wiT = wiT_ref[l]                                  # (H, C)      f32
        biT = biT_ref[l]                                  # (H, 1)      f32
        whT = whT_ref[l]                                  # (nh, H, H)  bf16
        bhT = bhT_ref[l]                                  # (nh, H, 1)  f32
        woT = woT_ref[l]                                  # (C, H)      bf16
        boT = boT_ref[l]                                  # (C, 1)      f32
        woHC = woHC_ref[l]                                # (H, C)      f32
        wio = wio_ref[l]                                  # (H, H)      bf16

        # ---- residual branch g(z): point-wise tanh MLP (transposed) --------
        # (H, C) @ (C, T) with K = C tiny: short VPU FMA chain (avoids a
        # nearly empty MXU pass); everything downstream uses the MXU in bf16.
        pre = wiT[:, 0:1] * zT[0:1, :]
        for cc in range(1, c_dim):
            pre = pre + wiT[:, cc:cc + 1] * zT[cc:cc + 1, :]
        h = jnp.tanh(pre + biT)                           # (H, T) f32
        s_list = [1.0 - h * h]                            # tanh' per level
        for d in range(depth - 1):
            h = jnp.tanh(jnp.dot(whT[d], h.astype(jnp.bfloat16),
                                 preferred_element_type=jnp.float32) + bhT[d])
            s_list.append(1.0 - h * h)
        g = jnp.dot(woT, h.astype(jnp.bfloat16),
                    preferred_element_type=jnp.float32) + boT   # (C, T) f32

        # ---- log|det(I + J_g)| via exact-trace truncated power series ------
        # C independent per-channel chains u_c : (H, T); the shared per-pixel
        # scale s_d multiplies each chain directly (no lane tiling, no
        # concats).  Level-major loops -> consecutive matmuls share weights.
        def hidden_chain(us):
            for d in range(depth - 1):
                sd = s_list[d + 1]
                us = [jnp.dot(whT[d], u.astype(jnp.bfloat16),
                              preferred_element_type=jnp.float32) * sd
                      for u in us]
            return us

        def trace_of(us):
            # tr(J^k) = sum_c  w_out[:, c] . (lane-sum of u_c)
            t = jnp.zeros((), jnp.float32)
            for cc in range(c_dim):
                r = jnp.sum(us[cc], axis=1, keepdims=True)    # (H, 1) XLU
                t = t + jnp.sum(woHC[:, cc:cc + 1] * r)
            return t

        # k = 1: the leading one-hot push collapses to broadcasting the
        # columns of W_in^T -- no matmul needed for the first JVP step.
        us = [wiT[:, cc:cc + 1] * s_list[0] for cc in range(c_dim)]
        us = hidden_chain(us)
        acc = trace_of(us)

        # k >= 2: lead-in via W_io = W_in^T W_out^T, one full MXU matmul per
        # chain, followed by the shared hidden chain.
        for k in range(2, n_exact_terms + 1):
            s0 = s_list[0]
            us = [jnp.dot(wio, u.astype(jnp.bfloat16),
                          preferred_element_type=jnp.float32) * s0
                  for u in us]
            us = hidden_chain(us)
            coef = (1.0 if k % 2 == 1 else -1.0) / float(k)
            acc = acc + jnp.float32(coef) * trace_of(us)

        return zT + g, ldj + acc                          # invertible step

    zT0 = z_ref[...].astype(jnp.float32)
    zT, ldj = lax.fori_loop(0, n_layers, layer_body,
                            (zT0, jnp.zeros((), jnp.float32)))

    zout_ref[...] = zT.astype(zout_ref.dtype)

    # ---- base-distribution (diagonal Normal(0, sqrt(var))) log-prob ---------
    nct = c_dim * tile_n
    log_norm = 0.5 * math.log(2.0 * math.pi * var)
    logp = -0.5 * jnp.sum(zT * zT) / var - log_norm * float(nct)

    # Per-grid-step partial (lane-dense block); reduced outside the kernel so
    # the grid axis stays "parallel" (feeds both v7x TensorCores).
    obj_ref[...] = jnp.zeros_like(obj_ref) + (logp + ldj)


def _spectral_normalize(w, coeff, n_iter):
    """Power-iteration spectral norm, scale so that sigma(W) <= coeff."""
    u = jnp.ones((w.shape[0],), jnp.float32) / jnp.sqrt(float(w.shape[0]))
    v = jnp.ones((w.shape[1],), jnp.float32) / jnp.sqrt(float(w.shape[1]))
    for _ in range(n_iter):
        v = w.T @ u
        v = v / (jnp.linalg.norm(v) + 1e-12)
        u = w @ v
        u = u / (jnp.linalg.norm(u) + 1e-12)
    sigma = u @ (w @ v)
    scale = jnp.minimum(1.0, coeff / (sigma + 1e-12))
    return w * scale


def init_ressno_params(key, n_layers, dim_c, dim_hidden, depth, coeff,
                       n_spectral_iter):
    keys = jax.random.split(key, n_layers * (depth + 1))
    w_in, b_in, w_hid, b_hid, w_out, b_out = [], [], [], [], [], []
    n_hid = max(depth - 1, 1)
    ki = 0
    for _ in range(n_layers):
        w = jax.random.normal(keys[ki], (dim_c, dim_hidden), jnp.float32)
        w = w / jnp.sqrt(float(dim_c)); ki += 1
        w_in.append(_spectral_normalize(w, coeff, n_spectral_iter))
        b_in.append(jnp.zeros((1, dim_hidden), jnp.float32))

        hw, hb = [], []
        for d in range(n_hid):
            if d < depth - 1:
                w = jax.random.normal(keys[ki], (dim_hidden, dim_hidden),
                                      jnp.float32)
                w = w / jnp.sqrt(float(dim_hidden)); ki += 1
                w = _spectral_normalize(w, coeff, n_spectral_iter)
            else:
                w = jnp.zeros((dim_hidden, dim_hidden), jnp.float32)
            hw.append(w)
            hb.append(jnp.zeros((1, dim_hidden), jnp.float32))
        w_hid.append(jnp.stack(hw))
        b_hid.append(jnp.stack(hb))

        w = jax.random.normal(keys[ki], (dim_hidden, dim_c), jnp.float32)
        w = w / jnp.sqrt(float(dim_hidden)); ki += 1
        w_out.append(_spectral_normalize(w, coeff, n_spectral_iter))
        b_out.append(jnp.zeros((1, dim_c), jnp.float32))

    return dict(
        w_in=jnp.stack(w_in), b_in=jnp.stack(b_in),
        w_hid=jnp.stack(w_hid), b_hid=jnp.stack(b_hid),
        w_out=jnp.stack(w_out), b_out=jnp.stack(b_out))


def _generation_defaults():
    """(target tile_n, vmem_limit_bytes) tuned per TPU generation."""
    vmem_cap = 64 * 1024 * 1024
    try:
        info = pltpu.get_tpu_info()
        vmem_cap = int(getattr(info, "vmem_capacity_bytes", vmem_cap))
    except Exception:
        pass
    if vmem_cap >= 100 * 1024 * 1024:      # v5e / v6e: 128 MiB physical VMEM
        return 1024, 64 * 1024 * 1024
    return 512, 40 * 1024 * 1024           # v7x: 64 MiB physical VMEM


def _pick_tile_n(n_rows, target):
    """Largest 128-multiple divisor of n_rows <= target, keeping >=2 steps."""
    best = None
    t = 128
    while t <= min(target, n_rows):
        if n_rows % t == 0 and n_rows // t >= 2:
            best = t
        t += 128
    if best is None:
        best = n_rows                      # single grid step
    return best


def ressno_forward(z_nchw, params, *, depth, n_exact_terms, var, tile_n=None):
    """Returns (-log_likelihood, z_latent) matching ResSNO.forward semantics."""
    assert n_exact_terms >= 1
    b, c, h, w = z_nchw.shape
    n_rows = b * h * w
    assert n_rows % 128 == 0, "flattened pixel count must be a lane multiple"

    target_tile, vmem_limit = _generation_defaults()
    if tile_n is None:
        tile_n = _pick_tile_n(n_rows, target_tile)
    tile_n = min(tile_n, n_rows)
    assert tile_n % 128 == 0, "lane tile must be a multiple of 128"
    assert n_rows % tile_n == 0, "demo shapes chosen so pixels tile evenly"

    # Channels on the sublane axis, flattened pixels on the lane axis.
    zT = jnp.transpose(z_nchw, (1, 0, 2, 3)).reshape(c, n_rows)
    zT = zT.astype(jnp.float32)

    n_layers = params["w_in"].shape[0]
    dim_hidden = params["w_in"].shape[2]
    n_hid = params["w_hid"].shape[1]

    # Transposed weights so the kernel's matmuls are (feature, pixel)-major.
    wiT = jnp.transpose(params["w_in"], (0, 2, 1)).astype(jnp.float32)     # (L,H,C)
    biT = jnp.transpose(params["b_in"], (0, 2, 1)).astype(jnp.float32)     # (L,H,1)
    whT = jnp.transpose(params["w_hid"], (0, 1, 3, 2))                     # (L,nh,H,H)
    bhT = jnp.transpose(params["b_hid"], (0, 1, 3, 2)).astype(jnp.float32)
    woT = jnp.transpose(params["w_out"], (0, 2, 1)).astype(jnp.float32)    # (L,C,H)
    boT = jnp.transpose(params["b_out"], (0, 2, 1)).astype(jnp.float32)    # (L,C,1)
    woHC = params["w_out"].astype(jnp.float32)                             # (L,H,C)
    # Lead-in for power-series terms k >= 2: W_io = W_in^T W_out^T  (H, H).
    wio = jnp.einsum("lhc,lcm->lhm", wiT, woT)

    # Matmul operands travel in bf16 (MXU native); accumulation stays f32.
    whT_bf = whT.astype(jnp.bfloat16)
    woT_bf = woT.astype(jnp.bfloat16)
    wio_bf = wio.astype(jnp.bfloat16)

    n_tiles = n_rows // tile_n
    kernel = functools.partial(
        _ressno_kernel, n_layers=n_layers, depth=depth,
        n_exact_terms=n_exact_terms, var=var)

    zT_out, partials = pl.pallas_call(
        kernel,
        out_shape=(jax.ShapeDtypeStruct((c, n_rows), jnp.float32),
                   jax.ShapeDtypeStruct((n_tiles, 8, 128), jnp.float32)),
        grid_spec=pltpu.PrefetchScalarGridSpec(
            num_scalar_prefetch=0,
            grid=(n_tiles,),
            in_specs=[
                pl.BlockSpec((c, tile_n), lambda i: (0, i)),
                pl.BlockSpec((n_layers, dim_hidden, c), lambda i: (0, 0, 0)),
                pl.BlockSpec((n_layers, dim_hidden, 1), lambda i: (0, 0, 0)),
                pl.BlockSpec((n_layers, n_hid, dim_hidden, dim_hidden),
                             lambda i: (0, 0, 0, 0)),
                pl.BlockSpec((n_layers, n_hid, dim_hidden, 1),
                             lambda i: (0, 0, 0, 0)),
                pl.BlockSpec((n_layers, c, dim_hidden), lambda i: (0, 0, 0)),
                pl.BlockSpec((n_layers, c, 1), lambda i: (0, 0, 0)),
                pl.BlockSpec((n_layers, dim_hidden, c), lambda i: (0, 0, 0)),
                pl.BlockSpec((n_layers, dim_hidden, dim_hidden),
                             lambda i: (0, 0, 0)),
            ],
            out_specs=[
                pl.BlockSpec((c, tile_n), lambda i: (0, i)),
                pl.BlockSpec((1, 8, 128), lambda i: (i, 0, 0)),
            ],
        ),
        compiler_params=pltpu.CompilerParams(
            dimension_semantics=("parallel",),     # per-step disjoint outputs
            vmem_limit_bytes=vmem_limit),
    )(zT, wiT, biT, whT_bf, bhT, woT_bf, boT, woHC, wio_bf)

    log_likelihood = jnp.sum(partials[:, 0, 0])
    z_latent = jnp.transpose(zT_out.reshape(c, b, h, w), (1, 0, 2, 3))
    # forward(z) = -_get_log_likelihood(z, base_shape)
    return -log_likelihood, z_latent


if __name__ == "__main__":
    # Small hyper-parameters consistent with the module's __init__ signature.
    n_layers = 2
    dim_hidden = 128          # multiple of 128: lane/MXU-aligned hidden width
    depth = 2
    k_max = 8                 # (Fourier-mode params, see TODO above)
    n_fourier_coeffs = 8
    coeff = 0.9
    n_exact_terms = 3
    n_spectral_iter = 5
    var = 1.0                 # BaseDistManager(type='normal', var=1.0)

    key = jax.random.PRNGKey(0)
    k_param, k_data = jax.random.split(key)

    B, C, H, W = 2, 4, 16, 16
    z = jax.random.normal(k_data, (B, C, H, W), jnp.float32)

    params = init_ressno_params(k_param, n_layers, C, dim_hidden, depth,
                                coeff, n_spectral_iter)

    # tile_n=256 -> 2 grid steps on the 512 flattened pixels (exercises the
    # per-step partial-sum reduction and the parallel grid axis).
    nll, z_latent = ressno_forward(z, params, depth=depth,
                                   n_exact_terms=n_exact_terms, var=var,
                                   tile_n=256)
    jax.block_until_ready((nll, z_latent))
    assert bool(jnp.isfinite(nll))
    print("KERNEL_OK")
</pallas_src>

<mosaic_0001>
module attributes {stable_mosaic.version = 11 : i64} {
  func.func @_ressno_kernel(%arg0: i32, %arg1: memref<4x256xf32, #tpu.memory_space<vmem>>, %arg2: memref<2x128x4xf32, #tpu.memory_space<vmem>>, %arg3: memref<2x128x1xf32, #tpu.memory_space<vmem>>, %arg4: memref<2x1x128x128xbf16, #tpu.memory_space<vmem>>, %arg5: memref<2x1x128x1xf32, #tpu.memory_space<vmem>>, %arg6: memref<2x4x128xbf16, #tpu.memory_space<vmem>>, %arg7: memref<2x4x1xf32, #tpu.memory_space<vmem>>, %arg8: memref<2x128x4xf32, #tpu.memory_space<vmem>>, %arg9: memref<2x128x128xbf16, #tpu.memory_space<vmem>>, %arg10: memref<4x256xf32, #tpu.memory_space<vmem>>, %arg11: memref<1x8x128xf32, #tpu.memory_space<vmem>>) attributes {dimension_semantics = [#tpu.dimension_semantics<parallel>], iteration_bounds = array<i64: 2>, scalar_prefetch = 0 : i64, scratch_operands = 0 : i64, tpu.core_type = #tpu.core_type<tc>, window_params = [{transform_indices = @transform_0, window_bounds = array<i64: 4, 256>}, {pipeline_mode = #tpu.pipeline_mode<synchronous>, transform_indices = @transform_1, window_bounds = array<i64: 2, 128, 4>}, {pipeline_mode = #tpu.pipeline_mode<synchronous>, transform_indices = @transform_2, window_bounds = array<i64: 2, 128, 1>}, {pipeline_mode = #tpu.pipeline_mode<synchronous>, transform_indices = @transform_3, window_bounds = array<i64: 2, 1, 128, 128>}, {pipeline_mode = #tpu.pipeline_mode<synchronous>, transform_indices = @transform_4, window_bounds = array<i64: 2, 1, 128, 1>}, {pipeline_mode = #tpu.pipeline_mode<synchronous>, transform_indices = @transform_5, window_bounds = array<i64: 2, 4, 128>}, {pipeline_mode = #tpu.pipeline_mode<synchronous>, transform_indices = @transform_6, window_bounds = array<i64: 2, 4, 1>}, {pipeline_mode = #tpu.pipeline_mode<synchronous>, transform_indices = @transform_7, window_bounds = array<i64: 2, 128, 4>}, {pipeline_mode = #tpu.pipeline_mode<synchronous>, transform_indices = @transform_8, window_bounds = array<i64: 2, 128, 128>}, {transform_indices = @transform_9, window_bounds = array<i64: 4, 256>}, {transform_indices = @transform_10, window_bounds = array<i64: 1, 8, 128>}]} {
    %c0 = arith.constant 0 : index
    %c0_0 = arith.constant 0 : index
    %0 = vector.load %arg1[%c0, %c0_0] : memref<4x256xf32, #tpu.memory_space<vmem>>, vector<4x256xf32>
    %cst = arith.constant 0.000000e+00 : f32
    %c0_i32 = arith.constant 0 : i32
    %c2_i32 = arith.constant 2 : i32
    %1 = arith.addi %c0_i32, %c2_i32 : i32
    %c1_i32 = arith.constant 1 : i32
    %2:2 = scf.for %arg12 = %c0_i32 to %1 step %c1_i32 iter_args(%arg13 = %0, %arg14 = %cst) -> (vector<4x256xf32>, f32)  : i32 {
      %17 = arith.index_cast %arg12 : i32 to index
      %c0_12 = arith.constant 0 : index
      %c0_13 = arith.constant 0 : index
      %18 = vector.load %arg2[%17, %c0_12, %c0_13] : memref<2x128x4xf32, #tpu.memory_space<vmem>>, vector<1x128x4xf32>
      %19 = vector.shape_cast %18 : vector<1x128x4xf32> to vector<128x4xf32>
      %20 = arith.index_cast %arg12 : i32 to index
      %c0_14 = arith.constant 0 : index
      %c0_15 = arith.constant 0 : index
      %21 = vector.load %arg3[%20, %c0_14, %c0_15] : memref<2x128x1xf32, #tpu.memory_space<vmem>>, vector<1x128x1xf32>
      %22 = vector.shape_cast %21 : vector<1x128x1xf32> to vector<128x1xf32>
      %23 = arith.index_cast %arg12 : i32 to index
      %c0_16 = arith.constant 0 : index
      %c0_17 = arith.constant 0 : index
      %c0_18 = arith.constant 0 : index
      %24 = vector.load %arg4[%23, %c0_16, %c0_17, %c0_18] : memref<2x1x128x128xbf16, #tpu.memory_space<vmem>>, vector<1x1x128x128xbf16>
      %25 = vector.shape_cast %24 : vector<1x1x128x128xbf16> to vector<1x128x128xbf16>
      %26 = arith.index_cast %arg12 : i32 to index
      %c0_19 = arith.constant 0 : index
      %c0_20 = arith.constant 0 : index
      %c0_21 = arith.constant 0 : index
      %27 = vector.load %arg5[%26, %c0_19, %c0_20, %c0_21] : memref<2x1x128x1xf32, #tpu.memory_space<vmem>>, vector<1x1x128x1xf32>
      %28 = vector.shape_cast %27 : vector<1x1x128x1xf32> to vector<1x128x1xf32>
      %29 = arith.index_cast %arg12 : i32 to index
      %c0_22 = arith.constant 0 : index
      %c0_23 = arith.constant 0 : index
      %30 = vector.load %arg6[%29, %c0_22, %c0_23] : memref<2x4x128xbf16, #tpu.memory_space<vmem>>, vector<1x4x128xbf16>
      %31 = vector.shape_cast %30 : vector<1x4x128xbf16> to vector<4x128xbf16>
      %32 = arith.index_cast %arg12 : i32 to index
      %c0_24 = arith.constant 0 : index
      %c0_25 = arith.constant 0 : index
      %33 = vector.load %arg7[%32, %c0_24, %c0_25] : memref<2x4x1xf32, #tpu.memory_space<vmem>>, vector<1x4x1xf32>
      %34 = vector.shape_cast %33 : vector<1x4x1xf32> to vector<4x1xf32>
      %35 = arith.index_cast %arg12 : i32 to index
      %c0_26 = arith.constant 0 : index
      %c0_27 = arith.constant 0 : index
      %36 = vector.load %arg8[%35, %c0_26, %c0_27] : memref<2x128x4xf32, #tpu.memory_space<vmem>>, vector<1x128x4xf32>
      %37 = vector.shape_cast %36 : vector<1x128x4xf32> to vector<128x4xf32>
      %38 = arith.index_cast %arg12 : i32 to index
      %c0_28 = arith.constant 0 : index
      %c0_29 = arith.constant 0 : index
      %39 = vector.load %arg9[%38, %c0_28, %c0_29] : memref<2x128x128xbf16, #tpu.memory_space<vmem>>, vector<1x128x128xbf16>
      %40 = vector.shape_cast %39 : vector<1x128x128xbf16> to vector<128x128xbf16>
      %41 = vector.extract_strided_slice %19 {offsets = [0, 0], sizes = [128, 1], strides = [1, 1]} : vector<128x4xf32> to vector<128x1xf32>
      %42 = vector.extract_strided_slice %arg13 {offsets = [0, 0], sizes = [1, 256], strides = [1, 1]} : vector<4x256xf32> to vector<1x256xf32>
      %43 = vector.broadcast %41 : vector<128x1xf32> to vector<128x256xf32>
      %44 = vector.broadcast %42 : vector<1x256xf32> to vector<128x256xf32>
      %45 = arith.mulf %43, %44 : vector<128x256xf32>
      %46 = vector.extract_strided_slice %19 {offsets = [0, 1], sizes = [128, 1], strides = [1, 1]} : vector<128x4xf32> to vector<128x1xf32>
      %47 = vector.extract_strided_slice %arg13 {offsets = [1, 0], sizes = [1, 256], strides = [1, 1]} : vector<4x256xf32> to vector<1x256xf32>
      %48 = vector.broadcast %46 : vector<128x1xf32> to vector<128x256xf32>
      %49 = vector.broadcast %47 : vector<1x256xf32> to vector<128x256xf32>
      %50 = arith.mulf %48, %49 : vector<128x256xf32>
      %51 = arith.addf %45, %50 : vector<128x256xf32>
      %52 = vector.extract_strided_slice %19 {offsets = [0, 2], sizes = [128, 1], strides = [1, 1]} : vector<128x4xf32> to vector<128x1xf32>
      %53 = vector.extract_strided_slice %arg13 {offsets = [2, 0], sizes = [1, 256], strides = [1, 1]} : vector<4x256xf32> to vector<1x256xf32>
      %54 = vector.broadcast %52 : vector<128x1xf32> to vector<128x256xf32>
      %55 = vector.broadcast %53 : vector<1x256xf32> to vector<128x256xf32>
      %56 = arith.mulf %54, %55 : vector<128x256xf32>
      %57 = arith.addf %51, %56 : vector<128x256xf32>
      %58 = vector.extract_strided_slice %19 {offsets = [0, 3], sizes = [128, 1], strides = [1, 1]} : vector<128x4xf32> to vector<128x1xf32>
      %59 = vector.extract_strided_slice %arg13 {offsets = [3, 0], sizes = [1, 256], strides = [1, 1]} : vector<4x256xf32> to vector<1x256xf32>
      %60 = vector.broadcast %58 : vector<128x1xf32> to vector<128x256xf32>
      %61 = vector.broadcast %59 : vector<1x256xf32> to vector<128x256xf32>
      %62 = arith.mulf %60, %61 : vector<128x256xf32>
      %63 = arith.addf %57, %62 : vector<128x256xf32>
      %64 = vector.broadcast %22 : vector<128x1xf32> to vector<128x256xf32>
      %65 = arith.addf %63, %64 : vector<128x256xf32>
      %66 = math.tanh %65 : vector<128x256xf32>
      %67 = arith.mulf %66, %66 : vector<128x256xf32>
      %cst_30 = arith.constant 1.000000e+00 : f32
      %68 = vector.broadcast %cst_30 : f32 to vector<128x256xf32>
      %69 = arith.subf %68, %67 : vector<128x256xf32>
      %70 = vector.shape_cast %25 : vector<1x128x128xbf16> to vector<128x128xbf16>
      %71 = arith.truncf %66 : vector<128x256xf32> to vector<128x256xbf16>
      %cst_31 = arith.constant dense<0.000000e+00> : vector<128x256xf32>
      %72 = tpu.matmul %70, %71, %cst_31 {dimension_numbers = #tpu.dot_dimension_numbers<[1], [0], [0], [1], [0, 0, 1, 1], [], []>} : vector<128x128xbf16>, vector<128x256xbf16>, vector<128x256xf32> -> vector<128x256xf32>
      %73 = vector.shape_cast %28 : vector<1x128x1xf32> to vector<128x1xf32>
      %74 = vector.broadcast %73 : vector<128x1xf32> to vector<128x256xf32>
      %75 = arith.addf %72, %74 : vector<128x256xf32>
      %76 = math.tanh %75 : vector<128x256xf32>
      %77 = arith.mulf %76, %76 : vector<128x256xf32>
      %cst_32 = arith.constant 1.000000e+00 : f32
      %78 = vector.broadcast %cst_32 : f32 to vector<128x256xf32>
      %79 = arith.subf %78, %77 : vector<128x256xf32>
      %80 = arith.truncf %76 : vector<128x256xf32> to vector<128x256xbf16>
      %cst_33 = arith.constant dense<0.000000e+00> : vector<4x256xf32>
      %81 = tpu.matmul %31, %80, %cst_33 {dimension_numbers = #tpu.dot_dimension_numbers<[1], [0], [0], [1], [0, 0, 1, 1], [], []>} : vector<4x128xbf16>, vector<128x256xbf16>, vector<4x256xf32> -> vector<4x256xf32>
      %82 = vector.broadcast %34 : vector<4x1xf32> to vector<4x256xf32>
      %83 = arith.addf %81, %82 : vector<4x256xf32>
      %84 = vector.extract_strided_slice %19 {offsets = [0, 0], sizes = [128, 1], strides = [1, 1]} : vector<128x4xf32> to vector<128x1xf32>
      %85 = vector.broadcast %84 : vector<128x1xf32> to vector<128x256xf32>
      %86 = arith.mulf %85, %69 : vector<128x256xf32>
      %87 = vector.extract_strided_slice %19 {offsets = [0, 1], sizes = [128, 1], strides = [1, 1]} : vector<128x4xf32> to vector<128x1xf32>
      %88 = vector.broadcast %87 : vector<128x1xf32> to vector<128x256xf32>
      %89 = arith.mulf %88, %69 : vector<128x256xf32>
      %90 = vector.extract_strided_slice %19 {offsets = [0, 2], sizes = [128, 1], strides = [1, 1]} : vector<128x4xf32> to vector<128x1xf32>
      %91 = vector.broadcast %90 : vector<128x1xf32> to vector<128x256xf32>
      %92 = arith.mulf %91, %69 : vector<128x256xf32>
      %93 = vector.extract_strided_slice %19 {offsets = [0, 3], sizes = [128, 1], strides = [1, 1]} : vector<128x4xf32> to vector<128x1xf32>
      %94 = vector.broadcast %93 : vector<128x1xf32> to vector<128x256xf32>
      %95 = arith.mulf %94, %69 : vector<128x256xf32>
      %96 = vector.shape_cast %25 : vector<1x128x128xbf16> to vector<128x128xbf16>
      %97 = arith.truncf %86 : vector<128x256xf32> to vector<128x256xbf16>
      %cst_34 = arith.constant dense<0.000000e+00> : vector<128x256xf32>
      %98 = tpu.matmul %96, %97, %cst_34 {dimension_numbers = #tpu.dot_dimension_numbers<[1], [0], [0], [1], [0, 0, 1, 1], [], []>} : vector<128x128xbf16>, vector<128x256xbf16>, vector<128x256xf32> -> vector<128x256xf32>
      %99 = arith.mulf %98, %79 : vector<128x256xf32>
      %100 = vector.shape_cast %25 : vector<1x128x128xbf16> to vector<128x128xbf16>
      %101 = arith.truncf %89 : vector<128x256xf32> to vector<128x256xbf16>
      %cst_35 = arith.constant dense<0.000000e+00> : vector<128x256xf32>
      %102 = tpu.matmul %100, %101, %cst_35 {dimension_numbers = #tpu.dot_dimension_numbers<[1], [0], [0], [1], [0, 0, 1, 1], [], []>} : vector<128x128xbf16>, vector<128x256xbf16>, vector<128x256xf32> -> vector<128x256xf32>
      %103 = arith.mulf %102, %79 : vector<128x256xf32>
      %104 = vector.shape_cast %25 : vector<1x128x128xbf16> to vector<128x128xbf16>
      %105 = arith.truncf %92 : vector<128x256xf32> to vector<128x256xbf16>
      %cst_36 = arith.constant dense<0.000000e+00> : vector<128x256xf32>
      %106 = tpu.matmul %104, %105, %cst_36 {dimension_numbers = #tpu.dot_dimension_numbers<[1], [0], [0], [1], [0, 0, 1, 1], [], []>} : vector<128x128xbf16>, vector<128x256xbf16>, vector<128x256xf32> -> vector<128x256xf32>
      %107 = arith.mulf %106, %79 : vector<128x256xf32>
      %108 = vector.shape_cast %25 : vector<1x128x128xbf16> to vector<128x128xbf16>
      %109 = arith.truncf %95 : vector<128x256xf32> to vector<128x256xbf16>
      %cst_37 = arith.constant dense<0.000000e+00> : vector<128x256xf32>
      %110 = tpu.matmul %108, %109, %cst_37 {dimension_numbers = #tpu.dot_dimension_numbers<[1], [0], [0], [1], [0, 0, 1, 1], [], []>} : vector<128x128xbf16>, vector<128x256xbf16>, vector<128x256xf32> -> vector<128x256xf32>
      %111 = arith.mulf %110, %79 : vector<128x256xf32>
      %cst_38 = arith.constant dense<0.000000e+00> : vector<128xf32>
      %112 = vector.multi_reduction <add>, %99, %cst_38 [1] : vector<128x256xf32> to vector<128xf32>
      %113 = vector.shape_cast %112 : vector<128xf32> to vector<128x1xf32>
      %114 = vector.extract_strided_slice %37 {offsets = [0, 0], sizes = [128, 1], strides = [1, 1]} : vector<128x4xf32> to vector<128x1xf32>
      %115 = arith.mulf %114, %113 : vector<128x1xf32>
      %116 = vector.shape_cast %115 : vector<128x1xf32> to vector<1x128x1xf32>
      %cst_39 = arith.constant dense<0.000000e+00> : vector<1xf32>
      %117 = vector.multi_reduction <add>, %116, %cst_39 [1, 2] : vector<1x128x1xf32> to vector<1xf32>
      %118 = vector.shape_cast %117 : vector<1xf32> to vector<1x1x1xf32>
      %119 = vector.extract %118[0, 0, 0] : f32 from vector<1x1x1xf32>
      %cst_40 = arith.constant 0.000000e+00 : f32
      %120 = arith.addf %cst_40, %119 : f32
      %cst_41 = arith.constant dense<0.000000e+00> : vector<128xf32>
      %121 = vector.multi_reduction <add>, %103, %cst_41 [1] : vector<128x256xf32> to vector<128xf32>
      %122 = vector.shape_cast %121 : vector<128xf32> to vector<128x1xf32>
      %123 = vector.extract_strided_slice %37 {offsets = [0, 1], sizes = [128, 1], strides = [1, 1]} : vector<128x4xf32> to vector<128x1xf32>
      %124 = arith.mulf %123, %122 : vector<128x1xf32>
      %125 = vector.shape_cast %124 : vector<128x1xf32> to vector<1x128x1xf32>
      %cst_42 = arith.constant dense<0.000000e+00> : vector<1xf32>
      %126 = vector.multi_reduction <add>, %125, %cst_42 [1, 2] : vector<1x128x1xf32> to vector<1xf32>
      %127 = vector.shape_cast %126 : vector<1xf32> to vector<1x1x1xf32>
      %128 = vector.extract %127[0, 0, 0] : f32 from vector<1x1x1xf32>
      %129 = arith.addf %120, %128 : f32
      %cst_43 = arith.constant dense<0.000000e+00> : vector<128xf32>
      %130 = vector.multi_reduction <add>, %107, %cst_43 [1] : vector<128x256xf32> to vector<128xf32>
      %131 = vector.shape_cast %130 : vector<128xf32> to vector<128x1xf32>
      %132 = vector.extract_strided_slice %37 {offsets = [0, 2], sizes = [128, 1], strides = [1, 1]} : vector<128x4xf32> to vector<128x1xf32>
      %133 = arith.mulf %132, %131 : vector<128x1xf32>
      %134 = vector.shape_cast %133 : vector<128x1xf32> to vector<1x128x1xf32>
      %cst_44 = arith.constant dense<0.000000e+00> : vector<1xf32>
      %135 = vector.multi_reduction <add>, %134, %cst_44 [1, 2] : vector<1x128x1xf32> to vector<1xf32>
      %136 = vector.shape_cast %135 : vector<1xf32> to vector<1x1x1xf32>
      %137 = vector.extract %136[0, 0, 0] : f32 from vector<1x1x1xf32>
      %138 = arith.addf %129, %137 : f32
      %cst_45 = arith.constant dense<0.000000e+00> : vector<128xf32>
      %139 = vector.multi_reduction <add>, %111, %cst_45 [1] : vector<128x256xf32> to vector<128xf32>
      %140 = vector.shape_cast %139 : vector<128xf32> to vector<128x1xf32>
      %141 = vector.extract_strided_slice %37 {offsets = [0, 3], sizes = [128, 1], strides = [1, 1]} : vector<128x4xf32> to vector<128x1xf32>
      %142 = arith.mulf %141, %140 : vector<128x1xf32>
      %143 = vector.shape_cast %142 : vector<128x1xf32> to vector<1x128x1xf32>
      %cst_46 = arith.constant dense<0.000000e+00> : vector<1xf32>
      %144 = vector.multi_reduction <add>, %143, %cst_46 [1, 2] : vector<1x128x1xf32> to vector<1xf32>
      %145 = vector.shape_cast %144 : vector<1xf32> to vector<1x1x1xf32>
      %146 = vector.extract %145[0, 0, 0] : f32 from vector<1x1x1xf32>
      %147 = arith.addf %138, %146 : f32
      %148 = arith.truncf %99 : vector<128x256xf32> to vector<128x256xbf16>
      %cst_47 = arith.constant dense<0.000000e+00> : vector<128x256xf32>
      %149 = tpu.matmul %40, %148, %cst_47 {dimension_numbers = #tpu.dot_dimension_numbers<[1], [0], [0], [1], [0, 0, 1, 1], [], []>} : vector<128x128xbf16>, vector<128x256xbf16>, vector<128x256xf32> -> vector<128x256xf32>
      %150 = arith.mulf %149, %69 : vector<128x256xf32>
      %151 = arith.truncf %103 : vector<128x256xf32> to vector<128x256xbf16>
      %cst_48 = arith.constant dense<0.000000e+00> : vector<128x256xf32>
      %152 = tpu.matmul %40, %151, %cst_48 {dimension_numbers = #tpu.dot_dimension_numbers<[1], [0], [0], [1], [0, 0, 1, 1], [], []>} : vector<128x128xbf16>, vector<128x256xbf16>, vector<128x256xf32> -> vector<128x256xf32>
      %153 = arith.mulf %152, %69 : vector<128x256xf32>
      %154 = arith.truncf %107 : vector<128x256xf32> to vector<128x256xbf16>
      %cst_49 = arith.constant dense<0.000000e+00> : vector<128x256xf32>
      %155 = tpu.matmul %40, %154, %cst_49 {dimension_numbers = #tpu.dot_dimension_numbers<[1], [0], [0], [1], [0, 0, 1, 1], [], []>} : vector<128x128xbf16>, vector<128x256xbf16>, vector<128x256xf32> -> vector<128x256xf32>
      %156 = arith.mulf %155, %69 : vector<128x256xf32>
      %157 = arith.truncf %111 : vector<128x256xf32> to vector<128x256xbf16>
      %cst_50 = arith.constant dense<0.000000e+00> : vector<128x256xf32>
      %158 = tpu.matmul %40, %157, %cst_50 {dimension_numbers = #tpu.dot_dimension_numbers<[1], [0], [0], [1], [0, 0, 1, 1], [], []>} : vector<128x128xbf16>, vector<128x256xbf16>, vector<128x256xf32> -> vector<128x256xf32>
      %159 = arith.mulf %158, %69 : vector<128x256xf32>
      %160 = vector.shape_cast %25 : vector<1x128x128xbf16> to vector<128x128xbf16>
      %161 = arith.truncf %150 : vector<128x256xf32> to vector<128x256xbf16>
      %cst_51 = arith.constant dense<0.000000e+00> : vector<128x256xf32>
      %162 = tpu.matmul %160, %161, %cst_51 {dimension_numbers = #tpu.dot_dimension_numbers<[1], [0], [0], [1], [0, 0, 1, 1], [], []>} : vector<128x128xbf16>, vector<128x256xbf16>, vector<128x256xf32> -> vector<128x256xf32>
      %163 = arith.mulf %162, %79 : vector<128x256xf32>
      %164 = vector.shape_cast %25 : vector<1x128x128xbf16> to vector<128x128xbf16>
      %165 = arith.truncf %153 : vector<128x256xf32> to vector<128x256xbf16>
      %cst_52 = arith.constant dense<0.000000e+00> : vector<128x256xf32>
      %166 = tpu.matmul %164, %165, %cst_52 {dimension_numbers = #tpu.dot_dimension_numbers<[1], [0], [0], [1], [0, 0, 1, 1], [], []>} : vector<128x128xbf16>, vector<128x256xbf16>, vector<128x256xf32> -> vector<128x256xf32>
      %167 = arith.mulf %166, %79 : vector<128x256xf32>
      %168 = vector.shape_cast %25 : vector<1x128x128xbf16> to vector<128x128xbf16>
      %169 = arith.truncf %156 : vector<128x256xf32> to vector<128x256xbf16>
      %cst_53 = arith.constant dense<0.000000e+00> : vector<128x256xf32>
      %170 = tpu.matmul %168, %169, %cst_53 {dimension_numbers = #tpu.dot_dimension_numbers<[1], [0], [0], [1], [0, 0, 1, 1], [], []>} : vector<128x128xbf16>, vector<128x256xbf16>, vector<128x256xf32> -> vector<128x256xf32>
      %171 = arith.mulf %170, %79 : vector<128x256xf32>
      %172 = vector.shape_cast %25 : vector<1x128x128xbf16> to vector<128x128xbf16>
      %173 = arith.truncf %159 : vector<128x256xf32> to vector<128x256xbf16>
      %cst_54 = arith.constant dense<0.000000e+00> : vector<128x256xf32>
      %174 = tpu.matmul %172, %173, %cst_54 {dimension_numbers = #tpu.dot_dimension_numbers<[1], [0], [0], [1], [0, 0, 1, 1], [], []>} : vector<128x128xbf16>, vector<128x256xbf16>, vector<128x256xf32> -> vector<128x256xf32>
      %175 = arith.mulf %174, %79 : vector<128x256xf32>
      %cst_55 = arith.constant dense<0.000000e+00> : vector<128xf32>
      %176 = vector.multi_reduction <add>, %163, %cst_55 [1] : vector<128x256xf32> to vector<128xf32>
      %177 = vector.shape_cast %176 : vector<128xf32> to vector<128x1xf32>
      %178 = vector.extract_strided_slice %37 {offsets = [0, 0], sizes = [128, 1], strides = [1, 1]} : vector<128x4xf32> to vector<128x1xf32>
      %179 = arith.mulf %178, %177 : vector<128x1xf32>
      %180 = vector.shape_cast %179 : vector<128x1xf32> to vector<1x128x1xf32>
      %cst_56 = arith.constant dense<0.000000e+00> : vector<1xf32>
      %181 = vector.multi_reduction <add>, %180, %cst_56 [1, 2] : vector<1x128x1xf32> to vector<1xf32>
      %182 = vector.shape_cast %181 : vector<1xf32> to vector<1x1x1xf32>
      %183 = vector.extract %182[0, 0, 0] : f32 from vector<1x1x1xf32>
      %cst_57 = arith.constant 0.000000e+00 : f32
      %184 = arith.addf %cst_57, %183 : f32
      %cst_58 = arith.constant dense<0.000000e+00> : vector<128xf32>
      %185 = vector.multi_reduction <add>, %167, %cst_58 [1] : vector<128x256xf32> to vector<128xf32>
      %186 = vector.shape_cast %185 : vector<128xf32> to vector<128x1xf32>
      %187 = vector.extract_strided_slice %37 {offsets = [0, 1], sizes = [128, 1], strides = [1, 1]} : vector<128x4xf32> to vector<128x1xf32>
      %188 = arith.mulf %187, %186 : vector<128x1xf32>
      %189 = vector.shape_cast %188 : vector<128x1xf32> to vector<1x128x1xf32>
      %cst_59 = arith.constant dense<0.000000e+00> : vector<1xf32>
      %190 = vector.multi_reduction <add>, %189, %cst_59 [1, 2] : vector<1x128x1xf32> to vector<1xf32>
      %191 = vector.shape_cast %190 : vector<1xf32> to vector<1x1x1xf32>
      %192 = vector.extract %191[0, 0, 0] : f32 from vector<1x1x1xf32>
      %193 = arith.addf %184, %192 : f32
      %cst_60 = arith.constant dense<0.000000e+00> : vector<128xf32>
      %194 = vector.multi_reduction <add>, %171, %cst_60 [1] : vector<128x256xf32> to vector<128xf32>
      %195 = vector.shape_cast %194 : vector<128xf32> to vector<128x1xf32>
      %196 = vector.extract_strided_slice %37 {offsets = [0, 2], sizes = [128, 1], strides = [1, 1]} : vector<128x4xf32> to vector<128x1xf32>
      %197 = arith.mulf %196, %195 : vector<128x1xf32>
      %198 = vector.shape_cast %197 : vector<128x1xf32> to vector<1x128x1xf32>
      %cst_61 = arith.constant dense<0.000000e+00> : vector<1xf32>
      %199 = vector.multi_reduction <add>, %198, %cst_61 [1, 2] : vector<1x128x1xf32> to vector<1xf32>
      %200 = vector.shape_cast %199 : vector<1xf32> to vector<1x1x1xf32>
      %201 = vector.extract %200[0, 0, 0] : f32 from vector<1x1x1xf32>
      %202 = arith.addf %193, %201 : f32
      %cst_62 = arith.constant dense<0.000000e+00> : vector<128xf32>
      %203 = vector.multi_reduction <add>, %175, %cst_62 [1] : vector<128x256xf32> to vector<128xf32>
      %204 = vector.shape_cast %203 : vector<128xf32> to vector<128x1xf32>
      %205 = vector.extract_strided_slice %37 {offsets = [0, 3], sizes = [128, 1], strides = [1, 1]} : vector<128x4xf32> to vector<128x1xf32>
      %206 = arith.mulf %205, %204 : vector<128x1xf32>
      %207 = vector.shape_cast %206 : vector<128x1xf32> to vector<1x128x1xf32>
      %cst_63 = arith.constant dense<0.000000e+00> : vector<1xf32>
      %208 = vector.multi_reduction <add>, %207, %cst_63 [1, 2] : vector<1x128x1xf32> to vector<1xf32>
      %209 = vector.shape_cast %208 : vector<1xf32> to vector<1x1x1xf32>
      %210 = vector.extract %209[0, 0, 0] : f32 from vector<1x1x1xf32>
      %211 = arith.addf %202, %210 : f32
      %cst_64 = arith.constant -5.000000e-01 : f32
      %212 = arith.mulf %cst_64, %211 : f32
      %213 = arith.addf %147, %212 : f32
      %214 = arith.truncf %163 : vector<128x256xf32> to vector<128x256xbf16>
      %cst_65 = arith.constant dense<0.000000e+00> : vector<128x256xf32>
      %215 = tpu.matmul %40, %214, %cst_65 {dimension_numbers = #tpu.dot_dimension_numbers<[1], [0], [0], [1], [0, 0, 1, 1], [], []>} : vector<128x128xbf16>, vector<128x256xbf16>, vector<128x256xf32> -> vector<128x256xf32>
      %216 = arith.mulf %215, %69 : vector<128x256xf32>
      %217 = arith.truncf %167 : vector<128x256xf32> to vector<128x256xbf16>
      %cst_66 = arith.constant dense<0.000000e+00> : vector<128x256xf32>
      %218 = tpu.matmul %40, %217, %cst_66 {dimension_numbers = #tpu.dot_dimension_numbers<[1], [0], [0], [1], [0, 0, 1, 1], [], []>} : vector<128x128xbf16>, vector<128x256xbf16>, vector<128x256xf32> -> vector<128x256xf32>
      %219 = arith.mulf %218, %69 : vector<128x256xf32>
      %220 = arith.truncf %171 : vector<128x256xf32> to vector<128x256xbf16>
      %cst_67 = arith.constant dense<0.000000e+00> : vector<128x256xf32>
      %221 = tpu.matmul %40, %220, %cst_67 {dimension_numbers = #tpu.dot_dimension_numbers<[1], [0], [0], [1], [0, 0, 1, 1], [], []>} : vector<128x128xbf16>, vector<128x256xbf16>, vector<128x256xf32> -> vector<128x256xf32>
      %222 = arith.mulf %221, %69 : vector<128x256xf32>
      %223 = arith.truncf %175 : vector<128x256xf32> to vector<128x256xbf16>
      %cst_68 = arith.constant dense<0.000000e+00> : vector<128x256xf32>
      %224 = tpu.matmul %40, %223, %cst_68 {dimension_numbers = #tpu.dot_dimension_numbers<[1], [0], [0], [1], [0, 0, 1, 1], [], []>} : vector<128x128xbf16>, vector<128x256xbf16>, vector<128x256xf32> -> vector<128x256xf32>
      %225 = arith.mulf %224, %69 : vector<128x256xf32>
      %226 = vector.shape_cast %25 : vector<1x128x128xbf16> to vector<128x128xbf16>
      %227 = arith.truncf %216 : vector<128x256xf32> to vector<128x256xbf16>
      %cst_69 = arith.constant dense<0.000000e+00> : vector<128x256xf32>
      %228 = tpu.matmul %226, %227, %cst_69 {dimension_numbers = #tpu.dot_dimension_numbers<[1], [0], [0], [1], [0, 0, 1, 1], [], []>} : vector<128x128xbf16>, vector<128x256xbf16>, vector<128x256xf32> -> vector<128x256xf32>
      %229 = arith.mulf %228, %79 : vector<128x256xf32>
      %230 = vector.shape_cast %25 : vector<1x128x128xbf16> to vector<128x128xbf16>
      %231 = arith.truncf %219 : vector<128x256xf32> to vector<128x256xbf16>
      %cst_70 = arith.constant dense<0.000000e+00> : vector<128x256xf32>
      %232 = tpu.matmul %230, %231, %cst_70 {dimension_numbers = #tpu.dot_dimension_numbers<[1], [0], [0], [1], [0, 0, 1, 1], [], []>} : vector<128x128xbf16>, vector<128x256xbf16>, vector<128x256xf32> -> vector<128x256xf32>
      %233 = arith.mulf %232, %79 : vector<128x256xf32>
      %234 = vector.shape_cast %25 : vector<1x128x128xbf16> to vector<128x128xbf16>
      %235 = arith.truncf %222 : vector<128x256xf32> to vector<128x256xbf16>
      %cst_71 = arith.constant dense<0.000000e+00> : vector<128x256xf32>
      %236 = tpu.matmul %234, %235, %cst_71 {dimension_numbers = #tpu.dot_dimension_numbers<[1], [0], [0], [1], [0, 0, 1, 1], [], []>} : vector<128x128xbf16>, vector<128x256xbf16>, vector<128x256xf32> -> vector<128x256xf32>
      %237 = arith.mulf %236, %79 : vector<128x256xf32>
      %238 = vector.shape_cast %25 : vector<1x128x128xbf16> to vector<128x128xbf16>
      %239 = arith.truncf %225 : vector<128x256xf32> to vector<128x256xbf16>
      %cst_72 = arith.constant dense<0.000000e+00> : vector<128x256xf32>
      %240 = tpu.matmul %238, %239, %cst_72 {dimension_numbers = #tpu.dot_dimension_numbers<[1], [0], [0], [1], [0, 0, 1, 1], [], []>} : vector<128x128xbf16>, vector<128x256xbf16>, vector<128x256xf32> -> vector<128x256xf32>
      %241 = arith.mulf %240, %79 : vector<128x256xf32>
      %cst_73 = arith.constant dense<0.000000e+00> : vector<128xf32>
      %242 = vector.multi_reduction <add>, %229, %cst_73 [1] : vector<128x256xf32> to vector<128xf32>
      %243 = vector.shape_cast %242 : vector<128xf32> to vector<128x1xf32>
      %244 = vector.extract_strided_slice %37 {offsets = [0, 0], sizes = [128, 1], strides = [1, 1]} : vector<128x4xf32> to vector<128x1xf32>
      %245 = arith.mulf %244, %243 : vector<128x1xf32>
      %246 = vector.shape_cast %245 : vector<128x1xf32> to vector<1x128x1xf32>
      %cst_74 = arith.constant dense<0.000000e+00> : vector<1xf32>
      %247 = vector.multi_reduction <add>, %246, %cst_74 [1, 2] : vector<1x128x1xf32> to vector<1xf32>
      %248 = vector.shape_cast %247 : vector<1xf32> to vector<1x1x1xf32>
      %249 = vector.extract %248[0, 0, 0] : f32 from vector<1x1x1xf32>
      %cst_75 = arith.constant 0.000000e+00 : f32
      %250 = arith.addf %cst_75, %249 : f32
      %cst_76 = arith.constant dense<0.000000e+00> : vector<128xf32>
      %251 = vector.multi_reduction <add>, %233, %cst_76 [1] : vector<128x256xf32> to vector<128xf32>
      %252 = vector.shape_cast %251 : vector<128xf32> to vector<128x1xf32>
      %253 = vector.extract_strided_slice %37 {offsets = [0, 1], sizes = [128, 1], strides = [1, 1]} : vector<128x4xf32> to vector<128x1xf32>
      %254 = arith.mulf %253, %252 : vector<128x1xf32>
      %255 = vector.shape_cast %254 : vector<128x1xf32> to vector<1x128x1xf32>
      %cst_77 = arith.constant dense<0.000000e+00> : vector<1xf32>
      %256 = vector.multi_reduction <add>, %255, %cst_77 [1, 2] : vector<1x128x1xf32> to vector<1xf32>
      %257 = vector.shape_cast %256 : vector<1xf32> to vector<1x1x1xf32>
      %258 = vector.extract %257[0, 0, 0] : f32 from vector<1x1x1xf32>
      %259 = arith.addf %250, %258 : f32
      %cst_78 = arith.constant dense<0.000000e+00> : vector<128xf32>
      %260 = vector.multi_reduction <add>, %237, %cst_78 [1] : vector<128x256xf32> to vector<128xf32>
      %261 = vector.shape_cast %260 : vector<128xf32> to vector<128x1xf32>
      %262 = vector.extract_strided_slice %37 {offsets = [0, 2], sizes = [128, 1], strides = [1, 1]} : vector<128x4xf32> to vector<128x1xf32>
      %263 = arith.mulf %262, %261 : vector<128x1xf32>
      %264 = vector.shape_cast %263 : vector<128x1xf32> to vector<1x128x1xf32>
      %cst_79 = arith.constant dense<0.000000e+00> : vector<1xf32>
      %265 = vector.multi_reduction <add>, %264, %cst_79 [1, 2] : vector<1x128x1xf32> to vector<1xf32>
      %266 = vector.shape_cast %265 : vector<1xf32> to vector<1x1x1xf32>
      %267 = vector.extract %266[0, 0, 0] : f32 from vector<1x1x1xf32>
      %268 = arith.addf %259, %267 : f32
      %cst_80 = arith.constant dense<0.000000e+00> : vector<128xf32>
      %269 = vector.multi_reduction <add>, %241, %cst_80 [1] : vector<128x256xf32> to vector<128xf32>
      %270 = vector.shape_cast %269 : vector<128xf32> to vector<128x1xf32>
      %271 = vector.extract_strided_slice %37 {offsets = [0, 3], sizes = [128, 1], strides = [1, 1]} : vector<128x4xf32> to vector<128x1xf32>
      %272 = arith.mulf %271, %270 : vector<128x1xf32>
      %273 = vector.shape_cast %272 : vector<128x1xf32> to vector<1x128x1xf32>
      %cst_81 = arith.constant dense<0.000000e+00> : vector<1xf32>
      %274 = vector.multi_reduction <add>, %273, %cst_81 [1, 2] : vector<1x128x1xf32> to vector<1xf32>
      %275 = vector.shape_cast %274 : vector<1xf32> to vector<1x1x1xf32>
      %276 = vector.extract %275[0, 0, 0] : f32 from vector<1x1x1xf32>
      %277 = arith.addf %268, %276 : f32
      %cst_82 = arith.constant 0.333333343 : f32
      %278 = arith.mulf %cst_82, %277 : f32
      %279 = arith.addf %213, %278 : f32
      %280 = arith.addf %arg13, %83 : vector<4x256xf32>
      %281 = arith.addf %arg14, %279 : f32
      scf.yield %280, %281 : vector<4x256xf32>, f32
    }
    %c2_i32_1 = arith.constant 2 : i32
    %c0_2 = arith.constant 0 : index
    %c0_3 = arith.constant 0 : index
    %3 = vector.load %arg10[%c0_2, %c0_3] : memref<4x256xf32, #tpu.memory_space<vmem>>, vector<4x256xf32>
    tpu.vector_store %arg10[%c0_2, %c0_3], %2#0 {strides = array<i32>} : memref<4x256xf32, #tpu.memory_space<vmem>>, vector<4x256xf32>,
    %4 = arith.mulf %2#0, %2#0 : vector<4x256xf32>
    %5 = vector.shape_cast %4 : vector<4x256xf32> to vector<1x4x256xf32>
    %cst_4 = arith.constant dense<0.000000e+00> : vector<1xf32>
    %6 = vector.multi_reduction <add>, %5, %cst_4 [1, 2] : vector<1x4x256xf32> to vector<1xf32>
    %7 = vector.shape_cast %6 : vector<1xf32> to vector<1x1x1xf32>
    %8 = vector.extract %7[0, 0, 0] : f32 from vector<1x1x1xf32>
    %cst_5 = arith.constant -5.000000e-01 : f32
    %9 = arith.mulf %cst_5, %8 : f32
    %cst_6 = arith.constant 1.000000e+00 : f32
    %10 = arith.divf %9, %cst_6 : f32
    %cst_7 = arith.constant 940.993041 : f32
    %11 = arith.subf %10, %cst_7 : f32
    %cst_8 = arith.constant 0.000000e+00 : f32
    %12 = vector.broadcast %cst_8 : f32 to vector<1x8x128xf32>
    %13 = arith.addf %11, %2#1 : f32
    %14 = vector.broadcast %13 : f32 to vector<1x8x128xf32>
    %15 = arith.addf %12, %14 : vector<1x8x128xf32>
    %c0_9 = arith.constant 0 : index
    %c0_10 = arith.constant 0 : index
    %c0_11 = arith.constant 0 : index
    %16 = vector.load %arg11[%c0_9, %c0_10, %c0_11] : memref<1x8x128xf32, #tpu.memory_space<vmem>>, vector<1x8x128xf32>
    tpu.vector_store %arg11[%c0_9, %c0_10, %c0_11], %15 {strides = array<i32>} : memref<1x8x128xf32, #tpu.memory_space<vmem>>, vector<1x8x128xf32>,
    return
  }
  func.func @transform_0(%arg0: i32) -> (i32, i32) {
    %c0_i32 = arith.constant 0 : i32
    %c0_i32_0 = arith.constant 0 : i32
    return %c0_i32, %arg0 : i32, i32
  }
  func.func @transform_1(%arg0: i32) -> (i32, i32, i32) {
    %c0_i32 = arith.constant 0 : i32
    %c0_i32_0 = arith.constant 0 : i32
    %c0_i32_1 = arith.constant 0 : i32
    %c0_i32_2 = arith.constant 0 : i32
    return %c0_i32, %c0_i32_0, %c0_i32_1 : i32, i32, i32
  }
  func.func @transform_2(%arg0: i32) -> (i32, i32, i32) {
    %c0_i32 = arith.constant 0 : i32
    %c0_i32_0 = arith.constant 0 : i32
    %c0_i32_1 = arith.constant 0 : i32
    %c0_i32_2 = arith.constant 0 : i32
    return %c0_i32, %c0_i32_0, %c0_i32_1 : i32, i32, i32
  }
  func.func @transform_3(%arg0: i32) -> (i32, i32, i32, i32) {
    %c0_i32 = arith.constant 0 : i32
    %c0_i32_0 = arith.constant 0 : i32
    %c0_i32_1 = arith.constant 0 : i32
    %c0_i32_2 = arith.constant 0 : i32
    %c0_i32_3 = arith.constant 0 : i32
    return %c0_i32, %c0_i32_0, %c0_i32_1, %c0_i32_2 : i32, i32, i32, i32
  }
  func.func @transform_4(%arg0: i32) -> (i32, i32, i32, i32) {
    %c0_i32 = arith.constant 0 : i32
    %c0_i32_0 = arith.constant 0 : i32
    %c0_i32_1 = arith.constant 0 : i32
    %c0_i32_2 = arith.constant 0 : i32
    %c0_i32_3 = arith.constant 0 : i32
    return %c0_i32, %c0_i32_0, %c0_i32_1, %c0_i32_2 : i32, i32, i32, i32
  }
  func.func @transform_5(%arg0: i32) -> (i32, i32, i32) {
    %c0_i32 = arith.constant 0 : i32
    %c0_i32_0 = arith.constant 0 : i32
    %c0_i32_1 = arith.constant 0 : i32
    %c0_i32_2 = arith.constant 0 : i32
    return %c0_i32, %c0_i32_0, %c0_i32_1 : i32, i32, i32
  }
  func.func @transform_6(%arg0: i32) -> (i32, i32, i32) {
    %c0_i32 = arith.constant 0 : i32
    %c0_i32_0 = arith.constant 0 : i32
    %c0_i32_1 = arith.constant 0 : i32
    %c0_i32_2 = arith.constant 0 : i32
    return %c0_i32, %c0_i32_0, %c0_i32_1 : i32, i32, i32
  }
  func.func @transform_7(%arg0: i32) -> (i32, i32, i32) {
    %c0_i32 = arith.constant 0 : i32
    %c0_i32_0 = arith.constant 0 : i32
    %c0_i32_1 = arith.constant 0 : i32
    %c0_i32_2 = arith.constant 0 : i32
    return %c0_i32, %c0_i32_0, %c0_i32_1 : i32, i32, i32
  }
  func.func @transform_8(%arg0: i32) -> (i32, i32, i32) {
    %c0_i32 = arith.constant 0 : i32
    %c0_i32_0 = arith.constant 0 : i32
    %c0_i32_1 = arith.constant 0 : i32
    %c0_i32_2 = arith.constant 0 : i32
    return %c0_i32, %c0_i32_0, %c0_i32_1 : i32, i32, i32
  }
  func.func @transform_9(%arg0: i32) -> (i32, i32) {
    %c0_i32 = arith.constant 0 : i32
    %c0_i32_0 = arith.constant 0 : i32
    return %c0_i32, %arg0 : i32, i32
  }
  func.func @transform_10(%arg0: i32) -> (i32, i32, i32) {
    %c0_i32 = arith.constant 0 : i32
    %c0_i32_0 = arith.constant 0 : i32
    %c0_i32_1 = arith.constant 0 : i32
    return %arg0, %c0_i32, %c0_i32_0 : i32, i32, i32
  }
}

</mosaic_0001>

<llo_original>
// kernel: tpu_custom_call.1
$region0: #{tpu_custom_call.1}
  #allocation0 [shape = 'u32[]', space=smem, size = 0x4, offset = 0x4, fixed_abs, tag = 'smem constant byte address 0x4 - core index']
  #allocation1 [shape = 'u32[144,128]{1,0:T(1,128)}', space=vmem, size = 0x12000, scoped, tag = 'internal scratch']
  %s0 = inlined_call_operand.vmem [shape: f32[4,512], index: 0, kind: input, shape index: {}]
  %s1 = inlined_call_operand.vmem [shape: f32[2,128,4], index: 1, kind: input, shape index: {}]
  %s2 = inlined_call_operand.vmem [shape: f32[2,128,1], index: 2, kind: input, shape index: {}]
  %s3 = inlined_call_operand.vmem [shape: bf16[2,1,128,128], index: 3, kind: input, shape index: {}]
  %s4 = inlined_call_operand.vmem [shape: f32[2,1,128,1], index: 4, kind: input, shape index: {}]
  %s5 = inlined_call_operand.vmem [shape: bf16[2,4,128], index: 5, kind: input, shape index: {}]
  %s6 = inlined_call_operand.vmem [shape: f32[2,4,1], index: 6, kind: input, shape index: {}]
  %s7 = inlined_call_operand.vmem [shape: f32[2,128,4], index: 7, kind: input, shape index: {}]
  %s8 = inlined_call_operand.vmem [shape: bf16[2,128,128], index: 8, kind: input, shape index: {}]
  %s9 = inlined_call_operand.hbm [shape: f32[4,512], index: 9, kind: output, shape index: {0}]
  %s10 = inlined_call_operand.hbm [shape: f32[2,8,128], index: 10, kind: output, shape index: {1}]
  %11 = xla_tuple %s9, %s10
  %s12 = sld [smem:[#allocation0]]
  $region84: #{tpu_custom_call.1} parent=0
    _
  %s14 = ssub.s32 1, %s12
  %s15 = scalar_select 0, %s14, %s12
  $region1: #{tpu_custom_call.1} parent=0
    #allocation2 [shape = 'u8[8192]{0}', space=vmem, size = 0x2000, scoped, tag = 'output window, operand 0']
    #allocation3 [shape = 's32[2]{0}', space=sflag, size = 0x8, scoped, tag = 'scoped memory for tpu_custom_call.1']
    #allocation4 [shape = 'u8[8192]{0}', space=vmem, size = 0x2000, scoped, tag = 'output window, operand 1']
    #allocation5 [shape = 's32[2]{0}', space=sflag, size = 0x8, scoped, tag = 'scoped memory for tpu_custom_call.1']
    %16 = vsyncpa [#allocation3], 0
    %s17 = scalar_lea.sflag [#allocation3], 1
    %18 = vsyncpa %s17, 0
    %19 = vsyncpa [#allocation5], 0
    %s20 = scalar_lea.sflag [#allocation5], 1
    %21 = vsyncpa %s20, 0
    loop: start=0, step=1, limit=4
    $region2: #{tpu_custom_call.1} parent=1 // loop_pre_header
      _
    $region3: #{tpu_custom_call.1} parent=1 // loop_header
      %s23 = sphi 0, %s27
      %p24 = scmp.ge.s32.totalorder %s23, 4
      %s33 = sphi 0, %s35
      %s36 = sphi 0, %s33
      %s37 = sphi 0, %s36
      %s53 = sphi 0, %s37
      %s57 = sphi 0, %s57
      %s59 = sphi 0, %s57
      %s60 = sphi 0, %s59
      %s74 = sphi 0, %s60
      %s78 = sphi 0, %s78
      %s80 = sphi 0, %s78
      %s81 = sphi 0, %s80
      %s95 = sphi 0, %s81
      %s99 = sphi 0, %s99
      %s101 = sphi 0, %s99
      %s102 = sphi 0, %s101
      %s116 = sphi 0, %s102
      %s120 = sphi 0, %s120
      %s122 = sphi 0, %s120
      %s123 = sphi 0, %s122
      %s137 = sphi 0, %s123
      %s141 = sphi 0, %s141
      %s143 = sphi 0, %s141
      %s144 = sphi 0, %s143
      %s158 = sphi 0, %s144
      %s162 = sphi 0, %s162
      %s164 = sphi 0, %s162
      %s165 = sphi 0, %s164
      %s179 = sphi 0, %s165
      %s183 = sphi 0, %s183
      %s185 = sphi 0, %s183
      %s186 = sphi 0, %s185
      %s200 = sphi 0, %s186
      %s204 = sphi 0, %s204
      %s206 = sphi 0, %s204
      %s207 = sphi 0, %s206
      %s221 = sphi 0, %s207
      %s227 = sphi 0, %s229
      %s230 = sphi 0, %s227
      %s231 = sphi 0, %s230
      %s247 = sphi 0, %s231
      %s253 = sphi 0, %s255
      %s256 = sphi 0, %s253
      %s257 = sphi 0, %s256
      %s273 = sphi 0, %s257
    $region4: #{tpu_custom_call.1} parent=1 // loop_header_branch
      %26 = sbr.rel (%p24) target = $region8
    $region5: #{tpu_custom_call.1} parent=1 // loop_body
      %s28 = ssub.s32 %s23, 1
      %s29 = ssub.s32 %s23, 2
      %s30 = sadd.s32 %s23, 1
      %s31 = ssub.s32 %s23, %s30
      %p32 = scmp.eq.s32.totalorder %s31, 0
      %s34 = sadd.s32 %s33, 1
      %s35 = scalar_select %p32, %s33, %s34
      %p38 = pneg %p32
      %p39 = scmp.eq.s32.totalorder %s23, 1
      %p40 = por %p38, %p39
      %p41 = scmp.ne.s32.totalorder %s33, %s36
      %p42 = scmp.eq.s32.totalorder %s23, 0
      %p43 = por %p41, %p42
      %p44 = scmp.ne.s32.totalorder %s33, %s36
      %p45 = scmp.eq.s32.totalorder %s28, 1
      %p46 = por %p44, %p45
      %p47 = scmp.ne.s32.totalorder %s36, %s37
      %p48 = scmp.eq.s32.totalorder %s28, 0
      %p49 = por %p47, %p48
      %p50 = scmp.ne.s32.totalorder %s36, %s37
      %p51 = scmp.eq.s32.totalorder %s29, 1
      %p52 = por %p50, %p51
      %p54 = scmp.ne.s32.totalorder %s37, %s53
      %p55 = scmp.eq.s32.totalorder %s29, 0
      %p56 = por %p54, %p55
      %s58 = sadd.s32 %s57, 1
      %p61 = scmp.eq.s32.totalorder %s23, 1
      %p62 = scmp.ne.s32.totalorder %s57, %s59
      %p63 = scmp.eq.s32.totalorder %s23, 0
      %p64 = por %p62, %p63
      %p65 = scmp.ne.s32.totalorder %s57, %s59
      %p66 = scmp.eq.s32.totalorder %s28, 1
      %p67 = por %p65, %p66
      %p68 = scmp.ne.s32.totalorder %s59, %s60
      %p69 = scmp.eq.s32.totalorder %s28, 0
      %p70 = por %p68, %p69
      %p71 = scmp.ne.s32.totalorder %s59, %s60
      %p72 = scmp.eq.s32.totalorder %s29, 1
      %p73 = por %p71, %p72
      %p75 = scmp.ne.s32.totalorder %s60, %s74
      %p76 = scmp.eq.s32.totalorder %s29, 0
      %p77 = por %p75, %p76
      %s79 = sadd.s32 %s78, 1
      %p82 = scmp.eq.s32.totalorder %s23, 1
      %p83 = scmp.ne.s32.totalorder %s78, %s80
      %p84 = scmp.eq.s32.totalorder %s23, 0
      %p85 = por %p83, %p84
      %p86 = scmp.ne.s32.totalorder %s78, %s80
      %p87 = scmp.eq.s32.totalorder %s28, 1
      %p88 = por %p86, %p87
      %p89 = scmp.ne.s32.totalorder %s80, %s81
      %p90 = scmp.eq.s32.totalorder %s28, 0
      %p91 = por %p89, %p90
      %p92 = scmp.ne.s32.totalorder %s80, %s81
      %p93 = scmp.eq.s32.totalorder %s29, 1
      %p94 = por %p92, %p93
      %p96 = scmp.ne.s32.totalorder %s81, %s95
      %p97 = scmp.eq.s32.totalorder %s29, 0
      %p98 = por %p96, %p97
      %s100 = sadd.s32 %s99, 1
      %p103 = scmp.eq.s32.totalorder %s23, 1
      %p104 = scmp.ne.s32.totalorder %s99, %s101
      %p105 = scmp.eq.s32.totalorder %s23, 0
      %p106 = por %p104, %p105
      %p107 = scmp.ne.s32.totalorder %s99, %s101
      %p108 = scmp.eq.s32.totalorder %s28, 1
      %p109 = por %p107, %p108
      %p110 = scmp.ne.s32.totalorder %s101, %s102
      %p111 = scmp.eq.s32.totalorder %s28, 0
      %p112 = por %p110, %p111
      %p113 = scmp.ne.s32.totalorder %s101, %s102
      %p114 = scmp.eq.s32.totalorder %s29, 1
      %p115 = por %p113, %p114
      %p117 = scmp.ne.s32.totalorder %s102, %s116
      %p118 = scmp.eq.s32.totalorder %s29, 0
      %p119 = por %p117, %p118
      %s121 = sadd.s32 %s120, 1
      %p124 = scmp.eq.s32.totalorder %s23, 1
      %p125 = scmp.ne.s32.totalorder %s120, %s122
      %p126 = scmp.eq.s32.totalorder %s23, 0
      %p127 = por %p125, %p126
      %p128 = scmp.ne.s32.totalorder %s120, %s122
      %p129 = scmp.eq.s32.totalorder %s28, 1
      %p130 = por %p128, %p129
      %p131 = scmp.ne.s32.totalorder %s122, %s123
      %p132 = scmp.eq.s32.totalorder %s28, 0
      %p133 = por %p131, %p132
      %p134 = scmp.ne.s32.totalorder %s122, %s123
      %p135 = scmp.eq.s32.totalorder %s29, 1
      %p136 = por %p134, %p135
      %p138 = scmp.ne.s32.totalorder %s123, %s137
      %p139 = scmp.eq.s32.totalorder %s29, 0
      %p140 = por %p138, %p139
      %s142 = sadd.s32 %s141, 1
      %p145 = scmp.eq.s32.totalorder %s23, 1
      %p146 = scmp.ne.s32.totalorder %s141, %s143
      %p147 = scmp.eq.s32.totalorder %s23, 0
      %p148 = por %p146, %p147
      %p149 = scmp.ne.s32.totalorder %s141, %s143
      %p150 = scmp.eq.s32.totalorder %s28, 1
      %p151 = por %p149, %p150
      %p152 = scmp.ne.s32.totalorder %s143, %s144
      %p153 = scmp.eq.s32.totalorder %s28, 0
      %p154 = por %p152, %p153
      %p155 = scmp.ne.s32.totalorder %s143, %s144
      %p156 = scmp.eq.s32.totalorder %s29, 1
      %p157 = por %p155, %p156
      %p159 = scmp.ne.s32.totalorder %s144, %s158
      %p160 = scmp.eq.s32.totalorder %s29, 0
      %p161 = por %p159, %p160
      %s163 = sadd.s32 %s162, 1
      %p166 = scmp.eq.s32.totalorder %s23, 1
      %p167 = scmp.ne.s32.totalorder %s162, %s164
      %p168 = scmp.eq.s32.totalorder %s23, 0
      %p169 = por %p167, %p168
      %p170 = scmp.ne.s32.totalorder %s162, %s164
      %p171 = scmp.eq.s32.totalorder %s28, 1
      %p172 = por %p170, %p171
      %p173 = scmp.ne.s32.totalorder %s164, %s165
      %p174 = scmp.eq.s32.totalorder %s28, 0
      %p175 = por %p173, %p174
      %p176 = scmp.ne.s32.totalorder %s164, %s165
      %p177 = scmp.eq.s32.totalorder %s29, 1
      %p178 = por %p176, %p177
      %p180 = scmp.ne.s32.totalorder %s165, %s179
      %p181 = scmp.eq.s32.totalorder %s29, 0
      %p182 = por %p180, %p181
      %s184 = sadd.s32 %s183, 1
      %p187 = scmp.eq.s32.totalorder %s23, 1
      %p188 = scmp.ne.s32.totalorder %s183, %s185
      %p189 = scmp.eq.s32.totalorder %s23, 0
      %p190 = por %p188, %p189
      %p191 = scmp.ne.s32.totalorder %s183, %s185
      %p192 = scmp.eq.s32.totalorder %s28, 1
      %p193 = por %p191, %p192
      %p194 = scmp.ne.s32.totalorder %s185, %s186
      %p195 = scmp.eq.s32.totalorder %s28, 0
      %p196 = por %p194, %p195
      %p197 = scmp.ne.s32.totalorder %s185, %s186
      %p198 = scmp.eq.s32.totalorder %s29, 1
      %p199 = por %p197, %p198
      %p201 = scmp.ne.s32.totalorder %s186, %s200
      %p202 = scmp.eq.s32.totalorder %s29, 0
      %p203 = por %p201, %p202
      %s205 = sadd.s32 %s204, 1
      %p208 = scmp.eq.s32.totalorder %s23, 1
      %p209 = scmp.ne.s32.totalorder %s204, %s206
      %p210 = scmp.eq.s32.totalorder %s23, 0
      %p211 = por %p209, %p210
      %p212 = scmp.ne.s32.totalorder %s204, %s206
      %p213 = scmp.eq.s32.totalorder %s28, 1
      %p214 = por %p212, %p213
      %p215 = scmp.ne.s32.totalorder %s206, %s207
      %p216 = scmp.eq.s32.totalorder %s28, 0
      %p217 = por %p215, %p216
      %p218 = scmp.ne.s32.totalorder %s206, %s207
      %p219 = scmp.eq.s32.totalorder %s29, 1
      %p220 = por %p218, %p219
      %p222 = scmp.ne.s32.totalorder %s207, %s221
      %p223 = scmp.eq.s32.totalorder %s29, 0
      %p224 = por %p222, %p223
      %s225 = ssub.s32 %s23, %s30
      %p226 = scmp.eq.s32.totalorder %s225, 0
      %s228 = sadd.s32 %s227, 1
      %s229 = scalar_select %p226, %s227, %s228
      %p232 = pneg %p226
      %p233 = scmp.eq.s32.totalorder %s23, 1
      %p234 = por %p232, %p233
      %p235 = scmp.ne.s32.totalorder %s227, %s230
      %p236 = scmp.eq.s32.totalorder %s23, 0
      %p237 = por %p235, %p236
      %p238 = scmp.ne.s32.totalorder %s227, %s230
      %p239 = scmp.eq.s32.totalorder %s28, 1
      %p240 = por %p238, %p239
      %p241 = scmp.ne.s32.totalorder %s230, %s231
      %p242 = scmp.eq.s32.totalorder %s28, 0
      %p243 = por %p241, %p242
      %p244 = scmp.ne.s32.totalorder %s230, %s231
      %p245 = scmp.eq.s32.totalorder %s29, 1
      %p246 = por %p244, %p245
      %p248 = scmp.ne.s32.totalorder %s231, %s247
      %p249 = scmp.eq.s32.totalorder %s29, 0
      %p250 = por %p248, %p249
      %s251 = ssub.s32 %s23, %s30
      %p252 = scmp.eq.s32.totalorder %s251, 0
      %s254 = sadd.s32 %s253, 1
      %s255 = scalar_select %p252, %s253, %s254
      %p258 = pneg %p252
      %p259 = scmp.eq.s32.totalorder %s23, 1
      %p260 = por %p258, %p259
      %p261 = scmp.ne.s32.totalorder %s253, %s256
      %p262 = scmp.eq.s32.totalorder %s23, 0
      %p263 = por %p261, %p262
      %p264 = scmp.ne.s32.totalorder %s253, %s256
      %p265 = scmp.eq.s32.totalorder %s28, 1
      %p266 = por %p264, %p265
      %p267 = scmp.ne.s32.totalorder %s256, %s257
      %p268 = scmp.eq.s32.totalorder %s28, 0
      %p269 = por %p267, %p268
      %p270 = scmp.ne.s32.totalorder %s256, %s257
      %p271 = scmp.eq.s32.totalorder %s29, 1
      %p272 = por %p270, %p271
      %p274 = scmp.ne.s32.totalorder %s257, %s273
      %p275 = scmp.eq.s32.totalorder %s29, 0
      %p276 = por %p274, %p275
      %p277 = scmp.le.s32.totalorder 1, %s23
      %p278 = scmp.lt.s32.totalorder %s23, 3
      %p279 = pnand %p277, %p278
      %p280 = pneg %p279
      // Predicated region
      $region9: #{tpu_custom_call.1} parent=5 // pred_check
        _
      $region10: #{tpu_custom_call.1} parent=5 // pred_check_branch
        %282 = sbr.rel (%p279) target = $region12
      $region11: #{tpu_custom_call.1} parent=5 // pred_region
        %s283 = ssub.s32 %s23, 1
        // Predicated region
        $region13: #{tpu_custom_call.1} parent=11 // pred_check
          %p284 = pneg %p70
        $region14: #{tpu_custom_call.1} parent=11 // pred_check_branch
          %286 = sbr.rel (%p284) target = $region16
        $region15: #{tpu_custom_call.1} parent=11 // pred_region
          _
        $region16: #{tpu_custom_call.1} parent=11 // pred_fallthru
          _
        // Predicated region
        $region17: #{tpu_custom_call.1} parent=11 // pred_check
          %p287 = pneg %p91
        $region18: #{tpu_custom_call.1} parent=11 // pred_check_branch
          %289 = sbr.rel (%p287) target = $region20
        $region19: #{tpu_custom_call.1} parent=11 // pred_region
          _
        $region20: #{tpu_custom_call.1} parent=11 // pred_fallthru
          _
        // Predicated region
        $region21: #{tpu_custom_call.1} parent=11 // pred_check
          %p290 = pneg %p112
        $region22: #{tpu_custom_call.1} parent=11 // pred_check_branch
          %292 = sbr.rel (%p290) target = $region24
        $region23: #{tpu_custom_call.1} parent=11 // pred_region
          _
        $region24: #{tpu_custom_call.1} parent=11 // pred_fallthru
          _
        // Predicated region
        $region25: #{tpu_custom_call.1} parent=11 // pred_check
          %p293 = pneg %p133
        $region26: #{tpu_custom_call.1} parent=11 // pred_check_branch
          %295 = sbr.rel (%p293) target = $region28
        $region27: #{tpu_custom_call.1} parent=11 // pred_region
          _
        $region28: #{tpu_custom_call.1} parent=11 // pred_fallthru
          _
        // Predicated region
        $region29: #{tpu_custom_call.1} parent=11 // pred_check
          %p296 = pneg %p154
        $region30: #{tpu_custom_call.1} parent=11 // pred_check_branch
          %298 = sbr.rel (%p296) target = $region32
        $region31: #{tpu_custom_call.1} parent=11 // pred_region
          _
        $region32: #{tpu_custom_call.1} parent=11 // pred_fallthru
          _
        // Predicated region
        $region33: #{tpu_custom_call.1} parent=11 // pred_check
          %p299 = pneg %p175
        $region34: #{tpu_custom_call.1} parent=11 // pred_check_branch
          %301 = sbr.rel (%p299) target = $region36
        $region35: #{tpu_custom_call.1} parent=11 // pred_region
          _
        $region36: #{tpu_custom_call.1} parent=11 // pred_fallthru
          _
        // Predicated region
        $region37: #{tpu_custom_call.1} parent=11 // pred_check
          %p302 = pneg %p196
        $region38: #{tpu_custom_call.1} parent=11 // pred_check_branch
          %304 = sbr.rel (%p302) target = $region40
        $region39: #{tpu_custom_call.1} parent=11 // pred_region
          _
        $region40: #{tpu_custom_call.1} parent=11 // pred_fallthru
          _
        // Predicated region
        $region41: #{tpu_custom_call.1} parent=11 // pred_check
          %p305 = pneg %p217
        $region42: #{tpu_custom_call.1} parent=11 // pred_check_branch
          %307 = sbr.rel (%p305) target = $region44
        $region43: #{tpu_custom_call.1} parent=11 // pred_region
          _
        $region44: #{tpu_custom_call.1} parent=11 // pred_fallthru
          _
      $region12: #{tpu_custom_call.1} parent=5 // pred_fallthru
        _
      %p308 = scmp.lt.s32.totalorder %s23, 2
      // Predicated region
      $region45: #{tpu_custom_call.1} parent=5 // pred_check
        %p309 = pneg %p308
      $region46: #{tpu_custom_call.1} parent=5 // pred_check_branch
        %311 = sbr.rel (%p309) target = $region48
      $region47: #{tpu_custom_call.1} parent=5 // pred_region
        // Predicated region
        $region49: #{tpu_custom_call.1} parent=47 // pred_check
          %p312 = pneg %p43
        $region50: #{tpu_custom_call.1} parent=47 // pred_check_branch
          %314 = sbr.rel (%p312) target = $region52
        $region51: #{tpu_custom_call.1} parent=47 // pred_region
          %s315 = smul.u32 2, %s23
          %p316 = scmp.lt.s32.totalorder %s315, 3
          %s317 = scalar_select %p316, %s315, 3
          %s318 = smul.addr %s317, 4
          %s319 = scalar_lea.vmem %s0, %s318
          %s320 = smul.u32 2, %s23
        $region52: #{tpu_custom_call.1} parent=47 // pred_fallthru
          _
      $region48: #{tpu_custom_call.1} parent=5 // pred_fallthru
        _
      %p321 = scmp.le.s32.totalorder 1, %s23
      %p322 = scmp.lt.s32.totalorder %s23, 3
      %p323 = pnand %p321, %p322
      %p324 = pneg %p323
      // Predicated region
      $region53: #{tpu_custom_call.1} parent=5 // pred_check
        _
      $region54: #{tpu_custom_call.1} parent=5 // pred_check_branch
        %326 = sbr.rel (%p323) target = $region56
      $region55: #{tpu_custom_call.1} parent=5 // pred_region
        %s327 = ssub.s32 %s23, 1
        %s328 = smul.u32 2, %s28
        %p329 = scmp.lt.s32.totalorder %s328, 3
        %s330 = scalar_select %p329, %s328, 3
        %s331 = smul.addr %s330, 4
        %s332 = scalar_lea.vmem %s0, %s331
        %p333 = pneg %p49
        %p334 = pneg %p46
        %p335 = pneg %p70
        %p336 = pneg %p67
        %p337 = pneg %p91
        %p338 = pneg %p88
        %p339 = pneg %p112
        %p340 = pneg %p109
        %p341 = pneg %p133
        %p342 = pneg %p130
        %p343 = pneg %p154
        %p344 = pneg %p151
        %p345 = pneg %p175
        %p346 = pneg %p172
        %p347 = pneg %p196
        %p348 = pneg %p193
        %p349 = pneg %p217
        %p350 = pneg %p214
        %p351 = pneg %p243
        %p352 = pneg %p240
        %s353 = sand.u32 %s230, 1
        %s354 = scalar_lea.sflag [#allocation3], %s353
        %s355 = sand.u32 %s230, 1
        %s356 = smul.addr %s355, 8
        %s357 = scalar_lea.vmem [#allocation2], %s356
        %p358 = pneg %p269
        %p359 = pneg %p266
        %s360 = sand.u32 %s256, 1
        %s361 = scalar_lea.sflag [#allocation5], %s360
        %s362 = sand.u32 %s256, 1
        %s363 = smul.addr %s362, 8
        %s364 = scalar_lea.vmem [#allocation4], %s363
        %s365 = smul.u32 2, %s28
        %p366 = scmp.lt.s32.totalorder %s365, 3
        %s367 = scalar_select %p366, %s365, 3
        %s368 = smul.addr %s367, 4
        %s369 = scalar_lea.vmem %s0, %s368
        %s370 = smul.u32 2, %s28
        %s371 = smul.u32 2, %s28
        %v373 = vld [vmem:[%s369] sm:$0xff]
        loop: start=0, step=1, limit=2
        $region57: #{tpu_custom_call.1} parent=55 // loop_pre_header
          _
        $region58: #{tpu_custom_call.1} parent=55 // loop_header
          %s375 = sphi 0, %s379
          %p376 = scmp.ge.s32.totalorder %s375, 2
          %v380 = vphi %v373, %v6927
          %s381 = sphi 0.0, %s6928
        $region59: #{tpu_custom_call.1} parent=55 // loop_header_branch
          %378 = sbr.rel (%p376) target = $region63
        $region60: #{tpu_custom_call.1} parent=55 // loop_body
          %s382 = smul.u32 %s375, 128
          %s383 = scalar_lea.vmem %s1, %s382
          %v384 = vld [vmem:[%s383] sm:$0xff]
          %v385 = vld [vmem:[%s383 + $0x8] sm:$0xff]
          %v386 = vld [vmem:[%s383 + $0x10] sm:$0xff]
          %v387 = vld [vmem:[%s383 + $0x18] sm:$0xff]
          %v388 = vld [vmem:[%s383 + $0x20] sm:$0xff]
          %v389 = vld [vmem:[%s383 + $0x28] sm:$0xff]
          %v390 = vld [vmem:[%s383 + $0x30] sm:$0xff]
          %v391 = vld [vmem:[%s383 + $0x38] sm:$0xff]
          %v392 = vld [vmem:[%s383 + $0x40] sm:$0xff]
          %v393 = vld [vmem:[%s383 + $0x48] sm:$0xff]
          %v394 = vld [vmem:[%s383 + $0x50] sm:$0xff]
          %v395 = vld [vmem:[%s383 + $0x58] sm:$0xff]
          %v396 = vld [vmem:[%s383 + $0x60] sm:$0xff]
          %v397 = vld [vmem:[%s383 + $0x68] sm:$0xff]
          %v398 = vld [vmem:[%s383 + $0x70] sm:$0xff]
          %v399 = vld [vmem:[%s383 + $0x78] sm:$0xff]
          %s400 = scalar_lea.vmem %s2, %s382
          %v401 = vld [vmem:[%s400] sm:$0xff]
          %v402 = vld [vmem:[%s400 + $0x8] sm:$0xff]
          %v403 = vld [vmem:[%s400 + $0x10] sm:$0xff]
          %v404 = vld [vmem:[%s400 + $0x18] sm:$0xff]
          %v405 = vld [vmem:[%s400 + $0x20] sm:$0xff]
          %v406 = vld [vmem:[%s400 + $0x28] sm:$0xff]
          %v407 = vld [vmem:[%s400 + $0x30] sm:$0xff]
          %v408 = vld [vmem:[%s400 + $0x38] sm:$0xff]
          %v409 = vld [vmem:[%s400 + $0x40] sm:$0xff]
          %v410 = vld [vmem:[%s400 + $0x48] sm:$0xff]
          %v411 = vld [vmem:[%s400 + $0x50] sm:$0xff]
          %v412 = vld [vmem:[%s400 + $0x58] sm:$0xff]
          %v413 = vld [vmem:[%s400 + $0x60] sm:$0xff]
          %v414 = vld [vmem:[%s400 + $0x68] sm:$0xff]
          %v415 = vld [vmem:[%s400 + $0x70] sm:$0xff]
          %v416 = vld [vmem:[%s400 + $0x78] sm:$0xff]
          %s417 = smul.u32 %s375, 16
          %s418 = smul.addr %s417, 4
          %s419 = scalar_lea.vmem %s3, %s418
          %v420 = vld [vmem:[%s419] sm:$0xf]
          %v421 = vld [vmem:[%s419 + $0x4] sm:$0xf]
          %v422 = vld [vmem:[%s419 + $0x8] sm:$0xf]
          %v423 = vld [vmem:[%s419 + $0xc] sm:$0xf]
          %v424 = vld [vmem:[%s419 + $0x10] sm:$0xf]
          %v425 = vld [vmem:[%s419 + $0x14] sm:$0xf]
          %v426 = vld [vmem:[%s419 + $0x18] sm:$0xf]
          %v427 = vld [vmem:[%s419 + $0x1c] sm:$0xf]
          %v428 = vld [vmem:[%s419 + $0x20] sm:$0xf]
          %v429 = vld [vmem:[%s419 + $0x24] sm:$0xf]
          %v430 = vld [vmem:[%s419 + $0x28] sm:$0xf]
          %v431 = vld [vmem:[%s419 + $0x2c] sm:$0xf]
          %v432 = vld [vmem:[%s419 + $0x30] sm:$0xf]
          %v433 = vld [vmem:[%s419 + $0x34] sm:$0xf]
          %v434 = vld [vmem:[%s419 + $0x38] sm:$0xf]
          %v435 = vld [vmem:[%s419 + $0x3c] sm:$0xf]
          %s436 = scalar_lea.vmem %s4, %s382
          %v437 = vld [vmem:[%s436] sm:$0xff]
          %v438 = vld [vmem:[%s436 + $0x8] sm:$0xff]
          %v439 = vld [vmem:[%s436 + $0x10] sm:$0xff]
          %v440 = vld [vmem:[%s436 + $0x18] sm:$0xff]
          %v441 = vld [vmem:[%s436 + $0x20] sm:$0xff]
          %v442 = vld [vmem:[%s436 + $0x28] sm:$0xff]
          %v443 = vld [vmem:[%s436 + $0x30] sm:$0xff]
          %v444 = vld [vmem:[%s436 + $0x38] sm:$0xff]
          %v445 = vld [vmem:[%s436 + $0x40] sm:$0xff]
          %v446 = vld [vmem:[%s436 + $0x48] sm:$0xff]
          %v447 = vld [vmem:[%s436 + $0x50] sm:$0xff]
          %v448 = vld [vmem:[%s436 + $0x58] sm:$0xff]
          %v449 = vld [vmem:[%s436 + $0x60] sm:$0xff]
          %v450 = vld [vmem:[%s436 + $0x68] sm:$0xff]
          %v451 = vld [vmem:[%s436 + $0x70] sm:$0xff]
          %v452 = vld [vmem:[%s436 + $0x78] sm:$0xff]
          %s453 = smul.addr %s375, 2
          %s454 = scalar_lea.vmem %s5, %s453
          %v455 = vld [vmem:[%s454] sm:$0x3]
          %s456 = smul.u32 %s375, 4
          %s457 = scalar_lea.vmem %s6, %s456
          %v458 = vld [vmem:[%s457] sm:$0xf]
          %s459 = scalar_lea.vmem %s7, %s382
          %v460 = vld [vmem:[%s459] sm:$0xff]
          %v461 = vld [vmem:[%s459 + $0x8] sm:$0xff]
          %v462 = vld [vmem:[%s459 + $0x10] sm:$0xff]
          %v463 = vld [vmem:[%s459 + $0x18] sm:$0xff]
          %v464 = vld [vmem:[%s459 + $0x20] sm:$0xff]
          %v465 = vld [vmem:[%s459 + $0x28] sm:$0xff]
          %v466 = vld [vmem:[%s459 + $0x30] sm:$0xff]
          %v467 = vld [vmem:[%s459 + $0x38] sm:$0xff]
          %v468 = vld [vmem:[%s459 + $0x40] sm:$0xff]
          %v469 = vld [vmem:[%s459 + $0x48] sm:$0xff]
          %v470 = vld [vmem:[%s459 + $0x50] sm:$0xff]
          %v471 = vld [vmem:[%s459 + $0x58] sm:$0xff]
          %v472 = vld [vmem:[%s459 + $0x60] sm:$0xff]
          %v473 = vld [vmem:[%s459 + $0x68] sm:$0xff]
          %v474 = vld [vmem:[%s459 + $0x70] sm:$0xff]
          %v475 = vld [vmem:[%s459 + $0x78] sm:$0xff]
          %s476 = smul.addr %s417, 4
          %s477 = scalar_lea.vmem %s8, %s476
          %v478 = vld [vmem:[%s477] sm:$0xf]
          %v479 = vld [vmem:[%s477 + $0x4] sm:$0xf]
          %v480 = vld [vmem:[%s477 + $0x8] sm:$0xf]
          %v481 = vld [vmem:[%s477 + $0xc] sm:$0xf]
          %v482 = vld [vmem:[%s477 + $0x10] sm:$0xf]
          %v483 = vld [vmem:[%s477 + $0x14] sm:$0xf]
          %v484 = vld [vmem:[%s477 + $0x18] sm:$0xf]
          %v485 = vld [vmem:[%s477 + $0x1c] sm:$0xf]
          %v486 = vld [vmem:[%s477 + $0x20] sm:$0xf]
          %v487 = vld [vmem:[%s477 + $0x24] sm:$0xf]
          %v488 = vld [vmem:[%s477 + $0x28] sm:$0xf]
          %v489 = vld [vmem:[%s477 + $0x2c] sm:$0xf]
          %v490 = vld [vmem:[%s477 + $0x30] sm:$0xf]
          %v491 = vld [vmem:[%s477 + $0x34] sm:$0xf]
          %v492 = vld [vmem:[%s477 + $0x38] sm:$0xf]
          %v493 = vld [vmem:[%s477 + $0x3c] sm:$0xf]
          %495 = vset.pattern.permute.xlu0 0
          %496 = vperm.xlu0 %495, %v384
          %v497 = vpop.permute.xlu0 %496
          %500 = vset.pattern.permute.xlu0 0
          %501 = vperm.xlu0 %500, %v385
          %v502 = vpop.permute.xlu0 %501
          %505 = vset.pattern.permute.xlu0 0
          %506 = vperm.xlu0 %505, %v386
          %v507 = vpop.permute.xlu0 %506
          %510 = vset.pattern.permute.xlu0 0
          %511 = vperm.xlu0 %510, %v387
          %v512 = vpop.permute.xlu0 %511
          %515 = vset.pattern.permute.xlu0 0
          %516 = vperm.xlu0 %515, %v388
          %v517 = vpop.permute.xlu0 %516
          %520 = vset.pattern.permute.xlu0 0
          %521 = vperm.xlu0 %520, %v389
          %v522 = vpop.permute.xlu0 %521
          %525 = vset.pattern.permute.xlu0 0
          %526 = vperm.xlu0 %525, %v390
          %v527 = vpop.permute.xlu0 %526
          %530 = vset.pattern.permute.xlu0 0
          %531 = vperm.xlu0 %530, %v391
          %v532 = vpop.permute.xlu0 %531
          %535 = vset.pattern.permute.xlu0 0
          %536 = vperm.xlu0 %535, %v392
          %v537 = vpop.permute.xlu0 %536
          %540 = vset.pattern.permute.xlu0 0
          %541 = vperm.xlu0 %540, %v393
          %v542 = vpop.permute.xlu0 %541
          %545 = vset.pattern.permute.xlu0 0
          %546 = vperm.xlu0 %545, %v394
          %v547 = vpop.permute.xlu0 %546
          %550 = vset.pattern.permute.xlu0 0
          %551 = vperm.xlu0 %550, %v395
          %v552 = vpop.permute.xlu0 %551
          %555 = vset.pattern.permute.xlu0 0
          %556 = vperm.xlu0 %555, %v396
          %v557 = vpop.permute.xlu0 %556
          %560 = vset.pattern.permute.xlu0 0
          %561 = vperm.xlu0 %560, %v397
          %v562 = vpop.permute.xlu0 %561
          %565 = vset.pattern.permute.xlu0 0
          %566 = vperm.xlu0 %565, %v398
          %v567 = vpop.permute.xlu0 %566
          %570 = vset.pattern.permute.xlu0 0
          %571 = vperm.xlu0 %570, %v399
          %v572 = vpop.permute.xlu0 %571
          %v575 = vlaneseq
          %v576 = vshrl.u32 %v575, 7
          %v577 = vsub.s32 0, %v576
          %v578 = vrot.slane %v380, %v577
          %v579 = vlaneseq
          %v580 = vshrl.u32 %v579, 7
          %v581 = vsub.s32 4, %v580
          %v582 = vrot.slane %v380, %v581
          %v585 = vlaneseq
          %v586 = vshrl.u32 %v585, 7
          %v587 = vsub.s32 0, %v586
          %v588 = vrot.slane %v578, %v587
          %v589 = vlaneseq
          %v590 = vshrl.u32 %v589, 7
          %v591 = vsub.s32 0, %v590
          %v592 = vrot.slane %v582, %v591
          %v593 = vmul.f32 %v497, %v588
          %v594 = vmul.f32 %v497, %v592
          %v595 = vmul.f32 %v502, %v588
          %v596 = vmul.f32 %v502, %v592
          %v597 = vmul.f32 %v507, %v588
          %v598 = vmul.f32 %v507, %v592
          %v599 = vmul.f32 %v512, %v588
          %v600 = vmul.f32 %v512, %v592
          %v601 = vmul.f32 %v517, %v588
          %v602 = vmul.f32 %v517, %v592
          %v603 = vmul.f32 %v522, %v588
          %v604 = vmul.f32 %v522, %v592
          %v605 = vmul.f32 %v527, %v588
          %v606 = vmul.f32 %v527, %v592
          %v607 = vmul.f32 %v532, %v588
          %v608 = vmul.f32 %v532, %v592
          %v609 = vmul.f32 %v537, %v588
          %v610 = vmul.f32 %v537, %v592
          %v611 = vmul.f32 %v542, %v588
          %v612 = vmul.f32 %v542, %v592
          %v613 = vmul.f32 %v547, %v588
          %v614 = vmul.f32 %v547, %v592
          %v615 = vmul.f32 %v552, %v588
          %v616 = vmul.f32 %v552, %v592
          %v617 = vmul.f32 %v557, %v588
          %v618 = vmul.f32 %v557, %v592
          %v619 = vmul.f32 %v562, %v588
          %v620 = vmul.f32 %v562, %v592
          %v621 = vmul.f32 %v567, %v588
          %v622 = vmul.f32 %v567, %v592
          %v623 = vmul.f32 %v572, %v588
          %v624 = vmul.f32 %v572, %v592
          %625 = vset.pattern.permute.xlu0 1
          %626 = vperm.xlu0 %625, %v384
          %v627 = vpop.permute.xlu0 %626
          %629 = vset.pattern.permute.xlu0 1
          %630 = vperm.xlu0 %629, %v385
          %v631 = vpop.permute.xlu0 %630
          %633 = vset.pattern.permute.xlu0 1
          %634 = vperm.xlu0 %633, %v386
          %v635 = vpop.permute.xlu0 %634
          %637 = vset.pattern.permute.xlu0 1
          %638 = vperm.xlu0 %637, %v387
          %v639 = vpop.permute.xlu0 %638
          %641 = vset.pattern.permute.xlu0 1
          %642 = vperm.xlu0 %641, %v388
          %v643 = vpop.permute.xlu0 %642
          %645 = vset.pattern.permute.xlu0 1
          %646 = vperm.xlu0 %645, %v389
          %v647 = vpop.permute.xlu0 %646
          %649 = vset.pattern.permute.xlu0 1
          %650 = vperm.xlu0 %649, %v390
          %v651 = vpop.permute.xlu0 %650
          %653 = vset.pattern.permute.xlu0 1
          %654 = vperm.xlu0 %653, %v391
          %v655 = vpop.permute.xlu0 %654
          %657 = vset.pattern.permute.xlu0 1
          %658 = vperm.xlu0 %657, %v392
          %v659 = vpop.permute.xlu0 %658
          %661 = vset.pattern.permute.xlu0 1
          %662 = vperm.xlu0 %661, %v393
          %v663 = vpop.permute.xlu0 %662
          %665 = vset.pattern.permute.xlu0 1
          %666 = vperm.xlu0 %665, %v394
          %v667 = vpop.permute.xlu0 %666
          %669 = vset.pattern.permute.xlu0 1
          %670 = vperm.xlu0 %669, %v395
          %v671 = vpop.permute.xlu0 %670
          %673 = vset.pattern.permute.xlu0 1
          %674 = vperm.xlu0 %673, %v396
          %v675 = vpop.permute.xlu0 %674
          %677 = vset.pattern.permute.xlu0 1
          %678 = vperm.xlu0 %677, %v397
          %v679 = vpop.permute.xlu0 %678
          %681 = vset.pattern.permute.xlu0 1
          %682 = vperm.xlu0 %681, %v398
          %v683 = vpop.permute.xlu0 %682
          %685 = vset.pattern.permute.xlu0 1
          %686 = vperm.xlu0 %685, %v399
          %v687 = vpop.permute.xlu0 %686
          %v689 = vlaneseq
          %v690 = vshrl.u32 %v689, 7
          %v691 = vsub.s32 1, %v690
          %v692 = vrot.slane %v380, %v691
          %v693 = vlaneseq
          %v694 = vshrl.u32 %v693, 7
          %v695 = vsub.s32 5, %v694
          %v696 = vrot.slane %v380, %v695
          %v699 = vlaneseq
          %v700 = vshrl.u32 %v699, 7
          %v701 = vsub.s32 1, %v700
          %v702 = vrot.slane %v692, %v701
          %v703 = vlaneseq
          %v704 = vshrl.u32 %v703, 7
          %v705 = vsub.s32 1, %v704
          %v706 = vrot.slane %v696, %v705
          %v707 = vmul.f32 %v627, %v702
          %v708 = vmul.f32 %v627, %v706
          %v709 = vmul.f32 %v631, %v702
          %v710 = vmul.f32 %v631, %v706
          %v711 = vmul.f32 %v635, %v702
          %v712 = vmul.f32 %v635, %v706
          %v713 = vmul.f32 %v639, %v702
          %v714 = vmul.f32 %v639, %v706
          %v715 = vmul.f32 %v643, %v702
          %v716 = vmul.f32 %v643, %v706
          %v717 = vmul.f32 %v647, %v702
          %v718 = vmul.f32 %v647, %v706
          %v719 = vmul.f32 %v651, %v702
          %v720 = vmul.f32 %v651, %v706
          %v721 = vmul.f32 %v655, %v702
          %v722 = vmul.f32 %v655, %v706
          %v723 = vmul.f32 %v659, %v702
          %v724 = vmul.f32 %v659, %v706
          %v725 = vmul.f32 %v663, %v702
          %v726 = vmul.f32 %v663, %v706
          %v727 = vmul.f32 %v667, %v702
          %v728 = vmul.f32 %v667, %v706
          %v729 = vmul.f32 %v671, %v702
          %v730 = vmul.f32 %v671, %v706
          %v731 = vmul.f32 %v675, %v702
          %v732 = vmul.f32 %v675, %v706
          %v733 = vmul.f32 %v679, %v702
          %v734 = vmul.f32 %v679, %v706
          %v735 = vmul.f32 %v683, %v702
          %v736 = vmul.f32 %v683, %v706
          %v737 = vmul.f32 %v687, %v702
          %v738 = vmul.f32 %v687, %v706
          %v739 = vadd.f32 %v593, %v707
          %v740 = vadd.f32 %v594, %v708
          %v741 = vadd.f32 %v595, %v709
          %v742 = vadd.f32 %v596, %v710
          %v743 = vadd.f32 %v597, %v711
          %v744 = vadd.f32 %v598, %v712
          %v745 = vadd.f32 %v599, %v713
          %v746 = vadd.f32 %v600, %v714
          %v747 = vadd.f32 %v601, %v715
          %v748 = vadd.f32 %v602, %v716
          %v749 = vadd.f32 %v603, %v717
          %v750 = vadd.f32 %v604, %v718
          %v751 = vadd.f32 %v605, %v719
          %v752 = vadd.f32 %v606, %v720
          %v753 = vadd.f32 %v607, %v721
          %v754 = vadd.f32 %v608, %v722
          %v755 = vadd.f32 %v609, %v723
          %v756 = vadd.f32 %v610, %v724
          %v757 = vadd.f32 %v611, %v725
          %v758 = vadd.f32 %v612, %v726
          %v759 = vadd.f32 %v613, %v727
          %v760 = vadd.f32 %v614, %v728
          %v761 = vadd.f32 %v615, %v729
          %v762 = vadd.f32 %v616, %v730
          %v763 = vadd.f32 %v617, %v731
          %v764 = vadd.f32 %v618, %v732
          %v765 = vadd.f32 %v619, %v733
          %v766 = vadd.f32 %v620, %v734
          %v767 = vadd.f32 %v621, %v735
          %v768 = vadd.f32 %v622, %v736
          %v769 = vadd.f32 %v623, %v737
          %v770 = vadd.f32 %v624, %v738
          %771 = vset.pattern.permute.xlu0 2
          %772 = vperm.xlu0 %771, %v384
          %v773 = vpop.permute.xlu0 %772
          %775 = vset.pattern.permute.xlu0 2
          %776 = vperm.xlu0 %775, %v385
          %v777 = vpop.permute.xlu0 %776
          %779 = vset.pattern.permute.xlu0 2
          %780 = vperm.xlu0 %779, %v386
          %v781 = vpop.permute.xlu0 %780
          %783 = vset.pattern.permute.xlu0 2
          %784 = vperm.xlu0 %783, %v387
          %v785 = vpop.permute.xlu0 %784
          %787 = vset.pattern.permute.xlu0 2
          %788 = vperm.xlu0 %787, %v388
          %v789 = vpop.permute.xlu0 %788
          %791 = vset.pattern.permute.xlu0 2
          %792 = vperm.xlu0 %791, %v389
          %v793 = vpop.permute.xlu0 %792
          %795 = vset.pattern.permute.xlu0 2
          %796 = vperm.xlu0 %795, %v390
          %v797 = vpop.permute.xlu0 %796
          %799 = vset.pattern.permute.xlu0 2
          %800 = vperm.xlu0 %799, %v391
          %v801 = vpop.permute.xlu0 %800
          %803 = vset.pattern.permute.xlu0 2
          %804 = vperm.xlu0 %803, %v392
          %v805 = vpop.permute.xlu0 %804
          %807 = vset.pattern.permute.xlu0 2
          %808 = vperm.xlu0 %807, %v393
          %v809 = vpop.permute.xlu0 %808
          %811 = vset.pattern.permute.xlu0 2
          %812 = vperm.xlu0 %811, %v394
          %v813 = vpop.permute.xlu0 %812
          %815 = vset.pattern.permute.xlu0 2
          %816 = vperm.xlu0 %815, %v395
          %v817 = vpop.permute.xlu0 %816
          %819 = vset.pattern.permute.xlu0 2
          %820 = vperm.xlu0 %819, %v396
          %v821 = vpop.permute.xlu0 %820
          %823 = vset.pattern.permute.xlu0 2
          %824 = vperm.xlu0 %823, %v397
          %v825 = vpop.permute.xlu0 %824
          %827 = vset.pattern.permute.xlu0 2
          %828 = vperm.xlu0 %827, %v398
          %v829 = vpop.permute.xlu0 %828
          %831 = vset.pattern.permute.xlu0 2
          %832 = vperm.xlu0 %831, %v399
          %v833 = vpop.permute.xlu0 %832
          %v835 = vlaneseq
          %v836 = vshrl.u32 %v835, 7
          %v837 = vsub.s32 2, %v836
          %v838 = vrot.slane %v380, %v837
          %v839 = vlaneseq
          %v840 = vshrl.u32 %v839, 7
          %v841 = vsub.s32 6, %v840
          %v842 = vrot.slane %v380, %v841
          %v845 = vlaneseq
          %v846 = vshrl.u32 %v845, 7
          %v847 = vsub.s32 2, %v846
          %v848 = vrot.slane %v838, %v847
          %v849 = vlaneseq
          %v850 = vshrl.u32 %v849, 7
          %v851 = vsub.s32 2, %v850
          %v852 = vrot.slane %v842, %v851
          %v853 = vmul.f32 %v773, %v848
          %v854 = vmul.f32 %v773, %v852
          %v855 = vmul.f32 %v777, %v848
          %v856 = vmul.f32 %v777, %v852
          %v857 = vmul.f32 %v781, %v848
          %v858 = vmul.f32 %v781, %v852
          %v859 = vmul.f32 %v785, %v848
          %v860 = vmul.f32 %v785, %v852
          %v861 = vmul.f32 %v789, %v848
          %v862 = vmul.f32 %v789, %v852
          %v863 = vmul.f32 %v793, %v848
          %v864 = vmul.f32 %v793, %v852
          %v865 = vmul.f32 %v797, %v848
          %v866 = vmul.f32 %v797, %v852
          %v867 = vmul.f32 %v801, %v848
          %v868 = vmul.f32 %v801, %v852
          %v869 = vmul.f32 %v805, %v848
          %v870 = vmul.f32 %v805, %v852
          %v871 = vmul.f32 %v809, %v848
          %v872 = vmul.f32 %v809, %v852
          %v873 = vmul.f32 %v813, %v848
          %v874 = vmul.f32 %v813, %v852
          %v875 = vmul.f32 %v817, %v848
          %v876 = vmul.f32 %v817, %v852
          %v877 = vmul.f32 %v821, %v848
          %v878 = vmul.f32 %v821, %v852
          %v879 = vmul.f32 %v825, %v848
          %v880 = vmul.f32 %v825, %v852
          %v881 = vmul.f32 %v829, %v848
          %v882 = vmul.f32 %v829, %v852
          %v883 = vmul.f32 %v833, %v848
          %v884 = vmul.f32 %v833, %v852
          %v885 = vadd.f32 %v739, %v853
          %v886 = vadd.f32 %v740, %v854
          %v887 = vadd.f32 %v741, %v855
          %v888 = vadd.f32 %v742, %v856
          %v889 = vadd.f32 %v743, %v857
          %v890 = vadd.f32 %v744, %v858
          %v891 = vadd.f32 %v745, %v859
          %v892 = vadd.f32 %v746, %v860
          %v893 = vadd.f32 %v747, %v861
          %v894 = vadd.f32 %v748, %v862
          %v895 = vadd.f32 %v749, %v863
          %v896 = vadd.f32 %v750, %v864
          %v897 = vadd.f32 %v751, %v865
          %v898 = vadd.f32 %v752, %v866
          %v899 = vadd.f32 %v753, %v867
          %v900 = vadd.f32 %v754, %v868
          %v901 = vadd.f32 %v755, %v869
          %v902 = vadd.f32 %v756, %v870
          %v903 = vadd.f32 %v757, %v871
          %v904 = vadd.f32 %v758, %v872
          %v905 = vadd.f32 %v759, %v873
          %v906 = vadd.f32 %v760, %v874
          %v907 = vadd.f32 %v761, %v875
          %v908 = vadd.f32 %v762, %v876
          %v909 = vadd.f32 %v763, %v877
          %v910 = vadd.f32 %v764, %v878
          %v911 = vadd.f32 %v765, %v879
          %v912 = vadd.f32 %v766, %v880
          %v913 = vadd.f32 %v767, %v881
          %v914 = vadd.f32 %v768, %v882
          %v915 = vadd.f32 %v769, %v883
          %v916 = vadd.f32 %v770, %v884
          %917 = vset.pattern.permute.xlu0 3
          %918 = vperm.xlu0 %917, %v384
          %v919 = vpop.permute.xlu0 %918
          %921 = vset.pattern.permute.xlu0 3
          %922 = vperm.xlu0 %921, %v385
          %v923 = vpop.permute.xlu0 %922
          %925 = vset.pattern.permute.xlu0 3
          %926 = vperm.xlu0 %925, %v386
          %v927 = vpop.permute.xlu0 %926
          %929 = vset.pattern.permute.xlu0 3
          %930 = vperm.xlu0 %929, %v387
          %v931 = vpop.permute.xlu0 %930
          %933 = vset.pattern.permute.xlu0 3
          %934 = vperm.xlu0 %933, %v388
          %v935 = vpop.permute.xlu0 %934
          %937 = vset.pattern.permute.xlu0 3
          %938 = vperm.xlu0 %937, %v389
          %v939 = vpop.permute.xlu0 %938
          %941 = vset.pattern.permute.xlu0 3
          %942 = vperm.xlu0 %941, %v390
          %v943 = vpop.permute.xlu0 %942
          %945 = vset.pattern.permute.xlu0 3
          %946 = vperm.xlu0 %945, %v391
          %v947 = vpop.permute.xlu0 %946
          %949 = vset.pattern.permute.xlu0 3
          %950 = vperm.xlu0 %949, %v392
          %v951 = vpop.permute.xlu0 %950
          %953 = vset.pattern.permute.xlu0 3
          %954 = vperm.xlu0 %953, %v393
          %v955 = vpop.permute.xlu0 %954
          %957 = vset.pattern.permute.xlu0 3
          %958 = vperm.xlu0 %957, %v394
          %v959 = vpop.permute.xlu0 %958
          %961 = vset.pattern.permute.xlu0 3
          %962 = vperm.xlu0 %961, %v395
          %v963 = vpop.permute.xlu0 %962
          %965 = vset.pattern.permute.xlu0 3
          %966 = vperm.xlu0 %965, %v396
          %v967 = vpop.permute.xlu0 %966
          %969 = vset.pattern.permute.xlu0 3
          %970 = vperm.xlu0 %969, %v397
          %v971 = vpop.permute.xlu0 %970
          %973 = vset.pattern.permute.xlu0 3
          %974 = vperm.xlu0 %973, %v398
          %v975 = vpop.permute.xlu0 %974
          %977 = vset.pattern.permute.xlu0 3
          %978 = vperm.xlu0 %977, %v399
          %v979 = vpop.permute.xlu0 %978
          %v981 = vlaneseq
          %v982 = vshrl.u32 %v981, 7
          %v983 = vsub.s32 3, %v982
          %v984 = vrot.slane %v380, %v983
          %v985 = vlaneseq
          %v986 = vshrl.u32 %v985, 7
          %v987 = vsub.s32 7, %v986
          %v988 = vrot.slane %v380, %v987
          %v991 = vlaneseq
          %v992 = vshrl.u32 %v991, 7
          %v993 = vsub.s32 3, %v992
          %v994 = vrot.slane %v984, %v993
          %v995 = vlaneseq
          %v996 = vshrl.u32 %v995, 7
          %v997 = vsub.s32 3, %v996
          %v998 = vrot.slane %v988, %v997
          %v999 = vmul.f32 %v919, %v994
          %v1000 = vmul.f32 %v919, %v998
          %v1001 = vmul.f32 %v923, %v994
          %v1002 = vmul.f32 %v923, %v998
          %v1003 = vmul.f32 %v927, %v994
          %v1004 = vmul.f32 %v927, %v998
          %v1005 = vmul.f32 %v931, %v994
          %v1006 = vmul.f32 %v931, %v998
          %v1007 = vmul.f32 %v935, %v994
          %v1008 = vmul.f32 %v935, %v998
          %v1009 = vmul.f32 %v939, %v994
          %v1010 = vmul.f32 %v939, %v998
          %v1011 = vmul.f32 %v943, %v994
          %v1012 = vmul.f32 %v943, %v998
          %v1013 = vmul.f32 %v947, %v994
          %v1014 = vmul.f32 %v947, %v998
          %v1015 = vmul.f32 %v951, %v994
          %v1016 = vmul.f32 %v951, %v998
          %v1017 = vmul.f32 %v955, %v994
          %v1018 = vmul.f32 %v955, %v998
          %v1019 = vmul.f32 %v959, %v994
          %v1020 = vmul.f32 %v959, %v998
          %v1021 = vmul.f32 %v963, %v994
          %v1022 = vmul.f32 %v963, %v998
          %v1023 = vmul.f32 %v967, %v994
          %v1024 = vmul.f32 %v967, %v998
          %v1025 = vmul.f32 %v971, %v994
          %v1026 = vmul.f32 %v971, %v998
          %v1027 = vmul.f32 %v975, %v994
          %v1028 = vmul.f32 %v975, %v998
          %v1029 = vmul.f32 %v979, %v994
          %v1030 = vmul.f32 %v979, %v998
          %v1031 = vadd.f32 %v885, %v999
          %v1032 = vadd.f32 %v886, %v1000
          %v1033 = vadd.f32 %v887, %v1001
          %v1034 = vadd.f32 %v888, %v1002
          %v1035 = vadd.f32 %v889, %v1003
          %v1036 = vadd.f32 %v890, %v1004
          %v1037 = vadd.f32 %v891, %v1005
          %v1038 = vadd.f32 %v892, %v1006
          %v1039 = vadd.f32 %v893, %v1007
          %v1040 = vadd.f32 %v894, %v1008
          %v1041 = vadd.f32 %v895, %v1009
          %v1042 = vadd.f32 %v896, %v1010
          %v1043 = vadd.f32 %v897, %v1011
          %v1044 = vadd.f32 %v898, %v1012
          %v1045 = vadd.f32 %v899, %v1013
          %v1046 = vadd.f32 %v900, %v1014
          %v1047 = vadd.f32 %v901, %v1015
          %v1048 = vadd.f32 %v902, %v1016
          %v1049 = vadd.f32 %v903, %v1017
          %v1050 = vadd.f32 %v904, %v1018
          %v1051 = vadd.f32 %v905, %v1019
          %v1052 = vadd.f32 %v906, %v1020
          %v1053 = vadd.f32 %v907, %v1021
          %v1054 = vadd.f32 %v908, %v1022
          %v1055 = vadd.f32 %v909, %v1023
          %v1056 = vadd.f32 %v910, %v1024
          %v1057 = vadd.f32 %v911, %v1025
          %v1058 = vadd.f32 %v912, %v1026
          %v1059 = vadd.f32 %v913, %v1027
          %v1060 = vadd.f32 %v914, %v1028
          %v1061 = vadd.f32 %v915, %v1029
          %v1062 = vadd.f32 %v916, %v1030
          %1064 = vset.pattern.permute.xlu0 0
          %1065 = vperm.xlu0 %1064, %v401
          %v1066 = vpop.permute.xlu0 %1065
          %1069 = vset.pattern.permute.xlu0 0
          %1070 = vperm.xlu0 %1069, %v402
          %v1071 = vpop.permute.xlu0 %1070
          %1074 = vset.pattern.permute.xlu0 0
          %1075 = vperm.xlu0 %1074, %v403
          %v1076 = vpop.permute.xlu0 %1075
          %1079 = vset.pattern.permute.xlu0 0
          %1080 = vperm.xlu0 %1079, %v404
          %v1081 = vpop.permute.xlu0 %1080
          %1084 = vset.pattern.permute.xlu0 0
          %1085 = vperm.xlu0 %1084, %v405
          %v1086 = vpop.permute.xlu0 %1085
          %1089 = vset.pattern.permute.xlu0 0
          %1090 = vperm.xlu0 %1089, %v406
          %v1091 = vpop.permute.xlu0 %1090
          %1094 = vset.pattern.permute.xlu0 0
          %1095 = vperm.xlu0 %1094, %v407
          %v1096 = vpop.permute.xlu0 %1095
          %1099 = vset.pattern.permute.xlu0 0
          %1100 = vperm.xlu0 %1099, %v408
          %v1101 = vpop.permute.xlu0 %1100
          %1104 = vset.pattern.permute.xlu0 0
          %1105 = vperm.xlu0 %1104, %v409
          %v1106 = vpop.permute.xlu0 %1105
          %1109 = vset.pattern.permute.xlu0 0
          %1110 = vperm.xlu0 %1109, %v410
          %v1111 = vpop.permute.xlu0 %1110
          %1114 = vset.pattern.permute.xlu0 0
          %1115 = vperm.xlu0 %1114, %v411
          %v1116 = vpop.permute.xlu0 %1115
          %1119 = vset.pattern.permute.xlu0 0
          %1120 = vperm.xlu0 %1119, %v412
          %v1121 = vpop.permute.xlu0 %1120
          %1124 = vset.pattern.permute.xlu0 0
          %1125 = vperm.xlu0 %1124, %v413
          %v1126 = vpop.permute.xlu0 %1125
          %1129 = vset.pattern.permute.xlu0 0
          %1130 = vperm.xlu0 %1129, %v414
          %v1131 = vpop.permute.xlu0 %1130
          %1134 = vset.pattern.permute.xlu0 0
          %1135 = vperm.xlu0 %1134, %v415
          %v1136 = vpop.permute.xlu0 %1135
          %1139 = vset.pattern.permute.xlu0 0
          %1140 = vperm.xlu0 %1139, %v416
          %v1141 = vpop.permute.xlu0 %1140
          %v1143 = vadd.f32 %v1031, %v1066
          %v1144 = vadd.f32 %v1032, %v1066
          %v1145 = vadd.f32 %v1033, %v1071
          %v1146 = vadd.f32 %v1034, %v1071
          %v1147 = vadd.f32 %v1035, %v1076
          %v1148 = vadd.f32 %v1036, %v1076
          %v1149 = vadd.f32 %v1037, %v1081
          %v1150 = vadd.f32 %v1038, %v1081
          %v1151 = vadd.f32 %v1039, %v1086
          %v1152 = vadd.f32 %v1040, %v1086
          %v1153 = vadd.f32 %v1041, %v1091
          %v1154 = vadd.f32 %v1042, %v1091
          %v1155 = vadd.f32 %v1043, %v1096
          %v1156 = vadd.f32 %v1044, %v1096
          %v1157 = vadd.f32 %v1045, %v1101
          %v1158 = vadd.f32 %v1046, %v1101
          %v1159 = vadd.f32 %v1047, %v1106
          %v1160 = vadd.f32 %v1048, %v1106
          %v1161 = vadd.f32 %v1049, %v1111
          %v1162 = vadd.f32 %v1050, %v1111
          %v1163 = vadd.f32 %v1051, %v1116
          %v1164 = vadd.f32 %v1052, %v1116
          %v1165 = vadd.f32 %v1053, %v1121
          %v1166 = vadd.f32 %v1054, %v1121
          %v1167 = vadd.f32 %v1055, %v1126
          %v1168 = vadd.f32 %v1056, %v1126
          %v1169 = vadd.f32 %v1057, %v1131
          %v1170 = vadd.f32 %v1058, %v1131
          %v1171 = vadd.f32 %v1059, %v1136
          %v1172 = vadd.f32 %v1060, %v1136
          %v1173 = vadd.f32 %v1061, %v1141
          %v1174 = vadd.f32 %v1062, %v1141
          %v1175 = vtanh.pop %v1143
          %v1176 = vtanh.pop %v1144
          %v1177 = vtanh.pop %v1145
          %v1178 = vtanh.pop %v1146
          %v1179 = vtanh.pop %v1147
          %v1180 = vtanh.pop %v1148
          %v1181 = vtanh.pop %v1149
          %v1182 = vtanh.pop %v1150
          %v1183 = vtanh.pop %v1151
          %v1184 = vtanh.pop %v1152
          %v1185 = vtanh.pop %v1153
          %v1186 = vtanh.pop %v1154
          %v1187 = vtanh.pop %v1155
          %v1188 = vtanh.pop %v1156
          %v1189 = vtanh.pop %v1157
          %v1190 = vtanh.pop %v1158
          %v1191 = vtanh.pop %v1159
          %v1192 = vtanh.pop %v1160
          %v1193 = vtanh.pop %v1161
          %v1194 = vtanh.pop %v1162
          %v1195 = vtanh.pop %v1163
          %v1196 = vtanh.pop %v1164
          %v1197 = vtanh.pop %v1165
          %v1198 = vtanh.pop %v1166
          %v1199 = vtanh.pop %v1167
          %v1200 = vtanh.pop %v1168
          %v1201 = vtanh.pop %v1169
          %v1202 = vtanh.pop %v1170
          %v1203 = vtanh.pop %v1171
          %v1204 = vtanh.pop %v1172
          %v1205 = vtanh.pop %v1173
          %v1206 = vtanh.pop %v1174
          %v1207 = vmul.f32 %v1175, %v1175
          %v1208 = vmul.f32 %v1176, %v1176
          %v1209 = vmul.f32 %v1177, %v1177
          %v1210 = vmul.f32 %v1178, %v1178
          %v1211 = vmul.f32 %v1179, %v1179
          %v1212 = vmul.f32 %v1180, %v1180
          %v1213 = vmul.f32 %v1181, %v1181
          %v1214 = vmul.f32 %v1182, %v1182
          %v1215 = vmul.f32 %v1183, %v1183
          %v1216 = vmul.f32 %v1184, %v1184
          %v1217 = vmul.f32 %v1185, %v1185
          %v1218 = vmul.f32 %v1186, %v1186
          %v1219 = vmul.f32 %v1187, %v1187
          %v1220 = vmul.f32 %v1188, %v1188
          %v1221 = vmul.f32 %v1189, %v1189
          %v1222 = vmul.f32 %v1190, %v1190
          %v1223 = vmul.f32 %v1191, %v1191
          %v1224 = vmul.f32 %v1192, %v1192
          %v1225 = vmul.f32 %v1193, %v1193
          %v1226 = vmul.f32 %v1194, %v1194
          %v1227 = vmul.f32 %v1195, %v1195
          %v1228 = vmul.f32 %v1196, %v1196
          %v1229 = vmul.f32 %v1197, %v1197
          %v1230 = vmul.f32 %v1198, %v1198
          %v1231 = vmul.f32 %v1199, %v1199
          %v1232 = vmul.f32 %v1200, %v1200
          %v1233 = vmul.f32 %v1201, %v1201
          %v1234 = vmul.f32 %v1202, %v1202
          %v1235 = vmul.f32 %v1203, %v1203
          %v1236 = vmul.f32 %v1204, %v1204
          %v1237 = vmul.f32 %v1205, %v1205
          %v1238 = vmul.f32 %v1206, %v1206
          %v1239 = vsub.f32 1.0, %v1207
          %v1240 = vsub.f32 1.0, %v1208
          %v1241 = vsub.f32 1.0, %v1209
          %v1242 = vsub.f32 1.0, %v1210
          %v1243 = vsub.f32 1.0, %v1211
          %v1244 = vsub.f32 1.0, %v1212
          %v1245 = vsub.f32 1.0, %v1213
          %v1246 = vsub.f32 1.0, %v1214
          %v1247 = vsub.f32 1.0, %v1215
          %v1248 = vsub.f32 1.0, %v1216
          %v1249 = vsub.f32 1.0, %v1217
          %v1250 = vsub.f32 1.0, %v1218
          %v1251 = vsub.f32 1.0, %v1219
          %v1252 = vsub.f32 1.0, %v1220
          %v1253 = vsub.f32 1.0, %v1221
          %v1254 = vsub.f32 1.0, %v1222
          %v1255 = vsub.f32 1.0, %v1223
          %v1256 = vsub.f32 1.0, %v1224
          %v1257 = vsub.f32 1.0, %v1225
          %v1258 = vsub.f32 1.0, %v1226
          %v1259 = vsub.f32 1.0, %v1227
          %v1260 = vsub.f32 1.0, %v1228
          %v1261 = vsub.f32 1.0, %v1229
          %v1262 = vsub.f32 1.0, %v1230
          %v1263 = vsub.f32 1.0, %v1231
          %v1264 = vsub.f32 1.0, %v1232
          %v1265 = vsub.f32 1.0, %v1233
          %v1266 = vsub.f32 1.0, %v1234
          %v1267 = vsub.f32 1.0, %v1235
          %v1268 = vsub.f32 1.0, %v1236
          %v1269 = vsub.f32 1.0, %v1237
          %v1270 = vsub.f32 1.0, %v1238
          %v1271 = vpack.c.bf16 %v1177, %v1175
          %v1272 = vpack.c.bf16 %v1178, %v1176
          %v1273 = vpack.c.bf16 %v1181, %v1179
          %v1274 = vpack.c.bf16 %v1182, %v1180
          %v1275 = vpack.c.bf16 %v1185, %v1183
          %v1276 = vpack.c.bf16 %v1186, %v1184
          %v1277 = vpack.c.bf16 %v1189, %v1187
          %v1278 = vpack.c.bf16 %v1190, %v1188
          %v1279 = vpack.c.bf16 %v1193, %v1191
          %v1280 = vpack.c.bf16 %v1194, %v1192
          %v1281 = vpack.c.bf16 %v1197, %v1195
          %v1282 = vpack.c.bf16 %v1198, %v1196
          %v1283 = vpack.c.bf16 %v1201, %v1199
          %v1284 = vpack.c.bf16 %v1202, %v1200
          %v1285 = vpack.c.bf16 %v1205, %v1203
          %v1286 = vpack.c.bf16 %v1206, %v1204
          %1288 = vset.pattern.permute.xlu0 0
          %1289 = vperm.xlu0 %1288, %v437
          %v1290 = vpop.permute.xlu0 %1289
          %1293 = vset.pattern.permute.xlu0 0
          %1294 = vperm.xlu0 %1293, %v438
          %v1295 = vpop.permute.xlu0 %1294
          %1298 = vset.pattern.permute.xlu0 0
          %1299 = vperm.xlu0 %1298, %v439
          %v1300 = vpop.permute.xlu0 %1299
          %1303 = vset.pattern.permute.xlu0 0
          %1304 = vperm.xlu0 %1303, %v440
          %v1305 = vpop.permute.xlu0 %1304
          %1308 = vset.pattern.permute.xlu0 0
          %1309 = vperm.xlu0 %1308, %v441
          %v1310 = vpop.permute.xlu0 %1309
          %1313 = vset.pattern.permute.xlu0 0
          %1314 = vperm.xlu0 %1313, %v442
          %v1315 = vpop.permute.xlu0 %1314
          %1318 = vset.pattern.permute.xlu0 0
          %1319 = vperm.xlu0 %1318, %v443
          %v1320 = vpop.permute.xlu0 %1319
          %1323 = vset.pattern.permute.xlu0 0
          %1324 = vperm.xlu0 %1323, %v444
          %v1325 = vpop.permute.xlu0 %1324
          %1328 = vset.pattern.permute.xlu0 0
          %1329 = vperm.xlu0 %1328, %v445
          %v1330 = vpop.permute.xlu0 %1329
          %1333 = vset.pattern.permute.xlu0 0
          %1334 = vperm.xlu0 %1333, %v446
          %v1335 = vpop.permute.xlu0 %1334
          %1338 = vset.pattern.permute.xlu0 0
          %1339 = vperm.xlu0 %1338, %v447
          %v1340 = vpop.permute.xlu0 %1339
          %1343 = vset.pattern.permute.xlu0 0
          %1344 = vperm.xlu0 %1343, %v448
          %v1345 = vpop.permute.xlu0 %1344
          %1348 = vset.pattern.permute.xlu0 0
          %1349 = vperm.xlu0 %1348, %v449
          %v1350 = vpop.permute.xlu0 %1349
          %1353 = vset.pattern.permute.xlu0 0
          %1354 = vperm.xlu0 %1353, %v450
          %v1355 = vpop.permute.xlu0 %1354
          %1358 = vset.pattern.permute.xlu0 0
          %1359 = vperm.xlu0 %1358, %v451
          %v1360 = vpop.permute.xlu0 %1359
          %1363 = vset.pattern.permute.xlu0 0
          %1364 = vperm.xlu0 %1363, %v452
          %v1365 = vpop.permute.xlu0 %1364
          %v1383 = vunpack.c.l.b16 %v420
          %v1384 = vunpack.c.l.b16 %v421
          %v1385 = vunpack.c.l.b16 %v422
          %v1386 = vunpack.c.l.b16 %v423
          %v1387 = vunpack.c.l.b16 %v424
          %v1388 = vunpack.c.l.b16 %v425
          %v1389 = vunpack.c.l.b16 %v426
          %v1390 = vunpack.c.l.b16 %v427
          %v1391 = vunpack.c.l.b16 %v428
          %v1392 = vunpack.c.l.b16 %v429
          %v1393 = vunpack.c.l.b16 %v430
          %v1394 = vunpack.c.l.b16 %v431
          %v1395 = vunpack.c.l.b16 %v432
          %v1396 = vunpack.c.l.b16 %v433
          %v1397 = vunpack.c.l.b16 %v434
          %v1398 = vunpack.c.l.b16 %v435
          %v1399 = vpack.c.b16 %v1384, %v1383
          %v1400 = vpack.c.b16 %v1386, %v1385
          %v1401 = vpack.c.b16 %v1388, %v1387
          %v1402 = vpack.c.b16 %v1390, %v1389
          %v1403 = vpack.c.b16 %v1392, %v1391
          %v1404 = vpack.c.b16 %v1394, %v1393
          %v1405 = vpack.c.b16 %v1396, %v1395
          %v1406 = vpack.c.b16 %v1398, %v1397
          %1415 = vmatprep.subr.bf16.mxu0 %v1286
          %1416 = vmatpush1.bf16.msra.mxu0 %v1285
          %1417 = vmatprep.subr.bf16.mxu0 %v1284
          %1418 = vmatpush1.bf16.msra.mxu0 %v1283
          %1419 = vmatprep.subr.bf16.mxu0 %v1282
          %1420 = vmatpush1.bf16.msra.mxu0 %v1281
          %1421 = vmatprep.subr.bf16.mxu0 %v1280
          %1422 = vmatpush1.bf16.msra.mxu0 %v1279
          %1423 = vmatprep.subr.bf16.mxu0 %v1278
          %1424 = vmatpush1.bf16.msra.mxu0 %v1277
          %1425 = vmatprep.subr.bf16.mxu0 %v1276
          %1426 = vmatpush1.bf16.msra.mxu0 %v1275
          %1427 = vmatprep.subr.bf16.mxu0 %v1274
          %1428 = vmatpush1.bf16.msra.mxu0 %v1273
          %1429 = vmatprep.subr.bf16.mxu0 %v1272
          %1430 = vmatpush1.bf16.msra.mxu0 %v1271
          %1431 = vmatprep.subr.bf16.mxu0 0
          %1432 = vmatpush2.bf16.msra.mxu0 0
          %1433 = vmatprep.subr.bf16.mxu0 0
          %1434 = vmatpush2.bf16.msra.mxu0 0
          %1435 = vmatprep.subr.bf16.mxu0 0
          %1436 = vmatpush2.bf16.msra.mxu0 0
          %1437 = vmatprep.subr.bf16.mxu0 0
          %1438 = vmatpush2.bf16.msra.mxu0 0
          %1439 = vmatprep.subr.bf16.mxu0 0
          %1440 = vmatpush2.bf16.msra.mxu0 0
          %1441 = vmatprep.subr.bf16.mxu0 0
          %1442 = vmatpush2.bf16.msra.mxu0 0
          %1443 = vmatprep.subr.bf16.mxu0 0
          %1444 = vmatpush2.bf16.msra.mxu0 0
          %1445 = vmatprep.subr.bf16.mxu0 0
          %1446 = vmatpush2.bf16.msra.mxu0 0
          %1447 = vmatprep.mubr.bf16.mxu0 0
          %1448 = vmatmul.mubr.bf16.gmra.mxu0 %v1399
          %v1449 = vpop.f32.mrf.mxu0
          %v1450 = vadd.f32 %v1290, %v1449
          %v1451 = vpop.f32.mrf.mxu0
          %v1452 = vadd.f32 %v1290, %v1451
          %v1453 = vpop.f32.mrf.mxu0
          %v1454 = vadd.f32 %v1295, %v1453
          %v1455 = vpop.f32.mrf.mxu0
          %v1456 = vadd.f32 %v1295, %v1455
          %1457 = vmatprep.mubr.bf16.mxu0 0
          %1458 = vmatmul.mubr.bf16.gmra.mxu0 %v1400
          %v1459 = vpop.f32.mrf.mxu0
          %v1460 = vadd.f32 %v1300, %v1459
          %v1461 = vpop.f32.mrf.mxu0
          %v1462 = vadd.f32 %v1300, %v1461
          %v1463 = vpop.f32.mrf.mxu0
          %v1464 = vadd.f32 %v1305, %v1463
          %v1465 = vpop.f32.mrf.mxu0
          %v1466 = vadd.f32 %v1305, %v1465
          %1467 = vmatprep.mubr.bf16.mxu0 0
          %1468 = vmatmul.mubr.bf16.gmra.mxu0 %v1401
          %v1469 = vpop.f32.mrf.mxu0
          %v1470 = vadd.f32 %v1310, %v1469
          %v1471 = vpop.f32.mrf.mxu0
          %v1472 = vadd.f32 %v1310, %v1471
          %v1473 = vpop.f32.mrf.mxu0
          %v1474 = vadd.f32 %v1315, %v1473
          %v1475 = vpop.f32.mrf.mxu0
          %v1476 = vadd.f32 %v1315, %v1475
          %1477 = vmatprep.mubr.bf16.mxu0 0
          %1478 = vmatmul.mubr.bf16.gmra.mxu0 %v1402
          %v1479 = vpop.f32.mrf.mxu0
          %v1480 = vadd.f32 %v1320, %v1479
          %v1481 = vpop.f32.mrf.mxu0
          %v1482 = vadd.f32 %v1320, %v1481
          %v1483 = vpop.f32.mrf.mxu0
          %v1484 = vadd.f32 %v1325, %v1483
          %v1485 = vpop.f32.mrf.mxu0
          %v1486 = vadd.f32 %v1325, %v1485
          %1487 = vmatprep.mubr.bf16.mxu0 0
          %1488 = vmatmul.mubr.bf16.gmra.mxu0 %v1403
          %v1489 = vpop.f32.mrf.mxu0
          %v1490 = vadd.f32 %v1330, %v1489
          %v1491 = vpop.f32.mrf.mxu0
          %v1492 = vadd.f32 %v1330, %v1491
          %v1493 = vpop.f32.mrf.mxu0
          %v1494 = vadd.f32 %v1335, %v1493
          %v1495 = vpop.f32.mrf.mxu0
          %v1496 = vadd.f32 %v1335, %v1495
          %1497 = vmatprep.mubr.bf16.mxu0 0
          %1498 = vmatmul.mubr.bf16.gmra.mxu0 %v1404
          %v1499 = vpop.f32.mrf.mxu0
          %v1500 = vadd.f32 %v1340, %v1499
          %v1501 = vpop.f32.mrf.mxu0
          %v1502 = vadd.f32 %v1340, %v1501
          %v1503 = vpop.f32.mrf.mxu0
          %v1504 = vadd.f32 %v1345, %v1503
          %v1505 = vpop.f32.mrf.mxu0
          %v1506 = vadd.f32 %v1345, %v1505
          %1507 = vmatprep.mubr.bf16.mxu0 0
          %1508 = vmatmul.mubr.bf16.gmra.mxu0 %v1405
          %v1509 = vpop.f32.mrf.mxu0
          %v1510 = vadd.f32 %v1350, %v1509
          %v1511 = vpop.f32.mrf.mxu0
          %v1512 = vadd.f32 %v1350, %v1511
          %v1513 = vpop.f32.mrf.mxu0
          %v1514 = vadd.f32 %v1355, %v1513
          %v1515 = vpop.f32.mrf.mxu0
          %v1516 = vadd.f32 %v1355, %v1515
          %1517 = vmatprep.mubr.bf16.mxu0 0
          %1518 = vmatmul.mubr.bf16.gmra.mxu0 %v1406
          %v1519 = vpop.f32.mrf.mxu0
          %v1520 = vadd.f32 %v1360, %v1519
          %v1521 = vpop.f32.mrf.mxu0
          %v1522 = vadd.f32 %v1360, %v1521
          %v1523 = vpop.f32.mrf.mxu0
          %v1524 = vadd.f32 %v1365, %v1523
          %v1525 = vpop.f32.mrf.mxu0
          %v1526 = vadd.f32 %v1365, %v1525
          %1527 = vdwg.mxu0
          %v1528 = vtanh.pop %v1450
          %v1529 = vtanh.pop %v1452
          %v1530 = vtanh.pop %v1454
          %v1531 = vtanh.pop %v1456
          %v1532 = vtanh.pop %v1460
          %v1533 = vtanh.pop %v1462
          %v1534 = vtanh.pop %v1464
          %v1535 = vtanh.pop %v1466
          %v1536 = vtanh.pop %v1470
          %v1537 = vtanh.pop %v1472
          %v1538 = vtanh.pop %v1474
          %v1539 = vtanh.pop %v1476
          %v1540 = vtanh.pop %v1480
          %v1541 = vtanh.pop %v1482
          %v1542 = vtanh.pop %v1484
          %v1543 = vtanh.pop %v1486
          %v1544 = vtanh.pop %v1490
          %v1545 = vtanh.pop %v1492
          %v1546 = vtanh.pop %v1494
          %v1547 = vtanh.pop %v1496
          %v1548 = vtanh.pop %v1500
          %v1549 = vtanh.pop %v1502
          %v1550 = vtanh.pop %v1504
          %v1551 = vtanh.pop %v1506
          %v1552 = vtanh.pop %v1510
          %v1553 = vtanh.pop %v1512
          %v1554 = vtanh.pop %v1514
          %v1555 = vtanh.pop %v1516
          %v1556 = vtanh.pop %v1520
          %v1557 = vtanh.pop %v1522
          %v1558 = vtanh.pop %v1524
          %v1559 = vtanh.pop %v1526
          %v1560 = vmul.f32 %v1528, %v1528
          %v1561 = vmul.f32 %v1529, %v1529
          %v1562 = vmul.f32 %v1530, %v1530
          %v1563 = vmul.f32 %v1531, %v1531
          %v1564 = vmul.f32 %v1532, %v1532
          %v1565 = vmul.f32 %v1533, %v1533
          %v1566 = vmul.f32 %v1534, %v1534
          %v1567 = vmul.f32 %v1535, %v1535
          %v1568 = vmul.f32 %v1536, %v1536
          %v1569 = vmul.f32 %v1537, %v1537
          %v1570 = vmul.f32 %v1538, %v1538
          %v1571 = vmul.f32 %v1539, %v1539
          %v1572 = vmul.f32 %v1540, %v1540
          %v1573 = vmul.f32 %v1541, %v1541
          %v1574 = vmul.f32 %v1542, %v1542
          %v1575 = vmul.f32 %v1543, %v1543
          %v1576 = vmul.f32 %v1544, %v1544
          %v1577 = vmul.f32 %v1545, %v1545
          %v1578 = vmul.f32 %v1546, %v1546
          %v1579 = vmul.f32 %v1547, %v1547
          %v1580 = vmul.f32 %v1548, %v1548
          %v1581 = vmul.f32 %v1549, %v1549
          %v1582 = vmul.f32 %v1550, %v1550
          %v1583 = vmul.f32 %v1551, %v1551
          %v1584 = vmul.f32 %v1552, %v1552
          %v1585 = vmul.f32 %v1553, %v1553
          %v1586 = vmul.f32 %v1554, %v1554
          %v1587 = vmul.f32 %v1555, %v1555
          %v1588 = vmul.f32 %v1556, %v1556
          %v1589 = vmul.f32 %v1557, %v1557
          %v1590 = vmul.f32 %v1558, %v1558
          %v1591 = vmul.f32 %v1559, %v1559
          %v1592 = vsub.f32 1.0, %v1560
          %v1593 = vsub.f32 1.0, %v1561
          %v1594 = vsub.f32 1.0, %v1562
          %v1595 = vsub.f32 1.0, %v1563
          %v1596 = vsub.f32 1.0, %v1564
          %v1597 = vsub.f32 1.0, %v1565
          %v1598 = vsub.f32 1.0, %v1566
          %v1599 = vsub.f32 1.0, %v1567
          %v1600 = vsub.f32 1.0, %v1568
          %v1601 = vsub.f32 1.0, %v1569
          %v1602 = vsub.f32 1.0, %v1570
          %v1603 = vsub.f32 1.0, %v1571
          %v1604 = vsub.f32 1.0, %v1572
          %v1605 = vsub.f32 1.0, %v1573
          %v1606 = vsub.f32 1.0, %v1574
          %v1607 = vsub.f32 1.0, %v1575
          %v1608 = vsub.f32 1.0, %v1576
          %v1609 = vsub.f32 1.0, %v1577
          %v1610 = vsub.f32 1.0, %v1578
          %v1611 = vsub.f32 1.0, %v1579
          %v1612 = vsub.f32 1.0, %v1580
          %v1613 = vsub.f32 1.0, %v1581
          %v1614 = vsub.f32 1.0, %v1582
          %v1615 = vsub.f32 1.0, %v1583
          %v1616 = vsub.f32 1.0, %v1584
          %v1617 = vsub.f32 1.0, %v1585
          %v1618 = vsub.f32 1.0, %v1586
          %v1619 = vsub.f32 1.0, %v1587
          %v1620 = vsub.f32 1.0, %v1588
          %v1621 = vsub.f32 1.0, %v1589
          %v1622 = vsub.f32 1.0, %v1590
          %v1623 = vsub.f32 1.0, %v1591
          %v1624 = vpack.c.bf16 %v1530, %v1528
          %v1625 = vpack.c.bf16 %v1531, %v1529
          %v1626 = vpack.c.bf16 %v1534, %v1532
          %v1627 = vpack.c.bf16 %v1535, %v1533
          %v1628 = vpack.c.bf16 %v1538, %v1536
          %v1629 = vpack.c.bf16 %v1539, %v1537
          %v1630 = vpack.c.bf16 %v1542, %v1540
          %v1631 = vpack.c.bf16 %v1543, %v1541
          %v1632 = vpack.c.bf16 %v1546, %v1544
          %v1633 = vpack.c.bf16 %v1547, %v1545
          %v1634 = vpack.c.bf16 %v1550, %v1548
          %v1635 = vpack.c.bf16 %v1551, %v1549
          %v1636 = vpack.c.bf16 %v1554, %v1552
          %v1637 = vpack.c.bf16 %v1555, %v1553
          %v1638 = vpack.c.bf16 %v1558, %v1556
          %v1639 = vpack.c.bf16 %v1559, %v1557
          %1641 = vset.pattern.permute.xlu0 0
          %1642 = vperm.xlu0 %1641, %v458
          %v1643 = vpop.permute.xlu0 %1642
          %1645 = vmatprep.subr.bf16.mxu0 %v1639
          %1646 = vmatpush1.bf16.msra.mxu0 %v1638
          %1647 = vmatprep.subr.bf16.mxu0 %v1637
          %1648 = vmatpush1.bf16.msra.mxu0 %v1636
          %1649 = vmatprep.subr.bf16.mxu0 %v1635
          %1650 = vmatpush1.bf16.msra.mxu0 %v1634
          %1651 = vmatprep.subr.bf16.mxu0 %v1633
          %1652 = vmatpush1.bf16.msra.mxu0 %v1632
          %1653 = vmatprep.subr.bf16.mxu0 %v1631
          %1654 = vmatpush1.bf16.msra.mxu0 %v1630
          %1655 = vmatprep.subr.bf16.mxu0 %v1629
          %1656 = vmatpush1.bf16.msra.mxu0 %v1628
          %1657 = vmatprep.subr.bf16.mxu0 %v1627
          %1658 = vmatpush1.bf16.msra.mxu0 %v1626
          %1659 = vmatprep.subr.bf16.mxu0 %v1625
          %1660 = vmatpush1.bf16.msra.mxu0 %v1624
          %1661 = vmatprep.subr.bf16.mxu0 0
          %1662 = vmatpush2.bf16.msra.mxu0 0
          %1663 = vmatprep.subr.bf16.mxu0 0
          %1664 = vmatpush2.bf16.msra.mxu0 0
          %1665 = vmatprep.subr.bf16.mxu0 0
          %1666 = vmatpush2.bf16.msra.mxu0 0
          %1667 = vmatprep.subr.bf16.mxu0 0
          %1668 = vmatpush2.bf16.msra.mxu0 0
          %1669 = vmatprep.subr.bf16.mxu0 0
          %1670 = vmatpush2.bf16.msra.mxu0 0
          %1671 = vmatprep.subr.bf16.mxu0 0
          %1672 = vmatpush2.bf16.msra.mxu0 0
          %1673 = vmatprep.subr.bf16.mxu0 0
          %1674 = vmatpush2.bf16.msra.mxu0 0
          %1675 = vmatprep.subr.bf16.mxu0 0
          %1676 = vmatpush2.bf16.msra.mxu0 0
          %1677 = vmatprep.mubr.bf16.mxu0 0
          %1678 = vmatmul.mubr.bf16.gmra.mxu0 %v455
          %v1679 = vpop.f32.mrf.mxu0
          %v1680 = vadd.f32 %v1643, %v1679
          %v1681 = vpop.f32.mrf.mxu0
          %v1682 = vadd.f32 %v1643, %v1681
          %v1683 = vpop.f32.mrf.mxu0
          %v1684 = vpop.f32.mrf.mxu0
          %1685 = vdwg.mxu0
          %v1686 = vmul.f32 %v497, %v1239
          %v1687 = vmul.f32 %v497, %v1240
          %v1688 = vmul.f32 %v502, %v1241
          %v1689 = vmul.f32 %v502, %v1242
          %v1690 = vmul.f32 %v507, %v1243
          %v1691 = vmul.f32 %v507, %v1244
          %v1692 = vmul.f32 %v512, %v1245
          %v1693 = vmul.f32 %v512, %v1246
          %v1694 = vmul.f32 %v517, %v1247
          %v1695 = vmul.f32 %v517, %v1248
          %v1696 = vmul.f32 %v522, %v1249
          %v1697 = vmul.f32 %v522, %v1250
          %v1698 = vmul.f32 %v527, %v1251
          %v1699 = vmul.f32 %v527, %v1252
          %v1700 = vmul.f32 %v532, %v1253
          %v1701 = vmul.f32 %v532, %v1254
          %v1702 = vmul.f32 %v537, %v1255
          %v1703 = vmul.f32 %v537, %v1256
          %v1704 = vmul.f32 %v542, %v1257
          %v1705 = vmul.f32 %v542, %v1258
          %v1706 = vmul.f32 %v547, %v1259
          %v1707 = vmul.f32 %v547, %v1260
          %v1708 = vmul.f32 %v552, %v1261
          %v1709 = vmul.f32 %v552, %v1262
          %v1710 = vmul.f32 %v557, %v1263
          %v1711 = vmul.f32 %v557, %v1264
          %v1712 = vmul.f32 %v562, %v1265
          %v1713 = vmul.f32 %v562, %v1266
          %v1714 = vmul.f32 %v567, %v1267
          %v1715 = vmul.f32 %v567, %v1268
          %v1716 = vmul.f32 %v572, %v1269
          %v1717 = vmul.f32 %v572, %v1270
          %v1718 = vmul.f32 %v627, %v1239
          %v1719 = vmul.f32 %v627, %v1240
          %v1720 = vmul.f32 %v631, %v1241
          %v1721 = vmul.f32 %v631, %v1242
          %v1722 = vmul.f32 %v635, %v1243
          %v1723 = vmul.f32 %v635, %v1244
          %v1724 = vmul.f32 %v639, %v1245
          %v1725 = vmul.f32 %v639, %v1246
          %v1726 = vmul.f32 %v643, %v1247
          %v1727 = vmul.f32 %v643, %v1248
          %v1728 = vmul.f32 %v647, %v1249
          %v1729 = vmul.f32 %v647, %v1250
          %v1730 = vmul.f32 %v651, %v1251
          %v1731 = vmul.f32 %v651, %v1252
          %v1732 = vmul.f32 %v655, %v1253
          %v1733 = vmul.f32 %v655, %v1254
          %v1734 = vmul.f32 %v659, %v1255
          %v1735 = vmul.f32 %v659, %v1256
          %v1736 = vmul.f32 %v663, %v1257
          %v1737 = vmul.f32 %v663, %v1258
          %v1738 = vmul.f32 %v667, %v1259
          %v1739 = vmul.f32 %v667, %v1260
          %v1740 = vmul.f32 %v671, %v1261
          %v1741 = vmul.f32 %v671, %v1262
          %v1742 = vmul.f32 %v675, %v1263
          %v1743 = vmul.f32 %v675, %v1264
          %v1744 = vmul.f32 %v679, %v1265
          %v1745 = vmul.f32 %v679, %v1266
          %v1746 = vmul.f32 %v683, %v1267
          %v1747 = vmul.f32 %v683, %v1268
          %v1748 = vmul.f32 %v687, %v1269
          %v1749 = vmul.f32 %v687, %v1270
          %v1750 = vmul.f32 %v773, %v1239
          %v1751 = vmul.f32 %v773, %v1240
          %v1752 = vmul.f32 %v777, %v1241
          %v1753 = vmul.f32 %v777, %v1242
          %v1754 = vmul.f32 %v781, %v1243
          %v1755 = vmul.f32 %v781, %v1244
          %v1756 = vmul.f32 %v785, %v1245
          %v1757 = vmul.f32 %v785, %v1246
          %v1758 = vmul.f32 %v789, %v1247
          %v1759 = vmul.f32 %v789, %v1248
          %v1760 = vmul.f32 %v793, %v1249
          %v1761 = vmul.f32 %v793, %v1250
          %v1762 = vmul.f32 %v797, %v1251
          %v1763 = vmul.f32 %v797, %v1252
          %v1764 = vmul.f32 %v801, %v1253
          %v1765 = vmul.f32 %v801, %v1254
          %v1766 = vmul.f32 %v805, %v1255
          %v1767 = vmul.f32 %v805, %v1256
          %v1768 = vmul.f32 %v809, %v1257
          %v1769 = vmul.f32 %v809, %v1258
          %v1770 = vmul.f32 %v813, %v1259
          %v1771 = vmul.f32 %v813, %v1260
          %v1772 = vmul.f32 %v817, %v1261
          %v1773 = vmul.f32 %v817, %v1262
          %v1774 = vmul.f32 %v821, %v1263
          %v1775 = vmul.f32 %v821, %v1264
          %v1776 = vmul.f32 %v825, %v1265
          %v1777 = vmul.f32 %v825, %v1266
          %v1778 = vmul.f32 %v829, %v1267
          %v1779 = vmul.f32 %v829, %v1268
          %v1780 = vmul.f32 %v833, %v1269
          %v1781 = vmul.f32 %v833, %v1270
          %v1782 = vmul.f32 %v919, %v1239
          %v1783 = vmul.f32 %v919, %v1240
          %v1784 = vmul.f32 %v923, %v1241
          %v1785 = vmul.f32 %v923, %v1242
          %v1786 = vmul.f32 %v927, %v1243
          %v1787 = vmul.f32 %v927, %v1244
          %v1788 = vmul.f32 %v931, %v1245
          %v1789 = vmul.f32 %v931, %v1246
          %v1790 = vmul.f32 %v935, %v1247
          %v1791 = vmul.f32 %v935, %v1248
          %v1792 = vmul.f32 %v939, %v1249
          %v1793 = vmul.f32 %v939, %v1250
          %v1794 = vmul.f32 %v943, %v1251
          %v1795 = vmul.f32 %v943, %v1252
          %v1796 = vmul.f32 %v947, %v1253
          %v1797 = vmul.f32 %v947, %v1254
          %v1798 = vmul.f32 %v951, %v1255
          %v1799 = vmul.f32 %v951, %v1256
          %v1800 = vmul.f32 %v955, %v1257
          %v1801 = vmul.f32 %v955, %v1258
          %v1802 = vmul.f32 %v959, %v1259
          %v1803 = vmul.f32 %v959, %v1260
          %v1804 = vmul.f32 %v963, %v1261
          %v1805 = vmul.f32 %v963, %v1262
          %v1806 = vmul.f32 %v967, %v1263
          %v1807 = vmul.f32 %v967, %v1264
          %v1808 = vmul.f32 %v971, %v1265
          %v1809 = vmul.f32 %v971, %v1266
          %v1810 = vmul.f32 %v975, %v1267
          %v1811 = vmul.f32 %v975, %v1268
          %v1812 = vmul.f32 %v979, %v1269
          %v1813 = vmul.f32 %v979, %v1270
          %v1814 = vpack.c.bf16 %v1688, %v1686
          %v1815 = vpack.c.bf16 %v1689, %v1687
          %v1816 = vpack.c.bf16 %v1692, %v1690
          %v1817 = vpack.c.bf16 %v1693, %v1691
          %v1818 = vpack.c.bf16 %v1696, %v1694
          %v1819 = vpack.c.bf16 %v1697, %v1695
          %v1820 = vpack.c.bf16 %v1700, %v1698
          %v1821 = vpack.c.bf16 %v1701, %v1699
          %v1822 = vpack.c.bf16 %v1704, %v1702
          %v1823 = vpack.c.bf16 %v1705, %v1703
          %v1824 = vpack.c.bf16 %v1708, %v1706
          %v1825 = vpack.c.bf16 %v1709, %v1707
          %v1826 = vpack.c.bf16 %v1712, %v1710
          %v1827 = vpack.c.bf16 %v1713, %v1711
          %v1828 = vpack.c.bf16 %v1716, %v1714
          %v1829 = vpack.c.bf16 %v1717, %v1715
          %1830 = vmatprep.subr.bf16.mxu0 %v1829
          %1831 = vmatpush1.bf16.msra.mxu0 %v1828
          %1832 = vmatprep.subr.bf16.mxu0 %v1827
          %1833 = vmatpush1.bf16.msra.mxu0 %v1826
          %1834 = vmatprep.subr.bf16.mxu0 %v1825
          %1835 = vmatpush1.bf16.msra.mxu0 %v1824
          %1836 = vmatprep.subr.bf16.mxu0 %v1823
          %1837 = vmatpush1.bf16.msra.mxu0 %v1822
          %1838 = vmatprep.subr.bf16.mxu0 %v1821
          %1839 = vmatpush1.bf16.msra.mxu0 %v1820
          %1840 = vmatprep.subr.bf16.mxu0 %v1819
          %1841 = vmatpush1.bf16.msra.mxu0 %v1818
          %1842 = vmatprep.subr.bf16.mxu0 %v1817
          %1843 = vmatpush1.bf16.msra.mxu0 %v1816
          %1844 = vmatprep.subr.bf16.mxu0 %v1815
          %1845 = vmatpush1.bf16.msra.mxu0 %v1814
          %1846 = vmatprep.subr.bf16.mxu0 0
          %1847 = vmatpush2.bf16.msra.mxu0 0
          %1848 = vmatprep.subr.bf16.mxu0 0
          %1849 = vmatpush2.bf16.msra.mxu0 0
          %1850 = vmatprep.subr.bf16.mxu0 0
          %1851 = vmatpush2.bf16.msra.mxu0 0
          %1852 = vmatprep.subr.bf16.mxu0 0
          %1853 = vmatpush2.bf16.msra.mxu0 0
          %1854 = vmatprep.subr.bf16.mxu0 0
          %1855 = vmatpush2.bf16.msra.mxu0 0
          %1856 = vmatprep.subr.bf16.mxu0 0
          %1857 = vmatpush2.bf16.msra.mxu0 0
          %1858 = vmatprep.subr.bf16.mxu0 0
          %1859 = vmatpush2.bf16.msra.mxu0 0
          %1860 = vmatprep.subr.bf16.mxu0 0
          %1861 = vmatpush2.bf16.msra.mxu0 0
          %1862 = vmatprep.mubr.bf16.mxu0 0
          %1863 = vmatmul.mubr.bf16.gmra.mxu0 %v1399
          %v1864 = vpop.f32.mrf.mxu0
          %v1865 = vadd.f32 0.0, %v1864
          %v1866 = vpop.f32.mrf.mxu0
          %v1867 = vadd.f32 0.0, %v1866
          %v1868 = vpop.f32.mrf.mxu0
          %v1869 = vadd.f32 0.0, %v1868
          %v1870 = vpop.f32.mrf.mxu0
          %v1871 = vadd.f32 0.0, %v1870
          %1872 = vmatprep.mubr.bf16.mxu0 0
          %1873 = vmatmul.mubr.bf16.gmra.mxu0 %v1400
          %v1874 = vpop.f32.mrf.mxu0
          %v1875 = vadd.f32 0.0, %v1874
          %v1876 = vpop.f32.mrf.mxu0
          %v1877 = vadd.f32 0.0, %v1876
          %v1878 = vpop.f32.mrf.mxu0
          %v1879 = vadd.f32 0.0, %v1878
          %v1880 = vpop.f32.mrf.mxu0
          %v1881 = vadd.f32 0.0, %v1880
          %1882 = vmatprep.mubr.bf16.mxu0 0
          %1883 = vmatmul.mubr.bf16.gmra.mxu0 %v1401
          %v1884 = vpop.f32.mrf.mxu0
          %v1885 = vadd.f32 0.0, %v1884
          %v1886 = vpop.f32.mrf.mxu0
          %v1887 = vadd.f32 0.0, %v1886
          %v1888 = vpop.f32.mrf.mxu0
          %v1889 = vadd.f32 0.0, %v1888
          %v1890 = vpop.f32.mrf.mxu0
          %v1891 = vadd.f32 0.0, %v1890
          %1892 = vmatprep.mubr.bf16.mxu0 0
          %1893 = vmatmul.mubr.bf16.gmra.mxu0 %v1402
          %v1894 = vpop.f32.mrf.mxu0
          %v1895 = vadd.f32 0.0, %v1894
          %v1896 = vpop.f32.mrf.mxu0
          %v1897 = vadd.f32 0.0, %v1896
          %v1898 = vpop.f32.mrf.mxu0
          %v1899 = vadd.f32 0.0, %v1898
          %v1900 = vpop.f32.mrf.mxu0
          %v1901 = vadd.f32 0.0, %v1900
          %1902 = vmatprep.mubr.bf16.mxu0 0
          %1903 = vmatmul.mubr.bf16.gmra.mxu0 %v1403
          %v1904 = vpop.f32.mrf.mxu0
          %v1905 = vadd.f32 0.0, %v1904
          %v1906 = vpop.f32.mrf.mxu0
          %v1907 = vadd.f32 0.0, %v1906
          %v1908 = vpop.f32.mrf.mxu0
          %v1909 = vadd.f32 0.0, %v1908
          %v1910 = vpop.f32.mrf.mxu0
          %v1911 = vadd.f32 0.0, %v1910
          %1912 = vmatprep.mubr.bf16.mxu0 0
          %1913 = vmatmul.mubr.bf16.gmra.mxu0 %v1404
          %v1914 = vpop.f32.mrf.mxu0
          %v1915 = vadd.f32 0.0, %v1914
          %v1916 = vpop.f32.mrf.mxu0
          %v1917 = vadd.f32 0.0, %v1916
          %v1918 = vpop.f32.mrf.mxu0
          %v1919 = vadd.f32 0.0, %v1918
          %v1920 = vpop.f32.mrf.mxu0
          %v1921 = vadd.f32 0.0, %v1920
          %1922 = vmatprep.mubr.bf16.mxu0 0
          %1923 = vmatmul.mubr.bf16.gmra.mxu0 %v1405
          %v1924 = vpop.f32.mrf.mxu0
          %v1925 = vadd.f32 0.0, %v1924
          %v1926 = vpop.f32.mrf.mxu0
          %v1927 = vadd.f32 0.0, %v1926
          %v1928 = vpop.f32.mrf.mxu0
          %v1929 = vadd.f32 0.0, %v1928
          %v1930 = vpop.f32.mrf.mxu0
          %v1931 = vadd.f32 0.0, %v1930
          %1932 = vmatprep.mubr.bf16.mxu0 0
          %1933 = vmatmul.mubr.bf16.gmra.mxu0 %v1406
          %v1934 = vpop.f32.mrf.mxu0
          %v1935 = vadd.f32 0.0, %v1934
          %v1936 = vpop.f32.mrf.mxu0
          %v1937 = vadd.f32 0.0, %v1936
          %v1938 = vpop.f32.mrf.mxu0
          %v1939 = vadd.f32 0.0, %v1938
          %v1940 = vpop.f32.mrf.mxu0
          %v1941 = vadd.f32 0.0, %v1940
          %1942 = vdwg.mxu0
          %v1943 = vmul.f32 %v1865, %v1592
          %v1944 = vmul.f32 %v1867, %v1593
          %v1945 = vmul.f32 %v1869, %v1594
          %v1946 = vmul.f32 %v1871, %v1595
          %v1947 = vmul.f32 %v1875, %v1596
          %v1948 = vmul.f32 %v1877, %v1597
          %v1949 = vmul.f32 %v1879, %v1598
          %v1950 = vmul.f32 %v1881, %v1599
          %v1951 = vmul.f32 %v1885, %v1600
          %v1952 = vmul.f32 %v1887, %v1601
          %v1953 = vmul.f32 %v1889, %v1602
          %v1954 = vmul.f32 %v1891, %v1603
          %v1955 = vmul.f32 %v1895, %v1604
          %v1956 = vmul.f32 %v1897, %v1605
          %v1957 = vmul.f32 %v1899, %v1606
          %v1958 = vmul.f32 %v1901, %v1607
          %v1959 = vmul.f32 %v1905, %v1608
          %v1960 = vmul.f32 %v1907, %v1609
          %v1961 = vmul.f32 %v1909, %v1610
          %v1962 = vmul.f32 %v1911, %v1611
          %v1963 = vmul.f32 %v1915, %v1612
          %v1964 = vmul.f32 %v1917, %v1613
          %v1965 = vmul.f32 %v1919, %v1614
          %v1966 = vmul.f32 %v1921, %v1615
          %v1967 = vmul.f32 %v1925, %v1616
          %v1968 = vmul.f32 %v1927, %v1617
          %v1969 = vmul.f32 %v1929, %v1618
          %v1970 = vmul.f32 %v1931, %v1619
          %v1971 = vmul.f32 %v1935, %v1620
          %v1972 = vmul.f32 %v1937, %v1621
          %v1973 = vmul.f32 %v1939, %v1622
          %v1974 = vmul.f32 %v1941, %v1623
          %v1975 = vpack.c.bf16 %v1720, %v1718
          %v1976 = vpack.c.bf16 %v1721, %v1719
          %v1977 = vpack.c.bf16 %v1724, %v1722
          %v1978 = vpack.c.bf16 %v1725, %v1723
          %v1979 = vpack.c.bf16 %v1728, %v1726
          %v1980 = vpack.c.bf16 %v1729, %v1727
          %v1981 = vpack.c.bf16 %v1732, %v1730
          %v1982 = vpack.c.bf16 %v1733, %v1731
          %v1983 = vpack.c.bf16 %v1736, %v1734
          %v1984 = vpack.c.bf16 %v1737, %v1735
          %v1985 = vpack.c.bf16 %v1740, %v1738
          %v1986 = vpack.c.bf16 %v1741, %v1739
          %v1987 = vpack.c.bf16 %v1744, %v1742
          %v1988 = vpack.c.bf16 %v1745, %v1743
          %v1989 = vpack.c.bf16 %v1748, %v1746
          %v1990 = vpack.c.bf16 %v1749, %v1747
          %1991 = vmatprep.subr.bf16.mxu0 %v1990
          %1992 = vmatpush1.bf16.msra.mxu0 %v1989
          %1993 = vmatprep.subr.bf16.mxu0 %v1988
          %1994 = vmatpush1.bf16.msra.mxu0 %v1987
          %1995 = vmatprep.subr.bf16.mxu0 %v1986
          %1996 = vmatpush1.bf16.msra.mxu0 %v1985
          %1997 = vmatprep.subr.bf16.mxu0 %v1984
          %1998 = vmatpush1.bf16.msra.mxu0 %v1983
          %1999 = vmatprep.subr.bf16.mxu0 %v1982
          %2000 = vmatpush1.bf16.msra.mxu0 %v1981
          %2001 = vmatprep.subr.bf16.mxu0 %v1980
          %2002 = vmatpush1.bf16.msra.mxu0 %v1979
          %2003 = vmatprep.subr.bf16.mxu0 %v1978
          %2004 = vmatpush1.bf16.msra.mxu0 %v1977
          %2005 = vmatprep.subr.bf16.mxu0 %v1976
          %2006 = vmatpush1.bf16.msra.mxu0 %v1975
          %2007 = vmatprep.subr.bf16.mxu0 0
          %2008 = vmatpush2.bf16.msra.mxu0 0
          %2009 = vmatprep.subr.bf16.mxu0 0
          %2010 = vmatpush2.bf16.msra.mxu0 0
          %2011 = vmatprep.subr.bf16.mxu0 0
          %2012 = vmatpush2.bf16.msra.mxu0 0
          %2013 = vmatprep.subr.bf16.mxu0 0
          %2014 = vmatpush2.bf16.msra.mxu0 0
          %2015 = vmatprep.subr.bf16.mxu0 0
          %2016 = vmatpush2.bf16.msra.mxu0 0
          %2017 = vmatprep.subr.bf16.mxu0 0
          %2018 = vmatpush2.bf16.msra.mxu0 0
          %2019 = vmatprep.subr.bf16.mxu0 0
          %2020 = vmatpush2.bf16.msra.mxu0 0
          %2021 = vmatprep.subr.bf16.mxu0 0
          %2022 = vmatpush2.bf16.msra.mxu0 0
          %2023 = vmatprep.mubr.bf16.mxu0 0
          %2024 = vmatmul.mubr.bf16.gmra.mxu0 %v1399
          %v2025 = vpop.f32.mrf.mxu0
          %v2026 = vadd.f32 0.0, %v2025
          %v2027 = vpop.f32.mrf.mxu0
          %v2028 = vadd.f32 0.0, %v2027
          %v2029 = vpop.f32.mrf.mxu0
          %v2030 = vadd.f32 0.0, %v2029
          %v2031 = vpop.f32.mrf.mxu0
          %v2032 = vadd.f32 0.0, %v2031
          %2033 = vmatprep.mubr.bf16.mxu0 0
          %2034 = vmatmul.mubr.bf16.gmra.mxu0 %v1400
          %v2035 = vpop.f32.mrf.mxu0
          %v2036 = vadd.f32 0.0, %v2035
          %v2037 = vpop.f32.mrf.mxu0
          %v2038 = vadd.f32 0.0, %v2037
          %v2039 = vpop.f32.mrf.mxu0
          %v2040 = vadd.f32 0.0, %v2039
          %v2041 = vpop.f32.mrf.mxu0
          %v2042 = vadd.f32 0.0, %v2041
          %2043 = vmatprep.mubr.bf16.mxu0 0
          %2044 = vmatmul.mubr.bf16.gmra.mxu0 %v1401
          %v2045 = vpop.f32.mrf.mxu0
          %v2046 = vadd.f32 0.0, %v2045
          %v2047 = vpop.f32.mrf.mxu0
          %v2048 = vadd.f32 0.0, %v2047
          %v2049 = vpop.f32.mrf.mxu0
          %v2050 = vadd.f32 0.0, %v2049
          %v2051 = vpop.f32.mrf.mxu0
          %v2052 = vadd.f32 0.0, %v2051
          %2053 = vmatprep.mubr.bf16.mxu0 0
          %2054 = vmatmul.mubr.bf16.gmra.mxu0 %v1402
          %v2055 = vpop.f32.mrf.mxu0
          %v2056 = vadd.f32 0.0, %v2055
          %v2057 = vpop.f32.mrf.mxu0
          %v2058 = vadd.f32 0.0, %v2057
          %v2059 = vpop.f32.mrf.mxu0
          %v2060 = vadd.f32 0.0, %v2059
          %v2061 = vpop.f32.mrf.mxu0
          %v2062 = vadd.f32 0.0, %v2061
          %2063 = vmatprep.mubr.bf16.mxu0 0
          %2064 = vmatmul.mubr.bf16.gmra.mxu0 %v1403
          %v2065 = vpop.f32.mrf.mxu0
          %v2066 = vadd.f32 0.0, %v2065
          %v2067 = vpop.f32.mrf.mxu0
          %v2068 = vadd.f32 0.0, %v2067
          %v2069 = vpop.f32.mrf.mxu0
          %v2070 = vadd.f32 0.0, %v2069
          %v2071 = vpop.f32.mrf.mxu0
          %v2072 = vadd.f32 0.0, %v2071
          %2073 = vmatprep.mubr.bf16.mxu0 0
          %2074 = vmatmul.mubr.bf16.gmra.mxu0 %v1404
          %v2075 = vpop.f32.mrf.mxu0
          %v2076 = vadd.f32 0.0, %v2075
          %v2077 = vpop.f32.mrf.mxu0
          %v2078 = vadd.f32 0.0, %v2077
          %v2079 = vpop.f32.mrf.mxu0
          %v2080 = vadd.f32 0.0, %v2079
          %v2081 = vpop.f32.mrf.mxu0
          %v2082 = vadd.f32 0.0, %v2081
          %2083 = vmatprep.mubr.bf16.mxu0 0
          %2084 = vmatmul.mubr.bf16.gmra.mxu0 %v1405
          %v2085 = vpop.f32.mrf.mxu0
          %v2086 = vadd.f32 0.0, %v2085
          %v2087 = vpop.f32.mrf.mxu0
          %v2088 = vadd.f32 0.0, %v2087
          %v2089 = vpop.f32.mrf.mxu0
          %v2090 = vadd.f32 0.0, %v2089
          %v2091 = vpop.f32.mrf.mxu0
          %v2092 = vadd.f32 0.0, %v2091
          %2093 = vmatprep.mubr.bf16.mxu0 0
          %2094 = vmatmul.mubr.bf16.gmra.mxu0 %v1406
          %v2095 = vpop.f32.mrf.mxu0
          %v2096 = vadd.f32 0.0, %v2095
          %v2097 = vpop.f32.mrf.mxu0
          %v2098 = vadd.f32 0.0, %v2097
          %v2099 = vpop.f32.mrf.mxu0
          %v2100 = vadd.f32 0.0, %v2099
          %v2101 = vpop.f32.mrf.mxu0
          %v2102 = vadd.f32 0.0, %v2101
          %2103 = vdwg.mxu0
          %v2104 = vmul.f32 %v2026, %v1592
          %v2105 = vmul.f32 %v2028, %v1593
          %v2106 = vmul.f32 %v2030, %v1594
          %v2107 = vmul.f32 %v2032, %v1595
          %v2108 = vmul.f32 %v2036, %v1596
          %v2109 = vmul.f32 %v2038, %v1597
          %v2110 = vmul.f32 %v2040, %v1598
          %v2111 = vmul.f32 %v2042, %v1599
          %v2112 = vmul.f32 %v2046, %v1600
          %v2113 = vmul.f32 %v2048, %v1601
          %v2114 = vmul.f32 %v2050, %v1602
          %v2115 = vmul.f32 %v2052, %v1603
          %v2116 = vmul.f32 %v2056, %v1604
          %v2117 = vmul.f32 %v2058, %v1605
          %v2118 = vmul.f32 %v2060, %v1606
          %v2119 = vmul.f32 %v2062, %v1607
          %v2120 = vmul.f32 %v2066, %v1608
          %v2121 = vmul.f32 %v2068, %v1609
          %v2122 = vmul.f32 %v2070, %v1610
          %v2123 = vmul.f32 %v2072, %v1611
          %v2124 = vmul.f32 %v2076, %v1612
          %v2125 = vmul.f32 %v2078, %v1613
          %v2126 = vmul.f32 %v2080, %v1614
          %v2127 = vmul.f32 %v2082, %v1615
          %v2128 = vmul.f32 %v2086, %v1616
          %v2129 = vmul.f32 %v2088, %v1617
          %v2130 = vmul.f32 %v2090, %v1618
          %v2131 = vmul.f32 %v2092, %v1619
          %v2132 = vmul.f32 %v2096, %v1620
          %v2133 = vmul.f32 %v2098, %v1621
          %v2134 = vmul.f32 %v2100, %v1622
          %v2135 = vmul.f32 %v2102, %v1623
          %v2136 = vpack.c.bf16 %v1752, %v1750
          %v2137 = vpack.c.bf16 %v1753, %v1751
          %v2138 = vpack.c.bf16 %v1756, %v1754
          %v2139 = vpack.c.bf16 %v1757, %v1755
          %v2140 = vpack.c.bf16 %v1760, %v1758
          %v2141 = vpack.c.bf16 %v1761, %v1759
          %v2142 = vpack.c.bf16 %v1764, %v1762
          %v2143 = vpack.c.bf16 %v1765, %v1763
          %v2144 = vpack.c.bf16 %v1768, %v1766
          %v2145 = vpack.c.bf16 %v1769, %v1767
          %v2146 = vpack.c.bf16 %v1772, %v1770
          %v2147 = vpack.c.bf16 %v1773, %v1771
          %v2148 = vpack.c.bf16 %v1776, %v1774
          %v2149 = vpack.c.bf16 %v1777, %v1775
          %v2150 = vpack.c.bf16 %v1780, %v1778
          %v2151 = vpack.c.bf16 %v1781, %v1779
          %2152 = vmatprep.subr.bf16.mxu0 %v2151
          %2153 = vmatpush1.bf16.msra.mxu0 %v2150
          %2154 = vmatprep.subr.bf16.mxu0 %v2149
          %2155 = vmatpush1.bf16.msra.mxu0 %v2148
          %2156 = vmatprep.subr.bf16.mxu0 %v2147
          %2157 = vmatpush1.bf16.msra.mxu0 %v2146
          %2158 = vmatprep.subr.bf16.mxu0 %v2145
          %2159 = vmatpush1.bf16.msra.mxu0 %v2144
          %2160 = vmatprep.subr.bf16.mxu0 %v2143
          %2161 = vmatpush1.bf16.msra.mxu0 %v2142
          %2162 = vmatprep.subr.bf16.mxu0 %v2141
          %2163 = vmatpush1.bf16.msra.mxu0 %v2140
          %2164 = vmatprep.subr.bf16.mxu0 %v2139
          %2165 = vmatpush1.bf16.msra.mxu0 %v2138
          %2166 = vmatprep.subr.bf16.mxu0 %v2137
          %2167 = vmatpush1.bf16.msra.mxu0 %v2136
          %2168 = vmatprep.subr.bf16.mxu0 0
          %2169 = vmatpush2.bf16.msra.mxu0 0
          %2170 = vmatprep.subr.bf16.mxu0 0
          %2171 = vmatpush2.bf16.msra.mxu0 0
          %2172 = vmatprep.subr.bf16.mxu0 0
          %2173 = vmatpush2.bf16.msra.mxu0 0
          %2174 = vmatprep.subr.bf16.mxu0 0
          %2175 = vmatpush2.bf16.msra.mxu0 0
          %2176 = vmatprep.subr.bf16.mxu0 0
          %2177 = vmatpush2.bf16.msra.mxu0 0
          %2178 = vmatprep.subr.bf16.mxu0 0
          %2179 = vmatpush2.bf16.msra.mxu0 0
          %2180 = vmatprep.subr.bf16.mxu0 0
          %2181 = vmatpush2.bf16.msra.mxu0 0
          %2182 = vmatprep.subr.bf16.mxu0 0
          %2183 = vmatpush2.bf16.msra.mxu0 0
          %2184 = vmatprep.mubr.bf16.mxu0 0
          %2185 = vmatmul.mubr.bf16.gmra.mxu0 %v1399
          %v2186 = vpop.f32.mrf.mxu0
          %v2187 = vadd.f32 0.0, %v2186
          %v2188 = vpop.f32.mrf.mxu0
          %v2189 = vadd.f32 0.0, %v2188
          %v2190 = vpop.f32.mrf.mxu0
          %v2191 = vadd.f32 0.0, %v2190
          %v2192 = vpop.f32.mrf.mxu0
          %v2193 = vadd.f32 0.0, %v2192
          %2194 = vmatprep.mubr.bf16.mxu0 0
          %2195 = vmatmul.mubr.bf16.gmra.mxu0 %v1400
          %v2196 = vpop.f32.mrf.mxu0
          %v2197 = vadd.f32 0.0, %v2196
          %v2198 = vpop.f32.mrf.mxu0
          %v2199 = vadd.f32 0.0, %v2198
          %v2200 = vpop.f32.mrf.mxu0
          %v2201 = vadd.f32 0.0, %v2200
          %v2202 = vpop.f32.mrf.mxu0
          %v2203 = vadd.f32 0.0, %v2202
          %2204 = vmatprep.mubr.bf16.mxu0 0
          %2205 = vmatmul.mubr.bf16.gmra.mxu0 %v1401
          %v2206 = vpop.f32.mrf.mxu0
          %v2207 = vadd.f32 0.0, %v2206
          %v2208 = vpop.f32.mrf.mxu0
          %v2209 = vadd.f32 0.0, %v2208
          %v2210 = vpop.f32.mrf.mxu0
          %v2211 = vadd.f32 0.0, %v2210
          %v2212 = vpop.f32.mrf.mxu0
          %v2213 = vadd.f32 0.0, %v2212
          %2214 = vmatprep.mubr.bf16.mxu0 0
          %2215 = vmatmul.mubr.bf16.gmra.mxu0 %v1402
          %v2216 = vpop.f32.mrf.mxu0
          %v2217 = vadd.f32 0.0, %v2216
          %v2218 = vpop.f32.mrf.mxu0
          %v2219 = vadd.f32 0.0, %v2218
          %v2220 = vpop.f32.mrf.mxu0
          %v2221 = vadd.f32 0.0, %v2220
          %v2222 = vpop.f32.mrf.mxu0
          %v2223 = vadd.f32 0.0, %v2222
          %2224 = vmatprep.mubr.bf16.mxu0 0
          %2225 = vmatmul.mubr.bf16.gmra.mxu0 %v1403
          %v2226 = vpop.f32.mrf.mxu0
          %v2227 = vadd.f32 0.0, %v2226
          %v2228 = vpop.f32.mrf.mxu0
          %v2229 = vadd.f32 0.0, %v2228
          %v2230 = vpop.f32.mrf.mxu0
          %v2231 = vadd.f32 0.0, %v2230
          %v2232 = vpop.f32.mrf.mxu0
          %v2233 = vadd.f32 0.0, %v2232
          %2234 = vmatprep.mubr.bf16.mxu0 0
          %2235 = vmatmul.mubr.bf16.gmra.mxu0 %v1404
          %v2236 = vpop.f32.mrf.mxu0
          %v2237 = vadd.f32 0.0, %v2236
          %v2238 = vpop.f32.mrf.mxu0
          %v2239 = vadd.f32 0.0, %v2238
          %v2240 = vpop.f32.mrf.mxu0
          %v2241 = vadd.f32 0.0, %v2240
          %v2242 = vpop.f32.mrf.mxu0
          %v2243 = vadd.f32 0.0, %v2242
          %2244 = vmatprep.mubr.bf16.mxu0 0
          %2245 = vmatmul.mubr.bf16.gmra.mxu0 %v1405
          %v2246 = vpop.f32.mrf.mxu0
          %v2247 = vadd.f32 0.0, %v2246
          %v2248 = vpop.f32.mrf.mxu0
          %v2249 = vadd.f32 0.0, %v2248
          %v2250 = vpop.f32.mrf.mxu0
          %v2251 = vadd.f32 0.0, %v2250
          %v2252 = vpop.f32.mrf.mxu0
          %v2253 = vadd.f32 0.0, %v2252
          %2254 = vmatprep.mubr.bf16.mxu0 0
          %2255 = vmatmul.mubr.bf16.gmra.mxu0 %v1406
          %v2256 = vpop.f32.mrf.mxu0
          %v2257 = vadd.f32 0.0, %v2256
          %v2258 = vpop.f32.mrf.mxu0
          %v2259 = vadd.f32 0.0, %v2258
          %v2260 = vpop.f32.mrf.mxu0
          %v2261 = vadd.f32 0.0, %v2260
          %v2262 = vpop.f32.mrf.mxu0
          %v2263 = vadd.f32 0.0, %v2262
          %2264 = vdwg.mxu0
          %v2265 = vmul.f32 %v2187, %v1592
          %v2266 = vmul.f32 %v2189, %v1593
          %v2267 = vmul.f32 %v2191, %v1594
          %v2268 = vmul.f32 %v2193, %v1595
          %v2269 = vmul.f32 %v2197, %v1596
          %v2270 = vmul.f32 %v2199, %v1597
          %v2271 = vmul.f32 %v2201, %v1598
          %v2272 = vmul.f32 %v2203, %v1599
          %v2273 = vmul.f32 %v2207, %v1600
          %v2274 = vmul.f32 %v2209, %v1601
          %v2275 = vmul.f32 %v2211, %v1602
          %v2276 = vmul.f32 %v2213, %v1603
          %v2277 = vmul.f32 %v2217, %v1604
          %v2278 = vmul.f32 %v2219, %v1605
          %v2279 = vmul.f32 %v2221, %v1606
          %v2280 = vmul.f32 %v2223, %v1607
          %v2281 = vmul.f32 %v2227, %v1608
          %v2282 = vmul.f32 %v2229, %v1609
          %v2283 = vmul.f32 %v2231, %v1610
          %v2284 = vmul.f32 %v2233, %v1611
          %v2285 = vmul.f32 %v2237, %v1612
          %v2286 = vmul.f32 %v2239, %v1613
          %v2287 = vmul.f32 %v2241, %v1614
          %v2288 = vmul.f32 %v2243, %v1615
          %v2289 = vmul.f32 %v2247, %v1616
          %v2290 = vmul.f32 %v2249, %v1617
          %v2291 = vmul.f32 %v2251, %v1618
          %v2292 = vmul.f32 %v2253, %v1619
          %v2293 = vmul.f32 %v2257, %v1620
          %v2294 = vmul.f32 %v2259, %v1621
          %v2295 = vmul.f32 %v2261, %v1622
          %v2296 = vmul.f32 %v2263, %v1623
          %v2297 = vpack.c.bf16 %v1784, %v1782
          %v2298 = vpack.c.bf16 %v1785, %v1783
          %v2299 = vpack.c.bf16 %v1788, %v1786
          %v2300 = vpack.c.bf16 %v1789, %v1787
          %v2301 = vpack.c.bf16 %v1792, %v1790
          %v2302 = vpack.c.bf16 %v1793, %v1791
          %v2303 = vpack.c.bf16 %v1796, %v1794
          %v2304 = vpack.c.bf16 %v1797, %v1795
          %v2305 = vpack.c.bf16 %v1800, %v1798
          %v2306 = vpack.c.bf16 %v1801, %v1799
          %v2307 = vpack.c.bf16 %v1804, %v1802
          %v2308 = vpack.c.bf16 %v1805, %v1803
          %v2309 = vpack.c.bf16 %v1808, %v1806
          %v2310 = vpack.c.bf16 %v1809, %v1807
          %v2311 = vpack.c.bf16 %v1812, %v1810
          %v2312 = vpack.c.bf16 %v1813, %v1811
          %2313 = vmatprep.subr.bf16.mxu0 %v2312
          %2314 = vmatpush1.bf16.msra.mxu0 %v2311
          %2315 = vmatprep.subr.bf16.mxu0 %v2310
          %2316 = vmatpush1.bf16.msra.mxu0 %v2309
          %2317 = vmatprep.subr.bf16.mxu0 %v2308
          %2318 = vmatpush1.bf16.msra.mxu0 %v2307
          %2319 = vmatprep.subr.bf16.mxu0 %v2306
          %2320 = vmatpush1.bf16.msra.mxu0 %v2305
          %2321 = vmatprep.subr.bf16.mxu0 %v2304
          %2322 = vmatpush1.bf16.msra.mxu0 %v2303
          %2323 = vmatprep.subr.bf16.mxu0 %v2302
          %2324 = vmatpush1.bf16.msra.mxu0 %v2301
          %2325 = vmatprep.subr.bf16.mxu0 %v2300
          %2326 = vmatpush1.bf16.msra.mxu0 %v2299
          %2327 = vmatprep.subr.bf16.mxu0 %v2298
          %2328 = vmatpush1.bf16.msra.mxu0 %v2297
          %2329 = vmatprep.subr.bf16.mxu0 0
          %2330 = vmatpush2.bf16.msra.mxu0 0
          %2331 = vmatprep.subr.bf16.mxu0 0
          %2332 = vmatpush2.bf16.msra.mxu0 0
          %2333 = vmatprep.subr.bf16.mxu0 0
          %2334 = vmatpush2.bf16.msra.mxu0 0
          %2335 = vmatprep.subr.bf16.mxu0 0
          %2336 = vmatpush2.bf16.msra.mxu0 0
          %2337 = vmatprep.subr.bf16.mxu0 0
          %2338 = vmatpush2.bf16.msra.mxu0 0
          %2339 = vmatprep.subr.bf16.mxu0 0
          %2340 = vmatpush2.bf16.msra.mxu0 0
          %2341 = vmatprep.subr.bf16.mxu0 0
          %2342 = vmatpush2.bf16.msra.mxu0 0
          %2343 = vmatprep.subr.bf16.mxu0 0
          %2344 = vmatpush2.bf16.msra.mxu0 0
          %2345 = vmatprep.mubr.bf16.mxu0 0
          %2346 = vmatmul.mubr.bf16.gmra.mxu0 %v1399
          %v2347 = vpop.f32.mrf.mxu0
          %v2348 = vadd.f32 0.0, %v2347
          %v2349 = vpop.f32.mrf.mxu0
          %v2350 = vadd.f32 0.0, %v2349
          %v2351 = vpop.f32.mrf.mxu0
          %v2352 = vadd.f32 0.0, %v2351
          %v2353 = vpop.f32.mrf.mxu0
          %v2354 = vadd.f32 0.0, %v2353
          %2355 = vmatprep.mubr.bf16.mxu0 0
          %2356 = vmatmul.mubr.bf16.gmra.mxu0 %v1400
          %v2357 = vpop.f32.mrf.mxu0
          %v2358 = vadd.f32 0.0, %v2357
          %v2359 = vpop.f32.mrf.mxu0
          %v2360 = vadd.f32 0.0, %v2359
          %v2361 = vpop.f32.mrf.mxu0
          %v2362 = vadd.f32 0.0, %v2361
          %v2363 = vpop.f32.mrf.mxu0
          %v2364 = vadd.f32 0.0, %v2363
          %2365 = vmatprep.mubr.bf16.mxu0 0
          %2366 = vmatmul.mubr.bf16.gmra.mxu0 %v1401
          %v2367 = vpop.f32.mrf.mxu0
          %v2368 = vadd.f32 0.0, %v2367
          %v2369 = vpop.f32.mrf.mxu0
          %v2370 = vadd.f32 0.0, %v2369
          %v2371 = vpop.f32.mrf.mxu0
          %v2372 = vadd.f32 0.0, %v2371
          %v2373 = vpop.f32.mrf.mxu0
          %v2374 = vadd.f32 0.0, %v2373
          %2375 = vmatprep.mubr.bf16.mxu0 0
          %2376 = vmatmul.mubr.bf16.gmra.mxu0 %v1402
          %v2377 = vpop.f32.mrf.mxu0
          %v2378 = vadd.f32 0.0, %v2377
          %v2379 = vpop.f32.mrf.mxu0
          %v2380 = vadd.f32 0.0, %v2379
          %v2381 = vpop.f32.mrf.mxu0
          %v2382 = vadd.f32 0.0, %v2381
          %v2383 = vpop.f32.mrf.mxu0
          %v2384 = vadd.f32 0.0, %v2383
          %2385 = vmatprep.mubr.bf16.mxu0 0
          %2386 = vmatmul.mubr.bf16.gmra.mxu0 %v1403
          %v2387 = vpop.f32.mrf.mxu0
          %v2388 = vadd.f32 0.0, %v2387
          %v2389 = vpop.f32.mrf.mxu0
          %v2390 = vadd.f32 0.0, %v2389
          %v2391 = vpop.f32.mrf.mxu0
          %v2392 = vadd.f32 0.0, %v2391
          %v2393 = vpop.f32.mrf.mxu0
          %v2394 = vadd.f32 0.0, %v2393
          %2395 = vmatprep.mubr.bf16.mxu0 0
          %2396 = vmatmul.mubr.bf16.gmra.mxu0 %v1404
          %v2397 = vpop.f32.mrf.mxu0
          %v2398 = vadd.f32 0.0, %v2397
          %v2399 = vpop.f32.mrf.mxu0
          %v2400 = vadd.f32 0.0, %v2399
          %v2401 = vpop.f32.mrf.mxu0
          %v2402 = vadd.f32 0.0, %v2401
          %v2403 = vpop.f32.mrf.mxu0
          %v2404 = vadd.f32 0.0, %v2403
          %2405 = vmatprep.mubr.bf16.mxu0 0
          %2406 = vmatmul.mubr.bf16.gmra.mxu0 %v1405
          %v2407 = vpop.f32.mrf.mxu0
          %v2408 = vadd.f32 0.0, %v2407
          %v2409 = vpop.f32.mrf.mxu0
          %v2410 = vadd.f32 0.0, %v2409
          %v2411 = vpop.f32.mrf.mxu0
          %v2412 = vadd.f32 0.0, %v2411
          %v2413 = vpop.f32.mrf.mxu0
          %v2414 = vadd.f32 0.0, %v2413
          %2415 = vmatprep.mubr.bf16.mxu0 0
          %2416 = vmatmul.mubr.bf16.gmra.mxu0 %v1406
          %v2417 = vpop.f32.mrf.mxu0
          %v2418 = vadd.f32 0.0, %v2417
          %v2419 = vpop.f32.mrf.mxu0
          %v2420 = vadd.f32 0.0, %v2419
          %v2421 = vpop.f32.mrf.mxu0
          %v2422 = vadd.f32 0.0, %v2421
          %v2423 = vpop.f32.mrf.mxu0
          %v2424 = vadd.f32 0.0, %v2423
          %2425 = vdwg.mxu0
          %v2426 = vmul.f32 %v2348, %v1592
          %v2427 = vmul.f32 %v2350, %v1593
          %v2428 = vmul.f32 %v2352, %v1594
          %v2429 = vmul.f32 %v2354, %v1595
          %v2430 = vmul.f32 %v2358, %v1596
          %v2431 = vmul.f32 %v2360, %v1597
          %v2432 = vmul.f32 %v2362, %v1598
          %v2433 = vmul.f32 %v2364, %v1599
          %v2434 = vmul.f32 %v2368, %v1600
          %v2435 = vmul.f32 %v2370, %v1601
          %v2436 = vmul.f32 %v2372, %v1602
          %v2437 = vmul.f32 %v2374, %v1603
          %v2438 = vmul.f32 %v2378, %v1604
          %v2439 = vmul.f32 %v2380, %v1605
          %v2440 = vmul.f32 %v2382, %v1606
          %v2441 = vmul.f32 %v2384, %v1607
          %v2442 = vmul.f32 %v2388, %v1608
          %v2443 = vmul.f32 %v2390, %v1609
          %v2444 = vmul.f32 %v2392, %v1610
          %v2445 = vmul.f32 %v2394, %v1611
          %v2446 = vmul.f32 %v2398, %v1612
          %v2447 = vmul.f32 %v2400, %v1613
          %v2448 = vmul.f32 %v2402, %v1614
          %v2449 = vmul.f32 %v2404, %v1615
          %v2450 = vmul.f32 %v2408, %v1616
          %v2451 = vmul.f32 %v2410, %v1617
          %v2452 = vmul.f32 %v2412, %v1618
          %v2453 = vmul.f32 %v2414, %v1619
          %v2454 = vmul.f32 %v2418, %v1620
          %v2455 = vmul.f32 %v2420, %v1621
          %v2456 = vmul.f32 %v2422, %v1622
          %v2457 = vmul.f32 %v2424, %v1623
          %v2458 = vadd.f32 %v1943, %v1944
          %2459 = vadd.xlane.f32.xlu0 %v2458
          %v2460 = vpop.xlane.xlu0 %2459
          %v2461 = vadd.f32 %v1945, %v1946
          %2462 = vadd.xlane.f32.xlu0 %v2461
          %v2463 = vpop.xlane.xlu0 %2462
          %v2464 = vadd.f32 %v1947, %v1948
          %2465 = vadd.xlane.f32.xlu0 %v2464
          %v2466 = vpop.xlane.xlu0 %2465
          %v2467 = vadd.f32 %v1949, %v1950
          %2468 = vadd.xlane.f32.xlu0 %v2467
          %v2469 = vpop.xlane.xlu0 %2468
          %v2470 = vadd.f32 %v1951, %v1952
          %2471 = vadd.xlane.f32.xlu0 %v2470
          %v2472 = vpop.xlane.xlu0 %2471
          %v2473 = vadd.f32 %v1953, %v1954
          %2474 = vadd.xlane.f32.xlu0 %v2473
          %v2475 = vpop.xlane.xlu0 %2474
          %v2476 = vadd.f32 %v1955, %v1956
          %2477 = vadd.xlane.f32.xlu0 %v2476
          %v2478 = vpop.xlane.xlu0 %2477
          %v2479 = vadd.f32 %v1957, %v1958
          %2480 = vadd.xlane.f32.xlu0 %v2479
          %v2481 = vpop.xlane.xlu0 %2480
          %v2482 = vadd.f32 %v1959, %v1960
          %2483 = vadd.xlane.f32.xlu0 %v2482
          %v2484 = vpop.xlane.xlu0 %2483
          %v2485 = vadd.f32 %v1961, %v1962
          %2486 = vadd.xlane.f32.xlu0 %v2485
          %v2487 = vpop.xlane.xlu0 %2486
          %v2488 = vadd.f32 %v1963, %v1964
          %2489 = vadd.xlane.f32.xlu0 %v2488
          %v2490 = vpop.xlane.xlu0 %2489
          %v2491 = vadd.f32 %v1965, %v1966
          %2492 = vadd.xlane.f32.xlu0 %v2491
          %v2493 = vpop.xlane.xlu0 %2492
          %v2494 = vadd.f32 %v1967, %v1968
          %2495 = vadd.xlane.f32.xlu0 %v2494
          %v2496 = vpop.xlane.xlu0 %2495
          %v2497 = vadd.f32 %v1969, %v1970
          %2498 = vadd.xlane.f32.xlu0 %v2497
          %v2499 = vpop.xlane.xlu0 %2498
          %v2500 = vadd.f32 %v1971, %v1972
          %2501 = vadd.xlane.f32.xlu0 %v2500
          %v2502 = vpop.xlane.xlu0 %2501
          %v2503 = vadd.f32 %v1973, %v1974
          %2504 = vadd.xlane.f32.xlu0 %v2503
          %v2505 = vpop.xlane.xlu0 %2504
          %v2506 = vmul.f32 %v460, %v2460
          %v2507 = vmul.f32 %v461, %v2463
          %v2508 = vmul.f32 %v462, %v2466
          %v2509 = vmul.f32 %v463, %v2469
          %v2510 = vmul.f32 %v464, %v2472
          %v2511 = vmul.f32 %v465, %v2475
          %v2512 = vmul.f32 %v466, %v2478
          %v2513 = vmul.f32 %v467, %v2481
          %v2514 = vmul.f32 %v468, %v2484
          %v2515 = vmul.f32 %v469, %v2487
          %v2516 = vmul.f32 %v470, %v2490
          %v2517 = vmul.f32 %v471, %v2493
          %v2518 = vmul.f32 %v472, %v2496
          %v2519 = vmul.f32 %v473, %v2499
          %v2520 = vmul.f32 %v474, %v2502
          %v2521 = vmul.f32 %v475, %v2505
          %vm2522 = vcmask 7168
          %v2523 = vsel %vm2522, %v2506, 0.0
          %v2524 = vsel %vm2522, %v2507, 0.0
          %v2525 = vadd.f32 %v2523, %v2524
          %v2526 = vsel %vm2522, %v2508, 0.0
          %v2527 = vadd.f32 %v2525, %v2526
          %v2528 = vsel %vm2522, %v2509, 0.0
          %v2529 = vadd.f32 %v2527, %v2528
          %v2530 = vsel %vm2522, %v2510, 0.0
          %v2531 = vadd.f32 %v2529, %v2530
          %v2532 = vsel %vm2522, %v2511, 0.0
          %v2533 = vadd.f32 %v2531, %v2532
          %v2534 = vsel %vm2522, %v2512, 0.0
          %v2535 = vadd.f32 %v2533, %v2534
          %v2536 = vsel %vm2522, %v2513, 0.0
          %v2537 = vadd.f32 %v2535, %v2536
          %v2538 = vsel %vm2522, %v2514, 0.0
          %v2539 = vadd.f32 %v2537, %v2538
          %v2540 = vsel %vm2522, %v2515, 0.0
          %v2541 = vadd.f32 %v2539, %v2540
          %v2542 = vsel %vm2522, %v2516, 0.0
          %v2543 = vadd.f32 %v2541, %v2542
          %v2544 = vsel %vm2522, %v2517, 0.0
          %v2545 = vadd.f32 %v2543, %v2544
          %v2546 = vsel %vm2522, %v2518, 0.0
          %v2547 = vadd.f32 %v2545, %v2546
          %v2548 = vsel %vm2522, %v2519, 0.0
          %v2549 = vadd.f32 %v2547, %v2548
          %v2550 = vsel %vm2522, %v2520, 0.0
          %v2551 = vadd.f32 %v2549, %v2550
          %v2552 = vsel %vm2522, %v2521, 0.0
          %v2553 = vadd.f32 %v2551, %v2552
          %2554 = vadd.xlane.f32.xlu0 %v2553
          %v2555 = vpop.xlane.xlu0 %2554
          %v2556 = vrot.slane %v2555, 4
          %v2557 = vadd.f32 %v2555, %v2556
          %v2558 = vrot.slane %v2557, 2
          %v2559 = vadd.f32 %v2557, %v2558
          %v2560 = vrot.slane %v2559, 1
          %v2561 = vadd.f32 %v2559, %v2560
          %s2562 = vtos %v2561
          %s2563 = sadd.f32 %s2562, 0.0
          %v2564 = vadd.f32 %v2104, %v2105
          %2565 = vadd.xlane.f32.xlu0 %v2564
          %v2566 = vpop.xlane.xlu0 %2565
          %v2567 = vadd.f32 %v2106, %v2107
          %2568 = vadd.xlane.f32.xlu0 %v2567
          %v2569 = vpop.xlane.xlu0 %2568
          %v2570 = vadd.f32 %v2108, %v2109
          %2571 = vadd.xlane.f32.xlu0 %v2570
          %v2572 = vpop.xlane.xlu0 %2571
          %v2573 = vadd.f32 %v2110, %v2111
          %2574 = vadd.xlane.f32.xlu0 %v2573
          %v2575 = vpop.xlane.xlu0 %2574
          %v2576 = vadd.f32 %v2112, %v2113
          %2577 = vadd.xlane.f32.xlu0 %v2576
          %v2578 = vpop.xlane.xlu0 %2577
          %v2579 = vadd.f32 %v2114, %v2115
          %2580 = vadd.xlane.f32.xlu0 %v2579
          %v2581 = vpop.xlane.xlu0 %2580
          %v2582 = vadd.f32 %v2116, %v2117
          %2583 = vadd.xlane.f32.xlu0 %v2582
          %v2584 = vpop.xlane.xlu0 %2583
          %v2585 = vadd.f32 %v2118, %v2119
          %2586 = vadd.xlane.f32.xlu0 %v2585
          %v2587 = vpop.xlane.xlu0 %2586
          %v2588 = vadd.f32 %v2120, %v2121
          %2589 = vadd.xlane.f32.xlu0 %v2588
          %v2590 = vpop.xlane.xlu0 %2589
          %v2591 = vadd.f32 %v2122, %v2123
          %2592 = vadd.xlane.f32.xlu0 %v2591
          %v2593 = vpop.xlane.xlu0 %2592
          %v2594 = vadd.f32 %v2124, %v2125
          %2595 = vadd.xlane.f32.xlu0 %v2594
          %v2596 = vpop.xlane.xlu0 %2595
          %v2597 = vadd.f32 %v2126, %v2127
          %2598 = vadd.xlane.f32.xlu0 %v2597
          %v2599 = vpop.xlane.xlu0 %2598
          %v2600 = vadd.f32 %v2128, %v2129
          %2601 = vadd.xlane.f32.xlu0 %v2600
          %v2602 = vpop.xlane.xlu0 %2601
          %v2603 = vadd.f32 %v2130, %v2131
          %2604 = vadd.xlane.f32.xlu0 %v2603
          %v2605 = vpop.xlane.xlu0 %2604
          %v2606 = vadd.f32 %v2132, %v2133
          %2607 = vadd.xlane.f32.xlu0 %v2606
          %v2608 = vpop.xlane.xlu0 %2607
          %v2609 = vadd.f32 %v2134, %v2135
          %2610 = vadd.xlane.f32.xlu0 %v2609
          %v2611 = vpop.xlane.xlu0 %2610
          %v2612 = vmul.f32 %v460, %v2566
          %v2613 = vmul.f32 %v461, %v2569
          %v2614 = vmul.f32 %v462, %v2572
          %v2615 = vmul.f32 %v463, %v2575
          %v2616 = vmul.f32 %v464, %v2578
          %v2617 = vmul.f32 %v465, %v2581
          %v2618 = vmul.f32 %v466, %v2584
          %v2619 = vmul.f32 %v467, %v2587
          %v2620 = vmul.f32 %v468, %v2590
          %v2621 = vmul.f32 %v469, %v2593
          %v2622 = vmul.f32 %v470, %v2596
          %v2623 = vmul.f32 %v471, %v2599
          %v2624 = vmul.f32 %v472, %v2602
          %v2625 = vmul.f32 %v473, %v2605
          %v2626 = vmul.f32 %v474, %v2608
          %v2627 = vmul.f32 %v475, %v2611
          %2644 = vrot.lane.b32.xlu0 %v2612, 127
          %v2645 = vpop.permute.xlu0 %2644
          %2646 = vrot.lane.b32.xlu0 %v2613, 127
          %v2647 = vpop.permute.xlu0 %2646
          %2648 = vrot.lane.b32.xlu0 %v2614, 127
          %v2649 = vpop.permute.xlu0 %2648
          %2650 = vrot.lane.b32.xlu0 %v2615, 127
          %v2651 = vpop.permute.xlu0 %2650
          %2652 = vrot.lane.b32.xlu0 %v2616, 127
          %v2653 = vpop.permute.xlu0 %2652
          %2654 = vrot.lane.b32.xlu0 %v2617, 127
          %v2655 = vpop.permute.xlu0 %2654
          %2656 = vrot.lane.b32.xlu0 %v2618, 127
          %v2657 = vpop.permute.xlu0 %2656
          %2658 = vrot.lane.b32.xlu0 %v2619, 127
          %v2659 = vpop.permute.xlu0 %2658
          %2660 = vrot.lane.b32.xlu0 %v2620, 127
          %v2661 = vpop.permute.xlu0 %2660
          %2662 = vrot.lane.b32.xlu0 %v2621, 127
          %v2663 = vpop.permute.xlu0 %2662
          %2664 = vrot.lane.b32.xlu0 %v2622, 127
          %v2665 = vpop.permute.xlu0 %2664
          %2666 = vrot.lane.b32.xlu0 %v2623, 127
          %v2667 = vpop.permute.xlu0 %2666
          %2668 = vrot.lane.b32.xlu0 %v2624, 127
          %v2669 = vpop.permute.xlu0 %2668
          %2670 = vrot.lane.b32.xlu0 %v2625, 127
          %v2671 = vpop.permute.xlu0 %2670
          %2672 = vrot.lane.b32.xlu0 %v2626, 127
          %v2673 = vpop.permute.xlu0 %2672
          %2674 = vrot.lane.b32.xlu0 %v2627, 127
          %v2675 = vpop.permute.xlu0 %2674
          %v2692 = vsel %vm2522, %v2645, 0.0
          %v2693 = vsel %vm2522, %v2647, 0.0
          %v2694 = vadd.f32 %v2692, %v2693
          %v2695 = vsel %vm2522, %v2649, 0.0
          %v2696 = vadd.f32 %v2694, %v2695
          %v2697 = vsel %vm2522, %v2651, 0.0
          %v2698 = vadd.f32 %v2696, %v2697
          %v2699 = vsel %vm2522, %v2653, 0.0
          %v2700 = vadd.f32 %v2698, %v2699
          %v2701 = vsel %vm2522, %v2655, 0.0
          %v2702 = vadd.f32 %v2700, %v2701
          %v2703 = vsel %vm2522, %v2657, 0.0
          %v2704 = vadd.f32 %v2702, %v2703
          %v2705 = vsel %vm2522, %v2659, 0.0
          %v2706 = vadd.f32 %v2704, %v2705
          %v2707 = vsel %vm2522, %v2661, 0.0
          %v2708 = vadd.f32 %v2706, %v2707
          %v2709 = vsel %vm2522, %v2663, 0.0
          %v2710 = vadd.f32 %v2708, %v2709
          %v2711 = vsel %vm2522, %v2665, 0.0
          %v2712 = vadd.f32 %v2710, %v2711
          %v2713 = vsel %vm2522, %v2667, 0.0
          %v2714 = vadd.f32 %v2712, %v2713
          %v2715 = vsel %vm2522, %v2669, 0.0
          %v2716 = vadd.f32 %v2714, %v2715
          %v2717 = vsel %vm2522, %v2671, 0.0
          %v2718 = vadd.f32 %v2716, %v2717
          %v2719 = vsel %vm2522, %v2673, 0.0
          %v2720 = vadd.f32 %v2718, %v2719
          %v2721 = vsel %vm2522, %v2675, 0.0
          %v2722 = vadd.f32 %v2720, %v2721
          %2723 = vadd.xlane.f32.xlu0 %v2722
          %v2724 = vpop.xlane.xlu0 %2723
          %v2725 = vrot.slane %v2724, 4
          %v2726 = vadd.f32 %v2724, %v2725
          %v2727 = vrot.slane %v2726, 2
          %v2728 = vadd.f32 %v2726, %v2727
          %v2729 = vrot.slane %v2728, 1
          %v2730 = vadd.f32 %v2728, %v2729
          %s2731 = vtos %v2730
          %s2732 = sadd.f32 %s2563, %s2731
          %v2733 = vadd.f32 %v2265, %v2266
          %2734 = vadd.xlane.f32.xlu0 %v2733
          %v2735 = vpop.xlane.xlu0 %2734
          %v2736 = vadd.f32 %v2267, %v2268
          %2737 = vadd.xlane.f32.xlu0 %v2736
          %v2738 = vpop.xlane.xlu0 %2737
          %v2739 = vadd.f32 %v2269, %v2270
          %2740 = vadd.xlane.f32.xlu0 %v2739
          %v2741 = vpop.xlane.xlu0 %2740
          %v2742 = vadd.f32 %v2271, %v2272
          %2743 = vadd.xlane.f32.xlu0 %v2742
          %v2744 = vpop.xlane.xlu0 %2743
          %v2745 = vadd.f32 %v2273, %v2274
          %2746 = vadd.xlane.f32.xlu0 %v2745
          %v2747 = vpop.xlane.xlu0 %2746
          %v2748 = vadd.f32 %v2275, %v2276
          %2749 = vadd.xlane.f32.xlu0 %v2748
          %v2750 = vpop.xlane.xlu0 %2749
          %v2751 = vadd.f32 %v2277, %v2278
          %2752 = vadd.xlane.f32.xlu0 %v2751
          %v2753 = vpop.xlane.xlu0 %2752
          %v2754 = vadd.f32 %v2279, %v2280
          %2755 = vadd.xlane.f32.xlu0 %v2754
          %v2756 = vpop.xlane.xlu0 %2755
          %v2757 = vadd.f32 %v2281, %v2282
          %2758 = vadd.xlane.f32.xlu0 %v2757
          %v2759 = vpop.xlane.xlu0 %2758
          %v2760 = vadd.f32 %v2283, %v2284
          %2761 = vadd.xlane.f32.xlu0 %v2760
          %v2762 = vpop.xlane.xlu0 %2761
          %v2763 = vadd.f32 %v2285, %v2286
          %2764 = vadd.xlane.f32.xlu0 %v2763
          %v2765 = vpop.xlane.xlu0 %2764
          %v2766 = vadd.f32 %v2287, %v2288
          %2767 = vadd.xlane.f32.xlu0 %v2766
          %v2768 = vpop.xlane.xlu0 %2767
          %v2769 = vadd.f32 %v2289, %v2290
          %2770 = vadd.xlane.f32.xlu0 %v2769
          %v2771 = vpop.xlane.xlu0 %2770
          %v2772 = vadd.f32 %v2291, %v2292
          %2773 = vadd.xlane.f32.xlu0 %v2772
          %v2774 = vpop.xlane.xlu0 %2773
          %v2775 = vadd.f32 %v2293, %v2294
          %2776 = vadd.xlane.f32.xlu0 %v2775
          %v2777 = vpop.xlane.xlu0 %2776
          %v2778 = vadd.f32 %v2295, %v2296
          %2779 = vadd.xlane.f32.xlu0 %v2778
          %v2780 = vpop.xlane.xlu0 %2779
          %v2781 = vmul.f32 %v460, %v2735
          %v2782 = vmul.f32 %v461, %v2738
          %v2783 = vmul.f32 %v462, %v2741
          %v2784 = vmul.f32 %v463, %v2744
          %v2785 = vmul.f32 %v464, %v2747
          %v2786 = vmul.f32 %v465, %v2750
          %v2787 = vmul.f32 %v466, %v2753
          %v2788 = vmul.f32 %v467, %v2756
          %v2789 = vmul.f32 %v468, %v2759
          %v2790 = vmul.f32 %v469, %v2762
          %v2791 = vmul.f32 %v470, %v2765
          %v2792 = vmul.f32 %v471, %v2768
          %v2793 = vmul.f32 %v472, %v2771
          %v2794 = vmul.f32 %v473, %v2774
          %v2795 = vmul.f32 %v474, %v2777
          %v2796 = vmul.f32 %v475, %v2780
          %2813 = vrot.lane.b32.xlu0 %v2781, 126
          %v2814 = vpop.permute.xlu0 %2813
          %2815 = vrot.lane.b32.xlu0 %v2782, 126
          %v2816 = vpop.permute.xlu0 %2815
          %2817 = vrot.lane.b32.xlu0 %v2783, 126
          %v2818 = vpop.permute.xlu0 %2817
          %2819 = vrot.lane.b32.xlu0 %v2784, 126
          %v2820 = vpop.permute.xlu0 %2819
          %2821 = vrot.lane.b32.xlu0 %v2785, 126
          %v2822 = vpop.permute.xlu0 %2821
          %2823 = vrot.lane.b32.xlu0 %v2786, 126
          %v2824 = vpop.permute.xlu0 %2823
          %2825 = vrot.lane.b32.xlu0 %v2787, 126
          %v2826 = vpop.permute.xlu0 %2825
          %2827 = vrot.lane.b32.xlu0 %v2788, 126
          %v2828 = vpop.permute.xlu0 %2827
          %2829 = vrot.lane.b32.xlu0 %v2789, 126
          %v2830 = vpop.permute.xlu0 %2829
          %2831 = vrot.lane.b32.xlu0 %v2790, 126
          %v2832 = vpop.permute.xlu0 %2831
          %2833 = vrot.lane.b32.xlu0 %v2791, 126
          %v2834 = vpop.permute.xlu0 %2833
          %2835 = vrot.lane.b32.xlu0 %v2792, 126
          %v2836 = vpop.permute.xlu0 %2835
          %2837 = vrot.lane.b32.xlu0 %v2793, 126
          %v2838 = vpop.permute.xlu0 %2837
          %2839 = vrot.lane.b32.xlu0 %v2794, 126
          %v2840 = vpop.permute.xlu0 %2839
          %2841 = vrot.lane.b32.xlu0 %v2795, 126
          %v2842 = vpop.permute.xlu0 %2841
          %2843 = vrot.lane.b32.xlu0 %v2796, 126
          %v2844 = vpop.permute.xlu0 %2843
          %v2861 = vsel %vm2522, %v2814, 0.0
          %v2862 = vsel %vm2522, %v2816, 0.0
          %v2863 = vadd.f32 %v2861, %v2862
          %v2864 = vsel %vm2522, %v2818, 0.0
          %v2865 = vadd.f32 %v2863, %v2864
          %v2866 = vsel %vm2522, %v2820, 0.0
          %v2867 = vadd.f32 %v2865, %v2866
          %v2868 = vsel %vm2522, %v2822, 0.0
          %v2869 = vadd.f32 %v2867, %v2868
          %v2870 = vsel %vm2522, %v2824, 0.0
          %v2871 = vadd.f32 %v2869, %v2870
          %v2872 = vsel %vm2522, %v2826, 0.0
          %v2873 = vadd.f32 %v2871, %v2872
          %v2874 = vsel %vm2522, %v2828, 0.0
          %v2875 = vadd.f32 %v2873, %v2874
          %v2876 = vsel %vm2522, %v2830, 0.0
          %v2877 = vadd.f32 %v2875, %v2876
          %v2878 = vsel %vm2522, %v2832, 0.0
          %v2879 = vadd.f32 %v2877, %v2878
          %v2880 = vsel %vm2522, %v2834, 0.0
          %v2881 = vadd.f32 %v2879, %v2880
          %v2882 = vsel %vm2522, %v2836, 0.0
          %v2883 = vadd.f32 %v2881, %v2882
          %v2884 = vsel %vm2522, %v2838, 0.0
          %v2885 = vadd.f32 %v2883, %v2884
          %v2886 = vsel %vm2522, %v2840, 0.0
          %v2887 = vadd.f32 %v2885, %v2886
          %v2888 = vsel %vm2522, %v2842, 0.0
          %v2889 = vadd.f32 %v2887, %v2888
          %v2890 = vsel %vm2522, %v2844, 0.0
          %v2891 = vadd.f32 %v2889, %v2890
          %2892 = vadd.xlane.f32.xlu0 %v2891
          %v2893 = vpop.xlane.xlu0 %2892
          %v2894 = vrot.slane %v2893, 4
          %v2895 = vadd.f32 %v2893, %v2894
          %v2896 = vrot.slane %v2895, 2
          %v2897 = vadd.f32 %v2895, %v2896
          %v2898 = vrot.slane %v2897, 1
          %v2899 = vadd.f32 %v2897, %v2898
          %s2900 = vtos %v2899
          %s2901 = sadd.f32 %s2732, %s2900
          %v2902 = vadd.f32 %v2426, %v2427
          %2903 = vadd.xlane.f32.xlu0 %v2902
          %v2904 = vpop.xlane.xlu0 %2903
          %v2905 = vadd.f32 %v2428, %v2429
          %2906 = vadd.xlane.f32.xlu0 %v2905
          %v2907 = vpop.xlane.xlu0 %2906
          %v2908 = vadd.f32 %v2430, %v2431
          %2909 = vadd.xlane.f32.xlu0 %v2908
          %v2910 = vpop.xlane.xlu0 %2909
          %v2911 = vadd.f32 %v2432, %v2433
          %2912 = vadd.xlane.f32.xlu0 %v2911
          %v2913 = vpop.xlane.xlu0 %2912
          %v2914 = vadd.f32 %v2434, %v2435
          %2915 = vadd.xlane.f32.xlu0 %v2914
          %v2916 = vpop.xlane.xlu0 %2915
          %v2917 = vadd.f32 %v2436, %v2437
          %2918 = vadd.xlane.f32.xlu0 %v2917
          %v2919 = vpop.xlane.xlu0 %2918
          %v2920 = vadd.f32 %v2438, %v2439
          %2921 = vadd.xlane.f32.xlu0 %v2920
          %v2922 = vpop.xlane.xlu0 %2921
          %v2923 = vadd.f32 %v2440, %v2441
          %2924 = vadd.xlane.f32.xlu0 %v2923
          %v2925 = vpop.xlane.xlu0 %2924
          %v2926 = vadd.f32 %v2442, %v2443
          %2927 = vadd.xlane.f32.xlu0 %v2926
          %v2928 = vpop.xlane.xlu0 %2927
          %v2929 = vadd.f32 %v2444, %v2445
          %2930 = vadd.xlane.f32.xlu0 %v2929
          %v2931 = vpop.xlane.xlu0 %2930
          %v2932 = vadd.f32 %v2446, %v2447
          %2933 = vadd.xlane.f32.xlu0 %v2932
          %v2934 = vpop.xlane.xlu0 %2933
          %v2935 = vadd.f32 %v2448, %v2449
          %2936 = vadd.xlane.f32.xlu0 %v2935
          %v2937 = vpop.xlane.xlu0 %2936
          %v2938 = vadd.f32 %v2450, %v2451
          %2939 = vadd.xlane.f32.xlu0 %v2938
          %v2940 = vpop.xlane.xlu0 %2939
          %v2941 = vadd.f32 %v2452, %v2453
          %2942 = vadd.xlane.f32.xlu0 %v2941
          %v2943 = vpop.xlane.xlu0 %2942
          %v2944 = vadd.f32 %v2454, %v2455
          %2945 = vadd.xlane.f32.xlu0 %v2944
          %v2946 = vpop.xlane.xlu0 %2945
          %v2947 = vadd.f32 %v2456, %v2457
          %2948 = vadd.xlane.f32.xlu0 %v2947
          %v2949 = vpop.xlane.xlu0 %2948
          %v2950 = vmul.f32 %v460, %v2904
          %v2951 = vmul.f32 %v461, %v2907
          %v2952 = vmul.f32 %v462, %v2910
          %v2953 = vmul.f32 %v463, %v2913
          %v2954 = vmul.f32 %v464, %v2916
          %v2955 = vmul.f32 %v465, %v2919
          %v2956 = vmul.f32 %v466, %v2922
          %v2957 = vmul.f32 %v467, %v2925
          %v2958 = vmul.f32 %v468, %v2928
          %v2959 = vmul.f32 %v469, %v2931
          %v2960 = vmul.f32 %v470, %v2934
          %v2961 = vmul.f32 %v471, %v2937
          %v2962 = vmul.f32 %v472, %v2940
          %v2963 = vmul.f32 %v473, %v2943
          %v2964 = vmul.f32 %v474, %v2946
          %v2965 = vmul.f32 %v475, %v2949
          %2982 = vrot.lane.b32.xlu0 %v2950, 125
          %v2983 = vpop.permute.xlu0 %2982
          %2984 = vrot.lane.b32.xlu0 %v2951, 125
          %v2985 = vpop.permute.xlu0 %2984
          %2986 = vrot.lane.b32.xlu0 %v2952, 125
          %v2987 = vpop.permute.xlu0 %2986
          %2988 = vrot.lane.b32.xlu0 %v2953, 125
          %v2989 = vpop.permute.xlu0 %2988
          %2990 = vrot.lane.b32.xlu0 %v2954, 125
          %v2991 = vpop.permute.xlu0 %2990
          %2992 = vrot.lane.b32.xlu0 %v2955, 125
          %v2993 = vpop.permute.xlu0 %2992
          %2994 = vrot.lane.b32.xlu0 %v2956, 125
          %v2995 = vpop.permute.xlu0 %2994
          %2996 = vrot.lane.b32.xlu0 %v2957, 125
          %v2997 = vpop.permute.xlu0 %2996
          %2998 = vrot.lane.b32.xlu0 %v2958, 125
          %v2999 = vpop.permute.xlu0 %2998
          %3000 = vrot.lane.b32.xlu0 %v2959, 125
          %v3001 = vpop.permute.xlu0 %3000
          %3002 = vrot.lane.b32.xlu0 %v2960, 125
          %v3003 = vpop.permute.xlu0 %3002
          %3004 = vrot.lane.b32.xlu0 %v2961, 125
          %v3005 = vpop.permute.xlu0 %3004
          %3006 = vrot.lane.b32.xlu0 %v2962, 125
          %v3007 = vpop.permute.xlu0 %3006
          %3008 = vrot.lane.b32.xlu0 %v2963, 125
          %v3009 = vpop.permute.xlu0 %3008
          %3010 = vrot.lane.b32.xlu0 %v2964, 125
          %v3011 = vpop.permute.xlu0 %3010
          %3012 = vrot.lane.b32.xlu0 %v2965, 125
          %v3013 = vpop.permute.xlu0 %3012
          %v3030 = vsel %vm2522, %v2983, 0.0
          %v3031 = vsel %vm2522, %v2985, 0.0
          %v3032 = vadd.f32 %v3030, %v3031
          %v3033 = vsel %vm2522, %v2987, 0.0
          %v3034 = vadd.f32 %v3032, %v3033
          %v3035 = vsel %vm2522, %v2989, 0.0
          %v3036 = vadd.f32 %v3034, %v3035
          %v3037 = vsel %vm2522, %v2991, 0.0
          %v3038 = vadd.f32 %v3036, %v3037
          %v3039 = vsel %vm2522, %v2993, 0.0
          %v3040 = vadd.f32 %v3038, %v3039
          %v3041 = vsel %vm2522, %v2995, 0.0
          %v3042 = vadd.f32 %v3040, %v3041
          %v3043 = vsel %vm2522, %v2997, 0.0
          %v3044 = vadd.f32 %v3042, %v3043
          %v3045 = vsel %vm2522, %v2999, 0.0
          %v3046 = vadd.f32 %v3044, %v3045
          %v3047 = vsel %vm2522, %v3001, 0.0
          %v3048 = vadd.f32 %v3046, %v3047
          %v3049 = vsel %vm2522, %v3003, 0.0
          %v3050 = vadd.f32 %v3048, %v3049
          %v3051 = vsel %vm2522, %v3005, 0.0
          %v3052 = vadd.f32 %v3050, %v3051
          %v3053 = vsel %vm2522, %v3007, 0.0
          %v3054 = vadd.f32 %v3052, %v3053
          %v3055 = vsel %vm2522, %v3009, 0.0
          %v3056 = vadd.f32 %v3054, %v3055
          %v3057 = vsel %vm2522, %v3011, 0.0
          %v3058 = vadd.f32 %v3056, %v3057
          %v3059 = vsel %vm2522, %v3013, 0.0
          %v3060 = vadd.f32 %v3058, %v3059
          %3061 = vadd.xlane.f32.xlu0 %v3060
          %v3062 = vpop.xlane.xlu0 %3061
          %v3063 = vrot.slane %v3062, 4
          %v3064 = vadd.f32 %v3062, %v3063
          %v3065 = vrot.slane %v3064, 2
          %v3066 = vadd.f32 %v3064, %v3065
          %v3067 = vrot.slane %v3066, 1
          %v3068 = vadd.f32 %v3066, %v3067
          %s3069 = vtos %v3068
          %s3070 = sadd.f32 %s2901, %s3069
          %v3071 = vpack.c.bf16 %v1945, %v1943
          %v3072 = vpack.c.bf16 %v1946, %v1944
          %v3073 = vpack.c.bf16 %v1949, %v1947
          %v3074 = vpack.c.bf16 %v1950, %v1948
          %v3075 = vpack.c.bf16 %v1953, %v1951
          %v3076 = vpack.c.bf16 %v1954, %v1952
          %v3077 = vpack.c.bf16 %v1957, %v1955
          %v3078 = vpack.c.bf16 %v1958, %v1956
          %v3079 = vpack.c.bf16 %v1961, %v1959
          %v3080 = vpack.c.bf16 %v1962, %v1960
          %v3081 = vpack.c.bf16 %v1965, %v1963
          %v3082 = vpack.c.bf16 %v1966, %v1964
          %v3083 = vpack.c.bf16 %v1969, %v1967
          %v3084 = vpack.c.bf16 %v1970, %v1968
          %v3085 = vpack.c.bf16 %v1973, %v1971
          %v3086 = vpack.c.bf16 %v1974, %v1972
          %v3103 = vunpack.c.l.b16 %v478
          %v3104 = vunpack.c.l.b16 %v479
          %v3105 = vunpack.c.l.b16 %v480
          %v3106 = vunpack.c.l.b16 %v481
          %v3107 = vunpack.c.l.b16 %v482
          %v3108 = vunpack.c.l.b16 %v483
          %v3109 = vunpack.c.l.b16 %v484
          %v3110 = vunpack.c.l.b16 %v485
          %v3111 = vunpack.c.l.b16 %v486
          %v3112 = vunpack.c.l.b16 %v487
          %v3113 = vunpack.c.l.b16 %v488
          %v3114 = vunpack.c.l.b16 %v489
          %v3115 = vunpack.c.l.b16 %v490
          %v3116 = vunpack.c.l.b16 %v491
          %v3117 = vunpack.c.l.b16 %v492
          %v3118 = vunpack.c.l.b16 %v493
          %v3119 = vpack.c.b16 %v3104, %v3103
          %v3120 = vpack.c.b16 %v3106, %v3105
          %v3121 = vpack.c.b16 %v3108, %v3107
          %v3122 = vpack.c.b16 %v3110, %v3109
          %v3123 = vpack.c.b16 %v3112, %v3111
          %v3124 = vpack.c.b16 %v3114, %v3113
          %v3125 = vpack.c.b16 %v3116, %v3115
          %v3126 = vpack.c.b16 %v3118, %v3117
          %3135 = vmatprep.subr.bf16.mxu0 %v3086
          %3136 = vmatpush1.bf16.msra.mxu0 %v3085
          %3137 = vmatprep.subr.bf16.mxu0 %v3084
          %3138 = vmatpush1.bf16.msra.mxu0 %v3083
          %3139 = vmatprep.subr.bf16.mxu0 %v3082
          %3140 = vmatpush1.bf16.msra.mxu0 %v3081
          %3141 = vmatprep.subr.bf16.mxu0 %v3080
          %3142 = vmatpush1.bf16.msra.mxu0 %v3079
          %3143 = vmatprep.subr.bf16.mxu0 %v3078
          %3144 = vmatpush1.bf16.msra.mxu0 %v3077
          %3145 = vmatprep.subr.bf16.mxu0 %v3076
          %3146 = vmatpush1.bf16.msra.mxu0 %v3075
          %3147 = vmatprep.subr.bf16.mxu0 %v3074
          %3148 = vmatpush1.bf16.msra.mxu0 %v3073
          %3149 = vmatprep.subr.bf16.mxu0 %v3072
          %3150 = vmatpush1.bf16.msra.mxu0 %v3071
          %3151 = vmatprep.subr.bf16.mxu0 0
          %3152 = vmatpush2.bf16.msra.mxu0 0
          %3153 = vmatprep.subr.bf16.mxu0 0
          %3154 = vmatpush2.bf16.msra.mxu0 0
          %3155 = vmatprep.subr.bf16.mxu0 0
          %3156 = vmatpush2.bf16.msra.mxu0 0
          %3157 = vmatprep.subr.bf16.mxu0 0
          %3158 = vmatpush2.bf16.msra.mxu0 0
          %3159 = vmatprep.subr.bf16.mxu0 0
          %3160 = vmatpush2.bf16.msra.mxu0 0
          %3161 = vmatprep.subr.bf16.mxu0 0
          %3162 = vmatpush2.bf16.msra.mxu0 0
          %3163 = vmatprep.subr.bf16.mxu0 0
          %3164 = vmatpush2.bf16.msra.mxu0 0
          %3165 = vmatprep.subr.bf16.mxu0 0
          %3166 = vmatpush2.bf16.msra.mxu0 0
          %3167 = vmatprep.mubr.bf16.mxu0 0
          %3168 = vmatmul.mubr.bf16.gmra.mxu0 %v3119
          %v3169 = vpop.f32.mrf.mxu0
          %v3170 = vadd.f32 0.0, %v3169
          %v3171 = vpop.f32.mrf.mxu0
          %v3172 = vadd.f32 0.0, %v3171
          %v3173 = vpop.f32.mrf.mxu0
          %v3174 = vadd.f32 0.0, %v3173
          %v3175 = vpop.f32.mrf.mxu0
          %v3176 = vadd.f32 0.0, %v3175
          %3177 = vmatprep.mubr.bf16.mxu0 0
          %3178 = vmatmul.mubr.bf16.gmra.mxu0 %v3120
          %v3179 = vpop.f32.mrf.mxu0
          %v3180 = vadd.f32 0.0, %v3179
          %v3181 = vpop.f32.mrf.mxu0
          %v3182 = vadd.f32 0.0, %v3181
          %v3183 = vpop.f32.mrf.mxu0
          %v3184 = vadd.f32 0.0, %v3183
          %v3185 = vpop.f32.mrf.mxu0
          %v3186 = vadd.f32 0.0, %v3185
          %3187 = vmatprep.mubr.bf16.mxu0 0
          %3188 = vmatmul.mubr.bf16.gmra.mxu0 %v3121
          %v3189 = vpop.f32.mrf.mxu0
          %v3190 = vadd.f32 0.0, %v3189
          %v3191 = vpop.f32.mrf.mxu0
          %v3192 = vadd.f32 0.0, %v3191
          %v3193 = vpop.f32.mrf.mxu0
          %v3194 = vadd.f32 0.0, %v3193
          %v3195 = vpop.f32.mrf.mxu0
          %v3196 = vadd.f32 0.0, %v3195
          %3197 = vmatprep.mubr.bf16.mxu0 0
          %3198 = vmatmul.mubr.bf16.gmra.mxu0 %v3122
          %v3199 = vpop.f32.mrf.mxu0
          %v3200 = vadd.f32 0.0, %v3199
          %v3201 = vpop.f32.mrf.mxu0
          %v3202 = vadd.f32 0.0, %v3201
          %v3203 = vpop.f32.mrf.mxu0
          %v3204 = vadd.f32 0.0, %v3203
          %v3205 = vpop.f32.mrf.mxu0
          %v3206 = vadd.f32 0.0, %v3205
          %3207 = vmatprep.mubr.bf16.mxu0 0
          %3208 = vmatmul.mubr.bf16.gmra.mxu0 %v3123
          %v3209 = vpop.f32.mrf.mxu0
          %v3210 = vadd.f32 0.0, %v3209
          %v3211 = vpop.f32.mrf.mxu0
          %v3212 = vadd.f32 0.0, %v3211
          %v3213 = vpop.f32.mrf.mxu0
          %v3214 = vadd.f32 0.0, %v3213
          %v3215 = vpop.f32.mrf.mxu0
          %v3216 = vadd.f32 0.0, %v3215
          %3217 = vmatprep.mubr.bf16.mxu0 0
          %3218 = vmatmul.mubr.bf16.gmra.mxu0 %v3124
          %v3219 = vpop.f32.mrf.mxu0
          %v3220 = vadd.f32 0.0, %v3219
          %v3221 = vpop.f32.mrf.mxu0
          %v3222 = vadd.f32 0.0, %v3221
          %v3223 = vpop.f32.mrf.mxu0
          %v3224 = vadd.f32 0.0, %v3223
          %v3225 = vpop.f32.mrf.mxu0
          %v3226 = vadd.f32 0.0, %v3225
          %3227 = vmatprep.mubr.bf16.mxu0 0
          %3228 = vmatmul.mubr.bf16.gmra.mxu0 %v3125
          %v3229 = vpop.f32.mrf.mxu0
          %v3230 = vadd.f32 0.0, %v3229
          %v3231 = vpop.f32.mrf.mxu0
          %v3232 = vadd.f32 0.0, %v3231
          %v3233 = vpop.f32.mrf.mxu0
          %v3234 = vadd.f32 0.0, %v3233
          %v3235 = vpop.f32.mrf.mxu0
          %v3236 = vadd.f32 0.0, %v3235
          %3237 = vmatprep.mubr.bf16.mxu0 0
          %3238 = vmatmul.mubr.bf16.gmra.mxu0 %v3126
          %v3239 = vpop.f32.mrf.mxu0
          %v3240 = vadd.f32 0.0, %v3239
          %v3241 = vpop.f32.mrf.mxu0
          %v3242 = vadd.f32 0.0, %v3241
          %v3243 = vpop.f32.mrf.mxu0
          %v3244 = vadd.f32 0.0, %v3243
          %v3245 = vpop.f32.mrf.mxu0
          %v3246 = vadd.f32 0.0, %v3245
          %3247 = vdwg.mxu0
          %v3248 = vmul.f32 %v3170, %v1239
          %v3249 = vmul.f32 %v3172, %v1240
          %v3250 = vmul.f32 %v3174, %v1241
          %v3251 = vmul.f32 %v3176, %v1242
          %v3252 = vmul.f32 %v3180, %v1243
          %v3253 = vmul.f32 %v3182, %v1244
          %v3254 = vmul.f32 %v3184, %v1245
          %v3255 = vmul.f32 %v3186, %v1246
          %v3256 = vmul.f32 %v3190, %v1247
          %v3257 = vmul.f32 %v3192, %v1248
          %v3258 = vmul.f32 %v3194, %v1249
          %v3259 = vmul.f32 %v3196, %v1250
          %v3260 = vmul.f32 %v3200, %v1251
          %v3261 = vmul.f32 %v3202, %v1252
          %v3262 = vmul.f32 %v3204, %v1253
          %v3263 = vmul.f32 %v3206, %v1254
          %v3264 = vmul.f32 %v3210, %v1255
          %v3265 = vmul.f32 %v3212, %v1256
          %v3266 = vmul.f32 %v3214, %v1257
          %v3267 = vmul.f32 %v3216, %v1258
          %v3268 = vmul.f32 %v3220, %v1259
          %v3269 = vmul.f32 %v3222, %v1260
          %v3270 = vmul.f32 %v3224, %v1261
          %v3271 = vmul.f32 %v3226, %v1262
          %v3272 = vmul.f32 %v3230, %v1263
          %v3273 = vmul.f32 %v3232, %v1264
          %v3274 = vmul.f32 %v3234, %v1265
          %v3275 = vmul.f32 %v3236, %v1266
          %v3276 = vmul.f32 %v3240, %v1267
          %v3277 = vmul.f32 %v3242, %v1268
          %v3278 = vmul.f32 %v3244, %v1269
          %v3279 = vmul.f32 %v3246, %v1270
          %v3280 = vpack.c.bf16 %v2106, %v2104
          %v3281 = vpack.c.bf16 %v2107, %v2105
          %v3282 = vpack.c.bf16 %v2110, %v2108
          %v3283 = vpack.c.bf16 %v2111, %v2109
          %v3284 = vpack.c.bf16 %v2114, %v2112
          %v3285 = vpack.c.bf16 %v2115, %v2113
          %v3286 = vpack.c.bf16 %v2118, %v2116
          %v3287 = vpack.c.bf16 %v2119, %v2117
          %v3288 = vpack.c.bf16 %v2122, %v2120
          %v3289 = vpack.c.bf16 %v2123, %v2121
          %v3290 = vpack.c.bf16 %v2126, %v2124
          %v3291 = vpack.c.bf16 %v2127, %v2125
          %v3292 = vpack.c.bf16 %v2130, %v2128
          %v3293 = vpack.c.bf16 %v2131, %v2129
          %v3294 = vpack.c.bf16 %v2134, %v2132
          %v3295 = vpack.c.bf16 %v2135, %v2133
          %3296 = vmatprep.subr.bf16.mxu0 %v3295
          %3297 = vmatpush1.bf16.msra.mxu0 %v3294
          %3298 = vmatprep.subr.bf16.mxu0 %v3293
          %3299 = vmatpush1.bf16.msra.mxu0 %v3292
          %3300 = vmatprep.subr.bf16.mxu0 %v3291
          %3301 = vmatpush1.bf16.msra.mxu0 %v3290
          %3302 = vmatprep.subr.bf16.mxu0 %v3289
          %3303 = vmatpush1.bf16.msra.mxu0 %v3288
          %3304 = vmatprep.subr.bf16.mxu0 %v3287
          %3305 = vmatpush1.bf16.msra.mxu0 %v3286
          %3306 = vmatprep.subr.bf16.mxu0 %v3285
          %3307 = vmatpush1.bf16.msra.mxu0 %v3284
          %3308 = vmatprep.subr.bf16.mxu0 %v3283
          %3309 = vmatpush1.bf16.msra.mxu0 %v3282
          %3310 = vmatprep.subr.bf16.mxu0 %v3281
          %3311 = vmatpush1.bf16.msra.mxu0 %v3280
          %3312 = vmatprep.subr.bf16.mxu0 0
          %3313 = vmatpush2.bf16.msra.mxu0 0
          %3314 = vmatprep.subr.bf16.mxu0 0
          %3315 = vmatpush2.bf16.msra.mxu0 0
          %3316 = vmatprep.subr.bf16.mxu0 0
          %3317 = vmatpush2.bf16.msra.mxu0 0
          %3318 = vmatprep.subr.bf16.mxu0 0
          %3319 = vmatpush2.bf16.msra.mxu0 0
          %3320 = vmatprep.subr.bf16.mxu0 0
          %3321 = vmatpush2.bf16.msra.mxu0 0
          %3322 = vmatprep.subr.bf16.mxu0 0
          %3323 = vmatpush2.bf16.msra.mxu0 0
          %3324 = vmatprep.subr.bf16.mxu0 0
          %3325 = vmatpush2.bf16.msra.mxu0 0
          %3326 = vmatprep.subr.bf16.mxu0 0
          %3327 = vmatpush2.bf16.msra.mxu0 0
          %3328 = vmatprep.mubr.bf16.mxu0 0
          %3329 = vmatmul.mubr.bf16.gmra.mxu0 %v3119
          %v3330 = vpop.f32.mrf.mxu0
          %v3331 = vadd.f32 0.0, %v3330
          %v3332 = vpop.f32.mrf.mxu0
          %v3333 = vadd.f32 0.0, %v3332
          %v3334 = vpop.f32.mrf.mxu0
          %v3335 = vadd.f32 0.0, %v3334
          %v3336 = vpop.f32.mrf.mxu0
          %v3337 = vadd.f32 0.0, %v3336
          %3338 = vmatprep.mubr.bf16.mxu0 0
          %3339 = vmatmul.mubr.bf16.gmra.mxu0 %v3120
          %v3340 = vpop.f32.mrf.mxu0
          %v3341 = vadd.f32 0.0, %v3340
          %v3342 = vpop.f32.mrf.mxu0
          %v3343 = vadd.f32 0.0, %v3342
          %v3344 = vpop.f32.mrf.mxu0
          %v3345 = vadd.f32 0.0, %v3344
          %v3346 = vpop.f32.mrf.mxu0
          %v3347 = vadd.f32 0.0, %v3346
          %3348 = vmatprep.mubr.bf16.mxu0 0
          %3349 = vmatmul.mubr.bf16.gmra.mxu0 %v3121
          %v3350 = vpop.f32.mrf.mxu0
          %v3351 = vadd.f32 0.0, %v3350
          %v3352 = vpop.f32.mrf.mxu0
          %v3353 = vadd.f32 0.0, %v3352
          %v3354 = vpop.f32.mrf.mxu0
          %v3355 = vadd.f32 0.0, %v3354
          %v3356 = vpop.f32.mrf.mxu0
          %v3357 = vadd.f32 0.0, %v3356
          %3358 = vmatprep.mubr.bf16.mxu0 0
          %3359 = vmatmul.mubr.bf16.gmra.mxu0 %v3122
          %v3360 = vpop.f32.mrf.mxu0
          %v3361 = vadd.f32 0.0, %v3360
          %v3362 = vpop.f32.mrf.mxu0
          %v3363 = vadd.f32 0.0, %v3362
          %v3364 = vpop.f32.mrf.mxu0
          %v3365 = vadd.f32 0.0, %v3364
          %v3366 = vpop.f32.mrf.mxu0
          %v3367 = vadd.f32 0.0, %v3366
          %3368 = vmatprep.mubr.bf16.mxu0 0
          %3369 = vmatmul.mubr.bf16.gmra.mxu0 %v3123
          %v3370 = vpop.f32.mrf.mxu0
          %v3371 = vadd.f32 0.0, %v3370
          %v3372 = vpop.f32.mrf.mxu0
          %v3373 = vadd.f32 0.0, %v3372
          %v3374 = vpop.f32.mrf.mxu0
          %v3375 = vadd.f32 0.0, %v3374
          %v3376 = vpop.f32.mrf.mxu0
          %v3377 = vadd.f32 0.0, %v3376
          %3378 = vmatprep.mubr.bf16.mxu0 0
          %3379 = vmatmul.mubr.bf16.gmra.mxu0 %v3124
          %v3380 = vpop.f32.mrf.mxu0
          %v3381 = vadd.f32 0.0, %v3380
          %v3382 = vpop.f32.mrf.mxu0
          %v3383 = vadd.f32 0.0, %v3382
          %v3384 = vpop.f32.mrf.mxu0
          %v3385 = vadd.f32 0.0, %v3384
          %v3386 = vpop.f32.mrf.mxu0
          %v3387 = vadd.f32 0.0, %v3386
          %3388 = vmatprep.mubr.bf16.mxu0 0
          %3389 = vmatmul.mubr.bf16.gmra.mxu0 %v3125
          %v3390 = vpop.f32.mrf.mxu0
          %v3391 = vadd.f32 0.0, %v3390
          %v3392 = vpop.f32.mrf.mxu0
          %v3393 = vadd.f32 0.0, %v3392
          %v3394 = vpop.f32.mrf.mxu0
          %v3395 = vadd.f32 0.0, %v3394
          %v3396 = vpop.f32.mrf.mxu0
          %v3397 = vadd.f32 0.0, %v3396
          %3398 = vmatprep.mubr.bf16.mxu0 0
          %3399 = vmatmul.mubr.bf16.gmra.mxu0 %v3126
          %v3400 = vpop.f32.mrf.mxu0
          %v3401 = vadd.f32 0.0, %v3400
          %v3402 = vpop.f32.mrf.mxu0
          %v3403 = vadd.f32 0.0, %v3402
          %v3404 = vpop.f32.mrf.mxu0
          %v3405 = vadd.f32 0.0, %v3404
          %v3406 = vpop.f32.mrf.mxu0
          %v3407 = vadd.f32 0.0, %v3406
          %3408 = vdwg.mxu0
          %v3409 = vmul.f32 %v3331, %v1239
          %v3410 = vmul.f32 %v3333, %v1240
          %v3411 = vmul.f32 %v3335, %v1241
          %v3412 = vmul.f32 %v3337, %v1242
          %v3413 = vmul.f32 %v3341, %v1243
          %v3414 = vmul.f32 %v3343, %v1244
          %v3415 = vmul.f32 %v3345, %v1245
          %v3416 = vmul.f32 %v3347, %v1246
          %v3417 = vmul.f32 %v3351, %v1247
          %v3418 = vmul.f32 %v3353, %v1248
          %v3419 = vmul.f32 %v3355, %v1249
          %v3420 = vmul.f32 %v3357, %v1250
          %v3421 = vmul.f32 %v3361, %v1251
          %v3422 = vmul.f32 %v3363, %v1252
          %v3423 = vmul.f32 %v3365, %v1253
          %v3424 = vmul.f32 %v3367, %v1254
          %v3425 = vmul.f32 %v3371, %v1255
          %v3426 = vmul.f32 %v3373, %v1256
          %v3427 = vmul.f32 %v3375, %v1257
          %v3428 = vmul.f32 %v3377, %v1258
          %v3429 = vmul.f32 %v3381, %v1259
          %v3430 = vmul.f32 %v3383, %v1260
          %v3431 = vmul.f32 %v3385, %v1261
          %v3432 = vmul.f32 %v3387, %v1262
          %v3433 = vmul.f32 %v3391, %v1263
          %v3434 = vmul.f32 %v3393, %v1264
          %v3435 = vmul.f32 %v3395, %v1265
          %v3436 = vmul.f32 %v3397, %v1266
          %v3437 = vmul.f32 %v3401, %v1267
          %v3438 = vmul.f32 %v3403, %v1268
          %v3439 = vmul.f32 %v3405, %v1269
          %v3440 = vmul.f32 %v3407, %v1270
          %v3441 = vpack.c.bf16 %v2267, %v2265
          %v3442 = vpack.c.bf16 %v2268, %v2266
          %v3443 = vpack.c.bf16 %v2271, %v2269
          %v3444 = vpack.c.bf16 %v2272, %v2270
          %v3445 = vpack.c.bf16 %v2275, %v2273
          %v3446 = vpack.c.bf16 %v2276, %v2274
          %v3447 = vpack.c.bf16 %v2279, %v2277
          %v3448 = vpack.c.bf16 %v2280, %v2278
          %v3449 = vpack.c.bf16 %v2283, %v2281
          %v3450 = vpack.c.bf16 %v2284, %v2282
          %v3451 = vpack.c.bf16 %v2287, %v2285
          %v3452 = vpack.c.bf16 %v2288, %v2286
          %v3453 = vpack.c.bf16 %v2291, %v2289
          %v3454 = vpack.c.bf16 %v2292, %v2290
          %v3455 = vpack.c.bf16 %v2295, %v2293
          %v3456 = vpack.c.bf16 %v2296, %v2294
          %3457 = vmatprep.subr.bf16.mxu0 %v3456
          %3458 = vmatpush1.bf16.msra.mxu0 %v3455
          %3459 = vmatprep.subr.bf16.mxu0 %v3454
          %3460 = vmatpush1.bf16.msra.mxu0 %v3453
          %3461 = vmatprep.subr.bf16.mxu0 %v3452
          %3462 = vmatpush1.bf16.msra.mxu0 %v3451
          %3463 = vmatprep.subr.bf16.mxu0 %v3450
          %3464 = vmatpush1.bf16.msra.mxu0 %v3449
          %3465 = vmatprep.subr.bf16.mxu0 %v3448
          %3466 = vmatpush1.bf16.msra.mxu0 %v3447
          %3467 = vmatprep.subr.bf16.mxu0 %v3446
          %3468 = vmatpush1.bf16.msra.mxu0 %v3445
          %3469 = vmatprep.subr.bf16.mxu0 %v3444
          %3470 = vmatpush1.bf16.msra.mxu0 %v3443
          %3471 = vmatprep.subr.bf16.mxu0 %v3442
          %3472 = vmatpush1.bf16.msra.mxu0 %v3441
          %3473 = vmatprep.subr.bf16.mxu0 0
          %3474 = vmatpush2.bf16.msra.mxu0 0
          %3475 = vmatprep.subr.bf16.mxu0 0
          %3476 = vmatpush2.bf16.msra.mxu0 0
          %3477 = vmatprep.subr.bf16.mxu0 0
          %3478 = vmatpush2.bf16.msra.mxu0 0
          %3479 = vmatprep.subr.bf16.mxu0 0
          %3480 = vmatpush2.bf16.msra.mxu0 0
          %3481 = vmatprep.subr.bf16.mxu0 0
          %3482 = vmatpush2.bf16.msra.mxu0 0
          %3483 = vmatprep.subr.bf16.mxu0 0
          %3484 = vmatpush2.bf16.msra.mxu0 0
          %3485 = vmatprep.subr.bf16.mxu0 0
          %3486 = vmatpush2.bf16.msra.mxu0 0
          %3487 = vmatprep.subr.bf16.mxu0 0
          %3488 = vmatpush2.bf16.msra.mxu0 0
          %3489 = vmatprep.mubr.bf16.mxu0 0
          %3490 = vmatmul.mubr.bf16.gmra.mxu0 %v3119
          %v3491 = vpop.f32.mrf.mxu0
          %v3492 = vadd.f32 0.0, %v3491
          %v3493 = vpop.f32.mrf.mxu0
          %v3494 = vadd.f32 0.0, %v3493
          %v3495 = vpop.f32.mrf.mxu0
          %v3496 = vadd.f32 0.0, %v3495
          %v3497 = vpop.f32.mrf.mxu0
          %v3498 = vadd.f32 0.0, %v3497
          %3499 = vmatprep.mubr.bf16.mxu0 0
          %3500 = vmatmul.mubr.bf16.gmra.mxu0 %v3120
          %v3501 = vpop.f32.mrf.mxu0
          %v3502 = vadd.f32 0.0, %v3501
          %v3503 = vpop.f32.mrf.mxu0
          %v3504 = vadd.f32 0.0, %v3503
          %v3505 = vpop.f32.mrf.mxu0
          %v3506 = vadd.f32 0.0, %v3505
          %v3507 = vpop.f32.mrf.mxu0
          %v3508 = vadd.f32 0.0, %v3507
          %3509 = vmatprep.mubr.bf16.mxu0 0
          %3510 = vmatmul.mubr.bf16.gmra.mxu0 %v3121
          %v3511 = vpop.f32.mrf.mxu0
          %v3512 = vadd.f32 0.0, %v3511
          %v3513 = vpop.f32.mrf.mxu0
          %v3514 = vadd.f32 0.0, %v3513
          %v3515 = vpop.f32.mrf.mxu0
          %v3516 = vadd.f32 0.0, %v3515
          %v3517 = vpop.f32.mrf.mxu0
          %v3518 = vadd.f32 0.0, %v3517
          %3519 = vmatprep.mubr.bf16.mxu0 0
          %3520 = vmatmul.mubr.bf16.gmra.mxu0 %v3122
          %v3521 = vpop.f32.mrf.mxu0
          %v3522 = vadd.f32 0.0, %v3521
          %v3523 = vpop.f32.mrf.mxu0
          %v3524 = vadd.f32 0.0, %v3523
          %v3525 = vpop.f32.mrf.mxu0
          %v3526 = vadd.f32 0.0, %v3525
          %v3527 = vpop.f32.mrf.mxu0
          %v3528 = vadd.f32 0.0, %v3527
          %3529 = vmatprep.mubr.bf16.mxu0 0
          %3530 = vmatmul.mubr.bf16.gmra.mxu0 %v3123
          %v3531 = vpop.f32.mrf.mxu0
          %v3532 = vadd.f32 0.0, %v3531
          %v3533 = vpop.f32.mrf.mxu0
          %v3534 = vadd.f32 0.0, %v3533
          %v3535 = vpop.f32.mrf.mxu0
          %v3536 = vadd.f32 0.0, %v3535
          %v3537 = vpop.f32.mrf.mxu0
          %v3538 = vadd.f32 0.0, %v3537
          %3539 = vmatprep.mubr.bf16.mxu0 0
          %3540 = vmatmul.mubr.bf16.gmra.mxu0 %v3124
          %v3541 = vpop.f32.mrf.mxu0
          %v3542 = vadd.f32 0.0, %v3541
          %v3543 = vpop.f32.mrf.mxu0
          %v3544 = vadd.f32 0.0, %v3543
          %v3545 = vpop.f32.mrf.mxu0
          %v3546 = vadd.f32 0.0, %v3545
          %v3547 = vpop.f32.mrf.mxu0
          %v3548 = vadd.f32 0.0, %v3547
          %3549 = vmatprep.mubr.bf16.mxu0 0
          %3550 = vmatmul.mubr.bf16.gmra.mxu0 %v3125
          %v3551 = vpop.f32.mrf.mxu0
          %v3552 = vadd.f32 0.0, %v3551
          %v3553 = vpop.f32.mrf.mxu0
          %v3554 = vadd.f32 0.0, %v3553
          %v3555 = vpop.f32.mrf.mxu0
          %v3556 = vadd.f32 0.0, %v3555
          %v3557 = vpop.f32.mrf.mxu0
          %v3558 = vadd.f32 0.0, %v3557
          %3559 = vmatprep.mubr.bf16.mxu0 0
          %3560 = vmatmul.mubr.bf16.gmra.mxu0 %v3126
          %v3561 = vpop.f32.mrf.mxu0
          %v3562 = vadd.f32 0.0, %v3561
          %v3563 = vpop.f32.mrf.mxu0
          %v3564 = vadd.f32 0.0, %v3563
          %v3565 = vpop.f32.mrf.mxu0
          %v3566 = vadd.f32 0.0, %v3565
          %v3567 = vpop.f32.mrf.mxu0
          %v3568 = vadd.f32 0.0, %v3567
          %3569 = vdwg.mxu0
          %v3570 = vmul.f32 %v3492, %v1239
          %v3571 = vmul.f32 %v3494, %v1240
          %v3572 = vmul.f32 %v3496, %v1241
          %v3573 = vmul.f32 %v3498, %v1242
          %v3574 = vmul.f32 %v3502, %v1243
          %v3575 = vmul.f32 %v3504, %v1244
          %v3576 = vmul.f32 %v3506, %v1245
          %v3577 = vmul.f32 %v3508, %v1246
          %v3578 = vmul.f32 %v3512, %v1247
          %v3579 = vmul.f32 %v3514, %v1248
          %v3580 = vmul.f32 %v3516, %v1249
          %v3581 = vmul.f32 %v3518, %v1250
          %v3582 = vmul.f32 %v3522, %v1251
          %v3583 = vmul.f32 %v3524, %v1252
          %v3584 = vmul.f32 %v3526, %v1253
          %v3585 = vmul.f32 %v3528, %v1254
          %v3586 = vmul.f32 %v3532, %v1255
          %v3587 = vmul.f32 %v3534, %v1256
          %v3588 = vmul.f32 %v3536, %v1257
          %v3589 = vmul.f32 %v3538, %v1258
          %v3590 = vmul.f32 %v3542, %v1259
          %v3591 = vmul.f32 %v3544, %v1260
          %v3592 = vmul.f32 %v3546, %v1261
          %v3593 = vmul.f32 %v3548, %v1262
          %v3594 = vmul.f32 %v3552, %v1263
          %v3595 = vmul.f32 %v3554, %v1264
          %v3596 = vmul.f32 %v3556, %v1265
          %v3597 = vmul.f32 %v3558, %v1266
          %v3598 = vmul.f32 %v3562, %v1267
          %v3599 = vmul.f32 %v3564, %v1268
          %v3600 = vmul.f32 %v3566, %v1269
          %v3601 = vmul.f32 %v3568, %v1270
          %v3602 = vpack.c.bf16 %v2428, %v2426
          %v3603 = vpack.c.bf16 %v2429, %v2427
          %v3604 = vpack.c.bf16 %v2432, %v2430
          %v3605 = vpack.c.bf16 %v2433, %v2431
          %v3606 = vpack.c.bf16 %v2436, %v2434
          %v3607 = vpack.c.bf16 %v2437, %v2435
          %v3608 = vpack.c.bf16 %v2440, %v2438
          %v3609 = vpack.c.bf16 %v2441, %v2439
          %v3610 = vpack.c.bf16 %v2444, %v2442
          %v3611 = vpack.c.bf16 %v2445, %v2443
          %v3612 = vpack.c.bf16 %v2448, %v2446
          %v3613 = vpack.c.bf16 %v2449, %v2447
          %v3614 = vpack.c.bf16 %v2452, %v2450
          %v3615 = vpack.c.bf16 %v2453, %v2451
          %v3616 = vpack.c.bf16 %v2456, %v2454
          %v3617 = vpack.c.bf16 %v2457, %v2455
          %3618 = vmatprep.subr.bf16.mxu0 %v3617
          %3619 = vmatpush1.bf16.msra.mxu0 %v3616
          %3620 = vmatprep.subr.bf16.mxu0 %v3615
          %3621 = vmatpush1.bf16.msra.mxu0 %v3614
          %3622 = vmatprep.subr.bf16.mxu0 %v3613
          %3623 = vmatpush1.bf16.msra.mxu0 %v3612
          %3624 = vmatprep.subr.bf16.mxu0 %v3611
          %3625 = vmatpush1.bf16.msra.mxu0 %v3610
          %3626 = vmatprep.subr.bf16.mxu0 %v3609
          %3627 = vmatpush1.bf16.msra.mxu0 %v3608
          %3628 = vmatprep.subr.bf16.mxu0 %v3607
          %3629 = vmatpush1.bf16.msra.mxu0 %v3606
          %3630 = vmatprep.subr.bf16.mxu0 %v3605
          %3631 = vmatpush1.bf16.msra.mxu0 %v3604
          %3632 = vmatprep.subr.bf16.mxu0 %v3603
          %3633 = vmatpush1.bf16.msra.mxu0 %v3602
          %3634 = vmatprep.subr.bf16.mxu0 0
          %3635 = vmatpush2.bf16.msra.mxu0 0
          %3636 = vmatprep.subr.bf16.mxu0 0
          %3637 = vmatpush2.bf16.msra.mxu0 0
          %3638 = vmatprep.subr.bf16.mxu0 0
          %3639 = vmatpush2.bf16.msra.mxu0 0
          %3640 = vmatprep.subr.bf16.mxu0 0
          %3641 = vmatpush2.bf16.msra.mxu0 0
          %3642 = vmatprep.subr.bf16.mxu0 0
          %3643 = vmatpush2.bf16.msra.mxu0 0
          %3644 = vmatprep.subr.bf16.mxu0 0
          %3645 = vmatpush2.bf16.msra.mxu0 0
          %3646 = vmatprep.subr.bf16.mxu0 0
          %3647 = vmatpush2.bf16.msra.mxu0 0
          %3648 = vmatprep.subr.bf16.mxu0 0
          %3649 = vmatpush2.bf16.msra.mxu0 0
          %3650 = vmatprep.mubr.bf16.mxu0 0
          %3651 = vmatmul.mubr.bf16.gmra.mxu0 %v3119
          %v3652 = vpop.f32.mrf.mxu0
          %v3653 = vadd.f32 0.0, %v3652
          %v3654 = vpop.f32.mrf.mxu0
          %v3655 = vadd.f32 0.0, %v3654
          %v3656 = vpop.f32.mrf.mxu0
          %v3657 = vadd.f32 0.0, %v3656
          %v3658 = vpop.f32.mrf.mxu0
          %v3659 = vadd.f32 0.0, %v3658
          %3660 = vmatprep.mubr.bf16.mxu0 0
          %3661 = vmatmul.mubr.bf16.gmra.mxu0 %v3120
          %v3662 = vpop.f32.mrf.mxu0
          %v3663 = vadd.f32 0.0, %v3662
          %v3664 = vpop.f32.mrf.mxu0
          %v3665 = vadd.f32 0.0, %v3664
          %v3666 = vpop.f32.mrf.mxu0
          %v3667 = vadd.f32 0.0, %v3666
          %v3668 = vpop.f32.mrf.mxu0
          %v3669 = vadd.f32 0.0, %v3668
          %3670 = vmatprep.mubr.bf16.mxu0 0
          %3671 = vmatmul.mubr.bf16.gmra.mxu0 %v3121
          %v3672 = vpop.f32.mrf.mxu0
          %v3673 = vadd.f32 0.0, %v3672
          %v3674 = vpop.f32.mrf.mxu0
          %v3675 = vadd.f32 0.0, %v3674
          %v3676 = vpop.f32.mrf.mxu0
          %v3677 = vadd.f32 0.0, %v3676
          %v3678 = vpop.f32.mrf.mxu0
          %v3679 = vadd.f32 0.0, %v3678
          %3680 = vmatprep.mubr.bf16.mxu0 0
          %3681 = vmatmul.mubr.bf16.gmra.mxu0 %v3122
          %v3682 = vpop.f32.mrf.mxu0
          %v3683 = vadd.f32 0.0, %v3682
          %v3684 = vpop.f32.mrf.mxu0
          %v3685 = vadd.f32 0.0, %v3684
          %v3686 = vpop.f32.mrf.mxu0
          %v3687 = vadd.f32 0.0, %v3686
          %v3688 = vpop.f32.mrf.mxu0
          %v3689 = vadd.f32 0.0, %v3688
          %3690 = vmatprep.mubr.bf16.mxu0 0
          %3691 = vmatmul.mubr.bf16.gmra.mxu0 %v3123
          %v3692 = vpop.f32.mrf.mxu0
          %v3693 = vadd.f32 0.0, %v3692
          %v3694 = vpop.f32.mrf.mxu0
          %v3695 = vadd.f32 0.0, %v3694
          %v3696 = vpop.f32.mrf.mxu0
          %v3697 = vadd.f32 0.0, %v3696
          %v3698 = vpop.f32.mrf.mxu0
          %v3699 = vadd.f32 0.0, %v3698
          %3700 = vmatprep.mubr.bf16.mxu0 0
          %3701 = vmatmul.mubr.bf16.gmra.mxu0 %v3124
          %v3702 = vpop.f32.mrf.mxu0
          %v3703 = vadd.f32 0.0, %v3702
          %v3704 = vpop.f32.mrf.mxu0
          %v3705 = vadd.f32 0.0, %v3704
          %v3706 = vpop.f32.mrf.mxu0
          %v3707 = vadd.f32 0.0, %v3706
          %v3708 = vpop.f32.mrf.mxu0
          %v3709 = vadd.f32 0.0, %v3708
          %3710 = vmatprep.mubr.bf16.mxu0 0
          %3711 = vmatmul.mubr.bf16.gmra.mxu0 %v3125
          %v3712 = vpop.f32.mrf.mxu0
          %v3713 = vadd.f32 0.0, %v3712
          %v3714 = vpop.f32.mrf.mxu0
          %v3715 = vadd.f32 0.0, %v3714
          %v3716 = vpop.f32.mrf.mxu0
          %v3717 = vadd.f32 0.0, %v3716
          %v3718 = vpop.f32.mrf.mxu0
          %v3719 = vadd.f32 0.0, %v3718
          %3720 = vmatprep.mubr.bf16.mxu0 0
          %3721 = vmatmul.mubr.bf16.gmra.mxu0 %v3126
          %v3722 = vpop.f32.mrf.mxu0
          %v3723 = vadd.f32 0.0, %v3722
          %v3724 = vpop.f32.mrf.mxu0
          %v3725 = vadd.f32 0.0, %v3724
          %v3726 = vpop.f32.mrf.mxu0
          %v3727 = vadd.f32 0.0, %v3726
          %v3728 = vpop.f32.mrf.mxu0
          %v3729 = vadd.f32 0.0, %v3728
          %3730 = vdwg.mxu0
          %v3731 = vmul.f32 %v3653, %v1239
          %v3732 = vmul.f32 %v3655, %v1240
          %v3733 = vmul.f32 %v3657, %v1241
          %v3734 = vmul.f32 %v3659, %v1242
          %v3735 = vmul.f32 %v3663, %v1243
          %v3736 = vmul.f32 %v3665, %v1244
          %v3737 = vmul.f32 %v3667, %v1245
          %v3738 = vmul.f32 %v3669, %v1246
          %v3739 = vmul.f32 %v3673, %v1247
          %v3740 = vmul.f32 %v3675, %v1248
          %v3741 = vmul.f32 %v3677, %v1249
          %v3742 = vmul.f32 %v3679, %v1250
          %v3743 = vmul.f32 %v3683, %v1251
          %v3744 = vmul.f32 %v3685, %v1252
          %v3745 = vmul.f32 %v3687, %v1253
          %v3746 = vmul.f32 %v3689, %v1254
          %v3747 = vmul.f32 %v3693, %v1255
          %v3748 = vmul.f32 %v3695, %v1256
          %v3749 = vmul.f32 %v3697, %v1257
          %v3750 = vmul.f32 %v3699, %v1258
          %v3751 = vmul.f32 %v3703, %v1259
          %v3752 = vmul.f32 %v3705, %v1260
          %v3753 = vmul.f32 %v3707, %v1261
          %v3754 = vmul.f32 %v3709, %v1262
          %v3755 = vmul.f32 %v3713, %v1263
          %v3756 = vmul.f32 %v3715, %v1264
          %v3757 = vmul.f32 %v3717, %v1265
          %v3758 = vmul.f32 %v3719, %v1266
          %v3759 = vmul.f32 %v3723, %v1267
          %v3760 = vmul.f32 %v3725, %v1268
          %v3761 = vmul.f32 %v3727, %v1269
          %v3762 = vmul.f32 %v3729, %v1270
          %v3763 = vpack.c.bf16 %v3250, %v3248
          %v3764 = vpack.c.bf16 %v3251, %v3249
          %v3765 = vpack.c.bf16 %v3254, %v3252
          %v3766 = vpack.c.bf16 %v3255, %v3253
          %v3767 = vpack.c.bf16 %v3258, %v3256
          %v3768 = vpack.c.bf16 %v3259, %v3257
          %v3769 = vpack.c.bf16 %v3262, %v3260
          %v3770 = vpack.c.bf16 %v3263, %v3261
          %v3771 = vpack.c.bf16 %v3266, %v3264
          %v3772 = vpack.c.bf16 %v3267, %v3265
          %v3773 = vpack.c.bf16 %v3270, %v3268
          %v3774 = vpack.c.bf16 %v3271, %v3269
          %v3775 = vpack.c.bf16 %v3274, %v3272
          %v3776 = vpack.c.bf16 %v3275, %v3273
          %v3777 = vpack.c.bf16 %v3278, %v3276
          %v3778 = vpack.c.bf16 %v3279, %v3277
          %3779 = vmatprep.subr.bf16.mxu0 %v3778
          %3780 = vmatpush1.bf16.msra.mxu0 %v3777
          %3781 = vmatprep.subr.bf16.mxu0 %v3776
          %3782 = vmatpush1.bf16.msra.mxu0 %v3775
          %3783 = vmatprep.subr.bf16.mxu0 %v3774
          %3784 = vmatpush1.bf16.msra.mxu0 %v3773
          %3785 = vmatprep.subr.bf16.mxu0 %v3772
          %3786 = vmatpush1.bf16.msra.mxu0 %v3771
          %3787 = vmatprep.subr.bf16.mxu0 %v3770
          %3788 = vmatpush1.bf16.msra.mxu0 %v3769
          %3789 = vmatprep.subr.bf16.mxu0 %v3768
          %3790 = vmatpush1.bf16.msra.mxu0 %v3767
          %3791 = vmatprep.subr.bf16.mxu0 %v3766
          %3792 = vmatpush1.bf16.msra.mxu0 %v3765
          %3793 = vmatprep.subr.bf16.mxu0 %v3764
          %3794 = vmatpush1.bf16.msra.mxu0 %v3763
          %3795 = vmatprep.subr.bf16.mxu0 0
          %3796 = vmatpush2.bf16.msra.mxu0 0
          %3797 = vmatprep.subr.bf16.mxu0 0
          %3798 = vmatpush2.bf16.msra.mxu0 0
          %3799 = vmatprep.subr.bf16.mxu0 0
          %3800 = vmatpush2.bf16.msra.mxu0 0
          %3801 = vmatprep.subr.bf16.mxu0 0
          %3802 = vmatpush2.bf16.msra.mxu0 0
          %3803 = vmatprep.subr.bf16.mxu0 0
          %3804 = vmatpush2.bf16.msra.mxu0 0
          %3805 = vmatprep.subr.bf16.mxu0 0
          %3806 = vmatpush2.bf16.msra.mxu0 0
          %3807 = vmatprep.subr.bf16.mxu0 0
          %3808 = vmatpush2.bf16.msra.mxu0 0
          %3809 = vmatprep.subr.bf16.mxu0 0
          %3810 = vmatpush2.bf16.msra.mxu0 0
          %3811 = vmatprep.mubr.bf16.mxu0 0
          %3812 = vmatmul.mubr.bf16.gmra.mxu0 %v1399
          %v3813 = vpop.f32.mrf.mxu0
          %v3814 = vadd.f32 0.0, %v3813
          %v3815 = vpop.f32.mrf.mxu0
          %v3816 = vadd.f32 0.0, %v3815
          %v3817 = vpop.f32.mrf.mxu0
          %v3818 = vadd.f32 0.0, %v3817
          %v3819 = vpop.f32.mrf.mxu0
          %v3820 = vadd.f32 0.0, %v3819
          %3821 = vmatprep.mubr.bf16.mxu0 0
          %3822 = vmatmul.mubr.bf16.gmra.mxu0 %v1400
          %v3823 = vpop.f32.mrf.mxu0
          %v3824 = vadd.f32 0.0, %v3823
          %v3825 = vpop.f32.mrf.mxu0
          %v3826 = vadd.f32 0.0, %v3825
          %v3827 = vpop.f32.mrf.mxu0
          %v3828 = vadd.f32 0.0, %v3827
          %v3829 = vpop.f32.mrf.mxu0
          %v3830 = vadd.f32 0.0, %v3829
          %3831 = vmatprep.mubr.bf16.mxu0 0
          %3832 = vmatmul.mubr.bf16.gmra.mxu0 %v1401
          %v3833 = vpop.f32.mrf.mxu0
          %v3834 = vadd.f32 0.0, %v3833
          %v3835 = vpop.f32.mrf.mxu0
          %v3836 = vadd.f32 0.0, %v3835
          %v3837 = vpop.f32.mrf.mxu0
          %v3838 = vadd.f32 0.0, %v3837
          %v3839 = vpop.f32.mrf.mxu0
          %v3840 = vadd.f32 0.0, %v3839
          %3841 = vmatprep.mubr.bf16.mxu0 0
          %3842 = vmatmul.mubr.bf16.gmra.mxu0 %v1402
          %v3843 = vpop.f32.mrf.mxu0
          %v3844 = vadd.f32 0.0, %v3843
          %v3845 = vpop.f32.mrf.mxu0
          %v3846 = vadd.f32 0.0, %v3845
          %v3847 = vpop.f32.mrf.mxu0
          %v3848 = vadd.f32 0.0, %v3847
          %v3849 = vpop.f32.mrf.mxu0
          %v3850 = vadd.f32 0.0, %v3849
          %3851 = vmatprep.mubr.bf16.mxu0 0
          %3852 = vmatmul.mubr.bf16.gmra.mxu0 %v1403
          %v3853 = vpop.f32.mrf.mxu0
          %v3854 = vadd.f32 0.0, %v3853
          %v3855 = vpop.f32.mrf.mxu0
          %v3856 = vadd.f32 0.0, %v3855
          %v3857 = vpop.f32.mrf.mxu0
          %v3858 = vadd.f32 0.0, %v3857
          %v3859 = vpop.f32.mrf.mxu0
          %v3860 = vadd.f32 0.0, %v3859
          %3861 = vmatprep.mubr.bf16.mxu0 0
          %3862 = vmatmul.mubr.bf16.gmra.mxu0 %v1404
          %v3863 = vpop.f32.mrf.mxu0
          %v3864 = vadd.f32 0.0, %v3863
          %v3865 = vpop.f32.mrf.mxu0
          %v3866 = vadd.f32 0.0, %v3865
          %v3867 = vpop.f32.mrf.mxu0
          %v3868 = vadd.f32 0.0, %v3867
          %v3869 = vpop.f32.mrf.mxu0
          %v3870 = vadd.f32 0.0, %v3869
          %3871 = vmatprep.mubr.bf16.mxu0 0
          %3872 = vmatmul.mubr.bf16.gmra.mxu0 %v1405
          %v3873 = vpop.f32.mrf.mxu0
          %v3874 = vadd.f32 0.0, %v3873
          %v3875 = vpop.f32.mrf.mxu0
          %v3876 = vadd.f32 0.0, %v3875
          %v3877 = vpop.f32.mrf.mxu0
          %v3878 = vadd.f32 0.0, %v3877
          %v3879 = vpop.f32.mrf.mxu0
          %v3880 = vadd.f32 0.0, %v3879
          %3881 = vmatprep.mubr.bf16.mxu0 0
          %3882 = vmatmul.mubr.bf16.gmra.mxu0 %v1406
          %v3883 = vpop.f32.mrf.mxu0
          %v3884 = vadd.f32 0.0, %v3883
          %v3885 = vpop.f32.mrf.mxu0
          %v3886 = vadd.f32 0.0, %v3885
          %v3887 = vpop.f32.mrf.mxu0
          %v3888 = vadd.f32 0.0, %v3887
          %v3889 = vpop.f32.mrf.mxu0
          %v3890 = vadd.f32 0.0, %v3889
          %3891 = vdwg.mxu0
          %v3892 = vmul.f32 %v3814, %v1592
          %v3893 = vmul.f32 %v3816, %v1593
          %v3894 = vmul.f32 %v3818, %v1594
          %v3895 = vmul.f32 %v3820, %v1595
          %v3896 = vmul.f32 %v3824, %v1596
          %v3897 = vmul.f32 %v3826, %v1597
          %v3898 = vmul.f32 %v3828, %v1598
          %v3899 = vmul.f32 %v3830, %v1599
          %v3900 = vmul.f32 %v3834, %v1600
          %v3901 = vmul.f32 %v3836, %v1601
          %v3902 = vmul.f32 %v3838, %v1602
          %v3903 = vmul.f32 %v3840, %v1603
          %v3904 = vmul.f32 %v3844, %v1604
          %v3905 = vmul.f32 %v3846, %v1605
          %v3906 = vmul.f32 %v3848, %v1606
          %v3907 = vmul.f32 %v3850, %v1607
          %v3908 = vmul.f32 %v3854, %v1608
          %v3909 = vmul.f32 %v3856, %v1609
          %v3910 = vmul.f32 %v3858, %v1610
          %v3911 = vmul.f32 %v3860, %v1611
          %v3912 = vmul.f32 %v3864, %v1612
          %v3913 = vmul.f32 %v3866, %v1613
          %v3914 = vmul.f32 %v3868, %v1614
          %v3915 = vmul.f32 %v3870, %v1615
          %v3916 = vmul.f32 %v3874, %v1616
          %v3917 = vmul.f32 %v3876, %v1617
          %v3918 = vmul.f32 %v3878, %v1618
          %v3919 = vmul.f32 %v3880, %v1619
          %v3920 = vmul.f32 %v3884, %v1620
          %v3921 = vmul.f32 %v3886, %v1621
          %v3922 = vmul.f32 %v3888, %v1622
          %v3923 = vmul.f32 %v3890, %v1623
          %v3924 = vpack.c.bf16 %v3411, %v3409
          %v3925 = vpack.c.bf16 %v3412, %v3410
          %v3926 = vpack.c.bf16 %v3415, %v3413
          %v3927 = vpack.c.bf16 %v3416, %v3414
          %v3928 = vpack.c.bf16 %v3419, %v3417
          %v3929 = vpack.c.bf16 %v3420, %v3418
          %v3930 = vpack.c.bf16 %v3423, %v3421
          %v3931 = vpack.c.bf16 %v3424, %v3422
          %v3932 = vpack.c.bf16 %v3427, %v3425
          %v3933 = vpack.c.bf16 %v3428, %v3426
          %v3934 = vpack.c.bf16 %v3431, %v3429
          %v3935 = vpack.c.bf16 %v3432, %v3430
          %v3936 = vpack.c.bf16 %v3435, %v3433
          %v3937 = vpack.c.bf16 %v3436, %v3434
          %v3938 = vpack.c.bf16 %v3439, %v3437
          %v3939 = vpack.c.bf16 %v3440, %v3438
          %3940 = vmatprep.subr.bf16.mxu0 %v3939
          %3941 = vmatpush1.bf16.msra.mxu0 %v3938
          %3942 = vmatprep.subr.bf16.mxu0 %v3937
          %3943 = vmatpush1.bf16.msra.mxu0 %v3936
          %3944 = vmatprep.subr.bf16.mxu0 %v3935
          %3945 = vmatpush1.bf16.msra.mxu0 %v3934
          %3946 = vmatprep.subr.bf16.mxu0 %v3933
          %3947 = vmatpush1.bf16.msra.mxu0 %v3932
          %3948 = vmatprep.subr.bf16.mxu0 %v3931
          %3949 = vmatpush1.bf16.msra.mxu0 %v3930
          %3950 = vmatprep.subr.bf16.mxu0 %v3929
          %3951 = vmatpush1.bf16.msra.mxu0 %v3928
          %3952 = vmatprep.subr.bf16.mxu0 %v3927
          %3953 = vmatpush1.bf16.msra.mxu0 %v3926
          %3954 = vmatprep.subr.bf16.mxu0 %v3925
          %3955 = vmatpush1.bf16.msra.mxu0 %v3924
          %3956 = vmatprep.subr.bf16.mxu0 0
          %3957 = vmatpush2.bf16.msra.mxu0 0
          %3958 = vmatprep.subr.bf16.mxu0 0
          %3959 = vmatpush2.bf16.msra.mxu0 0
          %3960 = vmatprep.subr.bf16.mxu0 0
          %3961 = vmatpush2.bf16.msra.mxu0 0
          %3962 = vmatprep.subr.bf16.mxu0 0
          %3963 = vmatpush2.bf16.msra.mxu0 0
          %3964 = vmatprep.subr.bf16.mxu0 0
          %3965 = vmatpush2.bf16.msra.mxu0 0
          %3966 = vmatprep.subr.bf16.mxu0 0
          %3967 = vmatpush2.bf16.msra.mxu0 0
          %3968 = vmatprep.subr.bf16.mxu0 0
          %3969 = vmatpush2.bf16.msra.mxu0 0
          %3970 = vmatprep.subr.bf16.mxu0 0
          %3971 = vmatpush2.bf16.msra.mxu0 0
          %3972 = vmatprep.mubr.bf16.mxu0 0
          %3973 = vmatmul.mubr.bf16.gmra.mxu0 %v1399
          %v3974 = vpop.f32.mrf.mxu0
          %v3975 = vadd.f32 0.0, %v3974
          %v3976 = vpop.f32.mrf.mxu0
          %v3977 = vadd.f32 0.0, %v3976
          %v3978 = vpop.f32.mrf.mxu0
          %v3979 = vadd.f32 0.0, %v3978
          %v3980 = vpop.f32.mrf.mxu0
          %v3981 = vadd.f32 0.0, %v3980
          %3982 = vmatprep.mubr.bf16.mxu0 0
          %3983 = vmatmul.mubr.bf16.gmra.mxu0 %v1400
          %v3984 = vpop.f32.mrf.mxu0
          %v3985 = vadd.f32 0.0, %v3984
          %v3986 = vpop.f32.mrf.mxu0
          %v3987 = vadd.f32 0.0, %v3986
          %v3988 = vpop.f32.mrf.mxu0
          %v3989 = vadd.f32 0.0, %v3988
          %v3990 = vpop.f32.mrf.mxu0
          %v3991 = vadd.f32 0.0, %v3990
          %3992 = vmatprep.mubr.bf16.mxu0 0
          %3993 = vmatmul.mubr.bf16.gmra.mxu0 %v1401
          %v3994 = vpop.f32.mrf.mxu0
          %v3995 = vadd.f32 0.0, %v3994
          %v3996 = vpop.f32.mrf.mxu0
          %v3997 = vadd.f32 0.0, %v3996
          %v3998 = vpop.f32.mrf.mxu0
          %v3999 = vadd.f32 0.0, %v3998
          %v4000 = vpop.f32.mrf.mxu0
          %v4001 = vadd.f32 0.0, %v4000
          %4002 = vmatprep.mubr.bf16.mxu0 0
          %4003 = vmatmul.mubr.bf16.gmra.mxu0 %v1402
          %v4004 = vpop.f32.mrf.mxu0
          %v4005 = vadd.f32 0.0, %v4004
          %v4006 = vpop.f32.mrf.mxu0
          %v4007 = vadd.f32 0.0, %v4006
          %v4008 = vpop.f32.mrf.mxu0
          %v4009 = vadd.f32 0.0, %v4008
          %v4010 = vpop.f32.mrf.mxu0
          %v4011 = vadd.f32 0.0, %v4010
          %4012 = vmatprep.mubr.bf16.mxu0 0
          %4013 = vmatmul.mubr.bf16.gmra.mxu0 %v1403
          %v4014 = vpop.f32.mrf.mxu0
          %v4015 = vadd.f32 0.0, %v4014
          %v4016 = vpop.f32.mrf.mxu0
          %v4017 = vadd.f32 0.0, %v4016
          %v4018 = vpop.f32.mrf.mxu0
          %v4019 = vadd.f32 0.0, %v4018
          %v4020 = vpop.f32.mrf.mxu0
          %v4021 = vadd.f32 0.0, %v4020
          %4022 = vmatprep.mubr.bf16.mxu0 0
          %4023 = vmatmul.mubr.bf16.gmra.mxu0 %v1404
          %v4024 = vpop.f32.mrf.mxu0
          %v4025 = vadd.f32 0.0, %v4024
          %v4026 = vpop.f32.mrf.mxu0
          %v4027 = vadd.f32 0.0, %v4026
          %v4028 = vpop.f32.mrf.mxu0
          %v4029 = vadd.f32 0.0, %v4028
          %v4030 = vpop.f32.mrf.mxu0
          %v4031 = vadd.f32 0.0, %v4030
          %4032 = vmatprep.mubr.bf16.mxu0 0
          %4033 = vmatmul.mubr.bf16.gmra.mxu0 %v1405
          %v4034 = vpop.f32.mrf.mxu0
          %v4035 = vadd.f32 0.0, %v4034
          %v4036 = vpop.f32.mrf.mxu0
          %v4037 = vadd.f32 0.0, %v4036
          %v4038 = vpop.f32.mrf.mxu0
          %v4039 = vadd.f32 0.0, %v4038
          %v4040 = vpop.f32.mrf.mxu0
          %v4041 = vadd.f32 0.0, %v4040
          %4042 = vmatprep.mubr.bf16.mxu0 0
          %4043 = vmatmul.mubr.bf16.gmra.mxu0 %v1406
          %v4044 = vpop.f32.mrf.mxu0
          %v4045 = vadd.f32 0.0, %v4044
          %v4046 = vpop.f32.mrf.mxu0
          %v4047 = vadd.f32 0.0, %v4046
          %v4048 = vpop.f32.mrf.mxu0
          %v4049 = vadd.f32 0.0, %v4048
          %v4050 = vpop.f32.mrf.mxu0
          %v4051 = vadd.f32 0.0, %v4050
          %4052 = vdwg.mxu0
          %v4053 = vmul.f32 %v3975, %v1592
          %v4054 = vmul.f32 %v3977, %v1593
          %v4055 = vmul.f32 %v3979, %v1594
          %v4056 = vmul.f32 %v3981, %v1595
          %v4057 = vmul.f32 %v3985, %v1596
          %v4058 = vmul.f32 %v3987, %v1597
          %v4059 = vmul.f32 %v3989, %v1598
          %v4060 = vmul.f32 %v3991, %v1599
          %v4061 = vmul.f32 %v3995, %v1600
          %v4062 = vmul.f32 %v3997, %v1601
          %v4063 = vmul.f32 %v3999, %v1602
          %v4064 = vmul.f32 %v4001, %v1603
          %v4065 = vmul.f32 %v4005, %v1604
          %v4066 = vmul.f32 %v4007, %v1605
          %v4067 = vmul.f32 %v4009, %v1606
          %v4068 = vmul.f32 %v4011, %v1607
          %v4069 = vmul.f32 %v4015, %v1608
          %v4070 = vmul.f32 %v4017, %v1609
          %v4071 = vmul.f32 %v4019, %v1610
          %v4072 = vmul.f32 %v4021, %v1611
          %v4073 = vmul.f32 %v4025, %v1612
          %v4074 = vmul.f32 %v4027, %v1613
          %v4075 = vmul.f32 %v4029, %v1614
          %v4076 = vmul.f32 %v4031, %v1615
          %v4077 = vmul.f32 %v4035, %v1616
          %v4078 = vmul.f32 %v4037, %v1617
          %v4079 = vmul.f32 %v4039, %v1618
          %v4080 = vmul.f32 %v4041, %v1619
          %v4081 = vmul.f32 %v4045, %v1620
          %v4082 = vmul.f32 %v4047, %v1621
          %v4083 = vmul.f32 %v4049, %v1622
          %v4084 = vmul.f32 %v4051, %v1623
          %v4085 = vpack.c.bf16 %v3572, %v3570
          %v4086 = vpack.c.bf16 %v3573, %v3571
          %v4087 = vpack.c.bf16 %v3576, %v3574
          %v4088 = vpack.c.bf16 %v3577, %v3575
          %v4089 = vpack.c.bf16 %v3580, %v3578
          %v4090 = vpack.c.bf16 %v3581, %v3579
          %v4091 = vpack.c.bf16 %v3584, %v3582
          %v4092 = vpack.c.bf16 %v3585, %v3583
          %v4093 = vpack.c.bf16 %v3588, %v3586
          %v4094 = vpack.c.bf16 %v3589, %v3587
          %v4095 = vpack.c.bf16 %v3592, %v3590
          %v4096 = vpack.c.bf16 %v3593, %v3591
          %v4097 = vpack.c.bf16 %v3596, %v3594
          %v4098 = vpack.c.bf16 %v3597, %v3595
          %v4099 = vpack.c.bf16 %v3600, %v3598
          %v4100 = vpack.c.bf16 %v3601, %v3599
          %4101 = vmatprep.subr.bf16.mxu0 %v4100
          %4102 = vmatpush1.bf16.msra.mxu0 %v4099
          %4103 = vmatprep.subr.bf16.mxu0 %v4098
          %4104 = vmatpush1.bf16.msra.mxu0 %v4097
          %4105 = vmatprep.subr.bf16.mxu0 %v4096
          %4106 = vmatpush1.bf16.msra.mxu0 %v4095
          %4107 = vmatprep.subr.bf16.mxu0 %v4094
          %4108 = vmatpush1.bf16.msra.mxu0 %v4093
          %4109 = vmatprep.subr.bf16.mxu0 %v4092
          %4110 = vmatpush1.bf16.msra.mxu0 %v4091
          %4111 = vmatprep.subr.bf16.mxu0 %v4090
          %4112 = vmatpush1.bf16.msra.mxu0 %v4089
          %4113 = vmatprep.subr.bf16.mxu0 %v4088
          %4114 = vmatpush1.bf16.msra.mxu0 %v4087
          %4115 = vmatprep.subr.bf16.mxu0 %v4086
          %4116 = vmatpush1.bf16.msra.mxu0 %v4085
          %4117 = vmatprep.subr.bf16.mxu0 0
          %4118 = vmatpush2.bf16.msra.mxu0 0
          %4119 = vmatprep.subr.bf16.mxu0 0
          %4120 = vmatpush2.bf16.msra.mxu0 0
          %4121 = vmatprep.subr.bf16.mxu0 0
          %4122 = vmatpush2.bf16.msra.mxu0 0
          %4123 = vmatprep.subr.bf16.mxu0 0
          %4124 = vmatpush2.bf16.msra.mxu0 0
          %4125 = vmatprep.subr.bf16.mxu0 0
          %4126 = vmatpush2.bf16.msra.mxu0 0
          %4127 = vmatprep.subr.bf16.mxu0 0
          %4128 = vmatpush2.bf16.msra.mxu0 0
          %4129 = vmatprep.subr.bf16.mxu0 0
          %4130 = vmatpush2.bf16.msra.mxu0 0
          %4131 = vmatprep.subr.bf16.mxu0 0
          %4132 = vmatpush2.bf16.msra.mxu0 0
          %4133 = vmatprep.mubr.bf16.mxu0 0
          %4134 = vmatmul.mubr.bf16.gmra.mxu0 %v1399
          %v4135 = vpop.f32.mrf.mxu0
          %v4136 = vadd.f32 0.0, %v4135
          %v4137 = vpop.f32.mrf.mxu0
          %v4138 = vadd.f32 0.0, %v4137
          %v4139 = vpop.f32.mrf.mxu0
          %v4140 = vadd.f32 0.0, %v4139
          %v4141 = vpop.f32.mrf.mxu0
          %v4142 = vadd.f32 0.0, %v4141
          %4143 = vmatprep.mubr.bf16.mxu0 0
          %4144 = vmatmul.mubr.bf16.gmra.mxu0 %v1400
          %v4145 = vpop.f32.mrf.mxu0
          %v4146 = vadd.f32 0.0, %v4145
          %v4147 = vpop.f32.mrf.mxu0
          %v4148 = vadd.f32 0.0, %v4147
          %v4149 = vpop.f32.mrf.mxu0
          %v4150 = vadd.f32 0.0, %v4149
          %v4151 = vpop.f32.mrf.mxu0
          %v4152 = vadd.f32 0.0, %v4151
          %4153 = vmatprep.mubr.bf16.mxu0 0
          %4154 = vmatmul.mubr.bf16.gmra.mxu0 %v1401
          %v4155 = vpop.f32.mrf.mxu0
          %v4156 = vadd.f32 0.0, %v4155
          %v4157 = vpop.f32.mrf.mxu0
          %v4158 = vadd.f32 0.0, %v4157
          %v4159 = vpop.f32.mrf.mxu0
          %v4160 = vadd.f32 0.0, %v4159
          %v4161 = vpop.f32.mrf.mxu0
          %v4162 = vadd.f32 0.0, %v4161
          %4163 = vmatprep.mubr.bf16.mxu0 0
          %4164 = vmatmul.mubr.bf16.gmra.mxu0 %v1402
          %v4165 = vpop.f32.mrf.mxu0
          %v4166 = vadd.f32 0.0, %v4165
          %v4167 = vpop.f32.mrf.mxu0
          %v4168 = vadd.f32 0.0, %v4167
          %v4169 = vpop.f32.mrf.mxu0
          %v4170 = vadd.f32 0.0, %v4169
          %v4171 = vpop.f32.mrf.mxu0
          %v4172 = vadd.f32 0.0, %v4171
          %4173 = vmatprep.mubr.bf16.mxu0 0
          %4174 = vmatmul.mubr.bf16.gmra.mxu0 %v1403
          %v4175 = vpop.f32.mrf.mxu0
          %v4176 = vadd.f32 0.0, %v4175
          %v4177 = vpop.f32.mrf.mxu0
          %v4178 = vadd.f32 0.0, %v4177
          %v4179 = vpop.f32.mrf.mxu0
          %v4180 = vadd.f32 0.0, %v4179
          %v4181 = vpop.f32.mrf.mxu0
          %v4182 = vadd.f32 0.0, %v4181
          %4183 = vmatprep.mubr.bf16.mxu0 0
          %4184 = vmatmul.mubr.bf16.gmra.mxu0 %v1404
          %v4185 = vpop.f32.mrf.mxu0
          %v4186 = vadd.f32 0.0, %v4185
          %v4187 = vpop.f32.mrf.mxu0
          %v4188 = vadd.f32 0.0, %v4187
          %v4189 = vpop.f32.mrf.mxu0
          %v4190 = vadd.f32 0.0, %v4189
          %v4191 = vpop.f32.mrf.mxu0
          %v4192 = vadd.f32 0.0, %v4191
          %4193 = vmatprep.mubr.bf16.mxu0 0
          %4194 = vmatmul.mubr.bf16.gmra.mxu0 %v1405
          %v4195 = vpop.f32.mrf.mxu0
          %v4196 = vadd.f32 0.0, %v4195
          %v4197 = vpop.f32.mrf.mxu0
          %v4198 = vadd.f32 0.0, %v4197
          %v4199 = vpop.f32.mrf.mxu0
          %v4200 = vadd.f32 0.0, %v4199
          %v4201 = vpop.f32.mrf.mxu0
          %v4202 = vadd.f32 0.0, %v4201
          %4203 = vmatprep.mubr.bf16.mxu0 0
          %4204 = vmatmul.mubr.bf16.gmra.mxu0 %v1406
          %v4205 = vpop.f32.mrf.mxu0
          %v4206 = vadd.f32 0.0, %v4205
          %v4207 = vpop.f32.mrf.mxu0
          %v4208 = vadd.f32 0.0, %v4207
          %v4209 = vpop.f32.mrf.mxu0
          %v4210 = vadd.f32 0.0, %v4209
          %v4211 = vpop.f32.mrf.mxu0
          %v4212 = vadd.f32 0.0, %v4211
          %4213 = vdwg.mxu0
          %v4214 = vmul.f32 %v4136, %v1592
          %v4215 = vmul.f32 %v4138, %v1593
          %v4216 = vmul.f32 %v4140, %v1594
          %v4217 = vmul.f32 %v4142, %v1595
          %v4218 = vmul.f32 %v4146, %v1596
          %v4219 = vmul.f32 %v4148, %v1597
          %v4220 = vmul.f32 %v4150, %v1598
          %v4221 = vmul.f32 %v4152, %v1599
          %v4222 = vmul.f32 %v4156, %v1600
          %v4223 = vmul.f32 %v4158, %v1601
          %v4224 = vmul.f32 %v4160, %v1602
          %v4225 = vmul.f32 %v4162, %v1603
          %v4226 = vmul.f32 %v4166, %v1604
          %v4227 = vmul.f32 %v4168, %v1605
          %v4228 = vmul.f32 %v4170, %v1606
          %v4229 = vmul.f32 %v4172, %v1607
          %v4230 = vmul.f32 %v4176, %v1608
          %v4231 = vmul.f32 %v4178, %v1609
          %v4232 = vmul.f32 %v4180, %v1610
          %v4233 = vmul.f32 %v4182, %v1611
          %v4234 = vmul.f32 %v4186, %v1612
          %v4235 = vmul.f32 %v4188, %v1613
          %v4236 = vmul.f32 %v4190, %v1614
          %v4237 = vmul.f32 %v4192, %v1615
          %v4238 = vmul.f32 %v4196, %v1616
          %v4239 = vmul.f32 %v4198, %v1617
          %v4240 = vmul.f32 %v4200, %v1618
          %v4241 = vmul.f32 %v4202, %v1619
          %v4242 = vmul.f32 %v4206, %v1620
          %v4243 = vmul.f32 %v4208, %v1621
          %v4244 = vmul.f32 %v4210, %v1622
          %v4245 = vmul.f32 %v4212, %v1623
          %v4246 = vpack.c.bf16 %v3733, %v3731
          %v4247 = vpack.c.bf16 %v3734, %v3732
          %v4248 = vpack.c.bf16 %v3737, %v3735
          %v4249 = vpack.c.bf16 %v3738, %v3736
          %v4250 = vpack.c.bf16 %v3741, %v3739
          %v4251 = vpack.c.bf16 %v3742, %v3740
          %v4252 = vpack.c.bf16 %v3745, %v3743
          %v4253 = vpack.c.bf16 %v3746, %v3744
          %v4254 = vpack.c.bf16 %v3749, %v3747
          %v4255 = vpack.c.bf16 %v3750, %v3748
          %v4256 = vpack.c.bf16 %v3753, %v3751
          %v4257 = vpack.c.bf16 %v3754, %v3752
          %v4258 = vpack.c.bf16 %v3757, %v3755
          %v4259 = vpack.c.bf16 %v3758, %v3756
          %v4260 = vpack.c.bf16 %v3761, %v3759
          %v4261 = vpack.c.bf16 %v3762, %v3760
          %4262 = vmatprep.subr.bf16.mxu0 %v4261
          %4263 = vmatpush1.bf16.msra.mxu0 %v4260
          %4264 = vmatprep.subr.bf16.mxu0 %v4259
          %4265 = vmatpush1.bf16.msra.mxu0 %v4258
          %4266 = vmatprep.subr.bf16.mxu0 %v4257
          %4267 = vmatpush1.bf16.msra.mxu0 %v4256
          %4268 = vmatprep.subr.bf16.mxu0 %v4255
          %4269 = vmatpush1.bf16.msra.mxu0 %v4254
          %4270 = vmatprep.subr.bf16.mxu0 %v4253
          %4271 = vmatpush1.bf16.msra.mxu0 %v4252
          %4272 = vmatprep.subr.bf16.mxu0 %v4251
          %4273 = vmatpush1.bf16.msra.mxu0 %v4250
          %4274 = vmatprep.subr.bf16.mxu0 %v4249
          %4275 = vmatpush1.bf16.msra.mxu0 %v4248
          %4276 = vmatprep.subr.bf16.mxu0 %v4247
          %4277 = vmatpush1.bf16.msra.mxu0 %v4246
          %4278 = vmatprep.subr.bf16.mxu0 0
          %4279 = vmatpush2.bf16.msra.mxu0 0
          %4280 = vmatprep.subr.bf16.mxu0 0
          %4281 = vmatpush2.bf16.msra.mxu0 0
          %4282 = vmatprep.subr.bf16.mxu0 0
          %4283 = vmatpush2.bf16.msra.mxu0 0
          %4284 = vmatprep.subr.bf16.mxu0 0
          %4285 = vmatpush2.bf16.msra.mxu0 0
          %4286 = vmatprep.subr.bf16.mxu0 0
          %4287 = vmatpush2.bf16.msra.mxu0 0
          %4288 = vmatprep.subr.bf16.mxu0 0
          %4289 = vmatpush2.bf16.msra.mxu0 0
          %4290 = vmatprep.subr.bf16.mxu0 0
          %4291 = vmatpush2.bf16.msra.mxu0 0
          %4292 = vmatprep.subr.bf16.mxu0 0
          %4293 = vmatpush2.bf16.msra.mxu0 0
          %4294 = vmatprep.mubr.bf16.mxu0 0
          %4295 = vmatmul.mubr.bf16.gmra.mxu0 %v1399
          %v4296 = vpop.f32.mrf.mxu0
          %v4297 = vadd.f32 0.0, %v4296
          %v4298 = vpop.f32.mrf.mxu0
          %v4299 = vadd.f32 0.0, %v4298
          %v4300 = vpop.f32.mrf.mxu0
          %v4301 = vadd.f32 0.0, %v4300
          %v4302 = vpop.f32.mrf.mxu0
          %v4303 = vadd.f32 0.0, %v4302
          %4304 = vmatprep.mubr.bf16.mxu0 0
          %4305 = vmatmul.mubr.bf16.gmra.mxu0 %v1400
          %v4306 = vpop.f32.mrf.mxu0
          %v4307 = vadd.f32 0.0, %v4306
          %v4308 = vpop.f32.mrf.mxu0
          %v4309 = vadd.f32 0.0, %v4308
          %v4310 = vpop.f32.mrf.mxu0
          %v4311 = vadd.f32 0.0, %v4310
          %v4312 = vpop.f32.mrf.mxu0
          %v4313 = vadd.f32 0.0, %v4312
          %4314 = vmatprep.mubr.bf16.mxu0 0
          %4315 = vmatmul.mubr.bf16.gmra.mxu0 %v1401
          %v4316 = vpop.f32.mrf.mxu0
          %v4317 = vadd.f32 0.0, %v4316
          %v4318 = vpop.f32.mrf.mxu0
          %v4319 = vadd.f32 0.0, %v4318
          %v4320 = vpop.f32.mrf.mxu0
          %v4321 = vadd.f32 0.0, %v4320
          %v4322 = vpop.f32.mrf.mxu0
          %v4323 = vadd.f32 0.0, %v4322
          %4324 = vmatprep.mubr.bf16.mxu0 0
          %4325 = vmatmul.mubr.bf16.gmra.mxu0 %v1402
          %v4326 = vpop.f32.mrf.mxu0
          %v4327 = vadd.f32 0.0, %v4326
          %v4328 = vpop.f32.mrf.mxu0
          %v4329 = vadd.f32 0.0, %v4328
          %v4330 = vpop.f32.mrf.mxu0
          %v4331 = vadd.f32 0.0, %v4330
          %v4332 = vpop.f32.mrf.mxu0
          %v4333 = vadd.f32 0.0, %v4332
          %4334 = vmatprep.mubr.bf16.mxu0 0
          %4335 = vmatmul.mubr.bf16.gmra.mxu0 %v1403
          %v4336 = vpop.f32.mrf.mxu0
          %v4337 = vadd.f32 0.0, %v4336
          %v4338 = vpop.f32.mrf.mxu0
          %v4339 = vadd.f32 0.0, %v4338
          %v4340 = vpop.f32.mrf.mxu0
          %v4341 = vadd.f32 0.0, %v4340
          %v4342 = vpop.f32.mrf.mxu0
          %v4343 = vadd.f32 0.0, %v4342
          %4344 = vmatprep.mubr.bf16.mxu0 0
          %4345 = vmatmul.mubr.bf16.gmra.mxu0 %v1404
          %v4346 = vpop.f32.mrf.mxu0
          %v4347 = vadd.f32 0.0, %v4346
          %v4348 = vpop.f32.mrf.mxu0
          %v4349 = vadd.f32 0.0, %v4348
          %v4350 = vpop.f32.mrf.mxu0
          %v4351 = vadd.f32 0.0, %v4350
          %v4352 = vpop.f32.mrf.mxu0
          %v4353 = vadd.f32 0.0, %v4352
          %4354 = vmatprep.mubr.bf16.mxu0 0
          %4355 = vmatmul.mubr.bf16.gmra.mxu0 %v1405
          %v4356 = vpop.f32.mrf.mxu0
          %v4357 = vadd.f32 0.0, %v4356
          %v4358 = vpop.f32.mrf.mxu0
          %v4359 = vadd.f32 0.0, %v4358
          %v4360 = vpop.f32.mrf.mxu0
          %v4361 = vadd.f32 0.0, %v4360
          %v4362 = vpop.f32.mrf.mxu0
          %v4363 = vadd.f32 0.0, %v4362
          %4364 = vmatprep.mubr.bf16.mxu0 0
          %4365 = vmatmul.mubr.bf16.gmra.mxu0 %v1406
          %v4366 = vpop.f32.mrf.mxu0
          %v4367 = vadd.f32 0.0, %v4366
          %v4368 = vpop.f32.mrf.mxu0
          %v4369 = vadd.f32 0.0, %v4368
          %v4370 = vpop.f32.mrf.mxu0
          %v4371 = vadd.f32 0.0, %v4370
          %v4372 = vpop.f32.mrf.mxu0
          %v4373 = vadd.f32 0.0, %v4372
          %4374 = vdwg.mxu0
          %v4375 = vmul.f32 %v4297, %v1592
          %v4376 = vmul.f32 %v4299, %v1593
          %v4377 = vmul.f32 %v4301, %v1594
          %v4378 = vmul.f32 %v4303, %v1595
          %v4379 = vmul.f32 %v4307, %v1596
          %v4380 = vmul.f32 %v4309, %v1597
          %v4381 = vmul.f32 %v4311, %v1598
          %v4382 = vmul.f32 %v4313, %v1599
          %v4383 = vmul.f32 %v4317, %v1600
          %v4384 = vmul.f32 %v4319, %v1601
          %v4385 = vmul.f32 %v4321, %v1602
          %v4386 = vmul.f32 %v4323, %v1603
          %v4387 = vmul.f32 %v4327, %v1604
          %v4388 = vmul.f32 %v4329, %v1605
          %v4389 = vmul.f32 %v4331, %v1606
          %v4390 = vmul.f32 %v4333, %v1607
          %v4391 = vmul.f32 %v4337, %v1608
          %v4392 = vmul.f32 %v4339, %v1609
          %v4393 = vmul.f32 %v4341, %v1610
          %v4394 = vmul.f32 %v4343, %v1611
          %v4395 = vmul.f32 %v4347, %v1612
          %v4396 = vmul.f32 %v4349, %v1613
          %v4397 = vmul.f32 %v4351, %v1614
          %v4398 = vmul.f32 %v4353, %v1615
          %v4399 = vmul.f32 %v4357, %v1616
          %v4400 = vmul.f32 %v4359, %v1617
          %v4401 = vmul.f32 %v4361, %v1618
          %v4402 = vmul.f32 %v4363, %v1619
          %v4403 = vmul.f32 %v4367, %v1620
          %v4404 = vmul.f32 %v4369, %v1621
          %v4405 = vmul.f32 %v4371, %v1622
          %v4406 = vmul.f32 %v4373, %v1623
          %v4407 = vadd.f32 %v3892, %v3893
          %4408 = vadd.xlane.f32.xlu0 %v4407
          %v4409 = vpop.xlane.xlu0 %4408
          %v4410 = vadd.f32 %v3894, %v3895
          %4411 = vadd.xlane.f32.xlu0 %v4410
          %v4412 = vpop.xlane.xlu0 %4411
          %v4413 = vadd.f32 %v3896, %v3897
          %4414 = vadd.xlane.f32.xlu0 %v4413
          %v4415 = vpop.xlane.xlu0 %4414
          %v4416 = vadd.f32 %v3898, %v3899
          %4417 = vadd.xlane.f32.xlu0 %v4416
          %v4418 = vpop.xlane.xlu0 %4417
          %v4419 = vadd.f32 %v3900, %v3901
          %4420 = vadd.xlane.f32.xlu0 %v4419
          %v4421 = vpop.xlane.xlu0 %4420
          %v4422 = vadd.f32 %v3902, %v3903
          %4423 = vadd.xlane.f32.xlu0 %v4422
          %v4424 = vpop.xlane.xlu0 %4423
          %v4425 = vadd.f32 %v3904, %v3905
          %4426 = vadd.xlane.f32.xlu0 %v4425
          %v4427 = vpop.xlane.xlu0 %4426
          %v4428 = vadd.f32 %v3906, %v3907
          %4429 = vadd.xlane.f32.xlu0 %v4428
          %v4430 = vpop.xlane.xlu0 %4429
          %v4431 = vadd.f32 %v3908, %v3909
          %4432 = vadd.xlane.f32.xlu0 %v4431
          %v4433 = vpop.xlane.xlu0 %4432
          %v4434 = vadd.f32 %v3910, %v3911
          %4435 = vadd.xlane.f32.xlu0 %v4434
          %v4436 = vpop.xlane.xlu0 %4435
          %v4437 = vadd.f32 %v3912, %v3913
          %4438 = vadd.xlane.f32.xlu0 %v4437
          %v4439 = vpop.xlane.xlu0 %4438
          %v4440 = vadd.f32 %v3914, %v3915
          %4441 = vadd.xlane.f32.xlu0 %v4440
          %v4442 = vpop.xlane.xlu0 %4441
          %v4443 = vadd.f32 %v3916, %v3917
          %4444 = vadd.xlane.f32.xlu0 %v4443
          %v4445 = vpop.xlane.xlu0 %4444
          %v4446 = vadd.f32 %v3918, %v3919
          %4447 = vadd.xlane.f32.xlu0 %v4446
          %v4448 = vpop.xlane.xlu0 %4447
          %v4449 = vadd.f32 %v3920, %v3921
          %4450 = vadd.xlane.f32.xlu0 %v4449
          %v4451 = vpop.xlane.xlu0 %4450
          %v4452 = vadd.f32 %v3922, %v3923
          %4453 = vadd.xlane.f32.xlu0 %v4452
          %v4454 = vpop.xlane.xlu0 %4453
          %v4455 = vmul.f32 %v460, %v4409
          %v4456 = vmul.f32 %v461, %v4412
          %v4457 = vmul.f32 %v462, %v4415
          %v4458 = vmul.f32 %v463, %v4418
          %v4459 = vmul.f32 %v464, %v4421
          %v4460 = vmul.f32 %v465, %v4424
          %v4461 = vmul.f32 %v466, %v4427
          %v4462 = vmul.f32 %v467, %v4430
          %v4463 = vmul.f32 %v468, %v4433
          %v4464 = vmul.f32 %v469, %v4436
          %v4465 = vmul.f32 %v470, %v4439
          %v4466 = vmul.f32 %v471, %v4442
          %v4467 = vmul.f32 %v472, %v4445
          %v4468 = vmul.f32 %v473, %v4448
          %v4469 = vmul.f32 %v474, %v4451
          %v4470 = vmul.f32 %v475, %v4454
          %v4471 = vsel %vm2522, %v4455, 0.0
          %v4472 = vsel %vm2522, %v4456, 0.0
          %v4473 = vadd.f32 %v4471, %v4472
          %v4474 = vsel %vm2522, %v4457, 0.0
          %v4475 = vadd.f32 %v4473, %v4474
          %v4476 = vsel %vm2522, %v4458, 0.0
          %v4477 = vadd.f32 %v4475, %v4476
          %v4478 = vsel %vm2522, %v4459, 0.0
          %v4479 = vadd.f32 %v4477, %v4478
          %v4480 = vsel %vm2522, %v4460, 0.0
          %v4481 = vadd.f32 %v4479, %v4480
          %v4482 = vsel %vm2522, %v4461, 0.0
          %v4483 = vadd.f32 %v4481, %v4482
          %v4484 = vsel %vm2522, %v4462, 0.0
          %v4485 = vadd.f32 %v4483, %v4484
          %v4486 = vsel %vm2522, %v4463, 0.0
          %v4487 = vadd.f32 %v4485, %v4486
          %v4488 = vsel %vm2522, %v4464, 0.0
          %v4489 = vadd.f32 %v4487, %v4488
          %v4490 = vsel %vm2522, %v4465, 0.0
          %v4491 = vadd.f32 %v4489, %v4490
          %v4492 = vsel %vm2522, %v4466, 0.0
          %v4493 = vadd.f32 %v4491, %v4492
          %v4494 = vsel %vm2522, %v4467, 0.0
          %v4495 = vadd.f32 %v4493, %v4494
          %v4496 = vsel %vm2522, %v4468, 0.0
          %v4497 = vadd.f32 %v4495, %v4496
          %v4498 = vsel %vm2522, %v4469, 0.0
          %v4499 = vadd.f32 %v4497, %v4498
          %v4500 = vsel %vm2522, %v4470, 0.0
          %v4501 = vadd.f32 %v4499, %v4500
          %4502 = vadd.xlane.f32.xlu0 %v4501
          %v4503 = vpop.xlane.xlu0 %4502
          %v4504 = vrot.slane %v4503, 4
          %v4505 = vadd.f32 %v4503, %v4504
          %v4506 = vrot.slane %v4505, 2
          %v4507 = vadd.f32 %v4505, %v4506
          %v4508 = vrot.slane %v4507, 1
          %v4509 = vadd.f32 %v4507, %v4508
          %s4510 = vtos %v4509
          %s4511 = sadd.f32 %s4510, 0.0
          %v4512 = vadd.f32 %v4053, %v4054
          %4513 = vadd.xlane.f32.xlu0 %v4512
          %v4514 = vpop.xlane.xlu0 %4513
          %v4515 = vadd.f32 %v4055, %v4056
          %4516 = vadd.xlane.f32.xlu0 %v4515
          %v4517 = vpop.xlane.xlu0 %4516
          %v4518 = vadd.f32 %v4057, %v4058
          %4519 = vadd.xlane.f32.xlu0 %v4518
          %v4520 = vpop.xlane.xlu0 %4519
          %v4521 = vadd.f32 %v4059, %v4060
          %4522 = vadd.xlane.f32.xlu0 %v4521
          %v4523 = vpop.xlane.xlu0 %4522
          %v4524 = vadd.f32 %v4061, %v4062
          %4525 = vadd.xlane.f32.xlu0 %v4524
          %v4526 = vpop.xlane.xlu0 %4525
          %v4527 = vadd.f32 %v4063, %v4064
          %4528 = vadd.xlane.f32.xlu0 %v4527
          %v4529 = vpop.xlane.xlu0 %4528
          %v4530 = vadd.f32 %v4065, %v4066
          %4531 = vadd.xlane.f32.xlu0 %v4530
          %v4532 = vpop.xlane.xlu0 %4531
          %v4533 = vadd.f32 %v4067, %v4068
          %4534 = vadd.xlane.f32.xlu0 %v4533
          %v4535 = vpop.xlane.xlu0 %4534
          %v4536 = vadd.f32 %v4069, %v4070
          %4537 = vadd.xlane.f32.xlu0 %v4536
          %v4538 = vpop.xlane.xlu0 %4537
          %v4539 = vadd.f32 %v4071, %v4072
          %4540 = vadd.xlane.f32.xlu0 %v4539
          %v4541 = vpop.xlane.xlu0 %4540
          %v4542 = vadd.f32 %v4073, %v4074
          %4543 = vadd.xlane.f32.xlu0 %v4542
          %v4544 = vpop.xlane.xlu0 %4543
          %v4545 = vadd.f32 %v4075, %v4076
          %4546 = vadd.xlane.f32.xlu0 %v4545
          %v4547 = vpop.xlane.xlu0 %4546
          %v4548 = vadd.f32 %v4077, %v4078
          %4549 = vadd.xlane.f32.xlu0 %v4548
          %v4550 = vpop.xlane.xlu0 %4549
          %v4551 = vadd.f32 %v4079, %v4080
          %4552 = vadd.xlane.f32.xlu0 %v4551
          %v4553 = vpop.xlane.xlu0 %4552
          %v4554 = vadd.f32 %v4081, %v4082
          %4555 = vadd.xlane.f32.xlu0 %v4554
          %v4556 = vpop.xlane.xlu0 %4555
          %v4557 = vadd.f32 %v4083, %v4084
          %4558 = vadd.xlane.f32.xlu0 %v4557
          %v4559 = vpop.xlane.xlu0 %4558
          %v4560 = vmul.f32 %v460, %v4514
          %v4561 = vmul.f32 %v461, %v4517
          %v4562 = vmul.f32 %v462, %v4520
          %v4563 = vmul.f32 %v463, %v4523
          %v4564 = vmul.f32 %v464, %v4526
          %v4565 = vmul.f32 %v465, %v4529
          %v4566 = vmul.f32 %v466, %v4532
          %v4567 = vmul.f32 %v467, %v4535
          %v4568 = vmul.f32 %v468, %v4538
          %v4569 = vmul.f32 %v469, %v4541
          %v4570 = vmul.f32 %v470, %v4544
          %v4571 = vmul.f32 %v471, %v4547
          %v4572 = vmul.f32 %v472, %v4550
          %v4573 = vmul.f32 %v473, %v4553
          %v4574 = vmul.f32 %v474, %v4556
          %v4575 = vmul.f32 %v475, %v4559
          %4592 = vrot.lane.b32.xlu0 %v4560, 127
          %v4593 = vpop.permute.xlu0 %4592
          %4594 = vrot.lane.b32.xlu0 %v4561, 127
          %v4595 = vpop.permute.xlu0 %4594
          %4596 = vrot.lane.b32.xlu0 %v4562, 127
          %v4597 = vpop.permute.xlu0 %4596
          %4598 = vrot.lane.b32.xlu0 %v4563, 127
          %v4599 = vpop.permute.xlu0 %4598
          %4600 = vrot.lane.b32.xlu0 %v4564, 127
          %v4601 = vpop.permute.xlu0 %4600
          %4602 = vrot.lane.b32.xlu0 %v4565, 127
          %v4603 = vpop.permute.xlu0 %4602
          %4604 = vrot.lane.b32.xlu0 %v4566, 127
          %v4605 = vpop.permute.xlu0 %4604
          %4606 = vrot.lane.b32.xlu0 %v4567, 127
          %v4607 = vpop.permute.xlu0 %4606
          %4608 = vrot.lane.b32.xlu0 %v4568, 127
          %v4609 = vpop.permute.xlu0 %4608
          %4610 = vrot.lane.b32.xlu0 %v4569, 127
          %v4611 = vpop.permute.xlu0 %4610
          %4612 = vrot.lane.b32.xlu0 %v4570, 127
          %v4613 = vpop.permute.xlu0 %4612
          %4614 = vrot.lane.b32.xlu0 %v4571, 127
          %v4615 = vpop.permute.xlu0 %4614
          %4616 = vrot.lane.b32.xlu0 %v4572, 127
          %v4617 = vpop.permute.xlu0 %4616
          %4618 = vrot.lane.b32.xlu0 %v4573, 127
          %v4619 = vpop.permute.xlu0 %4618
          %4620 = vrot.lane.b32.xlu0 %v4574, 127
          %v4621 = vpop.permute.xlu0 %4620
          %4622 = vrot.lane.b32.xlu0 %v4575, 127
          %v4623 = vpop.permute.xlu0 %4622
          %v4640 = vsel %vm2522, %v4593, 0.0
          %v4641 = vsel %vm2522, %v4595, 0.0
          %v4642 = vadd.f32 %v4640, %v4641
          %v4643 = vsel %vm2522, %v4597, 0.0
          %v4644 = vadd.f32 %v4642, %v4643
          %v4645 = vsel %vm2522, %v4599, 0.0
          %v4646 = vadd.f32 %v4644, %v4645
          %v4647 = vsel %vm2522, %v4601, 0.0
          %v4648 = vadd.f32 %v4646, %v4647
          %v4649 = vsel %vm2522, %v4603, 0.0
          %v4650 = vadd.f32 %v4648, %v4649
          %v4651 = vsel %vm2522, %v4605, 0.0
          %v4652 = vadd.f32 %v4650, %v4651
          %v4653 = vsel %vm2522, %v4607, 0.0
          %v4654 = vadd.f32 %v4652, %v4653
          %v4655 = vsel %vm2522, %v4609, 0.0
          %v4656 = vadd.f32 %v4654, %v4655
          %v4657 = vsel %vm2522, %v4611, 0.0
          %v4658 = vadd.f32 %v4656, %v4657
          %v4659 = vsel %vm2522, %v4613, 0.0
          %v4660 = vadd.f32 %v4658, %v4659
          %v4661 = vsel %vm2522, %v4615, 0.0
          %v4662 = vadd.f32 %v4660, %v4661
          %v4663 = vsel %vm2522, %v4617, 0.0
          %v4664 = vadd.f32 %v4662, %v4663
          %v4665 = vsel %vm2522, %v4619, 0.0
          %v4666 = vadd.f32 %v4664, %v4665
          %v4667 = vsel %vm2522, %v4621, 0.0
          %v4668 = vadd.f32 %v4666, %v4667
          %v4669 = vsel %vm2522, %v4623, 0.0
          %v4670 = vadd.f32 %v4668, %v4669
          %4671 = vadd.xlane.f32.xlu0 %v4670
          %v4672 = vpop.xlane.xlu0 %4671
          %v4673 = vrot.slane %v4672, 4
          %v4674 = vadd.f32 %v4672, %v4673
          %v4675 = vrot.slane %v4674, 2
          %v4676 = vadd.f32 %v4674, %v4675
          %v4677 = vrot.slane %v4676, 1
          %v4678 = vadd.f32 %v4676, %v4677
          %s4679 = vtos %v4678
          %s4680 = sadd.f32 %s4511, %s4679
          %v4681 = vadd.f32 %v4214, %v4215
          %4682 = vadd.xlane.f32.xlu0 %v4681
          %v4683 = vpop.xlane.xlu0 %4682
          %v4684 = vadd.f32 %v4216, %v4217
          %4685 = vadd.xlane.f32.xlu0 %v4684
          %v4686 = vpop.xlane.xlu0 %4685
          %v4687 = vadd.f32 %v4218, %v4219
          %4688 = vadd.xlane.f32.xlu0 %v4687
          %v4689 = vpop.xlane.xlu0 %4688
          %v4690 = vadd.f32 %v4220, %v4221
          %4691 = vadd.xlane.f32.xlu0 %v4690
          %v4692 = vpop.xlane.xlu0 %4691
          %v4693 = vadd.f32 %v4222, %v4223
          %4694 = vadd.xlane.f32.xlu0 %v4693
          %v4695 = vpop.xlane.xlu0 %4694
          %v4696 = vadd.f32 %v4224, %v4225
          %4697 = vadd.xlane.f32.xlu0 %v4696
          %v4698 = vpop.xlane.xlu0 %4697
          %v4699 = vadd.f32 %v4226, %v4227
          %4700 = vadd.xlane.f32.xlu0 %v4699
          %v4701 = vpop.xlane.xlu0 %4700
          %v4702 = vadd.f32 %v4228, %v4229
          %4703 = vadd.xlane.f32.xlu0 %v4702
          %v4704 = vpop.xlane.xlu0 %4703
          %v4705 = vadd.f32 %v4230, %v4231
          %4706 = vadd.xlane.f32.xlu0 %v4705
          %v4707 = vpop.xlane.xlu0 %4706
          %v4708 = vadd.f32 %v4232, %v4233
          %4709 = vadd.xlane.f32.xlu0 %v4708
          %v4710 = vpop.xlane.xlu0 %4709
          %v4711 = vadd.f32 %v4234, %v4235
          %4712 = vadd.xlane.f32.xlu0 %v4711
          %v4713 = vpop.xlane.xlu0 %4712
          %v4714 = vadd.f32 %v4236, %v4237
          %4715 = vadd.xlane.f32.xlu0 %v4714
          %v4716 = vpop.xlane.xlu0 %4715
          %v4717 = vadd.f32 %v4238, %v4239
          %4718 = vadd.xlane.f32.xlu0 %v4717
          %v4719 = vpop.xlane.xlu0 %4718
          %v4720 = vadd.f32 %v4240, %v4241
          %4721 = vadd.xlane.f32.xlu0 %v4720
          %v4722 = vpop.xlane.xlu0 %4721
          %v4723 = vadd.f32 %v4242, %v4243
          %4724 = vadd.xlane.f32.xlu0 %v4723
          %v4725 = vpop.xlane.xlu0 %4724
          %v4726 = vadd.f32 %v4244, %v4245
          %4727 = vadd.xlane.f32.xlu0 %v4726
          %v4728 = vpop.xlane.xlu0 %4727
          %v4729 = vmul.f32 %v460, %v4683
          %v4730 = vmul.f32 %v461, %v4686
          %v4731 = vmul.f32 %v462, %v4689
          %v4732 = vmul.f32 %v463, %v4692
          %v4733 = vmul.f32 %v464, %v4695
          %v4734 = vmul.f32 %v465, %v4698
          %v4735 = vmul.f32 %v466, %v4701
          %v4736 = vmul.f32 %v467, %v4704
          %v4737 = vmul.f32 %v468, %v4707
          %v4738 = vmul.f32 %v469, %v4710
          %v4739 = vmul.f32 %v470, %v4713
          %v4740 = vmul.f32 %v471, %v4716
          %v4741 = vmul.f32 %v472, %v4719
          %v4742 = vmul.f32 %v473, %v4722
          %v4743 = vmul.f32 %v474, %v4725
          %v4744 = vmul.f32 %v475, %v4728
          %4761 = vrot.lane.b32.xlu0 %v4729, 126
          %v4762 = vpop.permute.xlu0 %4761
          %4763 = vrot.lane.b32.xlu0 %v4730, 126
          %v4764 = vpop.permute.xlu0 %4763
          %4765 = vrot.lane.b32.xlu0 %v4731, 126
          %v4766 = vpop.permute.xlu0 %4765
          %4767 = vrot.lane.b32.xlu0 %v4732, 126
          %v4768 = vpop.permute.xlu0 %4767
          %4769 = vrot.lane.b32.xlu0 %v4733, 126
          %v4770 = vpop.permute.xlu0 %4769
          %4771 = vrot.lane.b32.xlu0 %v4734, 126
          %v4772 = vpop.permute.xlu0 %4771
          %4773 = vrot.lane.b32.xlu0 %v4735, 126
          %v4774 = vpop.permute.xlu0 %4773
          %4775 = vrot.lane.b32.xlu0 %v4736, 126
          %v4776 = vpop.permute.xlu0 %4775
          %4777 = vrot.lane.b32.xlu0 %v4737, 126
          %v4778 = vpop.permute.xlu0 %4777
          %4779 = vrot.lane.b32.xlu0 %v4738, 126
          %v4780 = vpop.permute.xlu0 %4779
          %4781 = vrot.lane.b32.xlu0 %v4739, 126
          %v4782 = vpop.permute.xlu0 %4781
          %4783 = vrot.lane.b32.xlu0 %v4740, 126
          %v4784 = vpop.permute.xlu0 %4783
          %4785 = vrot.lane.b32.xlu0 %v4741, 126
          %v4786 = vpop.permute.xlu0 %4785
          %4787 = vrot.lane.b32.xlu0 %v4742, 126
          %v4788 = vpop.permute.xlu0 %4787
          %4789 = vrot.lane.b32.xlu0 %v4743, 126
          %v4790 = vpop.permute.xlu0 %4789
          %4791 = vrot.lane.b32.xlu0 %v4744, 126
          %v4792 = vpop.permute.xlu0 %4791
          %v4809 = vsel %vm2522, %v4762, 0.0
          %v4810 = vsel %vm2522, %v4764, 0.0
          %v4811 = vadd.f32 %v4809, %v4810
          %v4812 = vsel %vm2522, %v4766, 0.0
          %v4813 = vadd.f32 %v4811, %v4812
          %v4814 = vsel %vm2522, %v4768, 0.0
          %v4815 = vadd.f32 %v4813, %v4814
          %v4816 = vsel %vm2522, %v4770, 0.0
          %v4817 = vadd.f32 %v4815, %v4816
          %v4818 = vsel %vm2522, %v4772, 0.0
          %v4819 = vadd.f32 %v4817, %v4818
          %v4820 = vsel %vm2522, %v4774, 0.0
          %v4821 = vadd.f32 %v4819, %v4820
          %v4822 = vsel %vm2522, %v4776, 0.0
          %v4823 = vadd.f32 %v4821, %v4822
          %v4824 = vsel %vm2522, %v4778, 0.0
          %v4825 = vadd.f32 %v4823, %v4824
          %v4826 = vsel %vm2522, %v4780, 0.0
          %v4827 = vadd.f32 %v4825, %v4826
          %v4828 = vsel %vm2522, %v4782, 0.0
          %v4829 = vadd.f32 %v4827, %v4828
          %v4830 = vsel %vm2522, %v4784, 0.0
          %v4831 = vadd.f32 %v4829, %v4830
          %v4832 = vsel %vm2522, %v4786, 0.0
          %v4833 = vadd.f32 %v4831, %v4832
          %v4834 = vsel %vm2522, %v4788, 0.0
          %v4835 = vadd.f32 %v4833, %v4834
          %v4836 = vsel %vm2522, %v4790, 0.0
          %v4837 = vadd.f32 %v4835, %v4836
          %v4838 = vsel %vm2522, %v4792, 0.0
          %v4839 = vadd.f32 %v4837, %v4838
          %4840 = vadd.xlane.f32.xlu0 %v4839
          %v4841 = vpop.xlane.xlu0 %4840
          %v4842 = vrot.slane %v4841, 4
          %v4843 = vadd.f32 %v4841, %v4842
          %v4844 = vrot.slane %v4843, 2
          %v4845 = vadd.f32 %v4843, %v4844
          %v4846 = vrot.slane %v4845, 1
          %v4847 = vadd.f32 %v4845, %v4846
          %s4848 = vtos %v4847
          %s4849 = sadd.f32 %s4680, %s4848
          %v4850 = vadd.f32 %v4375, %v4376
          %4851 = vadd.xlane.f32.xlu0 %v4850
          %v4852 = vpop.xlane.xlu0 %4851
          %v4853 = vadd.f32 %v4377, %v4378
          %4854 = vadd.xlane.f32.xlu0 %v4853
          %v4855 = vpop.xlane.xlu0 %4854
          %v4856 = vadd.f32 %v4379, %v4380
          %4857 = vadd.xlane.f32.xlu0 %v4856
          %v4858 = vpop.xlane.xlu0 %4857
          %v4859 = vadd.f32 %v4381, %v4382
          %4860 = vadd.xlane.f32.xlu0 %v4859
          %v4861 = vpop.xlane.xlu0 %4860
          %v4862 = vadd.f32 %v4383, %v4384
          %4863 = vadd.xlane.f32.xlu0 %v4862
          %v4864 = vpop.xlane.xlu0 %4863
          %v4865 = vadd.f32 %v4385, %v4386
          %4866 = vadd.xlane.f32.xlu0 %v4865
          %v4867 = vpop.xlane.xlu0 %4866
          %v4868 = vadd.f32 %v4387, %v4388
          %4869 = vadd.xlane.f32.xlu0 %v4868
          %v4870 = vpop.xlane.xlu0 %4869
          %v4871 = vadd.f32 %v4389, %v4390
          %4872 = vadd.xlane.f32.xlu0 %v4871
          %v4873 = vpop.xlane.xlu0 %4872
          %v4874 = vadd.f32 %v4391, %v4392
          %4875 = vadd.xlane.f32.xlu0 %v4874
          %v4876 = vpop.xlane.xlu0 %4875
          %v4877 = vadd.f32 %v4393, %v4394
          %4878 = vadd.xlane.f32.xlu0 %v4877
          %v4879 = vpop.xlane.xlu0 %4878
          %v4880 = vadd.f32 %v4395, %v4396
          %4881 = vadd.xlane.f32.xlu0 %v4880
          %v4882 = vpop.xlane.xlu0 %4881
          %v4883 = vadd.f32 %v4397, %v4398
          %4884 = vadd.xlane.f32.xlu0 %v4883
          %v4885 = vpop.xlane.xlu0 %4884
          %v4886 = vadd.f32 %v4399, %v4400
          %4887 = vadd.xlane.f32.xlu0 %v4886
          %v4888 = vpop.xlane.xlu0 %4887
          %v4889 = vadd.f32 %v4401, %v4402
          %4890 = vadd.xlane.f32.xlu0 %v4889
          %v4891 = vpop.xlane.xlu0 %4890
          %v4892 = vadd.f32 %v4403, %v4404
          %4893 = vadd.xlane.f32.xlu0 %v4892
          %v4894 = vpop.xlane.xlu0 %4893
          %v4895 = vadd.f32 %v4405, %v4406
          %4896 = vadd.xlane.f32.xlu0 %v4895
          %v4897 = vpop.xlane.xlu0 %4896
          %v4898 = vmul.f32 %v460, %v4852
          %v4899 = vmul.f32 %v461, %v4855
          %v4900 = vmul.f32 %v462, %v4858
          %v4901 = vmul.f32 %v463, %v4861
          %v4902 = vmul.f32 %v464, %v4864
          %v4903 = vmul.f32 %v465, %v4867
          %v4904 = vmul.f32 %v466, %v4870
          %v4905 = vmul.f32 %v467, %v4873
          %v4906 = vmul.f32 %v468, %v4876
          %v4907 = vmul.f32 %v469, %v4879
          %v4908 = vmul.f32 %v470, %v4882
          %v4909 = vmul.f32 %v471, %v4885
          %v4910 = vmul.f32 %v472, %v4888
          %v4911 = vmul.f32 %v473, %v4891
          %v4912 = vmul.f32 %v474, %v4894
          %v4913 = vmul.f32 %v475, %v4897
          %4930 = vrot.lane.b32.xlu0 %v4898, 125
          %v4931 = vpop.permute.xlu0 %4930
          %4932 = vrot.lane.b32.xlu0 %v4899, 125
          %v4933 = vpop.permute.xlu0 %4932
          %4934 = vrot.lane.b32.xlu0 %v4900, 125
          %v4935 = vpop.permute.xlu0 %4934
          %4936 = vrot.lane.b32.xlu0 %v4901, 125
          %v4937 = vpop.permute.xlu0 %4936
          %4938 = vrot.lane.b32.xlu0 %v4902, 125
          %v4939 = vpop.permute.xlu0 %4938
          %4940 = vrot.lane.b32.xlu0 %v4903, 125
          %v4941 = vpop.permute.xlu0 %4940
          %4942 = vrot.lane.b32.xlu0 %v4904, 125
          %v4943 = vpop.permute.xlu0 %4942
          %4944 = vrot.lane.b32.xlu0 %v4905, 125
          %v4945 = vpop.permute.xlu0 %4944
          %4946 = vrot.lane.b32.xlu0 %v4906, 125
          %v4947 = vpop.permute.xlu0 %4946
          %4948 = vrot.lane.b32.xlu0 %v4907, 125
          %v4949 = vpop.permute.xlu0 %4948
          %4950 = vrot.lane.b32.xlu0 %v4908, 125
          %v4951 = vpop.permute.xlu0 %4950
          %4952 = vrot.lane.b32.xlu0 %v4909, 125
          %v4953 = vpop.permute.xlu0 %4952
          %4954 = vrot.lane.b32.xlu0 %v4910, 125
          %v4955 = vpop.permute.xlu0 %4954
          %4956 = vrot.lane.b32.xlu0 %v4911, 125
          %v4957 = vpop.permute.xlu0 %4956
          %4958 = vrot.lane.b32.xlu0 %v4912, 125
          %v4959 = vpop.permute.xlu0 %4958
          %4960 = vrot.lane.b32.xlu0 %v4913, 125
          %v4961 = vpop.permute.xlu0 %4960
          %v4978 = vsel %vm2522, %v4931, 0.0
          %v4979 = vsel %vm2522, %v4933, 0.0
          %v4980 = vadd.f32 %v4978, %v4979
          %v4981 = vsel %vm2522, %v4935, 0.0
          %v4982 = vadd.f32 %v4980, %v4981
          %v4983 = vsel %vm2522, %v4937, 0.0
          %v4984 = vadd.f32 %v4982, %v4983
          %v4985 = vsel %vm2522, %v4939, 0.0
          %v4986 = vadd.f32 %v4984, %v4985
          %v4987 = vsel %vm2522, %v4941, 0.0
          %v4988 = vadd.f32 %v4986, %v4987
          %v4989 = vsel %vm2522, %v4943, 0.0
          %v4990 = vadd.f32 %v4988, %v4989
          %v4991 = vsel %vm2522, %v4945, 0.0
          %v4992 = vadd.f32 %v4990, %v4991
          %v4993 = vsel %vm2522, %v4947, 0.0
          %v4994 = vadd.f32 %v4992, %v4993
          %v4995 = vsel %vm2522, %v4949, 0.0
          %v4996 = vadd.f32 %v4994, %v4995
          %v4997 = vsel %vm2522, %v4951, 0.0
          %v4998 = vadd.f32 %v4996, %v4997
          %v4999 = vsel %vm2522, %v4953, 0.0
          %v5000 = vadd.f32 %v4998, %v4999
          %v5001 = vsel %vm2522, %v4955, 0.0
          %v5002 = vadd.f32 %v5000, %v5001
          %v5003 = vsel %vm2522, %v4957, 0.0
          %v5004 = vadd.f32 %v5002, %v5003
          %v5005 = vsel %vm2522, %v4959, 0.0
          %v5006 = vadd.f32 %v5004, %v5005
          %v5007 = vsel %vm2522, %v4961, 0.0
          %v5008 = vadd.f32 %v5006, %v5007
          %5009 = vadd.xlane.f32.xlu0 %v5008
          %v5010 = vpop.xlane.xlu0 %5009
          %v5011 = vrot.slane %v5010, 4
          %v5012 = vadd.f32 %v5010, %v5011
          %v5013 = vrot.slane %v5012, 2
          %v5014 = vadd.f32 %v5012, %v5013
          %v5015 = vrot.slane %v5014, 1
          %v5016 = vadd.f32 %v5014, %v5015
          %s5017 = vtos %v5016
          %s5018 = sadd.f32 %s4849, %s5017
          %s5019 = smul.f32 %s5018, -0.5
          %s5020 = sadd.f32 %s3070, %s5019
          %v5021 = vpack.c.bf16 %v3894, %v3892
          %v5022 = vpack.c.bf16 %v3895, %v3893
          %v5023 = vpack.c.bf16 %v3898, %v3896
          %v5024 = vpack.c.bf16 %v3899, %v3897
          %v5025 = vpack.c.bf16 %v3902, %v3900
          %v5026 = vpack.c.bf16 %v3903, %v3901
          %v5027 = vpack.c.bf16 %v3906, %v3904
          %v5028 = vpack.c.bf16 %v3907, %v3905
          %v5029 = vpack.c.bf16 %v3910, %v3908
          %v5030 = vpack.c.bf16 %v3911, %v3909
          %v5031 = vpack.c.bf16 %v3914, %v3912
          %v5032 = vpack.c.bf16 %v3915, %v3913
          %v5033 = vpack.c.bf16 %v3918, %v3916
          %v5034 = vpack.c.bf16 %v3919, %v3917
          %v5035 = vpack.c.bf16 %v3922, %v3920
          %v5036 = vpack.c.bf16 %v3923, %v3921
          %5037 = vmatprep.subr.bf16.mxu0 %v5036
          %5038 = vmatpush1.bf16.msra.mxu0 %v5035
          %5039 = vmatprep.subr.bf16.mxu0 %v5034
          %5040 = vmatpush1.bf16.msra.mxu0 %v5033
          %5041 = vmatprep.subr.bf16.mxu0 %v5032
          %5042 = vmatpush1.bf16.msra.mxu0 %v5031
          %5043 = vmatprep.subr.bf16.mxu0 %v5030
          %5044 = vmatpush1.bf16.msra.mxu0 %v5029
          %5045 = vmatprep.subr.bf16.mxu0 %v5028
          %5046 = vmatpush1.bf16.msra.mxu0 %v5027
          %5047 = vmatprep.subr.bf16.mxu0 %v5026
          %5048 = vmatpush1.bf16.msra.mxu0 %v5025
          %5049 = vmatprep.subr.bf16.mxu0 %v5024
          %5050 = vmatpush1.bf16.msra.mxu0 %v5023
          %5051 = vmatprep.subr.bf16.mxu0 %v5022
          %5052 = vmatpush1.bf16.msra.mxu0 %v5021
          %5053 = vmatprep.subr.bf16.mxu0 0
          %5054 = vmatpush2.bf16.msra.mxu0 0
          %5055 = vmatprep.subr.bf16.mxu0 0
          %5056 = vmatpush2.bf16.msra.mxu0 0
          %5057 = vmatprep.subr.bf16.mxu0 0
          %5058 = vmatpush2.bf16.msra.mxu0 0
          %5059 = vmatprep.subr.bf16.mxu0 0
          %5060 = vmatpush2.bf16.msra.mxu0 0
          %5061 = vmatprep.subr.bf16.mxu0 0
          %5062 = vmatpush2.bf16.msra.mxu0 0
          %5063 = vmatprep.subr.bf16.mxu0 0
          %5064 = vmatpush2.bf16.msra.mxu0 0
          %5065 = vmatprep.subr.bf16.mxu0 0
          %5066 = vmatpush2.bf16.msra.mxu0 0
          %5067 = vmatprep.subr.bf16.mxu0 0
          %5068 = vmatpush2.bf16.msra.mxu0 0
          %5069 = vmatprep.mubr.bf16.mxu0 0
          %5070 = vmatmul.mubr.bf16.gmra.mxu0 %v3119
          %v5071 = vpop.f32.mrf.mxu0
          %v5072 = vadd.f32 0.0, %v5071
          %v5073 = vpop.f32.mrf.mxu0
          %v5074 = vadd.f32 0.0, %v5073
          %v5075 = vpop.f32.mrf.mxu0
          %v5076 = vadd.f32 0.0, %v5075
          %v5077 = vpop.f32.mrf.mxu0
          %v5078 = vadd.f32 0.0, %v5077
          %5079 = vmatprep.mubr.bf16.mxu0 0
          %5080 = vmatmul.mubr.bf16.gmra.mxu0 %v3120
          %v5081 = vpop.f32.mrf.mxu0
          %v5082 = vadd.f32 0.0, %v5081
          %v5083 = vpop.f32.mrf.mxu0
          %v5084 = vadd.f32 0.0, %v5083
          %v5085 = vpop.f32.mrf.mxu0
          %v5086 = vadd.f32 0.0, %v5085
          %v5087 = vpop.f32.mrf.mxu0
          %v5088 = vadd.f32 0.0, %v5087
          %5089 = vmatprep.mubr.bf16.mxu0 0
          %5090 = vmatmul.mubr.bf16.gmra.mxu0 %v3121
          %v5091 = vpop.f32.mrf.mxu0
          %v5092 = vadd.f32 0.0, %v5091
          %v5093 = vpop.f32.mrf.mxu0
          %v5094 = vadd.f32 0.0, %v5093
          %v5095 = vpop.f32.mrf.mxu0
          %v5096 = vadd.f32 0.0, %v5095
          %v5097 = vpop.f32.mrf.mxu0
          %v5098 = vadd.f32 0.0, %v5097
          %5099 = vmatprep.mubr.bf16.mxu0 0
          %5100 = vmatmul.mubr.bf16.gmra.mxu0 %v3122
          %v5101 = vpop.f32.mrf.mxu0
          %v5102 = vadd.f32 0.0, %v5101
          %v5103 = vpop.f32.mrf.mxu0
          %v5104 = vadd.f32 0.0, %v5103
          %v5105 = vpop.f32.mrf.mxu0
          %v5106 = vadd.f32 0.0, %v5105
          %v5107 = vpop.f32.mrf.mxu0
          %v5108 = vadd.f32 0.0, %v5107
          %5109 = vmatprep.mubr.bf16.mxu0 0
          %5110 = vmatmul.mubr.bf16.gmra.mxu0 %v3123
          %v5111 = vpop.f32.mrf.mxu0
          %v5112 = vadd.f32 0.0, %v5111
          %v5113 = vpop.f32.mrf.mxu0
          %v5114 = vadd.f32 0.0, %v5113
          %v5115 = vpop.f32.mrf.mxu0
          %v5116 = vadd.f32 0.0, %v5115
          %v5117 = vpop.f32.mrf.mxu0
          %v5118 = vadd.f32 0.0, %v5117
          %5119 = vmatprep.mubr.bf16.mxu0 0
          %5120 = vmatmul.mubr.bf16.gmra.mxu0 %v3124
          %v5121 = vpop.f32.mrf.mxu0
          %v5122 = vadd.f32 0.0, %v5121
          %v5123 = vpop.f32.mrf.mxu0
          %v5124 = vadd.f32 0.0, %v5123
          %v5125 = vpop.f32.mrf.mxu0
          %v5126 = vadd.f32 0.0, %v5125
          %v5127 = vpop.f32.mrf.mxu0
          %v5128 = vadd.f32 0.0, %v5127
          %5129 = vmatprep.mubr.bf16.mxu0 0
          %5130 = vmatmul.mubr.bf16.gmra.mxu0 %v3125
          %v5131 = vpop.f32.mrf.mxu0
          %v5132 = vadd.f32 0.0, %v5131
          %v5133 = vpop.f32.mrf.mxu0
          %v5134 = vadd.f32 0.0, %v5133
          %v5135 = vpop.f32.mrf.mxu0
          %v5136 = vadd.f32 0.0, %v5135
          %v5137 = vpop.f32.mrf.mxu0
          %v5138 = vadd.f32 0.0, %v5137
          %5139 = vmatprep.mubr.bf16.mxu0 0
          %5140 = vmatmul.mubr.bf16.gmra.mxu0 %v3126
          %v5141 = vpop.f32.mrf.mxu0
          %v5142 = vadd.f32 0.0, %v5141
          %v5143 = vpop.f32.mrf.mxu0
          %v5144 = vadd.f32 0.0, %v5143
          %v5145 = vpop.f32.mrf.mxu0
          %v5146 = vadd.f32 0.0, %v5145
          %v5147 = vpop.f32.mrf.mxu0
          %v5148 = vadd.f32 0.0, %v5147
          %5149 = vdwg.mxu0
          %v5150 = vmul.f32 %v5072, %v1239
          %v5151 = vmul.f32 %v5074, %v1240
          %v5152 = vmul.f32 %v5076, %v1241
          %v5153 = vmul.f32 %v5078, %v1242
          %v5154 = vmul.f32 %v5082, %v1243
          %v5155 = vmul.f32 %v5084, %v1244
          %v5156 = vmul.f32 %v5086, %v1245
          %v5157 = vmul.f32 %v5088, %v1246
          %v5158 = vmul.f32 %v5092, %v1247
          %v5159 = vmul.f32 %v5094, %v1248
          %v5160 = vmul.f32 %v5096, %v1249
          %v5161 = vmul.f32 %v5098, %v1250
          %v5162 = vmul.f32 %v5102, %v1251
          %v5163 = vmul.f32 %v5104, %v1252
          %v5164 = vmul.f32 %v5106, %v1253
          %v5165 = vmul.f32 %v5108, %v1254
          %v5166 = vmul.f32 %v5112, %v1255
          %v5167 = vmul.f32 %v5114, %v1256
          %v5168 = vmul.f32 %v5116, %v1257
          %v5169 = vmul.f32 %v5118, %v1258
          %v5170 = vmul.f32 %v5122, %v1259
          %v5171 = vmul.f32 %v5124, %v1260
          %v5172 = vmul.f32 %v5126, %v1261
          %v5173 = vmul.f32 %v5128, %v1262
          %v5174 = vmul.f32 %v5132, %v1263
          %v5175 = vmul.f32 %v5134, %v1264
          %v5176 = vmul.f32 %v5136, %v1265
          %v5177 = vmul.f32 %v5138, %v1266
          %v5178 = vmul.f32 %v5142, %v1267
          %v5179 = vmul.f32 %v5144, %v1268
          %v5180 = vmul.f32 %v5146, %v1269
          %v5181 = vmul.f32 %v5148, %v1270
          %v5182 = vpack.c.bf16 %v4055, %v4053
          %v5183 = vpack.c.bf16 %v4056, %v4054
          %v5184 = vpack.c.bf16 %v4059, %v4057
          %v5185 = vpack.c.bf16 %v4060, %v4058
          %v5186 = vpack.c.bf16 %v4063, %v4061
          %v5187 = vpack.c.bf16 %v4064, %v4062
          %v5188 = vpack.c.bf16 %v4067, %v4065
          %v5189 = vpack.c.bf16 %v4068, %v4066
          %v5190 = vpack.c.bf16 %v4071, %v4069
          %v5191 = vpack.c.bf16 %v4072, %v4070
          %v5192 = vpack.c.bf16 %v4075, %v4073
          %v5193 = vpack.c.bf16 %v4076, %v4074
          %v5194 = vpack.c.bf16 %v4079, %v4077
          %v5195 = vpack.c.bf16 %v4080, %v4078
          %v5196 = vpack.c.bf16 %v4083, %v4081
          %v5197 = vpack.c.bf16 %v4084, %v4082
          %5198 = vmatprep.subr.bf16.mxu0 %v5197
          %5199 = vmatpush1.bf16.msra.mxu0 %v5196
          %5200 = vmatprep.subr.bf16.mxu0 %v5195
          %5201 = vmatpush1.bf16.msra.mxu0 %v5194
          %5202 = vmatprep.subr.bf16.mxu0 %v5193
          %5203 = vmatpush1.bf16.msra.mxu0 %v5192
          %5204 = vmatprep.subr.bf16.mxu0 %v5191
          %5205 = vmatpush1.bf16.msra.mxu0 %v5190
          %5206 = vmatprep.subr.bf16.mxu0 %v5189
          %5207 = vmatpush1.bf16.msra.mxu0 %v5188
          %5208 = vmatprep.subr.bf16.mxu0 %v5187
          %5209 = vmatpush1.bf16.msra.mxu0 %v5186
          %5210 = vmatprep.subr.bf16.mxu0 %v5185
          %5211 = vmatpush1.bf16.msra.mxu0 %v5184
          %5212 = vmatprep.subr.bf16.mxu0 %v5183
          %5213 = vmatpush1.bf16.msra.mxu0 %v5182
          %5214 = vmatprep.subr.bf16.mxu0 0
          %5215 = vmatpush2.bf16.msra.mxu0 0
          %5216 = vmatprep.subr.bf16.mxu0 0
          %5217 = vmatpush2.bf16.msra.mxu0 0
          %5218 = vmatprep.subr.bf16.mxu0 0
          %5219 = vmatpush2.bf16.msra.mxu0 0
          %5220 = vmatprep.subr.bf16.mxu0 0
          %5221 = vmatpush2.bf16.msra.mxu0 0
          %5222 = vmatprep.subr.bf16.mxu0 0
          %5223 = vmatpush2.bf16.msra.mxu0 0
          %5224 = vmatprep.subr.bf16.mxu0 0
          %5225 = vmatpush2.bf16.msra.mxu0 0
          %5226 = vmatprep.subr.bf16.mxu0 0
          %5227 = vmatpush2.bf16.msra.mxu0 0
          %5228 = vmatprep.subr.bf16.mxu0 0
          %5229 = vmatpush2.bf16.msra.mxu0 0
          %5230 = vmatprep.mubr.bf16.mxu0 0
          %5231 = vmatmul.mubr.bf16.gmra.mxu0 %v3119
          %v5232 = vpop.f32.mrf.mxu0
          %v5233 = vadd.f32 0.0, %v5232
          %v5234 = vpop.f32.mrf.mxu0
          %v5235 = vadd.f32 0.0, %v5234
          %v5236 = vpop.f32.mrf.mxu0
          %v5237 = vadd.f32 0.0, %v5236
          %v5238 = vpop.f32.mrf.mxu0
          %v5239 = vadd.f32 0.0, %v5238
          %5240 = vmatprep.mubr.bf16.mxu0 0
          %5241 = vmatmul.mubr.bf16.gmra.mxu0 %v3120
          %v5242 = vpop.f32.mrf.mxu0
          %v5243 = vadd.f32 0.0, %v5242
          %v5244 = vpop.f32.mrf.mxu0
          %v5245 = vadd.f32 0.0, %v5244
          %v5246 = vpop.f32.mrf.mxu0
          %v5247 = vadd.f32 0.0, %v5246
          %v5248 = vpop.f32.mrf.mxu0
          %v5249 = vadd.f32 0.0, %v5248
          %5250 = vmatprep.mubr.bf16.mxu0 0
          %5251 = vmatmul.mubr.bf16.gmra.mxu0 %v3121
          %v5252 = vpop.f32.mrf.mxu0
          %v5253 = vadd.f32 0.0, %v5252
          %v5254 = vpop.f32.mrf.mxu0
          %v5255 = vadd.f32 0.0, %v5254
          %v5256 = vpop.f32.mrf.mxu0
          %v5257 = vadd.f32 0.0, %v5256
          %v5258 = vpop.f32.mrf.mxu0
          %v5259 = vadd.f32 0.0, %v5258
          %5260 = vmatprep.mubr.bf16.mxu0 0
          %5261 = vmatmul.mubr.bf16.gmra.mxu0 %v3122
          %v5262 = vpop.f32.mrf.mxu0
          %v5263 = vadd.f32 0.0, %v5262
          %v5264 = vpop.f32.mrf.mxu0
          %v5265 = vadd.f32 0.0, %v5264
          %v5266 = vpop.f32.mrf.mxu0
          %v5267 = vadd.f32 0.0, %v5266
          %v5268 = vpop.f32.mrf.mxu0
          %v5269 = vadd.f32 0.0, %v5268
          %5270 = vmatprep.mubr.bf16.mxu0 0
          %5271 = vmatmul.mubr.bf16.gmra.mxu0 %v3123
          %v5272 = vpop.f32.mrf.mxu0
          %v5273 = vadd.f32 0.0, %v5272
          %v5274 = vpop.f32.mrf.mxu0
          %v5275 = vadd.f32 0.0, %v5274
          %v5276 = vpop.f32.mrf.mxu0
          %v5277 = vadd.f32 0.0, %v5276
          %v5278 = vpop.f32.mrf.mxu0
          %v5279 = vadd.f32 0.0, %v5278
          %5280 = vmatprep.mubr.bf16.mxu0 0
          %5281 = vmatmul.mubr.bf16.gmra.mxu0 %v3124
          %v5282 = vpop.f32.mrf.mxu0
          %v5283 = vadd.f32 0.0, %v5282
          %v5284 = vpop.f32.mrf.mxu0
          %v5285 = vadd.f32 0.0, %v5284
          %v5286 = vpop.f32.mrf.mxu0
          %v5287 = vadd.f32 0.0, %v5286
          %v5288 = vpop.f32.mrf.mxu0
          %v5289 = vadd.f32 0.0, %v5288
          %5290 = vmatprep.mubr.bf16.mxu0 0
          %5291 = vmatmul.mubr.bf16.gmra.mxu0 %v3125
          %v5292 = vpop.f32.mrf.mxu0
          %v5293 = vadd.f32 0.0, %v5292
          %v5294 = vpop.f32.mrf.mxu0
          %v5295 = vadd.f32 0.0, %v5294
          %v5296 = vpop.f32.mrf.mxu0
          %v5297 = vadd.f32 0.0, %v5296
          %v5298 = vpop.f32.mrf.mxu0
          %v5299 = vadd.f32 0.0, %v5298
          %5300 = vmatprep.mubr.bf16.mxu0 0
          %5301 = vmatmul.mubr.bf16.gmra.mxu0 %v3126
          %v5302 = vpop.f32.mrf.mxu0
          %v5303 = vadd.f32 0.0, %v5302
          %v5304 = vpop.f32.mrf.mxu0
          %v5305 = vadd.f32 0.0, %v5304
          %v5306 = vpop.f32.mrf.mxu0
          %v5307 = vadd.f32 0.0, %v5306
          %v5308 = vpop.f32.mrf.mxu0
          %v5309 = vadd.f32 0.0, %v5308
          %5310 = vdwg.mxu0
          %v5311 = vmul.f32 %v5233, %v1239
          %v5312 = vmul.f32 %v5235, %v1240
          %v5313 = vmul.f32 %v5237, %v1241
          %v5314 = vmul.f32 %v5239, %v1242
          %v5315 = vmul.f32 %v5243, %v1243
          %v5316 = vmul.f32 %v5245, %v1244
          %v5317 = vmul.f32 %v5247, %v1245
          %v5318 = vmul.f32 %v5249, %v1246
          %v5319 = vmul.f32 %v5253, %v1247
          %v5320 = vmul.f32 %v5255, %v1248
          %v5321 = vmul.f32 %v5257, %v1249
          %v5322 = vmul.f32 %v5259, %v1250
          %v5323 = vmul.f32 %v5263, %v1251
          %v5324 = vmul.f32 %v5265, %v1252
          %v5325 = vmul.f32 %v5267, %v1253
          %v5326 = vmul.f32 %v5269, %v1254
          %v5327 = vmul.f32 %v5273, %v1255
          %v5328 = vmul.f32 %v5275, %v1256
          %v5329 = vmul.f32 %v5277, %v1257
          %v5330 = vmul.f32 %v5279, %v1258
          %v5331 = vmul.f32 %v5283, %v1259
          %v5332 = vmul.f32 %v5285, %v1260
          %v5333 = vmul.f32 %v5287, %v1261
          %v5334 = vmul.f32 %v5289, %v1262
          %v5335 = vmul.f32 %v5293, %v1263
          %v5336 = vmul.f32 %v5295, %v1264
          %v5337 = vmul.f32 %v5297, %v1265
          %v5338 = vmul.f32 %v5299, %v1266
          %v5339 = vmul.f32 %v5303, %v1267
          %v5340 = vmul.f32 %v5305, %v1268
          %v5341 = vmul.f32 %v5307, %v1269
          %v5342 = vmul.f32 %v5309, %v1270
          %v5343 = vpack.c.bf16 %v4216, %v4214
          %v5344 = vpack.c.bf16 %v4217, %v4215
          %v5345 = vpack.c.bf16 %v4220, %v4218
          %v5346 = vpack.c.bf16 %v4221, %v4219
          %v5347 = vpack.c.bf16 %v4224, %v4222
          %v5348 = vpack.c.bf16 %v4225, %v4223
          %v5349 = vpack.c.bf16 %v4228, %v4226
          %v5350 = vpack.c.bf16 %v4229, %v4227
          %v5351 = vpack.c.bf16 %v4232, %v4230
          %v5352 = vpack.c.bf16 %v4233, %v4231
          %v5353 = vpack.c.bf16 %v4236, %v4234
          %v5354 = vpack.c.bf16 %v4237, %v4235
          %v5355 = vpack.c.bf16 %v4240, %v4238
          %v5356 = vpack.c.bf16 %v4241, %v4239
          %v5357 = vpack.c.bf16 %v4244, %v4242
          %v5358 = vpack.c.bf16 %v4245, %v4243
          %5359 = vmatprep.subr.bf16.mxu0 %v5358
          %5360 = vmatpush1.bf16.msra.mxu0 %v5357
          %5361 = vmatprep.subr.bf16.mxu0 %v5356
          %5362 = vmatpush1.bf16.msra.mxu0 %v5355
          %5363 = vmatprep.subr.bf16.mxu0 %v5354
          %5364 = vmatpush1.bf16.msra.mxu0 %v5353
          %5365 = vmatprep.subr.bf16.mxu0 %v5352
          %5366 = vmatpush1.bf16.msra.mxu0 %v5351
          %5367 = vmatprep.subr.bf16.mxu0 %v5350
          %5368 = vmatpush1.bf16.msra.mxu0 %v5349
          %5369 = vmatprep.subr.bf16.mxu0 %v5348
          %5370 = vmatpush1.bf16.msra.mxu0 %v5347
          %5371 = vmatprep.subr.bf16.mxu0 %v5346
          %5372 = vmatpush1.bf16.msra.mxu0 %v5345
          %5373 = vmatprep.subr.bf16.mxu0 %v5344
          %5374 = vmatpush1.bf16.msra.mxu0 %v5343
          %5375 = vmatprep.subr.bf16.mxu0 0
          %5376 = vmatpush2.bf16.msra.mxu0 0
          %5377 = vmatprep.subr.bf16.mxu0 0
          %5378 = vmatpush2.bf16.msra.mxu0 0
          %5379 = vmatprep.subr.bf16.mxu0 0
          %5380 = vmatpush2.bf16.msra.mxu0 0
          %5381 = vmatprep.subr.bf16.mxu0 0
          %5382 = vmatpush2.bf16.msra.mxu0 0
          %5383 = vmatprep.subr.bf16.mxu0 0
          %5384 = vmatpush2.bf16.msra.mxu0 0
          %5385 = vmatprep.subr.bf16.mxu0 0
          %5386 = vmatpush2.bf16.msra.mxu0 0
          %5387 = vmatprep.subr.bf16.mxu0 0
          %5388 = vmatpush2.bf16.msra.mxu0 0
          %5389 = vmatprep.subr.bf16.mxu0 0
          %5390 = vmatpush2.bf16.msra.mxu0 0
          %5391 = vmatprep.mubr.bf16.mxu0 0
          %5392 = vmatmul.mubr.bf16.gmra.mxu0 %v3119
          %v5393 = vpop.f32.mrf.mxu0
          %v5394 = vadd.f32 0.0, %v5393
          %v5395 = vpop.f32.mrf.mxu0
          %v5396 = vadd.f32 0.0, %v5395
          %v5397 = vpop.f32.mrf.mxu0
          %v5398 = vadd.f32 0.0, %v5397
          %v5399 = vpop.f32.mrf.mxu0
          %v5400 = vadd.f32 0.0, %v5399
          %5401 = vmatprep.mubr.bf16.mxu0 0
          %5402 = vmatmul.mubr.bf16.gmra.mxu0 %v3120
          %v5403 = vpop.f32.mrf.mxu0
          %v5404 = vadd.f32 0.0, %v5403
          %v5405 = vpop.f32.mrf.mxu0
          %v5406 = vadd.f32 0.0, %v5405
          %v5407 = vpop.f32.mrf.mxu0
          %v5408 = vadd.f32 0.0, %v5407
          %v5409 = vpop.f32.mrf.mxu0
          %v5410 = vadd.f32 0.0, %v5409
          %5411 = vmatprep.mubr.bf16.mxu0 0
          %5412 = vmatmul.mubr.bf16.gmra.mxu0 %v3121
          %v5413 = vpop.f32.mrf.mxu0
          %v5414 = vadd.f32 0.0, %v5413
          %v5415 = vpop.f32.mrf.mxu0
          %v5416 = vadd.f32 0.0, %v5415
          %v5417 = vpop.f32.mrf.mxu0
          %v5418 = vadd.f32 0.0, %v5417
          %v5419 = vpop.f32.mrf.mxu0
          %v5420 = vadd.f32 0.0, %v5419
          %5421 = vmatprep.mubr.bf16.mxu0 0
          %5422 = vmatmul.mubr.bf16.gmra.mxu0 %v3122
          %v5423 = vpop.f32.mrf.mxu0
          %v5424 = vadd.f32 0.0, %v5423
          %v5425 = vpop.f32.mrf.mxu0
          %v5426 = vadd.f32 0.0, %v5425
          %v5427 = vpop.f32.mrf.mxu0
          %v5428 = vadd.f32 0.0, %v5427
          %v5429 = vpop.f32.mrf.mxu0
          %v5430 = vadd.f32 0.0, %v5429
          %5431 = vmatprep.mubr.bf16.mxu0 0
          %5432 = vmatmul.mubr.bf16.gmra.mxu0 %v3123
          %v5433 = vpop.f32.mrf.mxu0
          %v5434 = vadd.f32 0.0, %v5433
          %v5435 = vpop.f32.mrf.mxu0
          %v5436 = vadd.f32 0.0, %v5435
          %v5437 = vpop.f32.mrf.mxu0
          %v5438 = vadd.f32 0.0, %v5437
          %v5439 = vpop.f32.mrf.mxu0
          %v5440 = vadd.f32 0.0, %v5439
          %5441 = vmatprep.mubr.bf16.mxu0 0
          %5442 = vmatmul.mubr.bf16.gmra.mxu0 %v3124
          %v5443 = vpop.f32.mrf.mxu0
          %v5444 = vadd.f32 0.0, %v5443
          %v5445 = vpop.f32.mrf.mxu0
          %v5446 = vadd.f32 0.0, %v5445
          %v5447 = vpop.f32.mrf.mxu0
          %v5448 = vadd.f32 0.0, %v5447
          %v5449 = vpop.f32.mrf.mxu0
          %v5450 = vadd.f32 0.0, %v5449
          %5451 = vmatprep.mubr.bf16.mxu0 0
          %5452 = vmatmul.mubr.bf16.gmra.mxu0 %v3125
          %v5453 = vpop.f32.mrf.mxu0
          %v5454 = vadd.f32 0.0, %v5453
          %v5455 = vpop.f32.mrf.mxu0
          %v5456 = vadd.f32 0.0, %v5455
          %v5457 = vpop.f32.mrf.mxu0
          %v5458 = vadd.f32 0.0, %v5457
          %v5459 = vpop.f32.mrf.mxu0
          %v5460 = vadd.f32 0.0, %v5459
          %5461 = vmatprep.mubr.bf16.mxu0 0
          %5462 = vmatmul.mubr.bf16.gmra.mxu0 %v3126
          %v5463 = vpop.f32.mrf.mxu0
          %v5464 = vadd.f32 0.0, %v5463
          %v5465 = vpop.f32.mrf.mxu0
          %v5466 = vadd.f32 0.0, %v5465
          %v5467 = vpop.f32.mrf.mxu0
          %v5468 = vadd.f32 0.0, %v5467
          %v5469 = vpop.f32.mrf.mxu0
          %v5470 = vadd.f32 0.0, %v5469
          %5471 = vdwg.mxu0
          %v5472 = vmul.f32 %v5394, %v1239
          %v5473 = vmul.f32 %v5396, %v1240
          %v5474 = vmul.f32 %v5398, %v1241
          %v5475 = vmul.f32 %v5400, %v1242
          %v5476 = vmul.f32 %v5404, %v1243
          %v5477 = vmul.f32 %v5406, %v1244
          %v5478 = vmul.f32 %v5408, %v1245
          %v5479 = vmul.f32 %v5410, %v1246
          %v5480 = vmul.f32 %v5414, %v1247
          %v5481 = vmul.f32 %v5416, %v1248
          %v5482 = vmul.f32 %v5418, %v1249
          %v5483 = vmul.f32 %v5420, %v1250
          %v5484 = vmul.f32 %v5424, %v1251
          %v5485 = vmul.f32 %v5426, %v1252
          %v5486 = vmul.f32 %v5428, %v1253
          %v5487 = vmul.f32 %v5430, %v1254
          %v5488 = vmul.f32 %v5434, %v1255
          %v5489 = vmul.f32 %v5436, %v1256
          %v5490 = vmul.f32 %v5438, %v1257
          %v5491 = vmul.f32 %v5440, %v1258
          %v5492 = vmul.f32 %v5444, %v1259
          %v5493 = vmul.f32 %v5446, %v1260
          %v5494 = vmul.f32 %v5448, %v1261
          %v5495 = vmul.f32 %v5450, %v1262
          %v5496 = vmul.f32 %v5454, %v1263
          %v5497 = vmul.f32 %v5456, %v1264
          %v5498 = vmul.f32 %v5458, %v1265
          %v5499 = vmul.f32 %v5460, %v1266
          %v5500 = vmul.f32 %v5464, %v1267
          %v5501 = vmul.f32 %v5466, %v1268
          %v5502 = vmul.f32 %v5468, %v1269
          %v5503 = vmul.f32 %v5470, %v1270
          %v5504 = vpack.c.bf16 %v4377, %v4375
          %v5505 = vpack.c.bf16 %v4378, %v4376
          %v5506 = vpack.c.bf16 %v4381, %v4379
          %v5507 = vpack.c.bf16 %v4382, %v4380
          %v5508 = vpack.c.bf16 %v4385, %v4383
          %v5509 = vpack.c.bf16 %v4386, %v4384
          %v5510 = vpack.c.bf16 %v4389, %v4387
          %v5511 = vpack.c.bf16 %v4390, %v4388
          %v5512 = vpack.c.bf16 %v4393, %v4391
          %v5513 = vpack.c.bf16 %v4394, %v4392
          %v5514 = vpack.c.bf16 %v4397, %v4395
          %v5515 = vpack.c.bf16 %v4398, %v4396
          %v5516 = vpack.c.bf16 %v4401, %v4399
          %v5517 = vpack.c.bf16 %v4402, %v4400
          %v5518 = vpack.c.bf16 %v4405, %v4403
          %v5519 = vpack.c.bf16 %v4406, %v4404
          %5520 = vmatprep.subr.bf16.mxu0 %v5519
          %5521 = vmatpush1.bf16.msra.mxu0 %v5518
          %5522 = vmatprep.subr.bf16.mxu0 %v5517
          %5523 = vmatpush1.bf16.msra.mxu0 %v5516
          %5524 = vmatprep.subr.bf16.mxu0 %v5515
          %5525 = vmatpush1.bf16.msra.mxu0 %v5514
          %5526 = vmatprep.subr.bf16.mxu0 %v5513
          %5527 = vmatpush1.bf16.msra.mxu0 %v5512
          %5528 = vmatprep.subr.bf16.mxu0 %v5511
          %5529 = vmatpush1.bf16.msra.mxu0 %v5510
          %5530 = vmatprep.subr.bf16.mxu0 %v5509
          %5531 = vmatpush1.bf16.msra.mxu0 %v5508
          %5532 = vmatprep.subr.bf16.mxu0 %v5507
          %5533 = vmatpush1.bf16.msra.mxu0 %v5506
          %5534 = vmatprep.subr.bf16.mxu0 %v5505
          %5535 = vmatpush1.bf16.msra.mxu0 %v5504
          %5536 = vmatprep.subr.bf16.mxu0 0
          %5537 = vmatpush2.bf16.msra.mxu0 0
          %5538 = vmatprep.subr.bf16.mxu0 0
          %5539 = vmatpush2.bf16.msra.mxu0 0
          %5540 = vmatprep.subr.bf16.mxu0 0
          %5541 = vmatpush2.bf16.msra.mxu0 0
          %5542 = vmatprep.subr.bf16.mxu0 0
          %5543 = vmatpush2.bf16.msra.mxu0 0
          %5544 = vmatprep.subr.bf16.mxu0 0
          %5545 = vmatpush2.bf16.msra.mxu0 0
          %5546 = vmatprep.subr.bf16.mxu0 0
          %5547 = vmatpush2.bf16.msra.mxu0 0
          %5548 = vmatprep.subr.bf16.mxu0 0
          %5549 = vmatpush2.bf16.msra.mxu0 0
          %5550 = vmatprep.subr.bf16.mxu0 0
          %5551 = vmatpush2.bf16.msra.mxu0 0
          %5552 = vmatprep.mubr.bf16.mxu0 0
          %5553 = vmatmul.mubr.bf16.gmra.mxu0 %v3119
          %v5554 = vpop.f32.mrf.mxu0
          %v5555 = vadd.f32 0.0, %v5554
          %v5556 = vpop.f32.mrf.mxu0
          %v5557 = vadd.f32 0.0, %v5556
          %v5558 = vpop.f32.mrf.mxu0
          %v5559 = vadd.f32 0.0, %v5558
          %v5560 = vpop.f32.mrf.mxu0
          %v5561 = vadd.f32 0.0, %v5560
          %5562 = vmatprep.mubr.bf16.mxu0 0
          %5563 = vmatmul.mubr.bf16.gmra.mxu0 %v3120
          %v5564 = vpop.f32.mrf.mxu0
          %v5565 = vadd.f32 0.0, %v5564
          %v5566 = vpop.f32.mrf.mxu0
          %v5567 = vadd.f32 0.0, %v5566
          %v5568 = vpop.f32.mrf.mxu0
          %v5569 = vadd.f32 0.0, %v5568
          %v5570 = vpop.f32.mrf.mxu0
          %v5571 = vadd.f32 0.0, %v5570
          %5572 = vmatprep.mubr.bf16.mxu0 0
          %5573 = vmatmul.mubr.bf16.gmra.mxu0 %v3121
          %v5574 = vpop.f32.mrf.mxu0
          %v5575 = vadd.f32 0.0, %v5574
          %v5576 = vpop.f32.mrf.mxu0
          %v5577 = vadd.f32 0.0, %v5576
          %v5578 = vpop.f32.mrf.mxu0
          %v5579 = vadd.f32 0.0, %v5578
          %v5580 = vpop.f32.mrf.mxu0
          %v5581 = vadd.f32 0.0, %v5580
          %5582 = vmatprep.mubr.bf16.mxu0 0
          %5583 = vmatmul.mubr.bf16.gmra.mxu0 %v3122
          %v5584 = vpop.f32.mrf.mxu0
          %v5585 = vadd.f32 0.0, %v5584
          %v5586 = vpop.f32.mrf.mxu0
          %v5587 = vadd.f32 0.0, %v5586
          %v5588 = vpop.f32.mrf.mxu0
          %v5589 = vadd.f32 0.0, %v5588
          %v5590 = vpop.f32.mrf.mxu0
          %v5591 = vadd.f32 0.0, %v5590
          %5592 = vmatprep.mubr.bf16.mxu0 0
          %5593 = vmatmul.mubr.bf16.gmra.mxu0 %v3123
          %v5594 = vpop.f32.mrf.mxu0
          %v5595 = vadd.f32 0.0, %v5594
          %v5596 = vpop.f32.mrf.mxu0
          %v5597 = vadd.f32 0.0, %v5596
          %v5598 = vpop.f32.mrf.mxu0
          %v5599 = vadd.f32 0.0, %v5598
          %v5600 = vpop.f32.mrf.mxu0
          %v5601 = vadd.f32 0.0, %v5600
          %5602 = vmatprep.mubr.bf16.mxu0 0
          %5603 = vmatmul.mubr.bf16.gmra.mxu0 %v3124
          %v5604 = vpop.f32.mrf.mxu0
          %v5605 = vadd.f32 0.0, %v5604
          %v5606 = vpop.f32.mrf.mxu0
          %v5607 = vadd.f32 0.0, %v5606
          %v5608 = vpop.f32.mrf.mxu0
          %v5609 = vadd.f32 0.0, %v5608
          %v5610 = vpop.f32.mrf.mxu0
          %v5611 = vadd.f32 0.0, %v5610
          %5612 = vmatprep.mubr.bf16.mxu0 0
          %5613 = vmatmul.mubr.bf16.gmra.mxu0 %v3125
          %v5614 = vpop.f32.mrf.mxu0
          %v5615 = vadd.f32 0.0, %v5614
          %v5616 = vpop.f32.mrf.mxu0
          %v5617 = vadd.f32 0.0, %v5616
          %v5618 = vpop.f32.mrf.mxu0
          %v5619 = vadd.f32 0.0, %v5618
          %v5620 = vpop.f32.mrf.mxu0
          %v5621 = vadd.f32 0.0, %v5620
          %5622 = vmatprep.mubr.bf16.mxu0 0
          %5623 = vmatmul.mubr.bf16.gmra.mxu0 %v3126
          %v5624 = vpop.f32.mrf.mxu0
          %v5625 = vadd.f32 0.0, %v5624
          %v5626 = vpop.f32.mrf.mxu0
          %v5627 = vadd.f32 0.0, %v5626
          %v5628 = vpop.f32.mrf.mxu0
          %v5629 = vadd.f32 0.0, %v5628
          %v5630 = vpop.f32.mrf.mxu0
          %v5631 = vadd.f32 0.0, %v5630
          %5632 = vdwg.mxu0
          %v5633 = vmul.f32 %v5555, %v1239
          %v5634 = vmul.f32 %v5557, %v1240
          %v5635 = vmul.f32 %v5559, %v1241
          %v5636 = vmul.f32 %v5561, %v1242
          %v5637 = vmul.f32 %v5565, %v1243
          %v5638 = vmul.f32 %v5567, %v1244
          %v5639 = vmul.f32 %v5569, %v1245
          %v5640 = vmul.f32 %v5571, %v1246
          %v5641 = vmul.f32 %v5575, %v1247
          %v5642 = vmul.f32 %v5577, %v1248
          %v5643 = vmul.f32 %v5579, %v1249
          %v5644 = vmul.f32 %v5581, %v1250
          %v5645 = vmul.f32 %v5585, %v1251
          %v5646 = vmul.f32 %v5587, %v1252
          %v5647 = vmul.f32 %v5589, %v1253
          %v5648 = vmul.f32 %v5591, %v1254
          %v5649 = vmul.f32 %v5595, %v1255
          %v5650 = vmul.f32 %v5597, %v1256
          %v5651 = vmul.f32 %v5599, %v1257
          %v5652 = vmul.f32 %v5601, %v1258
          %v5653 = vmul.f32 %v5605, %v1259
          %v5654 = vmul.f32 %v5607, %v1260
          %v5655 = vmul.f32 %v5609, %v1261
          %v5656 = vmul.f32 %v5611, %v1262
          %v5657 = vmul.f32 %v5615, %v1263
          %v5658 = vmul.f32 %v5617, %v1264
          %v5659 = vmul.f32 %v5619, %v1265
          %v5660 = vmul.f32 %v5621, %v1266
          %v5661 = vmul.f32 %v5625, %v1267
          %v5662 = vmul.f32 %v5627, %v1268
          %v5663 = vmul.f32 %v5629, %v1269
          %v5664 = vmul.f32 %v5631, %v1270
          %v5665 = vpack.c.bf16 %v5152, %v5150
          %v5666 = vpack.c.bf16 %v5153, %v5151
          %v5667 = vpack.c.bf16 %v5156, %v5154
          %v5668 = vpack.c.bf16 %v5157, %v5155
          %v5669 = vpack.c.bf16 %v5160, %v5158
          %v5670 = vpack.c.bf16 %v5161, %v5159
          %v5671 = vpack.c.bf16 %v5164, %v5162
          %v5672 = vpack.c.bf16 %v5165, %v5163
          %v5673 = vpack.c.bf16 %v5168, %v5166
          %v5674 = vpack.c.bf16 %v5169, %v5167
          %v5675 = vpack.c.bf16 %v5172, %v5170
          %v5676 = vpack.c.bf16 %v5173, %v5171
          %v5677 = vpack.c.bf16 %v5176, %v5174
          %v5678 = vpack.c.bf16 %v5177, %v5175
          %v5679 = vpack.c.bf16 %v5180, %v5178
          %v5680 = vpack.c.bf16 %v5181, %v5179
          %5681 = vmatprep.subr.bf16.mxu0 %v5680
          %5682 = vmatpush1.bf16.msra.mxu0 %v5679
          %5683 = vmatprep.subr.bf16.mxu0 %v5678
          %5684 = vmatpush1.bf16.msra.mxu0 %v5677
          %5685 = vmatprep.subr.bf16.mxu0 %v5676
          %5686 = vmatpush1.bf16.msra.mxu0 %v5675
          %5687 = vmatprep.subr.bf16.mxu0 %v5674
          %5688 = vmatpush1.bf16.msra.mxu0 %v5673
          %5689 = vmatprep.subr.bf16.mxu0 %v5672
          %5690 = vmatpush1.bf16.msra.mxu0 %v5671
          %5691 = vmatprep.subr.bf16.mxu0 %v5670
          %5692 = vmatpush1.bf16.msra.mxu0 %v5669
          %5693 = vmatprep.subr.bf16.mxu0 %v5668
          %5694 = vmatpush1.bf16.msra.mxu0 %v5667
          %5695 = vmatprep.subr.bf16.mxu0 %v5666
          %5696 = vmatpush1.bf16.msra.mxu0 %v5665
          %5697 = vmatprep.subr.bf16.mxu0 0
          %5698 = vmatpush2.bf16.msra.mxu0 0
          %5699 = vmatprep.subr.bf16.mxu0 0
          %5700 = vmatpush2.bf16.msra.mxu0 0
          %5701 = vmatprep.subr.bf16.mxu0 0
          %5702 = vmatpush2.bf16.msra.mxu0 0
          %5703 = vmatprep.subr.bf16.mxu0 0
          %5704 = vmatpush2.bf16.msra.mxu0 0
          %5705 = vmatprep.subr.bf16.mxu0 0
          %5706 = vmatpush2.bf16.msra.mxu0 0
          %5707 = vmatprep.subr.bf16.mxu0 0
          %5708 = vmatpush2.bf16.msra.mxu0 0
          %5709 = vmatprep.subr.bf16.mxu0 0
          %5710 = vmatpush2.bf16.msra.mxu0 0
          %5711 = vmatprep.subr.bf16.mxu0 0
          %5712 = vmatpush2.bf16.msra.mxu0 0
          %5713 = vmatprep.mubr.bf16.mxu0 0
          %5714 = vmatmul.mubr.bf16.gmra.mxu0 %v1399
          %v5715 = vpop.f32.mrf.mxu0
          %v5716 = vadd.f32 0.0, %v5715
          %v5717 = vpop.f32.mrf.mxu0
          %v5718 = vadd.f32 0.0, %v5717
          %v5719 = vpop.f32.mrf.mxu0
          %v5720 = vadd.f32 0.0, %v5719
          %v5721 = vpop.f32.mrf.mxu0
          %v5722 = vadd.f32 0.0, %v5721
          %5723 = vmatprep.mubr.bf16.mxu0 0
          %5724 = vmatmul.mubr.bf16.gmra.mxu0 %v1400
          %v5725 = vpop.f32.mrf.mxu0
          %v5726 = vadd.f32 0.0, %v5725
          %v5727 = vpop.f32.mrf.mxu0
          %v5728 = vadd.f32 0.0, %v5727
          %v5729 = vpop.f32.mrf.mxu0
          %v5730 = vadd.f32 0.0, %v5729
          %v5731 = vpop.f32.mrf.mxu0
          %v5732 = vadd.f32 0.0, %v5731
          %5733 = vmatprep.mubr.bf16.mxu0 0
          %5734 = vmatmul.mubr.bf16.gmra.mxu0 %v1401
          %v5735 = vpop.f32.mrf.mxu0
          %v5736 = vadd.f32 0.0, %v5735
          %v5737 = vpop.f32.mrf.mxu0
          %v5738 = vadd.f32 0.0, %v5737
          %v5739 = vpop.f32.mrf.mxu0
          %v5740 = vadd.f32 0.0, %v5739
          %v5741 = vpop.f32.mrf.mxu0
          %v5742 = vadd.f32 0.0, %v5741
          %5743 = vmatprep.mubr.bf16.mxu0 0
          %5744 = vmatmul.mubr.bf16.gmra.mxu0 %v1402
          %v5745 = vpop.f32.mrf.mxu0
          %v5746 = vadd.f32 0.0, %v5745
          %v5747 = vpop.f32.mrf.mxu0
          %v5748 = vadd.f32 0.0, %v5747
          %v5749 = vpop.f32.mrf.mxu0
          %v5750 = vadd.f32 0.0, %v5749
          %v5751 = vpop.f32.mrf.mxu0
          %v5752 = vadd.f32 0.0, %v5751
          %5753 = vmatprep.mubr.bf16.mxu0 0
          %5754 = vmatmul.mubr.bf16.gmra.mxu0 %v1403
          %v5755 = vpop.f32.mrf.mxu0
          %v5756 = vadd.f32 0.0, %v5755
          %v5757 = vpop.f32.mrf.mxu0
          %v5758 = vadd.f32 0.0, %v5757
          %v5759 = vpop.f32.mrf.mxu0
          %v5760 = vadd.f32 0.0, %v5759
          %v5761 = vpop.f32.mrf.mxu0
          %v5762 = vadd.f32 0.0, %v5761
          %5763 = vmatprep.mubr.bf16.mxu0 0
          %5764 = vmatmul.mubr.bf16.gmra.mxu0 %v1404
          %v5765 = vpop.f32.mrf.mxu0
          %v5766 = vadd.f32 0.0, %v5765
          %v5767 = vpop.f32.mrf.mxu0
          %v5768 = vadd.f32 0.0, %v5767
          %v5769 = vpop.f32.mrf.mxu0
          %v5770 = vadd.f32 0.0, %v5769
          %v5771 = vpop.f32.mrf.mxu0
          %v5772 = vadd.f32 0.0, %v5771
          %5773 = vmatprep.mubr.bf16.mxu0 0
          %5774 = vmatmul.mubr.bf16.gmra.mxu0 %v1405
          %v5775 = vpop.f32.mrf.mxu0
          %v5776 = vadd.f32 0.0, %v5775
          %v5777 = vpop.f32.mrf.mxu0
          %v5778 = vadd.f32 0.0, %v5777
          %v5779 = vpop.f32.mrf.mxu0
          %v5780 = vadd.f32 0.0, %v5779
          %v5781 = vpop.f32.mrf.mxu0
          %v5782 = vadd.f32 0.0, %v5781
          %5783 = vmatprep.mubr.bf16.mxu0 0
          %5784 = vmatmul.mubr.bf16.gmra.mxu0 %v1406
          %v5785 = vpop.f32.mrf.mxu0
          %v5786 = vadd.f32 0.0, %v5785
          %v5787 = vpop.f32.mrf.mxu0
          %v5788 = vadd.f32 0.0, %v5787
          %v5789 = vpop.f32.mrf.mxu0
          %v5790 = vadd.f32 0.0, %v5789
          %v5791 = vpop.f32.mrf.mxu0
          %v5792 = vadd.f32 0.0, %v5791
          %5793 = vdwg.mxu0
          %v5794 = vmul.f32 %v5716, %v1592
          %v5795 = vmul.f32 %v5718, %v1593
          %v5796 = vmul.f32 %v5720, %v1594
          %v5797 = vmul.f32 %v5722, %v1595
          %v5798 = vmul.f32 %v5726, %v1596
          %v5799 = vmul.f32 %v5728, %v1597
          %v5800 = vmul.f32 %v5730, %v1598
          %v5801 = vmul.f32 %v5732, %v1599
          %v5802 = vmul.f32 %v5736, %v1600
          %v5803 = vmul.f32 %v5738, %v1601
          %v5804 = vmul.f32 %v5740, %v1602
          %v5805 = vmul.f32 %v5742, %v1603
          %v5806 = vmul.f32 %v5746, %v1604
          %v5807 = vmul.f32 %v5748, %v1605
          %v5808 = vmul.f32 %v5750, %v1606
          %v5809 = vmul.f32 %v5752, %v1607
          %v5810 = vmul.f32 %v5756, %v1608
          %v5811 = vmul.f32 %v5758, %v1609
          %v5812 = vmul.f32 %v5760, %v1610
          %v5813 = vmul.f32 %v5762, %v1611
          %v5814 = vmul.f32 %v5766, %v1612
          %v5815 = vmul.f32 %v5768, %v1613
          %v5816 = vmul.f32 %v5770, %v1614
          %v5817 = vmul.f32 %v5772, %v1615
          %v5818 = vmul.f32 %v5776, %v1616
          %v5819 = vmul.f32 %v5778, %v1617
          %v5820 = vmul.f32 %v5780, %v1618
          %v5821 = vmul.f32 %v5782, %v1619
          %v5822 = vmul.f32 %v5786, %v1620
          %v5823 = vmul.f32 %v5788, %v1621
          %v5824 = vmul.f32 %v5790, %v1622
          %v5825 = vmul.f32 %v5792, %v1623
          %v5826 = vpack.c.bf16 %v5313, %v5311
          %v5827 = vpack.c.bf16 %v5314, %v5312
          %v5828 = vpack.c.bf16 %v5317, %v5315
          %v5829 = vpack.c.bf16 %v5318, %v5316
          %v5830 = vpack.c.bf16 %v5321, %v5319
          %v5831 = vpack.c.bf16 %v5322, %v5320
          %v5832 = vpack.c.bf16 %v5325, %v5323
          %v5833 = vpack.c.bf16 %v5326, %v5324
          %v5834 = vpack.c.bf16 %v5329, %v5327
          %v5835 = vpack.c.bf16 %v5330, %v5328
          %v5836 = vpack.c.bf16 %v5333, %v5331
          %v5837 = vpack.c.bf16 %v5334, %v5332
          %v5838 = vpack.c.bf16 %v5337, %v5335
          %v5839 = vpack.c.bf16 %v5338, %v5336
          %v5840 = vpack.c.bf16 %v5341, %v5339
          %v5841 = vpack.c.bf16 %v5342, %v5340
          %5842 = vmatprep.subr.bf16.mxu0 %v5841
          %5843 = vmatpush1.bf16.msra.mxu0 %v5840
          %5844 = vmatprep.subr.bf16.mxu0 %v5839
          %5845 = vmatpush1.bf16.msra.mxu0 %v5838
          %5846 = vmatprep.subr.bf16.mxu0 %v5837
          %5847 = vmatpush1.bf16.msra.mxu0 %v5836
          %5848 = vmatprep.subr.bf16.mxu0 %v5835
          %5849 = vmatpush1.bf16.msra.mxu0 %v5834
          %5850 = vmatprep.subr.bf16.mxu0 %v5833
          %5851 = vmatpush1.bf16.msra.mxu0 %v5832
          %5852 = vmatprep.subr.bf16.mxu0 %v5831
          %5853 = vmatpush1.bf16.msra.mxu0 %v5830
          %5854 = vmatprep.subr.bf16.mxu0 %v5829
          %5855 = vmatpush1.bf16.msra.mxu0 %v5828
          %5856 = vmatprep.subr.bf16.mxu0 %v5827
          %5857 = vmatpush1.bf16.msra.mxu0 %v5826
          %5858 = vmatprep.subr.bf16.mxu0 0
          %5859 = vmatpush2.bf16.msra.mxu0 0
          %5860 = vmatprep.subr.bf16.mxu0 0
          %5861 = vmatpush2.bf16.msra.mxu0 0
          %5862 = vmatprep.subr.bf16.mxu0 0
          %5863 = vmatpush2.bf16.msra.mxu0 0
          %5864 = vmatprep.subr.bf16.mxu0 0
          %5865 = vmatpush2.bf16.msra.mxu0 0
          %5866 = vmatprep.subr.bf16.mxu0 0
          %5867 = vmatpush2.bf16.msra.mxu0 0
          %5868 = vmatprep.subr.bf16.mxu0 0
          %5869 = vmatpush2.bf16.msra.mxu0 0
          %5870 = vmatprep.subr.bf16.mxu0 0
          %5871 = vmatpush2.bf16.msra.mxu0 0
          %5872 = vmatprep.subr.bf16.mxu0 0
          %5873 = vmatpush2.bf16.msra.mxu0 0
          %5874 = vmatprep.mubr.bf16.mxu0 0
          %5875 = vmatmul.mubr.bf16.gmra.mxu0 %v1399
          %v5876 = vpop.f32.mrf.mxu0
          %v5877 = vadd.f32 0.0, %v5876
          %v5878 = vpop.f32.mrf.mxu0
          %v5879 = vadd.f32 0.0, %v5878
          %v5880 = vpop.f32.mrf.mxu0
          %v5881 = vadd.f32 0.0, %v5880
          %v5882 = vpop.f32.mrf.mxu0
          %v5883 = vadd.f32 0.0, %v5882
          %5884 = vmatprep.mubr.bf16.mxu0 0
          %5885 = vmatmul.mubr.bf16.gmra.mxu0 %v1400
          %v5886 = vpop.f32.mrf.mxu0
          %v5887 = vadd.f32 0.0, %v5886
          %v5888 = vpop.f32.mrf.mxu0
          %v5889 = vadd.f32 0.0, %v5888
          %v5890 = vpop.f32.mrf.mxu0
          %v5891 = vadd.f32 0.0, %v5890
          %v5892 = vpop.f32.mrf.mxu0
          %v5893 = vadd.f32 0.0, %v5892
          %5894 = vmatprep.mubr.bf16.mxu0 0
          %5895 = vmatmul.mubr.bf16.gmra.mxu0 %v1401
          %v5896 = vpop.f32.mrf.mxu0
          %v5897 = vadd.f32 0.0, %v5896
          %v5898 = vpop.f32.mrf.mxu0
          %v5899 = vadd.f32 0.0, %v5898
          %v5900 = vpop.f32.mrf.mxu0
          %v5901 = vadd.f32 0.0, %v5900
          %v5902 = vpop.f32.mrf.mxu0
          %v5903 = vadd.f32 0.0, %v5902
          %5904 = vmatprep.mubr.bf16.mxu0 0
          %5905 = vmatmul.mubr.bf16.gmra.mxu0 %v1402
          %v5906 = vpop.f32.mrf.mxu0
          %v5907 = vadd.f32 0.0, %v5906
          %v5908 = vpop.f32.mrf.mxu0
          %v5909 = vadd.f32 0.0, %v5908
          %v5910 = vpop.f32.mrf.mxu0
          %v5911 = vadd.f32 0.0, %v5910
          %v5912 = vpop.f32.mrf.mxu0
          %v5913 = vadd.f32 0.0, %v5912
          %5914 = vmatprep.mubr.bf16.mxu0 0
          %5915 = vmatmul.mubr.bf16.gmra.mxu0 %v1403
          %v5916 = vpop.f32.mrf.mxu0
          %v5917 = vadd.f32 0.0, %v5916
          %v5918 = vpop.f32.mrf.mxu0
          %v5919 = vadd.f32 0.0, %v5918
          %v5920 = vpop.f32.mrf.mxu0
          %v5921 = vadd.f32 0.0, %v5920
          %v5922 = vpop.f32.mrf.mxu0
          %v5923 = vadd.f32 0.0, %v5922
          %5924 = vmatprep.mubr.bf16.mxu0 0
          %5925 = vmatmul.mubr.bf16.gmra.mxu0 %v1404
          %v5926 = vpop.f32.mrf.mxu0
          %v5927 = vadd.f32 0.0, %v5926
          %v5928 = vpop.f32.mrf.mxu0
          %v5929 = vadd.f32 0.0, %v5928
          %v5930 = vpop.f32.mrf.mxu0
          %v5931 = vadd.f32 0.0, %v5930
          %v5932 = vpop.f32.mrf.mxu0
          %v5933 = vadd.f32 0.0, %v5932
          %5934 = vmatprep.mubr.bf16.mxu0 0
          %5935 = vmatmul.mubr.bf16.gmra.mxu0 %v1405
          %v5936 = vpop.f32.mrf.mxu0
          %v5937 = vadd.f32 0.0, %v5936
          %v5938 = vpop.f32.mrf.mxu0
          %v5939 = vadd.f32 0.0, %v5938
          %v5940 = vpop.f32.mrf.mxu0
          %v5941 = vadd.f32 0.0, %v5940
          %v5942 = vpop.f32.mrf.mxu0
          %v5943 = vadd.f32 0.0, %v5942
          %5944 = vmatprep.mubr.bf16.mxu0 0
          %5945 = vmatmul.mubr.bf16.gmra.mxu0 %v1406
          %v5946 = vpop.f32.mrf.mxu0
          %v5947 = vadd.f32 0.0, %v5946
          %v5948 = vpop.f32.mrf.mxu0
          %v5949 = vadd.f32 0.0, %v5948
          %v5950 = vpop.f32.mrf.mxu0
          %v5951 = vadd.f32 0.0, %v5950
          %v5952 = vpop.f32.mrf.mxu0
          %v5953 = vadd.f32 0.0, %v5952
          %5954 = vdwg.mxu0
          %v5955 = vmul.f32 %v5877, %v1592
          %v5956 = vmul.f32 %v5879, %v1593
          %v5957 = vmul.f32 %v5881, %v1594
          %v5958 = vmul.f32 %v5883, %v1595
          %v5959 = vmul.f32 %v5887, %v1596
          %v5960 = vmul.f32 %v5889, %v1597
          %v5961 = vmul.f32 %v5891, %v1598
          %v5962 = vmul.f32 %v5893, %v1599
          %v5963 = vmul.f32 %v5897, %v1600
          %v5964 = vmul.f32 %v5899, %v1601
          %v5965 = vmul.f32 %v5901, %v1602
          %v5966 = vmul.f32 %v5903, %v1603
          %v5967 = vmul.f32 %v5907, %v1604
          %v5968 = vmul.f32 %v5909, %v1605
          %v5969 = vmul.f32 %v5911, %v1606
          %v5970 = vmul.f32 %v5913, %v1607
          %v5971 = vmul.f32 %v5917, %v1608
          %v5972 = vmul.f32 %v5919, %v1609
          %v5973 = vmul.f32 %v5921, %v1610
          %v5974 = vmul.f32 %v5923, %v1611
          %v5975 = vmul.f32 %v5927, %v1612
          %v5976 = vmul.f32 %v5929, %v1613
          %v5977 = vmul.f32 %v5931, %v1614
          %v5978 = vmul.f32 %v5933, %v1615
          %v5979 = vmul.f32 %v5937, %v1616
          %v5980 = vmul.f32 %v5939, %v1617
          %v5981 = vmul.f32 %v5941, %v1618
          %v5982 = vmul.f32 %v5943, %v1619
          %v5983 = vmul.f32 %v5947, %v1620
          %v5984 = vmul.f32 %v5949, %v1621
          %v5985 = vmul.f32 %v5951, %v1622
          %v5986 = vmul.f32 %v5953, %v1623
          %v5987 = vpack.c.bf16 %v5474, %v5472
          %v5988 = vpack.c.bf16 %v5475, %v5473
          %v5989 = vpack.c.bf16 %v5478, %v5476
          %v5990 = vpack.c.bf16 %v5479, %v5477
          %v5991 = vpack.c.bf16 %v5482, %v5480
          %v5992 = vpack.c.bf16 %v5483, %v5481
          %v5993 = vpack.c.bf16 %v5486, %v5484
          %v5994 = vpack.c.bf16 %v5487, %v5485
          %v5995 = vpack.c.bf16 %v5490, %v5488
          %v5996 = vpack.c.bf16 %v5491, %v5489
          %v5997 = vpack.c.bf16 %v5494, %v5492
          %v5998 = vpack.c.bf16 %v5495, %v5493
          %v5999 = vpack.c.bf16 %v5498, %v5496
          %v6000 = vpack.c.bf16 %v5499, %v5497
          %v6001 = vpack.c.bf16 %v5502, %v5500
          %v6002 = vpack.c.bf16 %v5503, %v5501
          %6003 = vmatprep.subr.bf16.mxu0 %v6002
          %6004 = vmatpush1.bf16.msra.mxu0 %v6001
          %6005 = vmatprep.subr.bf16.mxu0 %v6000
          %6006 = vmatpush1.bf16.msra.mxu0 %v5999
          %6007 = vmatprep.subr.bf16.mxu0 %v5998
          %6008 = vmatpush1.bf16.msra.mxu0 %v5997
          %6009 = vmatprep.subr.bf16.mxu0 %v5996
          %6010 = vmatpush1.bf16.msra.mxu0 %v5995
          %6011 = vmatprep.subr.bf16.mxu0 %v5994
          %6012 = vmatpush1.bf16.msra.mxu0 %v5993
          %6013 = vmatprep.subr.bf16.mxu0 %v5992
          %6014 = vmatpush1.bf16.msra.mxu0 %v5991
          %6015 = vmatprep.subr.bf16.mxu0 %v5990
          %6016 = vmatpush1.bf16.msra.mxu0 %v5989
          %6017 = vmatprep.subr.bf16.mxu0 %v5988
          %6018 = vmatpush1.bf16.msra.mxu0 %v5987
          %6019 = vmatprep.subr.bf16.mxu0 0
          %6020 = vmatpush2.bf16.msra.mxu0 0
          %6021 = vmatprep.subr.bf16.mxu0 0
          %6022 = vmatpush2.bf16.msra.mxu0 0
          %6023 = vmatprep.subr.bf16.mxu0 0
          %6024 = vmatpush2.bf16.msra.mxu0 0
          %6025 = vmatprep.subr.bf16.mxu0 0
          %6026 = vmatpush2.bf16.msra.mxu0 0
          %6027 = vmatprep.subr.bf16.mxu0 0
          %6028 = vmatpush2.bf16.msra.mxu0 0
          %6029 = vmatprep.subr.bf16.mxu0 0
          %6030 = vmatpush2.bf16.msra.mxu0 0
          %6031 = vmatprep.subr.bf16.mxu0 0
          %6032 = vmatpush2.bf16.msra.mxu0 0
          %6033 = vmatprep.subr.bf16.mxu0 0
          %6034 = vmatpush2.bf16.msra.mxu0 0
          %6035 = vmatprep.mubr.bf16.mxu0 0
          %6036 = vmatmul.mubr.bf16.gmra.mxu0 %v1399
          %v6037 = vpop.f32.mrf.mxu0
          %v6038 = vadd.f32 0.0, %v6037
          %v6039 = vpop.f32.mrf.mxu0
          %v6040 = vadd.f32 0.0, %v6039
          %v6041 = vpop.f32.mrf.mxu0
          %v6042 = vadd.f32 0.0, %v6041
          %v6043 = vpop.f32.mrf.mxu0
          %v6044 = vadd.f32 0.0, %v6043
          %6045 = vmatprep.mubr.bf16.mxu0 0
          %6046 = vmatmul.mubr.bf16.gmra.mxu0 %v1400
          %v6047 = vpop.f32.mrf.mxu0
          %v6048 = vadd.f32 0.0, %v6047
          %v6049 = vpop.f32.mrf.mxu0
          %v6050 = vadd.f32 0.0, %v6049
          %v6051 = vpop.f32.mrf.mxu0
          %v6052 = vadd.f32 0.0, %v6051
          %v6053 = vpop.f32.mrf.mxu0
          %v6054 = vadd.f32 0.0, %v6053
          %6055 = vmatprep.mubr.bf16.mxu0 0
          %6056 = vmatmul.mubr.bf16.gmra.mxu0 %v1401
          %v6057 = vpop.f32.mrf.mxu0
          %v6058 = vadd.f32 0.0, %v6057
          %v6059 = vpop.f32.mrf.mxu0
          %v6060 = vadd.f32 0.0, %v6059
          %v6061 = vpop.f32.mrf.mxu0
          %v6062 = vadd.f32 0.0, %v6061
          %v6063 = vpop.f32.mrf.mxu0
          %v6064 = vadd.f32 0.0, %v6063
          %6065 = vmatprep.mubr.bf16.mxu0 0
          %6066 = vmatmul.mubr.bf16.gmra.mxu0 %v1402
          %v6067 = vpop.f32.mrf.mxu0
          %v6068 = vadd.f32 0.0, %v6067
          %v6069 = vpop.f32.mrf.mxu0
          %v6070 = vadd.f32 0.0, %v6069
          %v6071 = vpop.f32.mrf.mxu0
          %v6072 = vadd.f32 0.0, %v6071
          %v6073 = vpop.f32.mrf.mxu0
          %v6074 = vadd.f32 0.0, %v6073
          %6075 = vmatprep.mubr.bf16.mxu0 0
          %6076 = vmatmul.mubr.bf16.gmra.mxu0 %v1403
          %v6077 = vpop.f32.mrf.mxu0
          %v6078 = vadd.f32 0.0, %v6077
          %v6079 = vpop.f32.mrf.mxu0
          %v6080 = vadd.f32 0.0, %v6079
          %v6081 = vpop.f32.mrf.mxu0
          %v6082 = vadd.f32 0.0, %v6081
          %v6083 = vpop.f32.mrf.mxu0
          %v6084 = vadd.f32 0.0, %v6083
          %6085 = vmatprep.mubr.bf16.mxu0 0
          %6086 = vmatmul.mubr.bf16.gmra.mxu0 %v1404
          %v6087 = vpop.f32.mrf.mxu0
          %v6088 = vadd.f32 0.0, %v6087
          %v6089 = vpop.f32.mrf.mxu0
          %v6090 = vadd.f32 0.0, %v6089
          %v6091 = vpop.f32.mrf.mxu0
          %v6092 = vadd.f32 0.0, %v6091
          %v6093 = vpop.f32.mrf.mxu0
          %v6094 = vadd.f32 0.0, %v6093
          %6095 = vmatprep.mubr.bf16.mxu0 0
          %6096 = vmatmul.mubr.bf16.gmra.mxu0 %v1405
          %v6097 = vpop.f32.mrf.mxu0
          %v6098 = vadd.f32 0.0, %v6097
          %v6099 = vpop.f32.mrf.mxu0
          %v6100 = vadd.f32 0.0, %v6099
          %v6101 = vpop.f32.mrf.mxu0
          %v6102 = vadd.f32 0.0, %v6101
          %v6103 = vpop.f32.mrf.mxu0
          %v6104 = vadd.f32 0.0, %v6103
          %6105 = vmatprep.mubr.bf16.mxu0 0
          %6106 = vmatmul.mubr.bf16.gmra.mxu0 %v1406
          %v6107 = vpop.f32.mrf.mxu0
          %v6108 = vadd.f32 0.0, %v6107
          %v6109 = vpop.f32.mrf.mxu0
          %v6110 = vadd.f32 0.0, %v6109
          %v6111 = vpop.f32.mrf.mxu0
          %v6112 = vadd.f32 0.0, %v6111
          %v6113 = vpop.f32.mrf.mxu0
          %v6114 = vadd.f32 0.0, %v6113
          %6115 = vdwg.mxu0
          %v6116 = vmul.f32 %v6038, %v1592
          %v6117 = vmul.f32 %v6040, %v1593
          %v6118 = vmul.f32 %v6042, %v1594
          %v6119 = vmul.f32 %v6044, %v1595
          %v6120 = vmul.f32 %v6048, %v1596
          %v6121 = vmul.f32 %v6050, %v1597
          %v6122 = vmul.f32 %v6052, %v1598
          %v6123 = vmul.f32 %v6054, %v1599
          %v6124 = vmul.f32 %v6058, %v1600
          %v6125 = vmul.f32 %v6060, %v1601
          %v6126 = vmul.f32 %v6062, %v1602
          %v6127 = vmul.f32 %v6064, %v1603
          %v6128 = vmul.f32 %v6068, %v1604
          %v6129 = vmul.f32 %v6070, %v1605
          %v6130 = vmul.f32 %v6072, %v1606
          %v6131 = vmul.f32 %v6074, %v1607
          %v6132 = vmul.f32 %v6078, %v1608
          %v6133 = vmul.f32 %v6080, %v1609
          %v6134 = vmul.f32 %v6082, %v1610
          %v6135 = vmul.f32 %v6084, %v1611
          %v6136 = vmul.f32 %v6088, %v1612
          %v6137 = vmul.f32 %v6090, %v1613
          %v6138 = vmul.f32 %v6092, %v1614
          %v6139 = vmul.f32 %v6094, %v1615
          %v6140 = vmul.f32 %v6098, %v1616
          %v6141 = vmul.f32 %v6100, %v1617
          %v6142 = vmul.f32 %v6102, %v1618
          %v6143 = vmul.f32 %v6104, %v1619
          %v6144 = vmul.f32 %v6108, %v1620
          %v6145 = vmul.f32 %v6110, %v1621
          %v6146 = vmul.f32 %v6112, %v1622
          %v6147 = vmul.f32 %v6114, %v1623
          %v6148 = vpack.c.bf16 %v5635, %v5633
          %v6149 = vpack.c.bf16 %v5636, %v5634
          %v6150 = vpack.c.bf16 %v5639, %v5637
          %v6151 = vpack.c.bf16 %v5640, %v5638
          %v6152 = vpack.c.bf16 %v5643, %v5641
          %v6153 = vpack.c.bf16 %v5644, %v5642
          %v6154 = vpack.c.bf16 %v5647, %v5645
          %v6155 = vpack.c.bf16 %v5648, %v5646
          %v6156 = vpack.c.bf16 %v5651, %v5649
          %v6157 = vpack.c.bf16 %v5652, %v5650
          %v6158 = vpack.c.bf16 %v5655, %v5653
          %v6159 = vpack.c.bf16 %v5656, %v5654
          %v6160 = vpack.c.bf16 %v5659, %v5657
          %v6161 = vpack.c.bf16 %v5660, %v5658
          %v6162 = vpack.c.bf16 %v5663, %v5661
          %v6163 = vpack.c.bf16 %v5664, %v5662
          %6164 = vmatprep.subr.bf16.mxu0 %v6163
          %6165 = vmatpush1.bf16.msra.mxu0 %v6162
          %6166 = vmatprep.subr.bf16.mxu0 %v6161
          %6167 = vmatpush1.bf16.msra.mxu0 %v6160
          %6168 = vmatprep.subr.bf16.mxu0 %v6159
          %6169 = vmatpush1.bf16.msra.mxu0 %v6158
          %6170 = vmatprep.subr.bf16.mxu0 %v6157
          %6171 = vmatpush1.bf16.msra.mxu0 %v6156
          %6172 = vmatprep.subr.bf16.mxu0 %v6155
          %6173 = vmatpush1.bf16.msra.mxu0 %v6154
          %6174 = vmatprep.subr.bf16.mxu0 %v6153
          %6175 = vmatpush1.bf16.msra.mxu0 %v6152
          %6176 = vmatprep.subr.bf16.mxu0 %v6151
          %6177 = vmatpush1.bf16.msra.mxu0 %v6150
          %6178 = vmatprep.subr.bf16.mxu0 %v6149
          %6179 = vmatpush1.bf16.msra.mxu0 %v6148
          %6180 = vmatprep.subr.bf16.mxu0 0
          %6181 = vmatpush2.bf16.msra.mxu0 0
          %6182 = vmatprep.subr.bf16.mxu0 0
          %6183 = vmatpush2.bf16.msra.mxu0 0
          %6184 = vmatprep.subr.bf16.mxu0 0
          %6185 = vmatpush2.bf16.msra.mxu0 0
          %6186 = vmatprep.subr.bf16.mxu0 0
          %6187 = vmatpush2.bf16.msra.mxu0 0
          %6188 = vmatprep.subr.bf16.mxu0 0
          %6189 = vmatpush2.bf16.msra.mxu0 0
          %6190 = vmatprep.subr.bf16.mxu0 0
          %6191 = vmatpush2.bf16.msra.mxu0 0
          %6192 = vmatprep.subr.bf16.mxu0 0
          %6193 = vmatpush2.bf16.msra.mxu0 0
          %6194 = vmatprep.subr.bf16.mxu0 0
          %6195 = vmatpush2.bf16.msra.mxu0 0
          %6196 = vmatprep.mubr.bf16.mxu0 0
          %6197 = vmatmul.mubr.bf16.gmra.mxu0 %v1399
          %v6198 = vpop.f32.mrf.mxu0
          %v6199 = vadd.f32 0.0, %v6198
          %v6200 = vpop.f32.mrf.mxu0
          %v6201 = vadd.f32 0.0, %v6200
          %v6202 = vpop.f32.mrf.mxu0
          %v6203 = vadd.f32 0.0, %v6202
          %v6204 = vpop.f32.mrf.mxu0
          %v6205 = vadd.f32 0.0, %v6204
          %6206 = vmatprep.mubr.bf16.mxu0 0
          %6207 = vmatmul.mubr.bf16.gmra.mxu0 %v1400
          %v6208 = vpop.f32.mrf.mxu0
          %v6209 = vadd.f32 0.0, %v6208
          %v6210 = vpop.f32.mrf.mxu0
          %v6211 = vadd.f32 0.0, %v6210
          %v6212 = vpop.f32.mrf.mxu0
          %v6213 = vadd.f32 0.0, %v6212
          %v6214 = vpop.f32.mrf.mxu0
          %v6215 = vadd.f32 0.0, %v6214
          %6216 = vmatprep.mubr.bf16.mxu0 0
          %6217 = vmatmul.mubr.bf16.gmra.mxu0 %v1401
          %v6218 = vpop.f32.mrf.mxu0
          %v6219 = vadd.f32 0.0, %v6218
          %v6220 = vpop.f32.mrf.mxu0
          %v6221 = vadd.f32 0.0, %v6220
          %v6222 = vpop.f32.mrf.mxu0
          %v6223 = vadd.f32 0.0, %v6222
          %v6224 = vpop.f32.mrf.mxu0
          %v6225 = vadd.f32 0.0, %v6224
          %6226 = vmatprep.mubr.bf16.mxu0 0
          %6227 = vmatmul.mubr.bf16.gmra.mxu0 %v1402
          %v6228 = vpop.f32.mrf.mxu0
          %v6229 = vadd.f32 0.0, %v6228
          %v6230 = vpop.f32.mrf.mxu0
          %v6231 = vadd.f32 0.0, %v6230
          %v6232 = vpop.f32.mrf.mxu0
          %v6233 = vadd.f32 0.0, %v6232
          %v6234 = vpop.f32.mrf.mxu0
          %v6235 = vadd.f32 0.0, %v6234
          %6236 = vmatprep.mubr.bf16.mxu0 0
          %6237 = vmatmul.mubr.bf16.gmra.mxu0 %v1403
          %v6238 = vpop.f32.mrf.mxu0
          %v6239 = vadd.f32 0.0, %v6238
          %v6240 = vpop.f32.mrf.mxu0
          %v6241 = vadd.f32 0.0, %v6240
          %v6242 = vpop.f32.mrf.mxu0
          %v6243 = vadd.f32 0.0, %v6242
          %v6244 = vpop.f32.mrf.mxu0
          %v6245 = vadd.f32 0.0, %v6244
          %6246 = vmatprep.mubr.bf16.mxu0 0
          %6247 = vmatmul.mubr.bf16.gmra.mxu0 %v1404
          %v6248 = vpop.f32.mrf.mxu0
          %v6249 = vadd.f32 0.0, %v6248
          %v6250 = vpop.f32.mrf.mxu0
          %v6251 = vadd.f32 0.0, %v6250
          %v6252 = vpop.f32.mrf.mxu0
          %v6253 = vadd.f32 0.0, %v6252
          %v6254 = vpop.f32.mrf.mxu0
          %v6255 = vadd.f32 0.0, %v6254
          %6256 = vmatprep.mubr.bf16.mxu0 0
          %6257 = vmatmul.mubr.bf16.gmra.mxu0 %v1405
          %v6258 = vpop.f32.mrf.mxu0
          %v6259 = vadd.f32 0.0, %v6258
          %v6260 = vpop.f32.mrf.mxu0
          %v6261 = vadd.f32 0.0, %v6260
          %v6262 = vpop.f32.mrf.mxu0
          %v6263 = vadd.f32 0.0, %v6262
          %v6264 = vpop.f32.mrf.mxu0
          %v6265 = vadd.f32 0.0, %v6264
          %6266 = vmatprep.mubr.bf16.mxu0 0
          %6267 = vmatmul.mubr.bf16.gmra.mxu0 %v1406
          %v6268 = vpop.f32.mrf.mxu0
          %v6269 = vadd.f32 0.0, %v6268
          %v6270 = vpop.f32.mrf.mxu0
          %v6271 = vadd.f32 0.0, %v6270
          %v6272 = vpop.f32.mrf.mxu0
          %v6273 = vadd.f32 0.0, %v6272
          %v6274 = vpop.f32.mrf.mxu0
          %v6275 = vadd.f32 0.0, %v6274
          %6276 = vdwg.mxu0
          %v6277 = vmul.f32 %v6199, %v1592
          %v6278 = vmul.f32 %v6201, %v1593
          %v6279 = vmul.f32 %v6203, %v1594
          %v6280 = vmul.f32 %v6205, %v1595
          %v6281 = vmul.f32 %v6209, %v1596
          %v6282 = vmul.f32 %v6211, %v1597
          %v6283 = vmul.f32 %v6213, %v1598
          %v6284 = vmul.f32 %v6215, %v1599
          %v6285 = vmul.f32 %v6219, %v1600
          %v6286 = vmul.f32 %v6221, %v1601
          %v6287 = vmul.f32 %v6223, %v1602
          %v6288 = vmul.f32 %v6225, %v1603
          %v6289 = vmul.f32 %v6229, %v1604
          %v6290 = vmul.f32 %v6231, %v1605
          %v6291 = vmul.f32 %v6233, %v1606
          %v6292 = vmul.f32 %v6235, %v1607
          %v6293 = vmul.f32 %v6239, %v1608
          %v6294 = vmul.f32 %v6241, %v1609
          %v6295 = vmul.f32 %v6243, %v1610
          %v6296 = vmul.f32 %v6245, %v1611
          %v6297 = vmul.f32 %v6249, %v1612
          %v6298 = vmul.f32 %v6251, %v1613
          %v6299 = vmul.f32 %v6253, %v1614
          %v6300 = vmul.f32 %v6255, %v1615
          %v6301 = vmul.f32 %v6259, %v1616
          %v6302 = vmul.f32 %v6261, %v1617
          %v6303 = vmul.f32 %v6263, %v1618
          %v6304 = vmul.f32 %v6265, %v1619
          %v6305 = vmul.f32 %v6269, %v1620
          %v6306 = vmul.f32 %v6271, %v1621
          %v6307 = vmul.f32 %v6273, %v1622
          %v6308 = vmul.f32 %v6275, %v1623
          %v6309 = vadd.f32 %v5794, %v5795
          %6310 = vadd.xlane.f32.xlu0 %v6309
          %v6311 = vpop.xlane.xlu0 %6310
          %v6312 = vadd.f32 %v5796, %v5797
          %6313 = vadd.xlane.f32.xlu0 %v6312
          %v6314 = vpop.xlane.xlu0 %6313
          %v6315 = vadd.f32 %v5798, %v5799
          %6316 = vadd.xlane.f32.xlu0 %v6315
          %v6317 = vpop.xlane.xlu0 %6316
          %v6318 = vadd.f32 %v5800, %v5801
          %6319 = vadd.xlane.f32.xlu0 %v6318
          %v6320 = vpop.xlane.xlu0 %6319
          %v6321 = vadd.f32 %v5802, %v5803
          %6322 = vadd.xlane.f32.xlu0 %v6321
          %v6323 = vpop.xlane.xlu0 %6322
          %v6324 = vadd.f32 %v5804, %v5805
          %6325 = vadd.xlane.f32.xlu0 %v6324
          %v6326 = vpop.xlane.xlu0 %6325
          %v6327 = vadd.f32 %v5806, %v5807
          %6328 = vadd.xlane.f32.xlu0 %v6327
          %v6329 = vpop.xlane.xlu0 %6328
          %v6330 = vadd.f32 %v5808, %v5809
          %6331 = vadd.xlane.f32.xlu0 %v6330
          %v6332 = vpop.xlane.xlu0 %6331
          %v6333 = vadd.f32 %v5810, %v5811
          %6334 = vadd.xlane.f32.xlu0 %v6333
          %v6335 = vpop.xlane.xlu0 %6334
          %v6336 = vadd.f32 %v5812, %v5813
          %6337 = vadd.xlane.f32.xlu0 %v6336
          %v6338 = vpop.xlane.xlu0 %6337
          %v6339 = vadd.f32 %v5814, %v5815
          %6340 = vadd.xlane.f32.xlu0 %v6339
          %v6341 = vpop.xlane.xlu0 %6340
          %v6342 = vadd.f32 %v5816, %v5817
          %6343 = vadd.xlane.f32.xlu0 %v6342
          %v6344 = vpop.xlane.xlu0 %6343
          %v6345 = vadd.f32 %v5818, %v5819
          %6346 = vadd.xlane.f32.xlu0 %v6345
          %v6347 = vpop.xlane.xlu0 %6346
          %v6348 = vadd.f32 %v5820, %v5821
          %6349 = vadd.xlane.f32.xlu0 %v6348
          %v6350 = vpop.xlane.xlu0 %6349
          %v6351 = vadd.f32 %v5822, %v5823
          %6352 = vadd.xlane.f32.xlu0 %v6351
          %v6353 = vpop.xlane.xlu0 %6352
          %v6354 = vadd.f32 %v5824, %v5825
          %6355 = vadd.xlane.f32.xlu0 %v6354
          %v6356 = vpop.xlane.xlu0 %6355
          %v6357 = vmul.f32 %v460, %v6311
          %v6358 = vmul.f32 %v461, %v6314
          %v6359 = vmul.f32 %v462, %v6317
          %v6360 = vmul.f32 %v463, %v6320
          %v6361 = vmul.f32 %v464, %v6323
          %v6362 = vmul.f32 %v465, %v6326
          %v6363 = vmul.f32 %v466, %v6329
          %v6364 = vmul.f32 %v467, %v6332
          %v6365 = vmul.f32 %v468, %v6335
          %v6366 = vmul.f32 %v469, %v6338
          %v6367 = vmul.f32 %v470, %v6341
          %v6368 = vmul.f32 %v471, %v6344
          %v6369 = vmul.f32 %v472, %v6347
          %v6370 = vmul.f32 %v473, %v6350
          %v6371 = vmul.f32 %v474, %v6353
          %v6372 = vmul.f32 %v475, %v6356
          %v6373 = vsel %vm2522, %v6357, 0.0
          %v6374 = vsel %vm2522, %v6358, 0.0
          %v6375 = vadd.f32 %v6373, %v6374
          %v6376 = vsel %vm2522, %v6359, 0.0
          %v6377 = vadd.f32 %v6375, %v6376
          %v6378 = vsel %vm2522, %v6360, 0.0
          %v6379 = vadd.f32 %v6377, %v6378
          %v6380 = vsel %vm2522, %v6361, 0.0
          %v6381 = vadd.f32 %v6379, %v6380
          %v6382 = vsel %vm2522, %v6362, 0.0
          %v6383 = vadd.f32 %v6381, %v6382
          %v6384 = vsel %vm2522, %v6363, 0.0
          %v6385 = vadd.f32 %v6383, %v6384
          %v6386 = vsel %vm2522, %v6364, 0.0
          %v6387 = vadd.f32 %v6385, %v6386
          %v6388 = vsel %vm2522, %v6365, 0.0
          %v6389 = vadd.f32 %v6387, %v6388
          %v6390 = vsel %vm2522, %v6366, 0.0
          %v6391 = vadd.f32 %v6389, %v6390
          %v6392 = vsel %vm2522, %v6367, 0.0
          %v6393 = vadd.f32 %v6391, %v6392
          %v6394 = vsel %vm2522, %v6368, 0.0
          %v6395 = vadd.f32 %v6393, %v6394
          %v6396 = vsel %vm2522, %v6369, 0.0
          %v6397 = vadd.f32 %v6395, %v6396
          %v6398 = vsel %vm2522, %v6370, 0.0
          %v6399 = vadd.f32 %v6397, %v6398
          %v6400 = vsel %vm2522, %v6371, 0.0
          %v6401 = vadd.f32 %v6399, %v6400
          %v6402 = vsel %vm2522, %v6372, 0.0
          %v6403 = vadd.f32 %v6401, %v6402
          %6404 = vadd.xlane.f32.xlu0 %v6403
          %v6405 = vpop.xlane.xlu0 %6404
          %v6406 = vrot.slane %v6405, 4
          %v6407 = vadd.f32 %v6405, %v6406
          %v6408 = vrot.slane %v6407, 2
          %v6409 = vadd.f32 %v6407, %v6408
          %v6410 = vrot.slane %v6409, 1
          %v6411 = vadd.f32 %v6409, %v6410
          %s6412 = vtos %v6411
          %s6413 = sadd.f32 %s6412, 0.0
          %v6414 = vadd.f32 %v5955, %v5956
          %6415 = vadd.xlane.f32.xlu0 %v6414
          %v6416 = vpop.xlane.xlu0 %6415
          %v6417 = vadd.f32 %v5957, %v5958
          %6418 = vadd.xlane.f32.xlu0 %v6417
          %v6419 = vpop.xlane.xlu0 %6418
          %v6420 = vadd.f32 %v5959, %v5960
          %6421 = vadd.xlane.f32.xlu0 %v6420
          %v6422 = vpop.xlane.xlu0 %6421
          %v6423 = vadd.f32 %v5961, %v5962
          %6424 = vadd.xlane.f32.xlu0 %v6423
          %v6425 = vpop.xlane.xlu0 %6424
          %v6426 = vadd.f32 %v5963, %v5964
          %6427 = vadd.xlane.f32.xlu0 %v6426
          %v6428 = vpop.xlane.xlu0 %6427
          %v6429 = vadd.f32 %v5965, %v5966
          %6430 = vadd.xlane.f32.xlu0 %v6429
          %v6431 = vpop.xlane.xlu0 %6430
          %v6432 = vadd.f32 %v5967, %v5968
          %6433 = vadd.xlane.f32.xlu0 %v6432
          %v6434 = vpop.xlane.xlu0 %6433
          %v6435 = vadd.f32 %v5969, %v5970
          %6436 = vadd.xlane.f32.xlu0 %v6435
          %v6437 = vpop.xlane.xlu0 %6436
          %v6438 = vadd.f32 %v5971, %v5972
          %6439 = vadd.xlane.f32.xlu0 %v6438
          %v6440 = vpop.xlane.xlu0 %6439
          %v6441 = vadd.f32 %v5973, %v5974
          %6442 = vadd.xlane.f32.xlu0 %v6441
          %v6443 = vpop.xlane.xlu0 %6442
          %v6444 = vadd.f32 %v5975, %v5976
          %6445 = vadd.xlane.f32.xlu0 %v6444
          %v6446 = vpop.xlane.xlu0 %6445
          %v6447 = vadd.f32 %v5977, %v5978
          %6448 = vadd.xlane.f32.xlu0 %v6447
          %v6449 = vpop.xlane.xlu0 %6448
          %v6450 = vadd.f32 %v5979, %v5980
          %6451 = vadd.xlane.f32.xlu0 %v6450
          %v6452 = vpop.xlane.xlu0 %6451
          %v6453 = vadd.f32 %v5981, %v5982
          %6454 = vadd.xlane.f32.xlu0 %v6453
          %v6455 = vpop.xlane.xlu0 %6454
          %v6456 = vadd.f32 %v5983, %v5984
          %6457 = vadd.xlane.f32.xlu0 %v6456
          %v6458 = vpop.xlane.xlu0 %6457
          %v6459 = vadd.f32 %v5985, %v5986
          %6460 = vadd.xlane.f32.xlu0 %v6459
          %v6461 = vpop.xlane.xlu0 %6460
          %v6462 = vmul.f32 %v460, %v6416
          %v6463 = vmul.f32 %v461, %v6419
          %v6464 = vmul.f32 %v462, %v6422
          %v6465 = vmul.f32 %v463, %v6425
          %v6466 = vmul.f32 %v464, %v6428
          %v6467 = vmul.f32 %v465, %v6431
          %v6468 = vmul.f32 %v466, %v6434
          %v6469 = vmul.f32 %v467, %v6437
          %v6470 = vmul.f32 %v468, %v6440
          %v6471 = vmul.f32 %v469, %v6443
          %v6472 = vmul.f32 %v470, %v6446
          %v6473 = vmul.f32 %v471, %v6449
          %v6474 = vmul.f32 %v472, %v6452
          %v6475 = vmul.f32 %v473, %v6455
          %v6476 = vmul.f32 %v474, %v6458
          %v6477 = vmul.f32 %v475, %v6461
          %6494 = vrot.lane.b32.xlu0 %v6462, 127
          %v6495 = vpop.permute.xlu0 %6494
          %6496 = vrot.lane.b32.xlu0 %v6463, 127
          %v6497 = vpop.permute.xlu0 %6496
          %6498 = vrot.lane.b32.xlu0 %v6464, 127
          %v6499 = vpop.permute.xlu0 %6498
          %6500 = vrot.lane.b32.xlu0 %v6465, 127
          %v6501 = vpop.permute.xlu0 %6500
          %6502 = vrot.lane.b32.xlu0 %v6466, 127
          %v6503 = vpop.permute.xlu0 %6502
          %6504 = vrot.lane.b32.xlu0 %v6467, 127
          %v6505 = vpop.permute.xlu0 %6504
          %6506 = vrot.lane.b32.xlu0 %v6468, 127
          %v6507 = vpop.permute.xlu0 %6506
          %6508 = vrot.lane.b32.xlu0 %v6469, 127
          %v6509 = vpop.permute.xlu0 %6508
          %6510 = vrot.lane.b32.xlu0 %v6470, 127
          %v6511 = vpop.permute.xlu0 %6510
          %6512 = vrot.lane.b32.xlu0 %v6471, 127
          %v6513 = vpop.permute.xlu0 %6512
          %6514 = vrot.lane.b32.xlu0 %v6472, 127
          %v6515 = vpop.permute.xlu0 %6514
          %6516 = vrot.lane.b32.xlu0 %v6473, 127
          %v6517 = vpop.permute.xlu0 %6516
          %6518 = vrot.lane.b32.xlu0 %v6474, 127
          %v6519 = vpop.permute.xlu0 %6518
          %6520 = vrot.lane.b32.xlu0 %v6475, 127
          %v6521 = vpop.permute.xlu0 %6520
          %6522 = vrot.lane.b32.xlu0 %v6476, 127
          %v6523 = vpop.permute.xlu0 %6522
          %6524 = vrot.lane.b32.xlu0 %v6477, 127
          %v6525 = vpop.permute.xlu0 %6524
          %v6542 = vsel %vm2522, %v6495, 0.0
          %v6543 = vsel %vm2522, %v6497, 0.0
          %v6544 = vadd.f32 %v6542, %v6543
          %v6545 = vsel %vm2522, %v6499, 0.0
          %v6546 = vadd.f32 %v6544, %v6545
          %v6547 = vsel %vm2522, %v6501, 0.0
          %v6548 = vadd.f32 %v6546, %v6547
          %v6549 = vsel %vm2522, %v6503, 0.0
          %v6550 = vadd.f32 %v6548, %v6549
          %v6551 = vsel %vm2522, %v6505, 0.0
          %v6552 = vadd.f32 %v6550, %v6551
          %v6553 = vsel %vm2522, %v6507, 0.0
          %v6554 = vadd.f32 %v6552, %v6553
          %v6555 = vsel %vm2522, %v6509, 0.0
          %v6556 = vadd.f32 %v6554, %v6555
          %v6557 = vsel %vm2522, %v6511, 0.0
          %v6558 = vadd.f32 %v6556, %v6557
          %v6559 = vsel %vm2522, %v6513, 0.0
          %v6560 = vadd.f32 %v6558, %v6559
          %v6561 = vsel %vm2522, %v6515, 0.0
          %v6562 = vadd.f32 %v6560, %v6561
          %v6563 = vsel %vm2522, %v6517, 0.0
          %v6564 = vadd.f32 %v6562, %v6563
          %v6565 = vsel %vm2522, %v6519, 0.0
          %v6566 = vadd.f32 %v6564, %v6565
          %v6567 = vsel %vm2522, %v6521, 0.0
          %v6568 = vadd.f32 %v6566, %v6567
          %v6569 = vsel %vm2522, %v6523, 0.0
          %v6570 = vadd.f32 %v6568, %v6569
          %v6571 = vsel %vm2522, %v6525, 0.0
          %v6572 = vadd.f32 %v6570, %v6571
          %6573 = vadd.xlane.f32.xlu0 %v6572
          %v6574 = vpop.xlane.xlu0 %6573
          %v6575 = vrot.slane %v6574, 4
          %v6576 = vadd.f32 %v6574, %v6575
          %v6577 = vrot.slane %v6576, 2
          %v6578 = vadd.f32 %v6576, %v6577
          %v6579 = vrot.slane %v6578, 1
          %v6580 = vadd.f32 %v6578, %v6579
          %s6581 = vtos %v6580
          %s6582 = sadd.f32 %s6413, %s6581
          %v6583 = vadd.f32 %v6116, %v6117
          %6584 = vadd.xlane.f32.xlu0 %v6583
          %v6585 = vpop.xlane.xlu0 %6584
          %v6586 = vadd.f32 %v6118, %v6119
          %6587 = vadd.xlane.f32.xlu0 %v6586
          %v6588 = vpop.xlane.xlu0 %6587
          %v6589 = vadd.f32 %v6120, %v6121
          %6590 = vadd.xlane.f32.xlu0 %v6589
          %v6591 = vpop.xlane.xlu0 %6590
          %v6592 = vadd.f32 %v6122, %v6123
          %6593 = vadd.xlane.f32.xlu0 %v6592
          %v6594 = vpop.xlane.xlu0 %6593
          %v6595 = vadd.f32 %v6124, %v6125
          %6596 = vadd.xlane.f32.xlu0 %v6595
          %v6597 = vpop.xlane.xlu0 %6596
          %v6598 = vadd.f32 %v6126, %v6127
          %6599 = vadd.xlane.f32.xlu0 %v6598
          %v6600 = vpop.xlane.xlu0 %6599
          %v6601 = vadd.f32 %v6128, %v6129
          %6602 = vadd.xlane.f32.xlu0 %v6601
          %v6603 = vpop.xlane.xlu0 %6602
          %v6604 = vadd.f32 %v6130, %v6131
          %6605 = vadd.xlane.f32.xlu0 %v6604
          %v6606 = vpop.xlane.xlu0 %6605
          %v6607 = vadd.f32 %v6132, %v6133
          %6608 = vadd.xlane.f32.xlu0 %v6607
          %v6609 = vpop.xlane.xlu0 %6608
          %v6610 = vadd.f32 %v6134, %v6135
          %6611 = vadd.xlane.f32.xlu0 %v6610
          %v6612 = vpop.xlane.xlu0 %6611
          %v6613 = vadd.f32 %v6136, %v6137
          %6614 = vadd.xlane.f32.xlu0 %v6613
          %v6615 = vpop.xlane.xlu0 %6614
          %v6616 = vadd.f32 %v6138, %v6139
          %6617 = vadd.xlane.f32.xlu0 %v6616
          %v6618 = vpop.xlane.xlu0 %6617
          %v6619 = vadd.f32 %v6140, %v6141
          %6620 = vadd.xlane.f32.xlu0 %v6619
          %v6621 = vpop.xlane.xlu0 %6620
          %v6622 = vadd.f32 %v6142, %v6143
          %6623 = vadd.xlane.f32.xlu0 %v6622
          %v6624 = vpop.xlane.xlu0 %6623
          %v6625 = vadd.f32 %v6144, %v6145
          %6626 = vadd.xlane.f32.xlu0 %v6625
          %v6627 = vpop.xlane.xlu0 %6626
          %v6628 = vadd.f32 %v6146, %v6147
          %6629 = vadd.xlane.f32.xlu0 %v6628
          %v6630 = vpop.xlane.xlu0 %6629
          %v6631 = vmul.f32 %v460, %v6585
          %v6632 = vmul.f32 %v461, %v6588
          %v6633 = vmul.f32 %v462, %v6591
          %v6634 = vmul.f32 %v463, %v6594
          %v6635 = vmul.f32 %v464, %v6597
          %v6636 = vmul.f32 %v465, %v6600
          %v6637 = vmul.f32 %v466, %v6603
          %v6638 = vmul.f32 %v467, %v6606
          %v6639 = vmul.f32 %v468, %v6609
          %v6640 = vmul.f32 %v469, %v6612
          %v6641 = vmul.f32 %v470, %v6615
          %v6642 = vmul.f32 %v471, %v6618
          %v6643 = vmul.f32 %v472, %v6621
          %v6644 = vmul.f32 %v473, %v6624
          %v6645 = vmul.f32 %v474, %v6627
          %v6646 = vmul.f32 %v475, %v6630
          %6663 = vrot.lane.b32.xlu0 %v6631, 126
          %v6664 = vpop.permute.xlu0 %6663
          %6665 = vrot.lane.b32.xlu0 %v6632, 126
          %v6666 = vpop.permute.xlu0 %6665
          %6667 = vrot.lane.b32.xlu0 %v6633, 126
          %v6668 = vpop.permute.xlu0 %6667
          %6669 = vrot.lane.b32.xlu0 %v6634, 126
          %v6670 = vpop.permute.xlu0 %6669
          %6671 = vrot.lane.b32.xlu0 %v6635, 126
          %v6672 = vpop.permute.xlu0 %6671
          %6673 = vrot.lane.b32.xlu0 %v6636, 126
          %v6674 = vpop.permute.xlu0 %6673
          %6675 = vrot.lane.b32.xlu0 %v6637, 126
          %v6676 = vpop.permute.xlu0 %6675
          %6677 = vrot.lane.b32.xlu0 %v6638, 126
          %v6678 = vpop.permute.xlu0 %6677
          %6679 = vrot.lane.b32.xlu0 %v6639, 126
          %v6680 = vpop.permute.xlu0 %6679
          %6681 = vrot.lane.b32.xlu0 %v6640, 126
          %v6682 = vpop.permute.xlu0 %6681
          %6683 = vrot.lane.b32.xlu0 %v6641, 126
          %v6684 = vpop.permute.xlu0 %6683
          %6685 = vrot.lane.b32.xlu0 %v6642, 126
          %v6686 = vpop.permute.xlu0 %6685
          %6687 = vrot.lane.b32.xlu0 %v6643, 126
          %v6688 = vpop.permute.xlu0 %6687
          %6689 = vrot.lane.b32.xlu0 %v6644, 126
          %v6690 = vpop.permute.xlu0 %6689
          %6691 = vrot.lane.b32.xlu0 %v6645, 126
          %v6692 = vpop.permute.xlu0 %6691
          %6693 = vrot.lane.b32.xlu0 %v6646, 126
          %v6694 = vpop.permute.xlu0 %6693
          %v6711 = vsel %vm2522, %v6664, 0.0
          %v6712 = vsel %vm2522, %v6666, 0.0
          %v6713 = vadd.f32 %v6711, %v6712
          %v6714 = vsel %vm2522, %v6668, 0.0
          %v6715 = vadd.f32 %v6713, %v6714
          %v6716 = vsel %vm2522, %v6670, 0.0
          %v6717 = vadd.f32 %v6715, %v6716
          %v6718 = vsel %vm2522, %v6672, 0.0
          %v6719 = vadd.f32 %v6717, %v6718
          %v6720 = vsel %vm2522, %v6674, 0.0
          %v6721 = vadd.f32 %v6719, %v6720
          %v6722 = vsel %vm2522, %v6676, 0.0
          %v6723 = vadd.f32 %v6721, %v6722
          %v6724 = vsel %vm2522, %v6678, 0.0
          %v6725 = vadd.f32 %v6723, %v6724
          %v6726 = vsel %vm2522, %v6680, 0.0
          %v6727 = vadd.f32 %v6725, %v6726
          %v6728 = vsel %vm2522, %v6682, 0.0
          %v6729 = vadd.f32 %v6727, %v6728
          %v6730 = vsel %vm2522, %v6684, 0.0
          %v6731 = vadd.f32 %v6729, %v6730
          %v6732 = vsel %vm2522, %v6686, 0.0
          %v6733 = vadd.f32 %v6731, %v6732
          %v6734 = vsel %vm2522, %v6688, 0.0
          %v6735 = vadd.f32 %v6733, %v6734
          %v6736 = vsel %vm2522, %v6690, 0.0
          %v6737 = vadd.f32 %v6735, %v6736
          %v6738 = vsel %vm2522, %v6692, 0.0
          %v6739 = vadd.f32 %v6737, %v6738
          %v6740 = vsel %vm2522, %v6694, 0.0
          %v6741 = vadd.f32 %v6739, %v6740
          %6742 = vadd.xlane.f32.xlu0 %v6741
          %v6743 = vpop.xlane.xlu0 %6742
          %v6744 = vrot.slane %v6743, 4
          %v6745 = vadd.f32 %v6743, %v6744
          %v6746 = vrot.slane %v6745, 2
          %v6747 = vadd.f32 %v6745, %v6746
          %v6748 = vrot.slane %v6747, 1
          %v6749 = vadd.f32 %v6747, %v6748
          %s6750 = vtos %v6749
          %s6751 = sadd.f32 %s6582, %s6750
          %v6752 = vadd.f32 %v6277, %v6278
          %6753 = vadd.xlane.f32.xlu0 %v6752
          %v6754 = vpop.xlane.xlu0 %6753
          %v6755 = vadd.f32 %v6279, %v6280
          %6756 = vadd.xlane.f32.xlu0 %v6755
          %v6757 = vpop.xlane.xlu0 %6756
          %v6758 = vadd.f32 %v6281, %v6282
          %6759 = vadd.xlane.f32.xlu0 %v6758
          %v6760 = vpop.xlane.xlu0 %6759
          %v6761 = vadd.f32 %v6283, %v6284
          %6762 = vadd.xlane.f32.xlu0 %v6761
          %v6763 = vpop.xlane.xlu0 %6762
          %v6764 = vadd.f32 %v6285, %v6286
          %6765 = vadd.xlane.f32.xlu0 %v6764
          %v6766 = vpop.xlane.xlu0 %6765
          %v6767 = vadd.f32 %v6287, %v6288
          %6768 = vadd.xlane.f32.xlu0 %v6767
          %v6769 = vpop.xlane.xlu0 %6768
          %v6770 = vadd.f32 %v6289, %v6290
          %6771 = vadd.xlane.f32.xlu0 %v6770
          %v6772 = vpop.xlane.xlu0 %6771
          %v6773 = vadd.f32 %v6291, %v6292
          %6774 = vadd.xlane.f32.xlu0 %v6773
          %v6775 = vpop.xlane.xlu0 %6774
          %v6776 = vadd.f32 %v6293, %v6294
          %6777 = vadd.xlane.f32.xlu0 %v6776
          %v6778 = vpop.xlane.xlu0 %6777
          %v6779 = vadd.f32 %v6295, %v6296
          %6780 = vadd.xlane.f32.xlu0 %v6779
          %v6781 = vpop.xlane.xlu0 %6780
          %v6782 = vadd.f32 %v6297, %v6298
          %6783 = vadd.xlane.f32.xlu0 %v6782
          %v6784 = vpop.xlane.xlu0 %6783
          %v6785 = vadd.f32 %v6299, %v6300
          %6786 = vadd.xlane.f32.xlu0 %v6785
          %v6787 = vpop.xlane.xlu0 %6786
          %v6788 = vadd.f32 %v6301, %v6302
          %6789 = vadd.xlane.f32.xlu0 %v6788
          %v6790 = vpop.xlane.xlu0 %6789
          %v6791 = vadd.f32 %v6303, %v6304
          %6792 = vadd.xlane.f32.xlu0 %v6791
          %v6793 = vpop.xlane.xlu0 %6792
          %v6794 = vadd.f32 %v6305, %v6306
          %6795 = vadd.xlane.f32.xlu0 %v6794
          %v6796 = vpop.xlane.xlu0 %6795
          %v6797 = vadd.f32 %v6307, %v6308
          %6798 = vadd.xlane.f32.xlu0 %v6797
          %v6799 = vpop.xlane.xlu0 %6798
          %v6800 = vmul.f32 %v460, %v6754
          %v6801 = vmul.f32 %v461, %v6757
          %v6802 = vmul.f32 %v462, %v6760
          %v6803 = vmul.f32 %v463, %v6763
          %v6804 = vmul.f32 %v464, %v6766
          %v6805 = vmul.f32 %v465, %v6769
          %v6806 = vmul.f32 %v466, %v6772
          %v6807 = vmul.f32 %v467, %v6775
          %v6808 = vmul.f32 %v468, %v6778
          %v6809 = vmul.f32 %v469, %v6781
          %v6810 = vmul.f32 %v470, %v6784
          %v6811 = vmul.f32 %v471, %v6787
          %v6812 = vmul.f32 %v472, %v6790
          %v6813 = vmul.f32 %v473, %v6793
          %v6814 = vmul.f32 %v474, %v6796
          %v6815 = vmul.f32 %v475, %v6799
          %6832 = vrot.lane.b32.xlu0 %v6800, 125
          %v6833 = vpop.permute.xlu0 %6832
          %6834 = vrot.lane.b32.xlu0 %v6801, 125
          %v6835 = vpop.permute.xlu0 %6834
          %6836 = vrot.lane.b32.xlu0 %v6802, 125
          %v6837 = vpop.permute.xlu0 %6836
          %6838 = vrot.lane.b32.xlu0 %v6803, 125
          %v6839 = vpop.permute.xlu0 %6838
          %6840 = vrot.lane.b32.xlu0 %v6804, 125
          %v6841 = vpop.permute.xlu0 %6840
          %6842 = vrot.lane.b32.xlu0 %v6805, 125
          %v6843 = vpop.permute.xlu0 %6842
          %6844 = vrot.lane.b32.xlu0 %v6806, 125
          %v6845 = vpop.permute.xlu0 %6844
          %6846 = vrot.lane.b32.xlu0 %v6807, 125
          %v6847 = vpop.permute.xlu0 %6846
          %6848 = vrot.lane.b32.xlu0 %v6808, 125
          %v6849 = vpop.permute.xlu0 %6848
          %6850 = vrot.lane.b32.xlu0 %v6809, 125
          %v6851 = vpop.permute.xlu0 %6850
          %6852 = vrot.lane.b32.xlu0 %v6810, 125
          %v6853 = vpop.permute.xlu0 %6852
          %6854 = vrot.lane.b32.xlu0 %v6811, 125
          %v6855 = vpop.permute.xlu0 %6854
          %6856 = vrot.lane.b32.xlu0 %v6812, 125
          %v6857 = vpop.permute.xlu0 %6856
          %6858 = vrot.lane.b32.xlu0 %v6813, 125
          %v6859 = vpop.permute.xlu0 %6858
          %6860 = vrot.lane.b32.xlu0 %v6814, 125
          %v6861 = vpop.permute.xlu0 %6860
          %6862 = vrot.lane.b32.xlu0 %v6815, 125
          %v6863 = vpop.permute.xlu0 %6862
          %v6880 = vsel %vm2522, %v6833, 0.0
          %v6881 = vsel %vm2522, %v6835, 0.0
          %v6882 = vadd.f32 %v6880, %v6881
          %v6883 = vsel %vm2522, %v6837, 0.0
          %v6884 = vadd.f32 %v6882, %v6883
          %v6885 = vsel %vm2522, %v6839, 0.0
          %v6886 = vadd.f32 %v6884, %v6885
          %v6887 = vsel %vm2522, %v6841, 0.0
          %v6888 = vadd.f32 %v6886, %v6887
          %v6889 = vsel %vm2522, %v6843, 0.0
          %v6890 = vadd.f32 %v6888, %v6889
          %v6891 = vsel %vm2522, %v6845, 0.0
          %v6892 = vadd.f32 %v6890, %v6891
          %v6893 = vsel %vm2522, %v6847, 0.0
          %v6894 = vadd.f32 %v6892, %v6893
          %v6895 = vsel %vm2522, %v6849, 0.0
          %v6896 = vadd.f32 %v6894, %v6895
          %v6897 = vsel %vm2522, %v6851, 0.0
          %v6898 = vadd.f32 %v6896, %v6897
          %v6899 = vsel %vm2522, %v6853, 0.0
          %v6900 = vadd.f32 %v6898, %v6899
          %v6901 = vsel %vm2522, %v6855, 0.0
          %v6902 = vadd.f32 %v6900, %v6901
          %v6903 = vsel %vm2522, %v6857, 0.0
          %v6904 = vadd.f32 %v6902, %v6903
          %v6905 = vsel %vm2522, %v6859, 0.0
          %v6906 = vadd.f32 %v6904, %v6905
          %v6907 = vsel %vm2522, %v6861, 0.0
          %v6908 = vadd.f32 %v6906, %v6907
          %v6909 = vsel %vm2522, %v6863, 0.0
          %v6910 = vadd.f32 %v6908, %v6909
          %6911 = vadd.xlane.f32.xlu0 %v6910
          %v6912 = vpop.xlane.xlu0 %6911
          %v6913 = vrot.slane %v6912, 4
          %v6914 = vadd.f32 %v6912, %v6913
          %v6915 = vrot.slane %v6914, 2
          %v6916 = vadd.f32 %v6914, %v6915
          %v6917 = vrot.slane %v6916, 1
          %v6918 = vadd.f32 %v6916, %v6917
          %s6919 = vtos %v6918
          %s6920 = sadd.f32 %s6751, %s6919
          %s6921 = smul.f32 %s6920, 0.33333334
          %s6922 = sadd.f32 %s5020, %s6921
          %v6925 = vcombine.low %v1680, %v1682
          %v6927 = vadd.f32 %v380, %v6925
          %s6928 = sadd.f32 %s381, %s6922
        $region61: #{tpu_custom_call.1} parent=55 // loop_footer
          %s379 = sadd.s32 1, %s375
        $region62: #{tpu_custom_call.1} parent=55 // loop_footer_branch
          %374 = sbr.rel target = $region58
        $region63: #{tpu_custom_call.1} parent=55 // loop_exit
          _
        %6929 = vst [vmem:[%s357] sm:$0xff] %v380
        %v6930 = vmul.f32 %v380, %v380
        %v6932 = vcombine.high %v6930, %v6930
        %vm6934 = vcmask 1043456
        %v6935 = vsel %vm6934, %v6930, 0.0
        %v6936 = vsel %vm6934, %v6932, 0.0
        %v6937 = vadd.f32 %v6935, %v6936
        %6938 = vadd.xlane.f32.xlu0 %v6937
        %v6939 = vpop.xlane.xlu0 %6938
        %v6940 = vrot.slane %v6939, 4
        %v6941 = vadd.f32 %v6939, %v6940
        %v6942 = vrot.slane %v6941, 2
        %v6943 = vadd.f32 %v6941, %v6942
        %v6944 = vrot.slane %v6943, 1
        %v6945 = vadd.f32 %v6943, %v6944
        %s6946 = vtos %v6945
        %s6947 = smul.f32 %s6946, -0.5
        %s6948 = ssub.f32 %s6947, 940.99304
        %s6949 = sadd.f32 %s6948, %s381
        %v6950 = vstv %s6949
        %v6951 = vadd.f32 %v6950, 0.0
        %6952 = vst [vmem:[%s364] sm:$0xff] %v6951
        %s6953 = sand.u32 %s230, 1
        %s6954 = scalar_lea.sflag [#allocation3], %s6953
        %s6955 = sand.u32 %s230, 1
        %s6956 = smul.addr %s6955, 8
        %s6957 = scalar_lea.vmem [#allocation2], %s6956
        %s6958 = sand.u32 %s256, 1
        %s6959 = scalar_lea.sflag [#allocation5], %s6958
        %s6960 = sand.u32 %s256, 1
        %s6961 = smul.addr %s6960, 8
        %s6962 = scalar_lea.vmem [#allocation4], %s6961
        // Predicated region
        $region64: #{tpu_custom_call.1} parent=55 // pred_check
          %p6963 = pneg %p240
        $region65: #{tpu_custom_call.1} parent=55 // pred_check_branch
          %6965 = sbr.rel (%p6963) target = $region67
        $region66: #{tpu_custom_call.1} parent=55 // pred_region
          %s6966 = smul.u32 2, %s28
          %s6968 = ssub.s32 128, 128
          %6969 = vsyncadd %s6954, %s6968
          %s6970 = smul.addr %s6966, 64
          %s6971 = scalar_lea.hbm %s9, %s6970
          %s6973 = sshll.u32 %s6957, 4
          %s6974 = int_to_ptr.vmem [resolvable:$true] %s6973
          %6976 = dma.vmem_to_hbm [thread:$0]  %s6974, 128, %s6971, %s6954
        $region67: #{tpu_custom_call.1} parent=55 // pred_fallthru
          _
        // Predicated region
        $region68: #{tpu_custom_call.1} parent=55 // pred_check
          %p6977 = pneg %p266
        $region69: #{tpu_custom_call.1} parent=55 // pred_check_branch
          %6979 = sbr.rel (%p6977) target = $region71
        $region70: #{tpu_custom_call.1} parent=55 // pred_region
          %s6981 = ssub.s32 128, 128
          %6982 = vsyncadd %s6959, %s6981
          %s6983 = smul.addr %s28, 128
          %s6984 = scalar_lea.hbm %s10, %s6983
          %s6986 = sshll.u32 %s6962, 4
          %s6987 = int_to_ptr.vmem [resolvable:$true] %s6986
          %6989 = dma.vmem_to_hbm [thread:$0]  %s6987, 128, %s6984, %s6959
        $region71: #{tpu_custom_call.1} parent=55 // pred_fallthru
          _
      $region56: #{tpu_custom_call.1} parent=5 // pred_fallthru
        _
      %p6990 = scmp.le.s32.totalorder 2, %s23
      // Predicated region
      $region72: #{tpu_custom_call.1} parent=5 // pred_check
        %p6991 = pneg %p6990
      $region73: #{tpu_custom_call.1} parent=5 // pred_check_branch
        %6993 = sbr.rel (%p6991) target = $region75
      $region74: #{tpu_custom_call.1} parent=5 // pred_region
        %s6994 = ssub.s32 %s23, 2
        // Predicated region
        $region76: #{tpu_custom_call.1} parent=74 // pred_check
          %p6995 = pneg %p246
        $region77: #{tpu_custom_call.1} parent=74 // pred_check_branch
          %6997 = sbr.rel (%p6995) target = $region79
        $region78: #{tpu_custom_call.1} parent=74 // pred_region
          %s6998 = sand.u32 %s231, 1
          %s6999 = scalar_lea.sflag [#allocation3], %s6998
          %s7000 = sand.u32 %s231, 1
          %s7001 = smul.addr %s7000, 8
          %s7002 = scalar_lea.vmem [#allocation2], %s7001
          %7003 = dma.done %s6999, 128
        $region79: #{tpu_custom_call.1} parent=74 // pred_fallthru
          _
        // Predicated region
        $region80: #{tpu_custom_call.1} parent=74 // pred_check
          %p7004 = pneg %p272
        $region81: #{tpu_custom_call.1} parent=74 // pred_check_branch
          %7006 = sbr.rel (%p7004) target = $region83
        $region82: #{tpu_custom_call.1} parent=74 // pred_region
          %s7007 = sand.u32 %s257, 1
          %s7008 = scalar_lea.sflag [#allocation5], %s7007
          %s7009 = sand.u32 %s257, 1
          %s7010 = smul.addr %s7009, 8
          %s7011 = scalar_lea.vmem [#allocation4], %s7010
          %7012 = dma.done %s7008, 128
        $region83: #{tpu_custom_call.1} parent=74 // pred_fallthru
          _
      $region75: #{tpu_custom_call.1} parent=5 // pred_fallthru
        _
    $region6: #{tpu_custom_call.1} parent=1 // loop_footer
      %s27 = sadd.s32 1, %s23
    $region7: #{tpu_custom_call.1} parent=1 // loop_footer_branch
      %22 = sbr.rel target = $region3
    $region8: #{tpu_custom_call.1} parent=1 // loop_exit
      _
    %7013 = vsyncpa [#allocation3], 1
    %s7014 = scalar_lea.sflag [#allocation3], 1
    %7015 = vsyncpa %s7014, 1
    %7016 = vsyncpa [#allocation5], 1
    %s7017 = scalar_lea.sflag [#allocation5], 1
    %7018 = vsyncpa %s7017, 1

</llo_original>
